<compile_context>
chip_gen: v7x
topology: tpu7x:2x2x1
jax: 0.10.0
libtpu: 0.0.40
codegen_flags: <defaults>
</compile_context>

<pallas_src>
import functools
import math

import jax
import jax.numpy as jnp
from jax.experimental import pallas as pl
from jax.experimental.pallas import tpu as pltpu


# ------------------------------ small helpers -------------------------------

def _round_up(x, m):
    return (x + m - 1) // m * m


def _pick_batch_tile(np_, s, d, h, do, budget_bytes=8 * 1024 * 1024):
    """Largest multiple-of-8 divisor of np_ whose per-block VMEM estimate fits."""
    def est(tn):
        io = 2 * 4 * s * tn * (_round_up(d, 128) + _round_up(do, 128))      # x,y (double-buffered)
        scr = 4 * s * tn * (_round_up(4 * h, 128) + _round_up(h, 128))      # xw + hseq scratch
        scr += 2 * 4 * tn * _round_up(h, 128)                               # h, c scratch
        w = 2 * 4 * (_round_up(4 * h, 128) * (d + h + 2) + _round_up(do, 128) * (h + 1))
        return io + scr + w
    t = np_
    while t >= 8:
        if np_ % t == 0 and t % 8 == 0 and est(t) <= budget_bytes:
            return t
        t -= 8
    return 8


def _pick_row_tile(r, t_dim, c_dim, budget_bytes=6 * 1024 * 1024):
    row_bytes = 4 * _round_up(t_dim, 8) * _round_up(c_dim, 128)
    per_row = 4 * 2 * row_bytes + 2 * 2 * 8 * 128 * 4
    cap = max(1, budget_bytes // per_row)
    for t in range(min(cap, r), 0, -1):
        if r % t == 0:
            return t
    return 1


def _pick_col_tile(l_dim, m, budget_bytes=6 * 1024 * 1024):
    if m % 128 != 0:
        return m
    col128 = 3 * 2 * 4 * _round_up(l_dim, 8) * 128
    cap = max(1, budget_bytes // col128) * 128
    t = min(cap, m) // 128 * 128
    while t >= 128:
        if m % t == 0:
            return t
        t -= 128
    return m


# ----------------------------- Pallas kernels ------------------------------

def lstm_kernel(x_ref, wih_ref, whh_ref, b_ref, wfc_ref, bfc_ref, y_ref,
                xw_scr, hseq_scr, h_scr, c_scr, *, reverse):
    """Single-direction LSTM over a time-major block with a fused FC epilogue.

    x_ref   : (S, TN, D)   input block (time-major; TN % 8 == 0)
    wih_ref : (D, 4H)      packed input->gate weights (gate order i, f, g, o)
    whh_ref : (H, 4H)      packed hidden->gate weights
    b_ref   : (1, 4H)      packed gate bias (b_ih + b_hh)
    wfc_ref : (H, Do)      FC weight slice applied to this direction's output
    bfc_ref : (1, Do)      FC bias (zeros for the backward direction)
    y_ref   : (S, TN, Do)  output block = lstm_hidden @ wfc + bfc
    xw_scr  : (S, TN, 4H)  f32 scratch: precomputed input projections
    hseq_scr: (S, TN, H)   f32 scratch: per-step hidden states
    h_scr, c_scr : (TN, H) f32 scratch: recurrent state
    """
    S, TN, D = x_ref.shape
    H = whh_ref.shape[0]
    Do = y_ref.shape[2]

    # (a) Input projection for the whole block: one large MXU matmul hoisted
    #     out of the serial recurrence (bias folded in once).
    x_all = x_ref[...].reshape(S * TN, D)
    xw = jnp.dot(x_all, wih_ref[...], preferred_element_type=jnp.float32) + b_ref[...]
    xw_scr[...] = xw.reshape(S, TN, 4 * H)

    # (b) Recurrence: only one fused-gate matmul (h @ W_hh) per step.
    h_scr[...] = jnp.zeros_like(h_scr)
    c_scr[...] = jnp.zeros_like(c_scr)
    whh = whh_ref[...]                      # hoisted weight read

    def step(t, carry):
        s = (S - 1 - t) if reverse else t   # in-kernel time reversal for bwd dir
        pre = xw_scr[s] + jnp.dot(h_scr[...], whh,
                                  preferred_element_type=jnp.float32)   # (TN, 4H)
        i = jax.nn.sigmoid(pre[:, 0:H])
        f = jax.nn.sigmoid(pre[:, H:2 * H])
        g = jnp.tanh(pre[:, 2 * H:3 * H])
        o = jax.nn.sigmoid(pre[:, 3 * H:4 * H])
        c = f * c_scr[...] + i * g
        h = o * jnp.tanh(c)
        c_scr[...] = c
        h_scr[...] = h
        hseq_scr[s] = h
        return carry

    jax.lax.fori_loop(0, S, step, 0, unroll=True if S <= 32 else 4)

    # (c) Fused FC epilogue: one large matmul over all timesteps at once.
    hs = hseq_scr[...].reshape(S * TN, H)
    z = jnp.dot(hs, wfc_ref[...], preferred_element_type=jnp.float32) + bfc_ref[...]
    y_ref[...] = z.reshape(S, TN, Do).astype(y_ref.dtype)


def bi_rownorm_add_kernel(zf_ref, zb_ref, res_ref, g_ref, b_ref, o_ref, *, eps):
    """z = zf + zb; InstanceNorm of each row-instance over its (T, C) slab,
    per-row affine, fused residual add.  Blocks: (tr, T, C); g/b: (tr, 1, 1)."""
    z = zf_ref[...] + zb_ref[...]
    n = z.shape[1] * z.shape[2]
    mean = jnp.sum(jnp.sum(z, axis=2, keepdims=True), axis=1, keepdims=True) / n
    d = z - mean
    var = jnp.sum(jnp.sum(d * d, axis=2, keepdims=True), axis=1, keepdims=True) / n
    zn = d * jax.lax.rsqrt(var + eps)
    o_ref[...] = (res_ref[...] + zn * g_ref[...] + b_ref[...]).astype(o_ref.dtype)


def colnorm_add_kernel(z_ref, res_ref, g_ref, b_ref, o_ref, *, eps):
    """InstanceNorm of each column over the whole leading axis, per-column
    affine, fused residual add.  Blocks: (L, tc); g/b: (1, tc)."""
    z = z_ref[...]
    l = z.shape[0]
    mean = jnp.sum(z, axis=0, keepdims=True) / l
    d = z - mean
    var = jnp.sum(d * d, axis=0, keepdims=True) / l
    zn = d * jax.lax.rsqrt(var + eps)
    o_ref[...] = (res_ref[...] + zn * g_ref[...] + b_ref[...]).astype(o_ref.dtype)


# ------------------------------ kernel wrappers -----------------------------

def run_lstm_fc(x_seq, w_ih, w_hh, b, fc_w, fc_b, *, reverse=False):
    """y[s] = lstm(x)[s] @ fc_w + fc_b.  When reverse=True the LSTM runs
    backwards in time but outputs stay in natural order (PyTorch biLSTM)."""
    S, N, D = x_seq.shape
    H = w_hh.shape[0]
    Do = fc_w.shape[1]

    # Pad the independent batch axis to a multiple of 8 so in-kernel reshapes
    # that merge (S, tile) leading dims are layout-free.
    pad = (-N) % 8
    Np = N + pad
    if pad:
        x_seq = jnp.pad(x_seq, ((0, 0), (0, pad), (0, 0)))

    tn = _pick_batch_tile(Np, S, D, H, Do)
    out = pl.pallas_call(
        functools.partial(lstm_kernel, reverse=reverse),
        out_shape=jax.ShapeDtypeStruct((S, Np, Do), jnp.float32),
        grid=(Np // tn,),
        in_specs=[
            pl.BlockSpec((S, tn, D), lambda i: (0, i, 0)),
            pl.BlockSpec((D, 4 * H), lambda i: (0, 0)),
            pl.BlockSpec((H, 4 * H), lambda i: (0, 0)),
            pl.BlockSpec((1, 4 * H), lambda i: (0, 0)),
            pl.BlockSpec((H, Do), lambda i: (0, 0)),
            pl.BlockSpec((1, Do), lambda i: (0, 0)),
        ],
        out_specs=pl.BlockSpec((S, tn, Do), lambda i: (0, i, 0)),
        scratch_shapes=[
            pltpu.VMEM((S, tn, 4 * H), jnp.float32),
            pltpu.VMEM((S, tn, H), jnp.float32),
            pltpu.VMEM((tn, H), jnp.float32),
            pltpu.VMEM((tn, H), jnp.float32),
        ],
        compiler_params=pltpu.CompilerParams(dimension_semantics=("parallel",)),
    )(x_seq, w_ih, w_hh, b, fc_w, fc_b.reshape(1, Do))
    if pad:
        out = out[:, :N, :]
    return out


def run_bi_rownorm_add(zf, zb, res, gamma_rows, beta_rows, *, eps=1e-8):
    R, T, C = zf.shape
    tr = _pick_row_tile(R, T, C)
    spec3 = pl.BlockSpec((tr, T, C), lambda i: (i, 0, 0))
    spec1 = pl.BlockSpec((tr, 1, 1), lambda i: (i, 0, 0))
    return pl.pallas_call(
        functools.partial(bi_rownorm_add_kernel, eps=eps),
        out_shape=jax.ShapeDtypeStruct((R, T, C), jnp.float32),
        grid=(R // tr,),
        in_specs=[spec3, spec3, spec3, spec1, spec1],
        out_specs=spec3,
        compiler_params=pltpu.CompilerParams(dimension_semantics=("parallel",)),
    )(zf, zb, res, gamma_rows.reshape(R, 1, 1), beta_rows.reshape(R, 1, 1))


def run_colnorm_add(z, res, gamma_cols, beta_cols, *, eps=1e-8):
    L, M = z.shape
    tc = _pick_col_tile(L, M)
    spec = pl.BlockSpec((L, tc), lambda j: (0, j))
    spec1 = pl.BlockSpec((1, tc), lambda j: (0, j))
    return pl.pallas_call(
        functools.partial(colnorm_add_kernel, eps=eps),
        out_shape=jax.ShapeDtypeStruct((L, M), jnp.float32),
        grid=(M // tc,),
        in_specs=[spec, spec, spec1, spec1],
        out_specs=spec,
        compiler_params=pltpu.CompilerParams(dimension_semantics=("parallel",)),
    )(z, res, gamma_cols.reshape(1, M), beta_cols.reshape(1, M))


# ------------------------------ DPRNN forward -------------------------------

def dprnn_forward(x, params, *, num_units, width):
    """x: (B, C=num_units, T, F=width) float32 -> (B, C, T, F)."""
    B, C, T, F = x.shape
    assert C == num_units and F == width
    H = C // 2

    # -------- intra path: bidirectional LSTM along the F (width) axis -------
    # canonical intra layout: (F, B, T, C)  ==  time-major (F, B*T, C)
    seq_i = jnp.transpose(x, (3, 0, 2, 1)).reshape(F, B * T, C)          # transpose 1/3
    zf = run_lstm_fc(seq_i, params["intra_wih_f"], params["intra_whh_f"],
                     params["intra_b_f"], params["intra_fc_w"][:H],
                     params["intra_fc_b"], reverse=False)
    zb = run_lstm_fc(seq_i, params["intra_wih_b"], params["intra_whh_b"],
                     params["intra_b_b"], params["intra_fc_w"][H:],
                     jnp.zeros_like(params["intra_fc_b"]), reverse=True)
    # zf + zb == concat(y_fwd, y_bwd) @ intra_fc_w + intra_fc_b
    # InstanceNorm2d(width): instance = (f, b) row, stats over (T, C),
    # affine per f, fused with the residual add against the input.
    gi = jnp.repeat(params["intra_ln_w"], B)                             # row f*B+b -> gamma[f]
    bi = jnp.repeat(params["intra_ln_b"], B)
    intra = run_bi_rownorm_add(zf.reshape(F * B, T, C),
                               zb.reshape(F * B, T, C),
                               seq_i.reshape(F * B, T, C), gi, bi)       # (F*B, T, C)

    # -------- inter path: unidirectional LSTM along the T (time) axis -------
    # canonical inter layout: (T, F, B, C)  ==  time-major (T, F*B, C)
    seq_t = jnp.transpose(intra.reshape(F, B, T, C),
                          (2, 0, 1, 3)).reshape(T, F * B, C)             # transpose 2/3
    z2 = run_lstm_fc(seq_t, params["inter_wih"], params["inter_whh"],
                     params["inter_b"], params["inter_fc_w"],
                     params["inter_fc_b"], reverse=False)                # (T, F*B, C)
    # InstanceNorm2d(channel): instance = (b, c) column of the (T*F, B*C)
    # flattening, stats over (T, F), affine per c, fused residual add.
    gt = jnp.tile(params["inter_ln_w"], B)                               # col b*C+c -> gamma[c]
    bt = jnp.tile(params["inter_ln_b"], B)
    out2d = run_colnorm_add(z2.reshape(T * F, B * C),
                            seq_t.reshape(T * F, B * C), gt, bt)         # (T*F, B*C)
    return jnp.transpose(out2d.reshape(T, F, B, C), (2, 3, 0, 1))        # transpose 3/3


# ----------------------------- parameter setup ------------------------------

def init_params(key, num_units, width):
    C = num_units
    H = C // 2
    ks = jax.random.split(key, 16)

    def u(k, shape, scale):
        return jax.random.uniform(k, shape, jnp.float32, -scale, scale)

    s_h = 1.0 / math.sqrt(H)
    s_c = 1.0 / math.sqrt(C)
    return {
        # intra biLSTM (hidden = C // 2); gates packed along lanes (i, f, g, o)
        "intra_wih_f": u(ks[0], (C, 4 * H), s_h),
        "intra_whh_f": u(ks[1], (H, 4 * H), s_h),
        "intra_b_f":   u(ks[2], (1, 4 * H), s_h),
        "intra_wih_b": u(ks[3], (C, 4 * H), s_h),
        "intra_whh_b": u(ks[4], (H, 4 * H), s_h),
        "intra_b_b":   u(ks[5], (1, 4 * H), s_h),
        # intra FC (stored (in, out)) and InstanceNorm2d(width) affine
        "intra_fc_w":  u(ks[6], (C, C), s_c),
        "intra_fc_b":  u(ks[7], (C,), s_c),
        "intra_ln_w":  1.0 + 0.1 * jax.random.normal(ks[8], (width,), jnp.float32),
        "intra_ln_b":  0.1 * jax.random.normal(ks[9], (width,), jnp.float32),
        # inter unidirectional LSTM (hidden = C)
        "inter_wih":   u(ks[10], (C, 4 * C), s_c),
        "inter_whh":   u(ks[11], (C, 4 * C), s_c),
        "inter_b":     u(ks[12], (1, 4 * C), s_c),
        # inter FC and InstanceNorm2d(channel) affine
        "inter_fc_w":  u(ks[13], (C, C), s_c),
        "inter_fc_b":  u(ks[14], (C,), s_c),
        "inter_ln_w":  1.0 + 0.1 * jax.random.normal(ks[15], (C,), jnp.float32),
        "inter_ln_b":  jnp.zeros((C,), jnp.float32),
    }


# --------------------------- pure-JAX reference ------------------------------

_PREC = jax.lax.Precision.HIGHEST


def _ref_lstm(seq, wih, whh, b, *, reverse=False):
    S, N, _ = seq.shape
    H = whh.shape[0]
    xs = seq[::-1] if reverse else seq

    def step(carry, x_t):
        h, c = carry
        pre = (jnp.dot(x_t, wih, precision=_PREC)
               + jnp.dot(h, whh, precision=_PREC) + b)
        i = jax.nn.sigmoid(pre[:, 0:H])
        f = jax.nn.sigmoid(pre[:, H:2 * H])
        g = jnp.tanh(pre[:, 2 * H:3 * H])
        o = jax.nn.sigmoid(pre[:, 3 * H:4 * H])
        c = f * c + i * g
        h = o * jnp.tanh(c)
        return (h, c), h

    init = (jnp.zeros((N, H), jnp.float32), jnp.zeros((N, H), jnp.float32))
    _, ys = jax.lax.scan(step, init, xs)
    return ys[::-1] if reverse else ys


def dprnn_reference(x, params):
    """Pure-JAX re-implementation mirroring the PyTorch module line by line."""
    B, C, T, F = x.shape
    eps = 1e-8
    xp = jnp.transpose(x, (0, 2, 3, 1))                                  # (B,T,F,C)
    seq = jnp.transpose(xp.reshape(B * T, F, C), (1, 0, 2))              # (F, B*T, C)
    yf = _ref_lstm(seq, params["intra_wih_f"], params["intra_whh_f"], params["intra_b_f"])
    yb = _ref_lstm(seq, params["intra_wih_b"], params["intra_whh_b"], params["intra_b_b"],
                   reverse=True)
    y = jnp.transpose(jnp.concatenate([yf, yb], axis=-1), (1, 0, 2))     # (B*T, F, C)
    dense = jnp.dot(y, params["intra_fc_w"], precision=_PREC) + params["intra_fc_b"]
    z = jnp.transpose(dense.reshape(B, T, F, C), (0, 2, 1, 3))           # (B,F,T,C)
    mu = jnp.mean(z, axis=(2, 3), keepdims=True)
    var = jnp.mean((z - mu) ** 2, axis=(2, 3), keepdims=True)
    zn = (z - mu) / jnp.sqrt(var + eps)
    zn = zn * params["intra_ln_w"][None, :, None, None] + params["intra_ln_b"][None, :, None, None]
    intra_out = xp + jnp.transpose(zn, (0, 2, 1, 3))                     # (B,T,F,C)

    seq2 = jnp.transpose(jnp.transpose(intra_out, (0, 2, 1, 3)).reshape(B * F, T, C),
                         (1, 0, 2))                                      # (T, B*F, C)
    y2 = jnp.transpose(_ref_lstm(seq2, params["inter_wih"], params["inter_whh"],
                                 params["inter_b"]), (1, 0, 2))          # (B*F, T, C)
    dense2 = jnp.dot(y2, params["inter_fc_w"], precision=_PREC) + params["inter_fc_b"]
    z2 = jnp.transpose(dense2.reshape(B, F, T, C), (0, 3, 2, 1))         # (B,C,T,F)
    mu2 = jnp.mean(z2, axis=(2, 3), keepdims=True)
    var2 = jnp.mean((z2 - mu2) ** 2, axis=(2, 3), keepdims=True)
    z2n = (z2 - mu2) / jnp.sqrt(var2 + eps)
    z2n = z2n * params["inter_ln_w"][None, :, None, None] + params["inter_ln_b"][None, :, None, None]
    inter_out = intra_out + jnp.transpose(z2n, (0, 2, 3, 1))             # (B,T,F,C)
    return jnp.transpose(inter_out, (0, 3, 1, 2))                        # (B,C,T,F)


# ---------------------------------- main -------------------------------------

if __name__ == "__main__":
    B, C, T, F = 2, 16, 4, 8        # batch, numUnits (=channel arg), time, width
    num_units, width = C, F

    key = jax.random.PRNGKey(0)
    kx, kp = jax.random.split(key)
    x = jax.random.normal(kx, (B, C, T, F), jnp.float32)
    params = init_params(kp, num_units, width)

    fwd = jax.jit(functools.partial(dprnn_forward, num_units=num_units, width=width))
    out = jax.block_until_ready(fwd(x, params))

    assert out.shape == (B, C, T, F)
    assert bool(jnp.all(jnp.isfinite(out)))

    # Correctness check vs. a pure-JAX reference (tolerance accounts for MXU
    # matmul precision differences between Pallas/Mosaic and XLA).
    ref = jax.block_until_ready(jax.jit(dprnn_reference)(x, params))
    max_err = float(jnp.max(jnp.abs(out - ref)))
    assert max_err < 5e-2, f"mismatch vs pure-JAX reference: {max_err}"

    print("KERNEL_OK")
</pallas_src>

<mosaic_0001>
module attributes {stable_mosaic.version = 11 : i64} {
  func.func @lstm_kernel(%arg0: i32, %arg1: memref<8x8x16xf32, #tpu.memory_space<vmem>>, %arg2: memref<16x32xf32, #tpu.memory_space<vmem>>, %arg3: memref<8x32xf32, #tpu.memory_space<vmem>>, %arg4: memref<1x32xf32, #tpu.memory_space<vmem>>, %arg5: memref<8x16xf32, #tpu.memory_space<vmem>>, %arg6: memref<1x16xf32, #tpu.memory_space<vmem>>, %arg7: memref<8x8x16xf32, #tpu.memory_space<vmem>>, %arg8: memref<8x8x32xf32, #tpu.memory_space<vmem>>, %arg9: memref<8x8x8xf32, #tpu.memory_space<vmem>>, %arg10: memref<8x8xf32, #tpu.memory_space<vmem>>, %arg11: memref<8x8xf32, #tpu.memory_space<vmem>>) attributes {dimension_semantics = [#tpu.dimension_semantics<parallel>], iteration_bounds = array<i64: 1>, scalar_prefetch = 0 : i64, scratch_operands = 4 : i64, tpu.core_type = #tpu.core_type<tc>, window_params = [{transform_indices = @transform_0, window_bounds = array<i64: 8, 8, 16>}, {pipeline_mode = #tpu.pipeline_mode<synchronous>, transform_indices = @transform_1, window_bounds = array<i64: 16, 32>}, {pipeline_mode = #tpu.pipeline_mode<synchronous>, transform_indices = @transform_2, window_bounds = array<i64: 8, 32>}, {pipeline_mode = #tpu.pipeline_mode<synchronous>, transform_indices = @transform_3, window_bounds = array<i64: 1, 32>}, {pipeline_mode = #tpu.pipeline_mode<synchronous>, transform_indices = @transform_4, window_bounds = array<i64: 8, 16>}, {pipeline_mode = #tpu.pipeline_mode<synchronous>, transform_indices = @transform_5, window_bounds = array<i64: 1, 16>}, {transform_indices = @transform_6, window_bounds = array<i64: 8, 8, 16>}]} {
    %c0 = arith.constant 0 : index
    %c0_0 = arith.constant 0 : index
    %c0_1 = arith.constant 0 : index
    %0 = vector.load %arg1[%c0, %c0_0, %c0_1] : memref<8x8x16xf32, #tpu.memory_space<vmem>>, vector<8x8x16xf32>
    %1 = vector.shape_cast %0 : vector<8x8x16xf32> to vector<64x16xf32>
    %c0_2 = arith.constant 0 : index
    %c0_3 = arith.constant 0 : index
    %2 = vector.load %arg2[%c0_2, %c0_3] : memref<16x32xf32, #tpu.memory_space<vmem>>, vector<16x32xf32>
    %cst = arith.constant dense<0.000000e+00> : vector<64x32xf32>
    %3 = tpu.matmul %1, %2, %cst {dimension_numbers = #tpu.dot_dimension_numbers<[1], [0], [0], [1], [0, 0, 1, 1], [], []>} : vector<64x16xf32>, vector<16x32xf32>, vector<64x32xf32> -> vector<64x32xf32>
    %c0_4 = arith.constant 0 : index
    %c0_5 = arith.constant 0 : index
    %4 = vector.load %arg4[%c0_4, %c0_5] : memref<1x32xf32, #tpu.memory_space<vmem>>, vector<1x32xf32>
    %5 = vector.broadcast %4 : vector<1x32xf32> to vector<64x32xf32>
    %6 = arith.addf %3, %5 : vector<64x32xf32>
    %7 = vector.shape_cast %6 : vector<64x32xf32> to vector<8x8x32xf32>
    %c0_6 = arith.constant 0 : index
    %c0_7 = arith.constant 0 : index
    %c0_8 = arith.constant 0 : index
    %8 = vector.load %arg8[%c0_6, %c0_7, %c0_8] : memref<8x8x32xf32, #tpu.memory_space<vmem>>, vector<8x8x32xf32>
    tpu.vector_store %arg8[%c0_6, %c0_7, %c0_8], %7 {strides = array<i32>} : memref<8x8x32xf32, #tpu.memory_space<vmem>>, vector<8x8x32xf32>,
    %cst_9 = arith.constant 0.000000e+00 : f32
    %9 = vector.broadcast %cst_9 : f32 to vector<8x8xf32>
    %c0_10 = arith.constant 0 : index
    %c0_11 = arith.constant 0 : index
    %10 = vector.load %arg10[%c0_10, %c0_11] : memref<8x8xf32, #tpu.memory_space<vmem>>, vector<8x8xf32>
    tpu.vector_store %arg10[%c0_10, %c0_11], %9 {strides = array<i32>} : memref<8x8xf32, #tpu.memory_space<vmem>>, vector<8x8xf32>,
    %cst_12 = arith.constant 0.000000e+00 : f32
    %11 = vector.broadcast %cst_12 : f32 to vector<8x8xf32>
    %c0_13 = arith.constant 0 : index
    %c0_14 = arith.constant 0 : index
    %12 = vector.load %arg11[%c0_13, %c0_14] : memref<8x8xf32, #tpu.memory_space<vmem>>, vector<8x8xf32>
    tpu.vector_store %arg11[%c0_13, %c0_14], %11 {strides = array<i32>} : memref<8x8xf32, #tpu.memory_space<vmem>>, vector<8x8xf32>,
    %c0_15 = arith.constant 0 : index
    %c0_16 = arith.constant 0 : index
    %13 = vector.load %arg3[%c0_15, %c0_16] : memref<8x32xf32, #tpu.memory_space<vmem>>, vector<8x32xf32>
    %c0_i32 = arith.constant 0 : i32
    %c7_i32 = arith.constant 7 : i32
    %14 = arith.subi %c7_i32, %c0_i32 : i32
    %15 = arith.index_cast %14 : i32 to index
    %c0_17 = arith.constant 0 : index
    %c0_18 = arith.constant 0 : index
    %16 = vector.load %arg8[%15, %c0_17, %c0_18] : memref<8x8x32xf32, #tpu.memory_space<vmem>>, vector<1x8x32xf32>
    %17 = vector.shape_cast %16 : vector<1x8x32xf32> to vector<8x32xf32>
    %c0_19 = arith.constant 0 : index
    %c0_20 = arith.constant 0 : index
    %18 = vector.load %arg10[%c0_19, %c0_20] : memref<8x8xf32, #tpu.memory_space<vmem>>, vector<8x8xf32>
    %cst_21 = arith.constant dense<0.000000e+00> : vector<8x32xf32>
    %19 = tpu.matmul %18, %13, %cst_21 {dimension_numbers = #tpu.dot_dimension_numbers<[1], [0], [0], [1], [0, 0, 1, 1], [], []>} : vector<8x8xf32>, vector<8x32xf32>, vector<8x32xf32> -> vector<8x32xf32>
    %20 = arith.addf %17, %19 : vector<8x32xf32>
    %21 = vector.extract_strided_slice %20 {offsets = [0, 0], sizes = [8, 8], strides = [1, 1]} : vector<8x32xf32> to vector<8x8xf32>
    %22 = arith.negf %21 : vector<8x8xf32>
    %23 = math.exp %22 : vector<8x8xf32>
    %cst_22 = arith.constant 1.000000e+00 : f32
    %24 = vector.broadcast %cst_22 : f32 to vector<8x8xf32>
    %25 = arith.addf %24, %23 : vector<8x8xf32>
    %26 = arith.divf %24, %25 : vector<8x8xf32>
    %27 = vector.extract_strided_slice %20 {offsets = [0, 8], sizes = [8, 8], strides = [1, 1]} : vector<8x32xf32> to vector<8x8xf32>
    %28 = arith.negf %27 : vector<8x8xf32>
    %29 = math.exp %28 : vector<8x8xf32>
    %cst_23 = arith.constant 1.000000e+00 : f32
    %30 = vector.broadcast %cst_23 : f32 to vector<8x8xf32>
    %31 = arith.addf %30, %29 : vector<8x8xf32>
    %32 = arith.divf %30, %31 : vector<8x8xf32>
    %33 = vector.extract_strided_slice %20 {offsets = [0, 16], sizes = [8, 8], strides = [1, 1]} : vector<8x32xf32> to vector<8x8xf32>
    %34 = math.tanh %33 : vector<8x8xf32>
    %35 = vector.extract_strided_slice %20 {offsets = [0, 24], sizes = [8, 8], strides = [1, 1]} : vector<8x32xf32> to vector<8x8xf32>
    %36 = arith.negf %35 : vector<8x8xf32>
    %37 = math.exp %36 : vector<8x8xf32>
    %cst_24 = arith.constant 1.000000e+00 : f32
    %38 = vector.broadcast %cst_24 : f32 to vector<8x8xf32>
    %39 = arith.addf %38, %37 : vector<8x8xf32>
    %40 = arith.divf %38, %39 : vector<8x8xf32>
    %c0_25 = arith.constant 0 : index
    %c0_26 = arith.constant 0 : index
    %41 = vector.load %arg11[%c0_25, %c0_26] : memref<8x8xf32, #tpu.memory_space<vmem>>, vector<8x8xf32>
    %42 = arith.mulf %32, %41 : vector<8x8xf32>
    %43 = arith.mulf %26, %34 : vector<8x8xf32>
    %44 = arith.addf %42, %43 : vector<8x8xf32>
    %45 = math.tanh %44 : vector<8x8xf32>
    %46 = arith.mulf %40, %45 : vector<8x8xf32>
    %c0_27 = arith.constant 0 : index
    %c0_28 = arith.constant 0 : index
    %47 = vector.load %arg11[%c0_27, %c0_28] : memref<8x8xf32, #tpu.memory_space<vmem>>, vector<8x8xf32>
    tpu.vector_store %arg11[%c0_27, %c0_28], %44 {strides = array<i32>} : memref<8x8xf32, #tpu.memory_space<vmem>>, vector<8x8xf32>,
    %c0_29 = arith.constant 0 : index
    %c0_30 = arith.constant 0 : index
    %48 = vector.load %arg10[%c0_29, %c0_30] : memref<8x8xf32, #tpu.memory_space<vmem>>, vector<8x8xf32>
    tpu.vector_store %arg10[%c0_29, %c0_30], %46 {strides = array<i32>} : memref<8x8xf32, #tpu.memory_space<vmem>>, vector<8x8xf32>,
    %49 = arith.index_cast %14 : i32 to index
    %c0_31 = arith.constant 0 : index
    %c0_32 = arith.constant 0 : index
    %50 = vector.load %arg9[%49, %c0_31, %c0_32] : memref<8x8x8xf32, #tpu.memory_space<vmem>>, vector<1x8x8xf32>
    %51 = vector.shape_cast %50 : vector<1x8x8xf32> to vector<8x8xf32>
    %52 = vector.shape_cast %46 : vector<8x8xf32> to vector<1x8x8xf32>
    tpu.vector_store %arg9[%49, %c0_31, %c0_32], %52 {strides = array<i32>} : memref<8x8x8xf32, #tpu.memory_space<vmem>>, vector<1x8x8xf32>,
    %c1_i32 = arith.constant 1 : i32
    %c7_i32_33 = arith.constant 7 : i32
    %53 = arith.subi %c7_i32_33, %c1_i32 : i32
    %54 = arith.index_cast %53 : i32 to index
    %c0_34 = arith.constant 0 : index
    %c0_35 = arith.constant 0 : index
    %55 = vector.load %arg8[%54, %c0_34, %c0_35] : memref<8x8x32xf32, #tpu.memory_space<vmem>>, vector<1x8x32xf32>
    %56 = vector.shape_cast %55 : vector<1x8x32xf32> to vector<8x32xf32>
    %c0_36 = arith.constant 0 : index
    %c0_37 = arith.constant 0 : index
    %57 = vector.load %arg10[%c0_36, %c0_37] : memref<8x8xf32, #tpu.memory_space<vmem>>, vector<8x8xf32>
    %cst_38 = arith.constant dense<0.000000e+00> : vector<8x32xf32>
    %58 = tpu.matmul %57, %13, %cst_38 {dimension_numbers = #tpu.dot_dimension_numbers<[1], [0], [0], [1], [0, 0, 1, 1], [], []>} : vector<8x8xf32>, vector<8x32xf32>, vector<8x32xf32> -> vector<8x32xf32>
    %59 = arith.addf %56, %58 : vector<8x32xf32>
    %60 = vector.extract_strided_slice %59 {offsets = [0, 0], sizes = [8, 8], strides = [1, 1]} : vector<8x32xf32> to vector<8x8xf32>
    %61 = arith.negf %60 : vector<8x8xf32>
    %62 = math.exp %61 : vector<8x8xf32>
    %cst_39 = arith.constant 1.000000e+00 : f32
    %63 = vector.broadcast %cst_39 : f32 to vector<8x8xf32>
    %64 = arith.addf %63, %62 : vector<8x8xf32>
    %65 = arith.divf %63, %64 : vector<8x8xf32>
    %66 = vector.extract_strided_slice %59 {offsets = [0, 8], sizes = [8, 8], strides = [1, 1]} : vector<8x32xf32> to vector<8x8xf32>
    %67 = arith.negf %66 : vector<8x8xf32>
    %68 = math.exp %67 : vector<8x8xf32>
    %cst_40 = arith.constant 1.000000e+00 : f32
    %69 = vector.broadcast %cst_40 : f32 to vector<8x8xf32>
    %70 = arith.addf %69, %68 : vector<8x8xf32>
    %71 = arith.divf %69, %70 : vector<8x8xf32>
    %72 = vector.extract_strided_slice %59 {offsets = [0, 16], sizes = [8, 8], strides = [1, 1]} : vector<8x32xf32> to vector<8x8xf32>
    %73 = math.tanh %72 : vector<8x8xf32>
    %74 = vector.extract_strided_slice %59 {offsets = [0, 24], sizes = [8, 8], strides = [1, 1]} : vector<8x32xf32> to vector<8x8xf32>
    %75 = arith.negf %74 : vector<8x8xf32>
    %76 = math.exp %75 : vector<8x8xf32>
    %cst_41 = arith.constant 1.000000e+00 : f32
    %77 = vector.broadcast %cst_41 : f32 to vector<8x8xf32>
    %78 = arith.addf %77, %76 : vector<8x8xf32>
    %79 = arith.divf %77, %78 : vector<8x8xf32>
    %c0_42 = arith.constant 0 : index
    %c0_43 = arith.constant 0 : index
    %80 = vector.load %arg11[%c0_42, %c0_43] : memref<8x8xf32, #tpu.memory_space<vmem>>, vector<8x8xf32>
    %81 = arith.mulf %71, %80 : vector<8x8xf32>
    %82 = arith.mulf %65, %73 : vector<8x8xf32>
    %83 = arith.addf %81, %82 : vector<8x8xf32>
    %84 = math.tanh %83 : vector<8x8xf32>
    %85 = arith.mulf %79, %84 : vector<8x8xf32>
    %c0_44 = arith.constant 0 : index
    %c0_45 = arith.constant 0 : index
    %86 = vector.load %arg11[%c0_44, %c0_45] : memref<8x8xf32, #tpu.memory_space<vmem>>, vector<8x8xf32>
    tpu.vector_store %arg11[%c0_44, %c0_45], %83 {strides = array<i32>} : memref<8x8xf32, #tpu.memory_space<vmem>>, vector<8x8xf32>,
    %c0_46 = arith.constant 0 : index
    %c0_47 = arith.constant 0 : index
    %87 = vector.load %arg10[%c0_46, %c0_47] : memref<8x8xf32, #tpu.memory_space<vmem>>, vector<8x8xf32>
    tpu.vector_store %arg10[%c0_46, %c0_47], %85 {strides = array<i32>} : memref<8x8xf32, #tpu.memory_space<vmem>>, vector<8x8xf32>,
    %88 = arith.index_cast %53 : i32 to index
    %c0_48 = arith.constant 0 : index
    %c0_49 = arith.constant 0 : index
    %89 = vector.load %arg9[%88, %c0_48, %c0_49] : memref<8x8x8xf32, #tpu.memory_space<vmem>>, vector<1x8x8xf32>
    %90 = vector.shape_cast %89 : vector<1x8x8xf32> to vector<8x8xf32>
    %91 = vector.shape_cast %85 : vector<8x8xf32> to vector<1x8x8xf32>
    tpu.vector_store %arg9[%88, %c0_48, %c0_49], %91 {strides = array<i32>} : memref<8x8x8xf32, #tpu.memory_space<vmem>>, vector<1x8x8xf32>,
    %c2_i32 = arith.constant 2 : i32
    %c7_i32_50 = arith.constant 7 : i32
    %92 = arith.subi %c7_i32_50, %c2_i32 : i32
    %93 = arith.index_cast %92 : i32 to index
    %c0_51 = arith.constant 0 : index
    %c0_52 = arith.constant 0 : index
    %94 = vector.load %arg8[%93, %c0_51, %c0_52] : memref<8x8x32xf32, #tpu.memory_space<vmem>>, vector<1x8x32xf32>
    %95 = vector.shape_cast %94 : vector<1x8x32xf32> to vector<8x32xf32>
    %c0_53 = arith.constant 0 : index
    %c0_54 = arith.constant 0 : index
    %96 = vector.load %arg10[%c0_53, %c0_54] : memref<8x8xf32, #tpu.memory_space<vmem>>, vector<8x8xf32>
    %cst_55 = arith.constant dense<0.000000e+00> : vector<8x32xf32>
    %97 = tpu.matmul %96, %13, %cst_55 {dimension_numbers = #tpu.dot_dimension_numbers<[1], [0], [0], [1], [0, 0, 1, 1], [], []>} : vector<8x8xf32>, vector<8x32xf32>, vector<8x32xf32> -> vector<8x32xf32>
    %98 = arith.addf %95, %97 : vector<8x32xf32>
    %99 = vector.extract_strided_slice %98 {offsets = [0, 0], sizes = [8, 8], strides = [1, 1]} : vector<8x32xf32> to vector<8x8xf32>
    %100 = arith.negf %99 : vector<8x8xf32>
    %101 = math.exp %100 : vector<8x8xf32>
    %cst_56 = arith.constant 1.000000e+00 : f32
    %102 = vector.broadcast %cst_56 : f32 to vector<8x8xf32>
    %103 = arith.addf %102, %101 : vector<8x8xf32>
    %104 = arith.divf %102, %103 : vector<8x8xf32>
    %105 = vector.extract_strided_slice %98 {offsets = [0, 8], sizes = [8, 8], strides = [1, 1]} : vector<8x32xf32> to vector<8x8xf32>
    %106 = arith.negf %105 : vector<8x8xf32>
    %107 = math.exp %106 : vector<8x8xf32>
    %cst_57 = arith.constant 1.000000e+00 : f32
    %108 = vector.broadcast %cst_57 : f32 to vector<8x8xf32>
    %109 = arith.addf %108, %107 : vector<8x8xf32>
    %110 = arith.divf %108, %109 : vector<8x8xf32>
    %111 = vector.extract_strided_slice %98 {offsets = [0, 16], sizes = [8, 8], strides = [1, 1]} : vector<8x32xf32> to vector<8x8xf32>
    %112 = math.tanh %111 : vector<8x8xf32>
    %113 = vector.extract_strided_slice %98 {offsets = [0, 24], sizes = [8, 8], strides = [1, 1]} : vector<8x32xf32> to vector<8x8xf32>
    %114 = arith.negf %113 : vector<8x8xf32>
    %115 = math.exp %114 : vector<8x8xf32>
    %cst_58 = arith.constant 1.000000e+00 : f32
    %116 = vector.broadcast %cst_58 : f32 to vector<8x8xf32>
    %117 = arith.addf %116, %115 : vector<8x8xf32>
    %118 = arith.divf %116, %117 : vector<8x8xf32>
    %c0_59 = arith.constant 0 : index
    %c0_60 = arith.constant 0 : index
    %119 = vector.load %arg11[%c0_59, %c0_60] : memref<8x8xf32, #tpu.memory_space<vmem>>, vector<8x8xf32>
    %120 = arith.mulf %110, %119 : vector<8x8xf32>
    %121 = arith.mulf %104, %112 : vector<8x8xf32>
    %122 = arith.addf %120, %121 : vector<8x8xf32>
    %123 = math.tanh %122 : vector<8x8xf32>
    %124 = arith.mulf %118, %123 : vector<8x8xf32>
    %c0_61 = arith.constant 0 : index
    %c0_62 = arith.constant 0 : index
    %125 = vector.load %arg11[%c0_61, %c0_62] : memref<8x8xf32, #tpu.memory_space<vmem>>, vector<8x8xf32>
    tpu.vector_store %arg11[%c0_61, %c0_62], %122 {strides = array<i32>} : memref<8x8xf32, #tpu.memory_space<vmem>>, vector<8x8xf32>,
    %c0_63 = arith.constant 0 : index
    %c0_64 = arith.constant 0 : index
    %126 = vector.load %arg10[%c0_63, %c0_64] : memref<8x8xf32, #tpu.memory_space<vmem>>, vector<8x8xf32>
    tpu.vector_store %arg10[%c0_63, %c0_64], %124 {strides = array<i32>} : memref<8x8xf32, #tpu.memory_space<vmem>>, vector<8x8xf32>,
    %127 = arith.index_cast %92 : i32 to index
    %c0_65 = arith.constant 0 : index
    %c0_66 = arith.constant 0 : index
    %128 = vector.load %arg9[%127, %c0_65, %c0_66] : memref<8x8x8xf32, #tpu.memory_space<vmem>>, vector<1x8x8xf32>
    %129 = vector.shape_cast %128 : vector<1x8x8xf32> to vector<8x8xf32>
    %130 = vector.shape_cast %124 : vector<8x8xf32> to vector<1x8x8xf32>
    tpu.vector_store %arg9[%127, %c0_65, %c0_66], %130 {strides = array<i32>} : memref<8x8x8xf32, #tpu.memory_space<vmem>>, vector<1x8x8xf32>,
    %c3_i32 = arith.constant 3 : i32
    %c7_i32_67 = arith.constant 7 : i32
    %131 = arith.subi %c7_i32_67, %c3_i32 : i32
    %132 = arith.index_cast %131 : i32 to index
    %c0_68 = arith.constant 0 : index
    %c0_69 = arith.constant 0 : index
    %133 = vector.load %arg8[%132, %c0_68, %c0_69] : memref<8x8x32xf32, #tpu.memory_space<vmem>>, vector<1x8x32xf32>
    %134 = vector.shape_cast %133 : vector<1x8x32xf32> to vector<8x32xf32>
    %c0_70 = arith.constant 0 : index
    %c0_71 = arith.constant 0 : index
    %135 = vector.load %arg10[%c0_70, %c0_71] : memref<8x8xf32, #tpu.memory_space<vmem>>, vector<8x8xf32>
    %cst_72 = arith.constant dense<0.000000e+00> : vector<8x32xf32>
    %136 = tpu.matmul %135, %13, %cst_72 {dimension_numbers = #tpu.dot_dimension_numbers<[1], [0], [0], [1], [0, 0, 1, 1], [], []>} : vector<8x8xf32>, vector<8x32xf32>, vector<8x32xf32> -> vector<8x32xf32>
    %137 = arith.addf %134, %136 : vector<8x32xf32>
    %138 = vector.extract_strided_slice %137 {offsets = [0, 0], sizes = [8, 8], strides = [1, 1]} : vector<8x32xf32> to vector<8x8xf32>
    %139 = arith.negf %138 : vector<8x8xf32>
    %140 = math.exp %139 : vector<8x8xf32>
    %cst_73 = arith.constant 1.000000e+00 : f32
    %141 = vector.broadcast %cst_73 : f32 to vector<8x8xf32>
    %142 = arith.addf %141, %140 : vector<8x8xf32>
    %143 = arith.divf %141, %142 : vector<8x8xf32>
    %144 = vector.extract_strided_slice %137 {offsets = [0, 8], sizes = [8, 8], strides = [1, 1]} : vector<8x32xf32> to vector<8x8xf32>
    %145 = arith.negf %144 : vector<8x8xf32>
    %146 = math.exp %145 : vector<8x8xf32>
    %cst_74 = arith.constant 1.000000e+00 : f32
    %147 = vector.broadcast %cst_74 : f32 to vector<8x8xf32>
    %148 = arith.addf %147, %146 : vector<8x8xf32>
    %149 = arith.divf %147, %148 : vector<8x8xf32>
    %150 = vector.extract_strided_slice %137 {offsets = [0, 16], sizes = [8, 8], strides = [1, 1]} : vector<8x32xf32> to vector<8x8xf32>
    %151 = math.tanh %150 : vector<8x8xf32>
    %152 = vector.extract_strided_slice %137 {offsets = [0, 24], sizes = [8, 8], strides = [1, 1]} : vector<8x32xf32> to vector<8x8xf32>
    %153 = arith.negf %152 : vector<8x8xf32>
    %154 = math.exp %153 : vector<8x8xf32>
    %cst_75 = arith.constant 1.000000e+00 : f32
    %155 = vector.broadcast %cst_75 : f32 to vector<8x8xf32>
    %156 = arith.addf %155, %154 : vector<8x8xf32>
    %157 = arith.divf %155, %156 : vector<8x8xf32>
    %c0_76 = arith.constant 0 : index
    %c0_77 = arith.constant 0 : index
    %158 = vector.load %arg11[%c0_76, %c0_77] : memref<8x8xf32, #tpu.memory_space<vmem>>, vector<8x8xf32>
    %159 = arith.mulf %149, %158 : vector<8x8xf32>
    %160 = arith.mulf %143, %151 : vector<8x8xf32>
    %161 = arith.addf %159, %160 : vector<8x8xf32>
    %162 = math.tanh %161 : vector<8x8xf32>
    %163 = arith.mulf %157, %162 : vector<8x8xf32>
    %c0_78 = arith.constant 0 : index
    %c0_79 = arith.constant 0 : index
    %164 = vector.load %arg11[%c0_78, %c0_79] : memref<8x8xf32, #tpu.memory_space<vmem>>, vector<8x8xf32>
    tpu.vector_store %arg11[%c0_78, %c0_79], %161 {strides = array<i32>} : memref<8x8xf32, #tpu.memory_space<vmem>>, vector<8x8xf32>,
    %c0_80 = arith.constant 0 : index
    %c0_81 = arith.constant 0 : index
    %165 = vector.load %arg10[%c0_80, %c0_81] : memref<8x8xf32, #tpu.memory_space<vmem>>, vector<8x8xf32>
    tpu.vector_store %arg10[%c0_80, %c0_81], %163 {strides = array<i32>} : memref<8x8xf32, #tpu.memory_space<vmem>>, vector<8x8xf32>,
    %166 = arith.index_cast %131 : i32 to index
    %c0_82 = arith.constant 0 : index
    %c0_83 = arith.constant 0 : index
    %167 = vector.load %arg9[%166, %c0_82, %c0_83] : memref<8x8x8xf32, #tpu.memory_space<vmem>>, vector<1x8x8xf32>
    %168 = vector.shape_cast %167 : vector<1x8x8xf32> to vector<8x8xf32>
    %169 = vector.shape_cast %163 : vector<8x8xf32> to vector<1x8x8xf32>
    tpu.vector_store %arg9[%166, %c0_82, %c0_83], %169 {strides = array<i32>} : memref<8x8x8xf32, #tpu.memory_space<vmem>>, vector<1x8x8xf32>,
    %c4_i32 = arith.constant 4 : i32
    %c7_i32_84 = arith.constant 7 : i32
    %170 = arith.subi %c7_i32_84, %c4_i32 : i32
    %171 = arith.index_cast %170 : i32 to index
    %c0_85 = arith.constant 0 : index
    %c0_86 = arith.constant 0 : index
    %172 = vector.load %arg8[%171, %c0_85, %c0_86] : memref<8x8x32xf32, #tpu.memory_space<vmem>>, vector<1x8x32xf32>
    %173 = vector.shape_cast %172 : vector<1x8x32xf32> to vector<8x32xf32>
    %c0_87 = arith.constant 0 : index
    %c0_88 = arith.constant 0 : index
    %174 = vector.load %arg10[%c0_87, %c0_88] : memref<8x8xf32, #tpu.memory_space<vmem>>, vector<8x8xf32>
    %cst_89 = arith.constant dense<0.000000e+00> : vector<8x32xf32>
    %175 = tpu.matmul %174, %13, %cst_89 {dimension_numbers = #tpu.dot_dimension_numbers<[1], [0], [0], [1], [0, 0, 1, 1], [], []>} : vector<8x8xf32>, vector<8x32xf32>, vector<8x32xf32> -> vector<8x32xf32>
    %176 = arith.addf %173, %175 : vector<8x32xf32>
    %177 = vector.extract_strided_slice %176 {offsets = [0, 0], sizes = [8, 8], strides = [1, 1]} : vector<8x32xf32> to vector<8x8xf32>
    %178 = arith.negf %177 : vector<8x8xf32>
    %179 = math.exp %178 : vector<8x8xf32>
    %cst_90 = arith.constant 1.000000e+00 : f32
    %180 = vector.broadcast %cst_90 : f32 to vector<8x8xf32>
    %181 = arith.addf %180, %179 : vector<8x8xf32>
    %182 = arith.divf %180, %181 : vector<8x8xf32>
    %183 = vector.extract_strided_slice %176 {offsets = [0, 8], sizes = [8, 8], strides = [1, 1]} : vector<8x32xf32> to vector<8x8xf32>
    %184 = arith.negf %183 : vector<8x8xf32>
    %185 = math.exp %184 : vector<8x8xf32>
    %cst_91 = arith.constant 1.000000e+00 : f32
    %186 = vector.broadcast %cst_91 : f32 to vector<8x8xf32>
    %187 = arith.addf %186, %185 : vector<8x8xf32>
    %188 = arith.divf %186, %187 : vector<8x8xf32>
    %189 = vector.extract_strided_slice %176 {offsets = [0, 16], sizes = [8, 8], strides = [1, 1]} : vector<8x32xf32> to vector<8x8xf32>
    %190 = math.tanh %189 : vector<8x8xf32>
    %191 = vector.extract_strided_slice %176 {offsets = [0, 24], sizes = [8, 8], strides = [1, 1]} : vector<8x32xf32> to vector<8x8xf32>
    %192 = arith.negf %191 : vector<8x8xf32>
    %193 = math.exp %192 : vector<8x8xf32>
    %cst_92 = arith.constant 1.000000e+00 : f32
    %194 = vector.broadcast %cst_92 : f32 to vector<8x8xf32>
    %195 = arith.addf %194, %193 : vector<8x8xf32>
    %196 = arith.divf %194, %195 : vector<8x8xf32>
    %c0_93 = arith.constant 0 : index
    %c0_94 = arith.constant 0 : index
    %197 = vector.load %arg11[%c0_93, %c0_94] : memref<8x8xf32, #tpu.memory_space<vmem>>, vector<8x8xf32>
    %198 = arith.mulf %188, %197 : vector<8x8xf32>
    %199 = arith.mulf %182, %190 : vector<8x8xf32>
    %200 = arith.addf %198, %199 : vector<8x8xf32>
    %201 = math.tanh %200 : vector<8x8xf32>
    %202 = arith.mulf %196, %201 : vector<8x8xf32>
    %c0_95 = arith.constant 0 : index
    %c0_96 = arith.constant 0 : index
    %203 = vector.load %arg11[%c0_95, %c0_96] : memref<8x8xf32, #tpu.memory_space<vmem>>, vector<8x8xf32>
    tpu.vector_store %arg11[%c0_95, %c0_96], %200 {strides = array<i32>} : memref<8x8xf32, #tpu.memory_space<vmem>>, vector<8x8xf32>,
    %c0_97 = arith.constant 0 : index
    %c0_98 = arith.constant 0 : index
    %204 = vector.load %arg10[%c0_97, %c0_98] : memref<8x8xf32, #tpu.memory_space<vmem>>, vector<8x8xf32>
    tpu.vector_store %arg10[%c0_97, %c0_98], %202 {strides = array<i32>} : memref<8x8xf32, #tpu.memory_space<vmem>>, vector<8x8xf32>,
    %205 = arith.index_cast %170 : i32 to index
    %c0_99 = arith.constant 0 : index
    %c0_100 = arith.constant 0 : index
    %206 = vector.load %arg9[%205, %c0_99, %c0_100] : memref<8x8x8xf32, #tpu.memory_space<vmem>>, vector<1x8x8xf32>
    %207 = vector.shape_cast %206 : vector<1x8x8xf32> to vector<8x8xf32>
    %208 = vector.shape_cast %202 : vector<8x8xf32> to vector<1x8x8xf32>
    tpu.vector_store %arg9[%205, %c0_99, %c0_100], %208 {strides = array<i32>} : memref<8x8x8xf32, #tpu.memory_space<vmem>>, vector<1x8x8xf32>,
    %c5_i32 = arith.constant 5 : i32
    %c7_i32_101 = arith.constant 7 : i32
    %209 = arith.subi %c7_i32_101, %c5_i32 : i32
    %210 = arith.index_cast %209 : i32 to index
    %c0_102 = arith.constant 0 : index
    %c0_103 = arith.constant 0 : index
    %211 = vector.load %arg8[%210, %c0_102, %c0_103] : memref<8x8x32xf32, #tpu.memory_space<vmem>>, vector<1x8x32xf32>
    %212 = vector.shape_cast %211 : vector<1x8x32xf32> to vector<8x32xf32>
    %c0_104 = arith.constant 0 : index
    %c0_105 = arith.constant 0 : index
    %213 = vector.load %arg10[%c0_104, %c0_105] : memref<8x8xf32, #tpu.memory_space<vmem>>, vector<8x8xf32>
    %cst_106 = arith.constant dense<0.000000e+00> : vector<8x32xf32>
    %214 = tpu.matmul %213, %13, %cst_106 {dimension_numbers = #tpu.dot_dimension_numbers<[1], [0], [0], [1], [0, 0, 1, 1], [], []>} : vector<8x8xf32>, vector<8x32xf32>, vector<8x32xf32> -> vector<8x32xf32>
    %215 = arith.addf %212, %214 : vector<8x32xf32>
    %216 = vector.extract_strided_slice %215 {offsets = [0, 0], sizes = [8, 8], strides = [1, 1]} : vector<8x32xf32> to vector<8x8xf32>
    %217 = arith.negf %216 : vector<8x8xf32>
    %218 = math.exp %217 : vector<8x8xf32>
    %cst_107 = arith.constant 1.000000e+00 : f32
    %219 = vector.broadcast %cst_107 : f32 to vector<8x8xf32>
    %220 = arith.addf %219, %218 : vector<8x8xf32>
    %221 = arith.divf %219, %220 : vector<8x8xf32>
    %222 = vector.extract_strided_slice %215 {offsets = [0, 8], sizes = [8, 8], strides = [1, 1]} : vector<8x32xf32> to vector<8x8xf32>
    %223 = arith.negf %222 : vector<8x8xf32>
    %224 = math.exp %223 : vector<8x8xf32>
    %cst_108 = arith.constant 1.000000e+00 : f32
    %225 = vector.broadcast %cst_108 : f32 to vector<8x8xf32>
    %226 = arith.addf %225, %224 : vector<8x8xf32>
    %227 = arith.divf %225, %226 : vector<8x8xf32>
    %228 = vector.extract_strided_slice %215 {offsets = [0, 16], sizes = [8, 8], strides = [1, 1]} : vector<8x32xf32> to vector<8x8xf32>
    %229 = math.tanh %228 : vector<8x8xf32>
    %230 = vector.extract_strided_slice %215 {offsets = [0, 24], sizes = [8, 8], strides = [1, 1]} : vector<8x32xf32> to vector<8x8xf32>
    %231 = arith.negf %230 : vector<8x8xf32>
    %232 = math.exp %231 : vector<8x8xf32>
    %cst_109 = arith.constant 1.000000e+00 : f32
    %233 = vector.broadcast %cst_109 : f32 to vector<8x8xf32>
    %234 = arith.addf %233, %232 : vector<8x8xf32>
    %235 = arith.divf %233, %234 : vector<8x8xf32>
    %c0_110 = arith.constant 0 : index
    %c0_111 = arith.constant 0 : index
    %236 = vector.load %arg11[%c0_110, %c0_111] : memref<8x8xf32, #tpu.memory_space<vmem>>, vector<8x8xf32>
    %237 = arith.mulf %227, %236 : vector<8x8xf32>
    %238 = arith.mulf %221, %229 : vector<8x8xf32>
    %239 = arith.addf %237, %238 : vector<8x8xf32>
    %240 = math.tanh %239 : vector<8x8xf32>
    %241 = arith.mulf %235, %240 : vector<8x8xf32>
    %c0_112 = arith.constant 0 : index
    %c0_113 = arith.constant 0 : index
    %242 = vector.load %arg11[%c0_112, %c0_113] : memref<8x8xf32, #tpu.memory_space<vmem>>, vector<8x8xf32>
    tpu.vector_store %arg11[%c0_112, %c0_113], %239 {strides = array<i32>} : memref<8x8xf32, #tpu.memory_space<vmem>>, vector<8x8xf32>,
    %c0_114 = arith.constant 0 : index
    %c0_115 = arith.constant 0 : index
    %243 = vector.load %arg10[%c0_114, %c0_115] : memref<8x8xf32, #tpu.memory_space<vmem>>, vector<8x8xf32>
    tpu.vector_store %arg10[%c0_114, %c0_115], %241 {strides = array<i32>} : memref<8x8xf32, #tpu.memory_space<vmem>>, vector<8x8xf32>,
    %244 = arith.index_cast %209 : i32 to index
    %c0_116 = arith.constant 0 : index
    %c0_117 = arith.constant 0 : index
    %245 = vector.load %arg9[%244, %c0_116, %c0_117] : memref<8x8x8xf32, #tpu.memory_space<vmem>>, vector<1x8x8xf32>
    %246 = vector.shape_cast %245 : vector<1x8x8xf32> to vector<8x8xf32>
    %247 = vector.shape_cast %241 : vector<8x8xf32> to vector<1x8x8xf32>
    tpu.vector_store %arg9[%244, %c0_116, %c0_117], %247 {strides = array<i32>} : memref<8x8x8xf32, #tpu.memory_space<vmem>>, vector<1x8x8xf32>,
    %c6_i32 = arith.constant 6 : i32
    %c7_i32_118 = arith.constant 7 : i32
    %248 = arith.subi %c7_i32_118, %c6_i32 : i32
    %249 = arith.index_cast %248 : i32 to index
    %c0_119 = arith.constant 0 : index
    %c0_120 = arith.constant 0 : index
    %250 = vector.load %arg8[%249, %c0_119, %c0_120] : memref<8x8x32xf32, #tpu.memory_space<vmem>>, vector<1x8x32xf32>
    %251 = vector.shape_cast %250 : vector<1x8x32xf32> to vector<8x32xf32>
    %c0_121 = arith.constant 0 : index
    %c0_122 = arith.constant 0 : index
    %252 = vector.load %arg10[%c0_121, %c0_122] : memref<8x8xf32, #tpu.memory_space<vmem>>, vector<8x8xf32>
    %cst_123 = arith.constant dense<0.000000e+00> : vector<8x32xf32>
    %253 = tpu.matmul %252, %13, %cst_123 {dimension_numbers = #tpu.dot_dimension_numbers<[1], [0], [0], [1], [0, 0, 1, 1], [], []>} : vector<8x8xf32>, vector<8x32xf32>, vector<8x32xf32> -> vector<8x32xf32>
    %254 = arith.addf %251, %253 : vector<8x32xf32>
    %255 = vector.extract_strided_slice %254 {offsets = [0, 0], sizes = [8, 8], strides = [1, 1]} : vector<8x32xf32> to vector<8x8xf32>
    %256 = arith.negf %255 : vector<8x8xf32>
    %257 = math.exp %256 : vector<8x8xf32>
    %cst_124 = arith.constant 1.000000e+00 : f32
    %258 = vector.broadcast %cst_124 : f32 to vector<8x8xf32>
    %259 = arith.addf %258, %257 : vector<8x8xf32>
    %260 = arith.divf %258, %259 : vector<8x8xf32>
    %261 = vector.extract_strided_slice %254 {offsets = [0, 8], sizes = [8, 8], strides = [1, 1]} : vector<8x32xf32> to vector<8x8xf32>
    %262 = arith.negf %261 : vector<8x8xf32>
    %263 = math.exp %262 : vector<8x8xf32>
    %cst_125 = arith.constant 1.000000e+00 : f32
    %264 = vector.broadcast %cst_125 : f32 to vector<8x8xf32>
    %265 = arith.addf %264, %263 : vector<8x8xf32>
    %266 = arith.divf %264, %265 : vector<8x8xf32>
    %267 = vector.extract_strided_slice %254 {offsets = [0, 16], sizes = [8, 8], strides = [1, 1]} : vector<8x32xf32> to vector<8x8xf32>
    %268 = math.tanh %267 : vector<8x8xf32>
    %269 = vector.extract_strided_slice %254 {offsets = [0, 24], sizes = [8, 8], strides = [1, 1]} : vector<8x32xf32> to vector<8x8xf32>
    %270 = arith.negf %269 : vector<8x8xf32>
    %271 = math.exp %270 : vector<8x8xf32>
    %cst_126 = arith.constant 1.000000e+00 : f32
    %272 = vector.broadcast %cst_126 : f32 to vector<8x8xf32>
    %273 = arith.addf %272, %271 : vector<8x8xf32>
    %274 = arith.divf %272, %273 : vector<8x8xf32>
    %c0_127 = arith.constant 0 : index
    %c0_128 = arith.constant 0 : index
    %275 = vector.load %arg11[%c0_127, %c0_128] : memref<8x8xf32, #tpu.memory_space<vmem>>, vector<8x8xf32>
    %276 = arith.mulf %266, %275 : vector<8x8xf32>
    %277 = arith.mulf %260, %268 : vector<8x8xf32>
    %278 = arith.addf %276, %277 : vector<8x8xf32>
    %279 = math.tanh %278 : vector<8x8xf32>
    %280 = arith.mulf %274, %279 : vector<8x8xf32>
    %c0_129 = arith.constant 0 : index
    %c0_130 = arith.constant 0 : index
    %281 = vector.load %arg11[%c0_129, %c0_130] : memref<8x8xf32, #tpu.memory_space<vmem>>, vector<8x8xf32>
    tpu.vector_store %arg11[%c0_129, %c0_130], %278 {strides = array<i32>} : memref<8x8xf32, #tpu.memory_space<vmem>>, vector<8x8xf32>,
    %c0_131 = arith.constant 0 : index
    %c0_132 = arith.constant 0 : index
    %282 = vector.load %arg10[%c0_131, %c0_132] : memref<8x8xf32, #tpu.memory_space<vmem>>, vector<8x8xf32>
    tpu.vector_store %arg10[%c0_131, %c0_132], %280 {strides = array<i32>} : memref<8x8xf32, #tpu.memory_space<vmem>>, vector<8x8xf32>,
    %283 = arith.index_cast %248 : i32 to index
    %c0_133 = arith.constant 0 : index
    %c0_134 = arith.constant 0 : index
    %284 = vector.load %arg9[%283, %c0_133, %c0_134] : memref<8x8x8xf32, #tpu.memory_space<vmem>>, vector<1x8x8xf32>
    %285 = vector.shape_cast %284 : vector<1x8x8xf32> to vector<8x8xf32>
    %286 = vector.shape_cast %280 : vector<8x8xf32> to vector<1x8x8xf32>
    tpu.vector_store %arg9[%283, %c0_133, %c0_134], %286 {strides = array<i32>} : memref<8x8x8xf32, #tpu.memory_space<vmem>>, vector<1x8x8xf32>,
    %c7_i32_135 = arith.constant 7 : i32
    %c7_i32_136 = arith.constant 7 : i32
    %287 = arith.subi %c7_i32_136, %c7_i32_135 : i32
    %288 = arith.index_cast %287 : i32 to index
    %c0_137 = arith.constant 0 : index
    %c0_138 = arith.constant 0 : index
    %289 = vector.load %arg8[%288, %c0_137, %c0_138] : memref<8x8x32xf32, #tpu.memory_space<vmem>>, vector<1x8x32xf32>
    %290 = vector.shape_cast %289 : vector<1x8x32xf32> to vector<8x32xf32>
    %c0_139 = arith.constant 0 : index
    %c0_140 = arith.constant 0 : index
    %291 = vector.load %arg10[%c0_139, %c0_140] : memref<8x8xf32, #tpu.memory_space<vmem>>, vector<8x8xf32>
    %cst_141 = arith.constant dense<0.000000e+00> : vector<8x32xf32>
    %292 = tpu.matmul %291, %13, %cst_141 {dimension_numbers = #tpu.dot_dimension_numbers<[1], [0], [0], [1], [0, 0, 1, 1], [], []>} : vector<8x8xf32>, vector<8x32xf32>, vector<8x32xf32> -> vector<8x32xf32>
    %293 = arith.addf %290, %292 : vector<8x32xf32>
    %294 = vector.extract_strided_slice %293 {offsets = [0, 0], sizes = [8, 8], strides = [1, 1]} : vector<8x32xf32> to vector<8x8xf32>
    %295 = arith.negf %294 : vector<8x8xf32>
    %296 = math.exp %295 : vector<8x8xf32>
    %cst_142 = arith.constant 1.000000e+00 : f32
    %297 = vector.broadcast %cst_142 : f32 to vector<8x8xf32>
    %298 = arith.addf %297, %296 : vector<8x8xf32>
    %299 = arith.divf %297, %298 : vector<8x8xf32>
    %300 = vector.extract_strided_slice %293 {offsets = [0, 8], sizes = [8, 8], strides = [1, 1]} : vector<8x32xf32> to vector<8x8xf32>
    %301 = arith.negf %300 : vector<8x8xf32>
    %302 = math.exp %301 : vector<8x8xf32>
    %cst_143 = arith.constant 1.000000e+00 : f32
    %303 = vector.broadcast %cst_143 : f32 to vector<8x8xf32>
    %304 = arith.addf %303, %302 : vector<8x8xf32>
    %305 = arith.divf %303, %304 : vector<8x8xf32>
    %306 = vector.extract_strided_slice %293 {offsets = [0, 16], sizes = [8, 8], strides = [1, 1]} : vector<8x32xf32> to vector<8x8xf32>
    %307 = math.tanh %306 : vector<8x8xf32>
    %308 = vector.extract_strided_slice %293 {offsets = [0, 24], sizes = [8, 8], strides = [1, 1]} : vector<8x32xf32> to vector<8x8xf32>
    %309 = arith.negf %308 : vector<8x8xf32>
    %310 = math.exp %309 : vector<8x8xf32>
    %cst_144 = arith.constant 1.000000e+00 : f32
    %311 = vector.broadcast %cst_144 : f32 to vector<8x8xf32>
    %312 = arith.addf %311, %310 : vector<8x8xf32>
    %313 = arith.divf %311, %312 : vector<8x8xf32>
    %c0_145 = arith.constant 0 : index
    %c0_146 = arith.constant 0 : index
    %314 = vector.load %arg11[%c0_145, %c0_146] : memref<8x8xf32, #tpu.memory_space<vmem>>, vector<8x8xf32>
    %315 = arith.mulf %305, %314 : vector<8x8xf32>
    %316 = arith.mulf %299, %307 : vector<8x8xf32>
    %317 = arith.addf %315, %316 : vector<8x8xf32>
    %318 = math.tanh %317 : vector<8x8xf32>
    %319 = arith.mulf %313, %318 : vector<8x8xf32>
    %c0_147 = arith.constant 0 : index
    %c0_148 = arith.constant 0 : index
    %320 = vector.load %arg11[%c0_147, %c0_148] : memref<8x8xf32, #tpu.memory_space<vmem>>, vector<8x8xf32>
    tpu.vector_store %arg11[%c0_147, %c0_148], %317 {strides = array<i32>} : memref<8x8xf32, #tpu.memory_space<vmem>>, vector<8x8xf32>,
    %c0_149 = arith.constant 0 : index
    %c0_150 = arith.constant 0 : index
    %321 = vector.load %arg10[%c0_149, %c0_150] : memref<8x8xf32, #tpu.memory_space<vmem>>, vector<8x8xf32>
    tpu.vector_store %arg10[%c0_149, %c0_150], %319 {strides = array<i32>} : memref<8x8xf32, #tpu.memory_space<vmem>>, vector<8x8xf32>,
    %322 = arith.index_cast %287 : i32 to index
    %c0_151 = arith.constant 0 : index
    %c0_152 = arith.constant 0 : index
    %323 = vector.load %arg9[%322, %c0_151, %c0_152] : memref<8x8x8xf32, #tpu.memory_space<vmem>>, vector<1x8x8xf32>
    %324 = vector.shape_cast %323 : vector<1x8x8xf32> to vector<8x8xf32>
    %325 = vector.shape_cast %319 : vector<8x8xf32> to vector<1x8x8xf32>
    tpu.vector_store %arg9[%322, %c0_151, %c0_152], %325 {strides = array<i32>} : memref<8x8x8xf32, #tpu.memory_space<vmem>>, vector<1x8x8xf32>,
    %c8_i32 = arith.constant 8 : i32
    %c0_153 = arith.constant 0 : index
    %c0_154 = arith.constant 0 : index
    %c0_155 = arith.constant 0 : index
    %326 = vector.load %arg9[%c0_153, %c0_154, %c0_155] : memref<8x8x8xf32, #tpu.memory_space<vmem>>, vector<8x8x8xf32>
    %327 = vector.shape_cast %326 : vector<8x8x8xf32> to vector<64x8xf32>
    %c0_156 = arith.constant 0 : index
    %c0_157 = arith.constant 0 : index
    %328 = vector.load %arg5[%c0_156, %c0_157] : memref<8x16xf32, #tpu.memory_space<vmem>>, vector<8x16xf32>
    %cst_158 = arith.constant dense<0.000000e+00> : vector<64x16xf32>
    %329 = tpu.matmul %327, %328, %cst_158 {dimension_numbers = #tpu.dot_dimension_numbers<[1], [0], [0], [1], [0, 0, 1, 1], [], []>} : vector<64x8xf32>, vector<8x16xf32>, vector<64x16xf32> -> vector<64x16xf32>
    %c0_159 = arith.constant 0 : index
    %c0_160 = arith.constant 0 : index
    %330 = vector.load %arg6[%c0_159, %c0_160] : memref<1x16xf32, #tpu.memory_space<vmem>>, vector<1x16xf32>
    %331 = vector.broadcast %330 : vector<1x16xf32> to vector<64x16xf32>
    %332 = arith.addf %329, %331 : vector<64x16xf32>
    %333 = vector.shape_cast %332 : vector<64x16xf32> to vector<8x8x16xf32>
    %c0_161 = arith.constant 0 : index
    %c0_162 = arith.constant 0 : index
    %c0_163 = arith.constant 0 : index
    %334 = vector.load %arg7[%c0_161, %c0_162, %c0_163] : memref<8x8x16xf32, #tpu.memory_space<vmem>>, vector<8x8x16xf32>
    tpu.vector_store %arg7[%c0_161, %c0_162, %c0_163], %333 {strides = array<i32>} : memref<8x8x16xf32, #tpu.memory_space<vmem>>, vector<8x8x16xf32>,
    return
  }
  func.func @transform_0(%arg0: i32) -> (i32, i32, i32) {
    %c0_i32 = arith.constant 0 : i32
    %c0_i32_0 = arith.constant 0 : i32
    %c0_i32_1 = arith.constant 0 : i32
    return %c0_i32, %arg0, %c0_i32_0 : i32, i32, i32
  }
  func.func @transform_1(%arg0: i32) -> (i32, i32) {
    %c0_i32 = arith.constant 0 : i32
    %c0_i32_0 = arith.constant 0 : i32
    %c0_i32_1 = arith.constant 0 : i32
    return %c0_i32, %c0_i32_0 : i32, i32
  }
  func.func @transform_2(%arg0: i32) -> (i32, i32) {
    %c0_i32 = arith.constant 0 : i32
    %c0_i32_0 = arith.constant 0 : i32
    %c0_i32_1 = arith.constant 0 : i32
    return %c0_i32, %c0_i32_0 : i32, i32
  }
  func.func @transform_3(%arg0: i32) -> (i32, i32) {
    %c0_i32 = arith.constant 0 : i32
    %c0_i32_0 = arith.constant 0 : i32
    %c0_i32_1 = arith.constant 0 : i32
    return %c0_i32, %c0_i32_0 : i32, i32
  }
  func.func @transform_4(%arg0: i32) -> (i32, i32) {
    %c0_i32 = arith.constant 0 : i32
    %c0_i32_0 = arith.constant 0 : i32
    %c0_i32_1 = arith.constant 0 : i32
    return %c0_i32, %c0_i32_0 : i32, i32
  }
  func.func @transform_5(%arg0: i32) -> (i32, i32) {
    %c0_i32 = arith.constant 0 : i32
    %c0_i32_0 = arith.constant 0 : i32
    %c0_i32_1 = arith.constant 0 : i32
    return %c0_i32, %c0_i32_0 : i32, i32
  }
  func.func @transform_6(%arg0: i32) -> (i32, i32, i32) {
    %c0_i32 = arith.constant 0 : i32
    %c0_i32_0 = arith.constant 0 : i32
    %c0_i32_1 = arith.constant 0 : i32
    return %c0_i32, %arg0, %c0_i32_0 : i32, i32, i32
  }
}

module attributes {stable_mosaic.version = 11 : i64} {
  func.func @bi_rownorm_add_kernel(%arg0: i32, %arg1: memref<16x4x16xf32, #tpu.memory_space<vmem>>, %arg2: memref<16x4x16xf32, #tpu.memory_space<vmem>>, %arg3: memref<16x4x16xf32, #tpu.memory_space<vmem>>, %arg4: memref<16x1x1xf32, #tpu.memory_space<vmem>>, %arg5: memref<16x1x1xf32, #tpu.memory_space<vmem>>, %arg6: memref<16x4x16xf32, #tpu.memory_space<vmem>>) attributes {dimension_semantics = [#tpu.dimension_semantics<parallel>], iteration_bounds = array<i64: 1>, scalar_prefetch = 0 : i64, scratch_operands = 0 : i64, tpu.core_type = #tpu.core_type<tc>, window_params = [{transform_indices = @transform_0, window_bounds = array<i64: 16, 4, 16>}, {transform_indices = @transform_1, window_bounds = array<i64: 16, 4, 16>}, {transform_indices = @transform_2, window_bounds = array<i64: 16, 4, 16>}, {transform_indices = @transform_3, window_bounds = array<i64: 16, 1, 1>}, {transform_indices = @transform_4, window_bounds = array<i64: 16, 1, 1>}, {transform_indices = @transform_5, window_bounds = array<i64: 16, 4, 16>}]} {
    %c0 = arith.constant 0 : index
    %c0_0 = arith.constant 0 : index
    %c0_1 = arith.constant 0 : index
    %0 = vector.load %arg1[%c0, %c0_0, %c0_1] : memref<16x4x16xf32, #tpu.memory_space<vmem>>, vector<16x4x16xf32>
    %c0_2 = arith.constant 0 : index
    %c0_3 = arith.constant 0 : index
    %c0_4 = arith.constant 0 : index
    %1 = vector.load %arg2[%c0_2, %c0_3, %c0_4] : memref<16x4x16xf32, #tpu.memory_space<vmem>>, vector<16x4x16xf32>
    %2 = arith.addf %0, %1 : vector<16x4x16xf32>
    %cst = arith.constant dense<0.000000e+00> : vector<16x4xf32>
    %3 = vector.multi_reduction <add>, %2, %cst [2] : vector<16x4x16xf32> to vector<16x4xf32>
    %4 = vector.shape_cast %3 : vector<16x4xf32> to vector<16x4x1xf32>
    %cst_5 = arith.constant dense<0.000000e+00> : vector<16x1xf32>
    %5 = vector.multi_reduction <add>, %4, %cst_5 [1] : vector<16x4x1xf32> to vector<16x1xf32>
    %6 = vector.shape_cast %5 : vector<16x1xf32> to vector<16x1x1xf32>
    %cst_6 = arith.constant 6.400000e+01 : f32
    %7 = vector.broadcast %cst_6 : f32 to vector<16x1x1xf32>
    %8 = arith.divf %6, %7 : vector<16x1x1xf32>
    %9 = vector.broadcast %8 : vector<16x1x1xf32> to vector<16x4x16xf32>
    %10 = arith.subf %2, %9 : vector<16x4x16xf32>
    %11 = arith.mulf %10, %10 : vector<16x4x16xf32>
    %cst_7 = arith.constant dense<0.000000e+00> : vector<16x4xf32>
    %12 = vector.multi_reduction <add>, %11, %cst_7 [2] : vector<16x4x16xf32> to vector<16x4xf32>
    %13 = vector.shape_cast %12 : vector<16x4xf32> to vector<16x4x1xf32>
    %cst_8 = arith.constant dense<0.000000e+00> : vector<16x1xf32>
    %14 = vector.multi_reduction <add>, %13, %cst_8 [1] : vector<16x4x1xf32> to vector<16x1xf32>
    %15 = vector.shape_cast %14 : vector<16x1xf32> to vector<16x1x1xf32>
    %cst_9 = arith.constant 6.400000e+01 : f32
    %16 = vector.broadcast %cst_9 : f32 to vector<16x1x1xf32>
    %17 = arith.divf %15, %16 : vector<16x1x1xf32>
    %cst_10 = arith.constant 9.99999993E-9 : f32
    %18 = vector.broadcast %cst_10 : f32 to vector<16x1x1xf32>
    %19 = arith.addf %17, %18 : vector<16x1x1xf32>
    %20 = math.rsqrt %19 : vector<16x1x1xf32>
    %21 = vector.broadcast %20 : vector<16x1x1xf32> to vector<16x4x16xf32>
    %22 = arith.mulf %10, %21 : vector<16x4x16xf32>
    %c0_11 = arith.constant 0 : index
    %c0_12 = arith.constant 0 : index
    %c0_13 = arith.constant 0 : index
    %23 = vector.load %arg3[%c0_11, %c0_12, %c0_13] : memref<16x4x16xf32, #tpu.memory_space<vmem>>, vector<16x4x16xf32>
    %c0_14 = arith.constant 0 : index
    %c0_15 = arith.constant 0 : index
    %c0_16 = arith.constant 0 : index
    %24 = vector.load %arg4[%c0_14, %c0_15, %c0_16] : memref<16x1x1xf32, #tpu.memory_space<vmem>>, vector<16x1x1xf32>
    %25 = vector.broadcast %24 : vector<16x1x1xf32> to vector<16x4x16xf32>
    %26 = arith.mulf %22, %25 : vector<16x4x16xf32>
    %27 = arith.addf %23, %26 : vector<16x4x16xf32>
    %c0_17 = arith.constant 0 : index
    %c0_18 = arith.constant 0 : index
    %c0_19 = arith.constant 0 : index
    %28 = vector.load %arg5[%c0_17, %c0_18, %c0_19] : memref<16x1x1xf32, #tpu.memory_space<vmem>>, vector<16x1x1xf32>
    %29 = vector.broadcast %28 : vector<16x1x1xf32> to vector<16x4x16xf32>
    %30 = arith.addf %27, %29 : vector<16x4x16xf32>
    %c0_20 = arith.constant 0 : index
    %c0_21 = arith.constant 0 : index
    %c0_22 = arith.constant 0 : index
    %31 = vector.load %arg6[%c0_20, %c0_21, %c0_22] : memref<16x4x16xf32, #tpu.memory_space<vmem>>, vector<16x4x16xf32>
    tpu.vector_store %arg6[%c0_20, %c0_21, %c0_22], %30 {strides = array<i32>} : memref<16x4x16xf32, #tpu.memory_space<vmem>>, vector<16x4x16xf32>,
    return
  }
  func.func @transform_0(%arg0: i32) -> (i32, i32, i32) {
    %c0_i32 = arith.constant 0 : i32
    %c0_i32_0 = arith.constant 0 : i32
    %c0_i32_1 = arith.constant 0 : i32
    return %arg0, %c0_i32, %c0_i32_0 : i32, i32, i32
  }
  func.func @transform_1(%arg0: i32) -> (i32, i32, i32) {
    %c0_i32 = arith.constant 0 : i32
    %c0_i32_0 = arith.constant 0 : i32
    %c0_i32_1 = arith.constant 0 : i32
    return %arg0, %c0_i32, %c0_i32_0 : i32, i32, i32
  }
  func.func @transform_2(%arg0: i32) -> (i32, i32, i32) {
    %c0_i32 = arith.constant 0 : i32
    %c0_i32_0 = arith.constant 0 : i32
    %c0_i32_1 = arith.constant 0 : i32
    return %arg0, %c0_i32, %c0_i32_0 : i32, i32, i32
  }
  func.func @transform_3(%arg0: i32) -> (i32, i32, i32) {
    %c0_i32 = arith.constant 0 : i32
    %c0_i32_0 = arith.constant 0 : i32
    %c0_i32_1 = arith.constant 0 : i32
    return %arg0, %c0_i32, %c0_i32_0 : i32, i32, i32
  }
  func.func @transform_4(%arg0: i32) -> (i32, i32, i32) {
    %c0_i32 = arith.constant 0 : i32
    %c0_i32_0 = arith.constant 0 : i32
    %c0_i32_1 = arith.constant 0 : i32
    return %arg0, %c0_i32, %c0_i32_0 : i32, i32, i32
  }
  func.func @transform_5(%arg0: i32) -> (i32, i32, i32) {
    %c0_i32 = arith.constant 0 : i32
    %c0_i32_0 = arith.constant 0 : i32
    %c0_i32_1 = arith.constant 0 : i32
    return %arg0, %c0_i32, %c0_i32_0 : i32, i32, i32
  }
}

module attributes {stable_mosaic.version = 11 : i64} {
  func.func @lstm_kernel(%arg0: i32, %arg1: memref<8x8x16xf32, #tpu.memory_space<vmem>>, %arg2: memref<16x32xf32, #tpu.memory_space<vmem>>, %arg3: memref<8x32xf32, #tpu.memory_space<vmem>>, %arg4: memref<1x32xf32, #tpu.memory_space<vmem>>, %arg5: memref<8x16xf32, #tpu.memory_space<vmem>>, %arg6: memref<1x16xf32, #tpu.memory_space<vmem>>, %arg7: memref<8x8x16xf32, #tpu.memory_space<vmem>>, %arg8: memref<8x8x32xf32, #tpu.memory_space<vmem>>, %arg9: memref<8x8x8xf32, #tpu.memory_space<vmem>>, %arg10: memref<8x8xf32, #tpu.memory_space<vmem>>, %arg11: memref<8x8xf32, #tpu.memory_space<vmem>>) attributes {dimension_semantics = [#tpu.dimension_semantics<parallel>], iteration_bounds = array<i64: 1>, scalar_prefetch = 0 : i64, scratch_operands = 4 : i64, tpu.core_type = #tpu.core_type<tc>, window_params = [{transform_indices = @transform_0, window_bounds = array<i64: 8, 8, 16>}, {pipeline_mode = #tpu.pipeline_mode<synchronous>, transform_indices = @transform_1, window_bounds = array<i64: 16, 32>}, {pipeline_mode = #tpu.pipeline_mode<synchronous>, transform_indices = @transform_2, window_bounds = array<i64: 8, 32>}, {pipeline_mode = #tpu.pipeline_mode<synchronous>, transform_indices = @transform_3, window_bounds = array<i64: 1, 32>}, {pipeline_mode = #tpu.pipeline_mode<synchronous>, transform_indices = @transform_4, window_bounds = array<i64: 8, 16>}, {pipeline_mode = #tpu.pipeline_mode<synchronous>, transform_indices = @transform_5, window_bounds = array<i64: 1, 16>}, {transform_indices = @transform_6, window_bounds = array<i64: 8, 8, 16>}]} {
    %c0 = arith.constant 0 : index
    %c0_0 = arith.constant 0 : index
    %c0_1 = arith.constant 0 : index
    %0 = vector.load %arg1[%c0, %c0_0, %c0_1] : memref<8x8x16xf32, #tpu.memory_space<vmem>>, vector<8x8x16xf32>
    %1 = vector.shape_cast %0 : vector<8x8x16xf32> to vector<64x16xf32>
    %c0_2 = arith.constant 0 : index
    %c0_3 = arith.constant 0 : index
    %2 = vector.load %arg2[%c0_2, %c0_3] : memref<16x32xf32, #tpu.memory_space<vmem>>, vector<16x32xf32>
    %cst = arith.constant dense<0.000000e+00> : vector<64x32xf32>
    %3 = tpu.matmul %1, %2, %cst {dimension_numbers = #tpu.dot_dimension_numbers<[1], [0], [0], [1], [0, 0, 1, 1], [], []>} : vector<64x16xf32>, vector<16x32xf32>, vector<64x32xf32> -> vector<64x32xf32>
    %c0_4 = arith.constant 0 : index
    %c0_5 = arith.constant 0 : index
    %4 = vector.load %arg4[%c0_4, %c0_5] : memref<1x32xf32, #tpu.memory_space<vmem>>, vector<1x32xf32>
    %5 = vector.broadcast %4 : vector<1x32xf32> to vector<64x32xf32>
    %6 = arith.addf %3, %5 : vector<64x32xf32>
    %7 = vector.shape_cast %6 : vector<64x32xf32> to vector<8x8x32xf32>
    %c0_6 = arith.constant 0 : index
    %c0_7 = arith.constant 0 : index
    %c0_8 = arith.constant 0 : index
    %8 = vector.load %arg8[%c0_6, %c0_7, %c0_8] : memref<8x8x32xf32, #tpu.memory_space<vmem>>, vector<8x8x32xf32>
    tpu.vector_store %arg8[%c0_6, %c0_7, %c0_8], %7 {strides = array<i32>} : memref<8x8x32xf32, #tpu.memory_space<vmem>>, vector<8x8x32xf32>,
    %cst_9 = arith.constant 0.000000e+00 : f32
    %9 = vector.broadcast %cst_9 : f32 to vector<8x8xf32>
    %c0_10 = arith.constant 0 : index
    %c0_11 = arith.constant 0 : index
    %10 = vector.load %arg10[%c0_10, %c0_11] : memref<8x8xf32, #tpu.memory_space<vmem>>, vector<8x8xf32>
    tpu.vector_store %arg10[%c0_10, %c0_11], %9 {strides = array<i32>} : memref<8x8xf32, #tpu.memory_space<vmem>>, vector<8x8xf32>,
    %cst_12 = arith.constant 0.000000e+00 : f32
    %11 = vector.broadcast %cst_12 : f32 to vector<8x8xf32>
    %c0_13 = arith.constant 0 : index
    %c0_14 = arith.constant 0 : index
    %12 = vector.load %arg11[%c0_13, %c0_14] : memref<8x8xf32, #tpu.memory_space<vmem>>, vector<8x8xf32>
    tpu.vector_store %arg11[%c0_13, %c0_14], %11 {strides = array<i32>} : memref<8x8xf32, #tpu.memory_space<vmem>>, vector<8x8xf32>,
    %c0_15 = arith.constant 0 : index
    %c0_16 = arith.constant 0 : index
    %13 = vector.load %arg3[%c0_15, %c0_16] : memref<8x32xf32, #tpu.memory_space<vmem>>, vector<8x32xf32>
    %c0_i32 = arith.constant 0 : i32
    %14 = arith.index_cast %c0_i32 : i32 to index
    %c0_17 = arith.constant 0 : index
    %c0_18 = arith.constant 0 : index
    %15 = vector.load %arg8[%14, %c0_17, %c0_18] : memref<8x8x32xf32, #tpu.memory_space<vmem>>, vector<1x8x32xf32>
    %16 = vector.shape_cast %15 : vector<1x8x32xf32> to vector<8x32xf32>
    %c0_19 = arith.constant 0 : index
    %c0_20 = arith.constant 0 : index
    %17 = vector.load %arg10[%c0_19, %c0_20] : memref<8x8xf32, #tpu.memory_space<vmem>>, vector<8x8xf32>
    %cst_21 = arith.constant dense<0.000000e+00> : vector<8x32xf32>
    %18 = tpu.matmul %17, %13, %cst_21 {dimension_numbers = #tpu.dot_dimension_numbers<[1], [0], [0], [1], [0, 0, 1, 1], [], []>} : vector<8x8xf32>, vector<8x32xf32>, vector<8x32xf32> -> vector<8x32xf32>
    %19 = arith.addf %16, %18 : vector<8x32xf32>
    %20 = vector.extract_strided_slice %19 {offsets = [0, 0], sizes = [8, 8], strides = [1, 1]} : vector<8x32xf32> to vector<8x8xf32>
    %21 = arith.negf %20 : vector<8x8xf32>
    %22 = math.exp %21 : vector<8x8xf32>
    %cst_22 = arith.constant 1.000000e+00 : f32
    %23 = vector.broadcast %cst_22 : f32 to vector<8x8xf32>
    %24 = arith.addf %23, %22 : vector<8x8xf32>
    %25 = arith.divf %23, %24 : vector<8x8xf32>
    %26 = vector.extract_strided_slice %19 {offsets = [0, 8], sizes = [8, 8], strides = [1, 1]} : vector<8x32xf32> to vector<8x8xf32>
    %27 = arith.negf %26 : vector<8x8xf32>
    %28 = math.exp %27 : vector<8x8xf32>
    %cst_23 = arith.constant 1.000000e+00 : f32
    %29 = vector.broadcast %cst_23 : f32 to vector<8x8xf32>
    %30 = arith.addf %29, %28 : vector<8x8xf32>
    %31 = arith.divf %29, %30 : vector<8x8xf32>
    %32 = vector.extract_strided_slice %19 {offsets = [0, 16], sizes = [8, 8], strides = [1, 1]} : vector<8x32xf32> to vector<8x8xf32>
    %33 = math.tanh %32 : vector<8x8xf32>
    %34 = vector.extract_strided_slice %19 {offsets = [0, 24], sizes = [8, 8], strides = [1, 1]} : vector<8x32xf32> to vector<8x8xf32>
    %35 = arith.negf %34 : vector<8x8xf32>
    %36 = math.exp %35 : vector<8x8xf32>
    %cst_24 = arith.constant 1.000000e+00 : f32
    %37 = vector.broadcast %cst_24 : f32 to vector<8x8xf32>
    %38 = arith.addf %37, %36 : vector<8x8xf32>
    %39 = arith.divf %37, %38 : vector<8x8xf32>
    %c0_25 = arith.constant 0 : index
    %c0_26 = arith.constant 0 : index
    %40 = vector.load %arg11[%c0_25, %c0_26] : memref<8x8xf32, #tpu.memory_space<vmem>>, vector<8x8xf32>
    %41 = arith.mulf %31, %40 : vector<8x8xf32>
    %42 = arith.mulf %25, %33 : vector<8x8xf32>
    %43 = arith.addf %41, %42 : vector<8x8xf32>
    %44 = math.tanh %43 : vector<8x8xf32>
    %45 = arith.mulf %39, %44 : vector<8x8xf32>
    %c0_27 = arith.constant 0 : index
    %c0_28 = arith.constant 0 : index
    %46 = vector.load %arg11[%c0_27, %c0_28] : memref<8x8xf32, #tpu.memory_space<vmem>>, vector<8x8xf32>
    tpu.vector_store %arg11[%c0_27, %c0_28], %43 {strides = array<i32>} : memref<8x8xf32, #tpu.memory_space<vmem>>, vector<8x8xf32>,
    %c0_29 = arith.constant 0 : index
    %c0_30 = arith.constant 0 : index
    %47 = vector.load %arg10[%c0_29, %c0_30] : memref<8x8xf32, #tpu.memory_space<vmem>>, vector<8x8xf32>
    tpu.vector_store %arg10[%c0_29, %c0_30], %45 {strides = array<i32>} : memref<8x8xf32, #tpu.memory_space<vmem>>, vector<8x8xf32>,
    %48 = arith.index_cast %c0_i32 : i32 to index
    %c0_31 = arith.constant 0 : index
    %c0_32 = arith.constant 0 : index
    %49 = vector.load %arg9[%48, %c0_31, %c0_32] : memref<8x8x8xf32, #tpu.memory_space<vmem>>, vector<1x8x8xf32>
    %50 = vector.shape_cast %49 : vector<1x8x8xf32> to vector<8x8xf32>
    %51 = vector.shape_cast %45 : vector<8x8xf32> to vector<1x8x8xf32>
    tpu.vector_store %arg9[%48, %c0_31, %c0_32], %51 {strides = array<i32>} : memref<8x8x8xf32, #tpu.memory_space<vmem>>, vector<1x8x8xf32>,
    %c1_i32 = arith.constant 1 : i32
    %52 = arith.index_cast %c1_i32 : i32 to index
    %c0_33 = arith.constant 0 : index
    %c0_34 = arith.constant 0 : index
    %53 = vector.load %arg8[%52, %c0_33, %c0_34] : memref<8x8x32xf32, #tpu.memory_space<vmem>>, vector<1x8x32xf32>
    %54 = vector.shape_cast %53 : vector<1x8x32xf32> to vector<8x32xf32>
    %c0_35 = arith.constant 0 : index
    %c0_36 = arith.constant 0 : index
    %55 = vector.load %arg10[%c0_35, %c0_36] : memref<8x8xf32, #tpu.memory_space<vmem>>, vector<8x8xf32>
    %cst_37 = arith.constant dense<0.000000e+00> : vector<8x32xf32>
    %56 = tpu.matmul %55, %13, %cst_37 {dimension_numbers = #tpu.dot_dimension_numbers<[1], [0], [0], [1], [0, 0, 1, 1], [], []>} : vector<8x8xf32>, vector<8x32xf32>, vector<8x32xf32> -> vector<8x32xf32>
    %57 = arith.addf %54, %56 : vector<8x32xf32>
    %58 = vector.extract_strided_slice %57 {offsets = [0, 0], sizes = [8, 8], strides = [1, 1]} : vector<8x32xf32> to vector<8x8xf32>
    %59 = arith.negf %58 : vector<8x8xf32>
    %60 = math.exp %59 : vector<8x8xf32>
    %cst_38 = arith.constant 1.000000e+00 : f32
    %61 = vector.broadcast %cst_38 : f32 to vector<8x8xf32>
    %62 = arith.addf %61, %60 : vector<8x8xf32>
    %63 = arith.divf %61, %62 : vector<8x8xf32>
    %64 = vector.extract_strided_slice %57 {offsets = [0, 8], sizes = [8, 8], strides = [1, 1]} : vector<8x32xf32> to vector<8x8xf32>
    %65 = arith.negf %64 : vector<8x8xf32>
    %66 = math.exp %65 : vector<8x8xf32>
    %cst_39 = arith.constant 1.000000e+00 : f32
    %67 = vector.broadcast %cst_39 : f32 to vector<8x8xf32>
    %68 = arith.addf %67, %66 : vector<8x8xf32>
    %69 = arith.divf %67, %68 : vector<8x8xf32>
    %70 = vector.extract_strided_slice %57 {offsets = [0, 16], sizes = [8, 8], strides = [1, 1]} : vector<8x32xf32> to vector<8x8xf32>
    %71 = math.tanh %70 : vector<8x8xf32>
    %72 = vector.extract_strided_slice %57 {offsets = [0, 24], sizes = [8, 8], strides = [1, 1]} : vector<8x32xf32> to vector<8x8xf32>
    %73 = arith.negf %72 : vector<8x8xf32>
    %74 = math.exp %73 : vector<8x8xf32>
    %cst_40 = arith.constant 1.000000e+00 : f32
    %75 = vector.broadcast %cst_40 : f32 to vector<8x8xf32>
    %76 = arith.addf %75, %74 : vector<8x8xf32>
    %77 = arith.divf %75, %76 : vector<8x8xf32>
    %c0_41 = arith.constant 0 : index
    %c0_42 = arith.constant 0 : index
    %78 = vector.load %arg11[%c0_41, %c0_42] : memref<8x8xf32, #tpu.memory_space<vmem>>, vector<8x8xf32>
    %79 = arith.mulf %69, %78 : vector<8x8xf32>
    %80 = arith.mulf %63, %71 : vector<8x8xf32>
    %81 = arith.addf %79, %80 : vector<8x8xf32>
    %82 = math.tanh %81 : vector<8x8xf32>
    %83 = arith.mulf %77, %82 : vector<8x8xf32>
    %c0_43 = arith.constant 0 : index
    %c0_44 = arith.constant 0 : index
    %84 = vector.load %arg11[%c0_43, %c0_44] : memref<8x8xf32, #tpu.memory_space<vmem>>, vector<8x8xf32>
    tpu.vector_store %arg11[%c0_43, %c0_44], %81 {strides = array<i32>} : memref<8x8xf32, #tpu.memory_space<vmem>>, vector<8x8xf32>,
    %c0_45 = arith.constant 0 : index
    %c0_46 = arith.constant 0 : index
    %85 = vector.load %arg10[%c0_45, %c0_46] : memref<8x8xf32, #tpu.memory_space<vmem>>, vector<8x8xf32>
    tpu.vector_store %arg10[%c0_45, %c0_46], %83 {strides = array<i32>} : memref<8x8xf32, #tpu.memory_space<vmem>>, vector<8x8xf32>,
    %86 = arith.index_cast %c1_i32 : i32 to index
    %c0_47 = arith.constant 0 : index
    %c0_48 = arith.constant 0 : index
    %87 = vector.load %arg9[%86, %c0_47, %c0_48] : memref<8x8x8xf32, #tpu.memory_space<vmem>>, vector<1x8x8xf32>
    %88 = vector.shape_cast %87 : vector<1x8x8xf32> to vector<8x8xf32>
    %89 = vector.shape_cast %83 : vector<8x8xf32> to vector<1x8x8xf32>
    tpu.vector_store %arg9[%86, %c0_47, %c0_48], %89 {strides = array<i32>} : memref<8x8x8xf32, #tpu.memory_space<vmem>>, vector<1x8x8xf32>,
    %c2_i32 = arith.constant 2 : i32
    %90 = arith.index_cast %c2_i32 : i32 to index
    %c0_49 = arith.constant 0 : index
    %c0_50 = arith.constant 0 : index
    %91 = vector.load %arg8[%90, %c0_49, %c0_50] : memref<8x8x32xf32, #tpu.memory_space<vmem>>, vector<1x8x32xf32>
    %92 = vector.shape_cast %91 : vector<1x8x32xf32> to vector<8x32xf32>
    %c0_51 = arith.constant 0 : index
    %c0_52 = arith.constant 0 : index
    %93 = vector.load %arg10[%c0_51, %c0_52] : memref<8x8xf32, #tpu.memory_space<vmem>>, vector<8x8xf32>
    %cst_53 = arith.constant dense<0.000000e+00> : vector<8x32xf32>
    %94 = tpu.matmul %93, %13, %cst_53 {dimension_numbers = #tpu.dot_dimension_numbers<[1], [0], [0], [1], [0, 0, 1, 1], [], []>} : vector<8x8xf32>, vector<8x32xf32>, vector<8x32xf32> -> vector<8x32xf32>
    %95 = arith.addf %92, %94 : vector<8x32xf32>
    %96 = vector.extract_strided_slice %95 {offsets = [0, 0], sizes = [8, 8], strides = [1, 1]} : vector<8x32xf32> to vector<8x8xf32>
    %97 = arith.negf %96 : vector<8x8xf32>
    %98 = math.exp %97 : vector<8x8xf32>
    %cst_54 = arith.constant 1.000000e+00 : f32
    %99 = vector.broadcast %cst_54 : f32 to vector<8x8xf32>
    %100 = arith.addf %99, %98 : vector<8x8xf32>
    %101 = arith.divf %99, %100 : vector<8x8xf32>
    %102 = vector.extract_strided_slice %95 {offsets = [0, 8], sizes = [8, 8], strides = [1, 1]} : vector<8x32xf32> to vector<8x8xf32>
    %103 = arith.negf %102 : vector<8x8xf32>
    %104 = math.exp %103 : vector<8x8xf32>
    %cst_55 = arith.constant 1.000000e+00 : f32
    %105 = vector.broadcast %cst_55 : f32 to vector<8x8xf32>
    %106 = arith.addf %105, %104 : vector<8x8xf32>
    %107 = arith.divf %105, %106 : vector<8x8xf32>
    %108 = vector.extract_strided_slice %95 {offsets = [0, 16], sizes = [8, 8], strides = [1, 1]} : vector<8x32xf32> to vector<8x8xf32>
    %109 = math.tanh %108 : vector<8x8xf32>
    %110 = vector.extract_strided_slice %95 {offsets = [0, 24], sizes = [8, 8], strides = [1, 1]} : vector<8x32xf32> to vector<8x8xf32>
    %111 = arith.negf %110 : vector<8x8xf32>
    %112 = math.exp %111 : vector<8x8xf32>
    %cst_56 = arith.constant 1.000000e+00 : f32
    %113 = vector.broadcast %cst_56 : f32 to vector<8x8xf32>
    %114 = arith.addf %113, %112 : vector<8x8xf32>
    %115 = arith.divf %113, %114 : vector<8x8xf32>
    %c0_57 = arith.constant 0 : index
    %c0_58 = arith.constant 0 : index
    %116 = vector.load %arg11[%c0_57, %c0_58] : memref<8x8xf32, #tpu.memory_space<vmem>>, vector<8x8xf32>
    %117 = arith.mulf %107, %116 : vector<8x8xf32>
    %118 = arith.mulf %101, %109 : vector<8x8xf32>
    %119 = arith.addf %117, %118 : vector<8x8xf32>
    %120 = math.tanh %119 : vector<8x8xf32>
    %121 = arith.mulf %115, %120 : vector<8x8xf32>
    %c0_59 = arith.constant 0 : index
    %c0_60 = arith.constant 0 : index
    %122 = vector.load %arg11[%c0_59, %c0_60] : memref<8x8xf32, #tpu.memory_space<vmem>>, vector<8x8xf32>
    tpu.vector_store %arg11[%c0_59, %c0_60], %119 {strides = array<i32>} : memref<8x8xf32, #tpu.memory_space<vmem>>, vector<8x8xf32>,
    %c0_61 = arith.constant 0 : index
    %c0_62 = arith.constant 0 : index
    %123 = vector.load %arg10[%c0_61, %c0_62] : memref<8x8xf32, #tpu.memory_space<vmem>>, vector<8x8xf32>
    tpu.vector_store %arg10[%c0_61, %c0_62], %121 {strides = array<i32>} : memref<8x8xf32, #tpu.memory_space<vmem>>, vector<8x8xf32>,
    %124 = arith.index_cast %c2_i32 : i32 to index
    %c0_63 = arith.constant 0 : index
    %c0_64 = arith.constant 0 : index
    %125 = vector.load %arg9[%124, %c0_63, %c0_64] : memref<8x8x8xf32, #tpu.memory_space<vmem>>, vector<1x8x8xf32>
    %126 = vector.shape_cast %125 : vector<1x8x8xf32> to vector<8x8xf32>
    %127 = vector.shape_cast %121 : vector<8x8xf32> to vector<1x8x8xf32>
    tpu.vector_store %arg9[%124, %c0_63, %c0_64], %127 {strides = array<i32>} : memref<8x8x8xf32, #tpu.memory_space<vmem>>, vector<1x8x8xf32>,
    %c3_i32 = arith.constant 3 : i32
    %128 = arith.index_cast %c3_i32 : i32 to index
    %c0_65 = arith.constant 0 : index
    %c0_66 = arith.constant 0 : index
    %129 = vector.load %arg8[%128, %c0_65, %c0_66] : memref<8x8x32xf32, #tpu.memory_space<vmem>>, vector<1x8x32xf32>
    %130 = vector.shape_cast %129 : vector<1x8x32xf32> to vector<8x32xf32>
    %c0_67 = arith.constant 0 : index
    %c0_68 = arith.constant 0 : index
    %131 = vector.load %arg10[%c0_67, %c0_68] : memref<8x8xf32, #tpu.memory_space<vmem>>, vector<8x8xf32>
    %cst_69 = arith.constant dense<0.000000e+00> : vector<8x32xf32>
    %132 = tpu.matmul %131, %13, %cst_69 {dimension_numbers = #tpu.dot_dimension_numbers<[1], [0], [0], [1], [0, 0, 1, 1], [], []>} : vector<8x8xf32>, vector<8x32xf32>, vector<8x32xf32> -> vector<8x32xf32>
    %133 = arith.addf %130, %132 : vector<8x32xf32>
    %134 = vector.extract_strided_slice %133 {offsets = [0, 0], sizes = [8, 8], strides = [1, 1]} : vector<8x32xf32> to vector<8x8xf32>
    %135 = arith.negf %134 : vector<8x8xf32>
    %136 = math.exp %135 : vector<8x8xf32>
    %cst_70 = arith.constant 1.000000e+00 : f32
    %137 = vector.broadcast %cst_70 : f32 to vector<8x8xf32>
    %138 = arith.addf %137, %136 : vector<8x8xf32>
    %139 = arith.divf %137, %138 : vector<8x8xf32>
    %140 = vector.extract_strided_slice %133 {offsets = [0, 8], sizes = [8, 8], strides = [1, 1]} : vector<8x32xf32> to vector<8x8xf32>
    %141 = arith.negf %140 : vector<8x8xf32>
    %142 = math.exp %141 : vector<8x8xf32>
    %cst_71 = arith.constant 1.000000e+00 : f32
    %143 = vector.broadcast %cst_71 : f32 to vector<8x8xf32>
    %144 = arith.addf %143, %142 : vector<8x8xf32>
    %145 = arith.divf %143, %144 : vector<8x8xf32>
    %146 = vector.extract_strided_slice %133 {offsets = [0, 16], sizes = [8, 8], strides = [1, 1]} : vector<8x32xf32> to vector<8x8xf32>
    %147 = math.tanh %146 : vector<8x8xf32>
    %148 = vector.extract_strided_slice %133 {offsets = [0, 24], sizes = [8, 8], strides = [1, 1]} : vector<8x32xf32> to vector<8x8xf32>
    %149 = arith.negf %148 : vector<8x8xf32>
    %150 = math.exp %149 : vector<8x8xf32>
    %cst_72 = arith.constant 1.000000e+00 : f32
    %151 = vector.broadcast %cst_72 : f32 to vector<8x8xf32>
    %152 = arith.addf %151, %150 : vector<8x8xf32>
    %153 = arith.divf %151, %152 : vector<8x8xf32>
    %c0_73 = arith.constant 0 : index
    %c0_74 = arith.constant 0 : index
    %154 = vector.load %arg11[%c0_73, %c0_74] : memref<8x8xf32, #tpu.memory_space<vmem>>, vector<8x8xf32>
    %155 = arith.mulf %145, %154 : vector<8x8xf32>
    %156 = arith.mulf %139, %147 : vector<8x8xf32>
    %157 = arith.addf %155, %156 : vector<8x8xf32>
    %158 = math.tanh %157 : vector<8x8xf32>
    %159 = arith.mulf %153, %158 : vector<8x8xf32>
    %c0_75 = arith.constant 0 : index
    %c0_76 = arith.constant 0 : index
    %160 = vector.load %arg11[%c0_75, %c0_76] : memref<8x8xf32, #tpu.memory_space<vmem>>, vector<8x8xf32>
    tpu.vector_store %arg11[%c0_75, %c0_76], %157 {strides = array<i32>} : memref<8x8xf32, #tpu.memory_space<vmem>>, vector<8x8xf32>,
    %c0_77 = arith.constant 0 : index
    %c0_78 = arith.constant 0 : index
    %161 = vector.load %arg10[%c0_77, %c0_78] : memref<8x8xf32, #tpu.memory_space<vmem>>, vector<8x8xf32>
    tpu.vector_store %arg10[%c0_77, %c0_78], %159 {strides = array<i32>} : memref<8x8xf32, #tpu.memory_space<vmem>>, vector<8x8xf32>,
    %162 = arith.index_cast %c3_i32 : i32 to index
    %c0_79 = arith.constant 0 : index
    %c0_80 = arith.constant 0 : index
    %163 = vector.load %arg9[%162, %c0_79, %c0_80] : memref<8x8x8xf32, #tpu.memory_space<vmem>>, vector<1x8x8xf32>
    %164 = vector.shape_cast %163 : vector<1x8x8xf32> to vector<8x8xf32>
    %165 = vector.shape_cast %159 : vector<8x8xf32> to vector<1x8x8xf32>
    tpu.vector_store %arg9[%162, %c0_79, %c0_80], %165 {strides = array<i32>} : memref<8x8x8xf32, #tpu.memory_space<vmem>>, vector<1x8x8xf32>,
    %c4_i32 = arith.constant 4 : i32
    %166 = arith.index_cast %c4_i32 : i32 to index
    %c0_81 = arith.constant 0 : index
    %c0_82 = arith.constant 0 : index
    %167 = vector.load %arg8[%166, %c0_81, %c0_82] : memref<8x8x32xf32, #tpu.memory_space<vmem>>, vector<1x8x32xf32>
    %168 = vector.shape_cast %167 : vector<1x8x32xf32> to vector<8x32xf32>
    %c0_83 = arith.constant 0 : index
    %c0_84 = arith.constant 0 : index
    %169 = vector.load %arg10[%c0_83, %c0_84] : memref<8x8xf32, #tpu.memory_space<vmem>>, vector<8x8xf32>
    %cst_85 = arith.constant dense<0.000000e+00> : vector<8x32xf32>
    %170 = tpu.matmul %169, %13, %cst_85 {dimension_numbers = #tpu.dot_dimension_numbers<[1], [0], [0], [1], [0, 0, 1, 1], [], []>} : vector<8x8xf32>, vector<8x32xf32>, vector<8x32xf32> -> vector<8x32xf32>
    %171 = arith.addf %168, %170 : vector<8x32xf32>
    %172 = vector.extract_strided_slice %171 {offsets = [0, 0], sizes = [8, 8], strides = [1, 1]} : vector<8x32xf32> to vector<8x8xf32>
    %173 = arith.negf %172 : vector<8x8xf32>
    %174 = math.exp %173 : vector<8x8xf32>
    %cst_86 = arith.constant 1.000000e+00 : f32
    %175 = vector.broadcast %cst_86 : f32 to vector<8x8xf32>
    %176 = arith.addf %175, %174 : vector<8x8xf32>
    %177 = arith.divf %175, %176 : vector<8x8xf32>
    %178 = vector.extract_strided_slice %171 {offsets = [0, 8], sizes = [8, 8], strides = [1, 1]} : vector<8x32xf32> to vector<8x8xf32>
    %179 = arith.negf %178 : vector<8x8xf32>
    %180 = math.exp %179 : vector<8x8xf32>
    %cst_87 = arith.constant 1.000000e+00 : f32
    %181 = vector.broadcast %cst_87 : f32 to vector<8x8xf32>
    %182 = arith.addf %181, %180 : vector<8x8xf32>
    %183 = arith.divf %181, %182 : vector<8x8xf32>
    %184 = vector.extract_strided_slice %171 {offsets = [0, 16], sizes = [8, 8], strides = [1, 1]} : vector<8x32xf32> to vector<8x8xf32>
    %185 = math.tanh %184 : vector<8x8xf32>
    %186 = vector.extract_strided_slice %171 {offsets = [0, 24], sizes = [8, 8], strides = [1, 1]} : vector<8x32xf32> to vector<8x8xf32>
    %187 = arith.negf %186 : vector<8x8xf32>
    %188 = math.exp %187 : vector<8x8xf32>
    %cst_88 = arith.constant 1.000000e+00 : f32
    %189 = vector.broadcast %cst_88 : f32 to vector<8x8xf32>
    %190 = arith.addf %189, %188 : vector<8x8xf32>
    %191 = arith.divf %189, %190 : vector<8x8xf32>
    %c0_89 = arith.constant 0 : index
    %c0_90 = arith.constant 0 : index
    %192 = vector.load %arg11[%c0_89, %c0_90] : memref<8x8xf32, #tpu.memory_space<vmem>>, vector<8x8xf32>
    %193 = arith.mulf %183, %192 : vector<8x8xf32>
    %194 = arith.mulf %177, %185 : vector<8x8xf32>
    %195 = arith.addf %193, %194 : vector<8x8xf32>
    %196 = math.tanh %195 : vector<8x8xf32>
    %197 = arith.mulf %191, %196 : vector<8x8xf32>
    %c0_91 = arith.constant 0 : index
    %c0_92 = arith.constant 0 : index
    %198 = vector.load %arg11[%c0_91, %c0_92] : memref<8x8xf32, #tpu.memory_space<vmem>>, vector<8x8xf32>
    tpu.vector_store %arg11[%c0_91, %c0_92], %195 {strides = array<i32>} : memref<8x8xf32, #tpu.memory_space<vmem>>, vector<8x8xf32>,
    %c0_93 = arith.constant 0 : index
    %c0_94 = arith.constant 0 : index
    %199 = vector.load %arg10[%c0_93, %c0_94] : memref<8x8xf32, #tpu.memory_space<vmem>>, vector<8x8xf32>
    tpu.vector_store %arg10[%c0_93, %c0_94], %197 {strides = array<i32>} : memref<8x8xf32, #tpu.memory_space<vmem>>, vector<8x8xf32>,
    %200 = arith.index_cast %c4_i32 : i32 to index
    %c0_95 = arith.constant 0 : index
    %c0_96 = arith.constant 0 : index
    %201 = vector.load %arg9[%200, %c0_95, %c0_96] : memref<8x8x8xf32, #tpu.memory_space<vmem>>, vector<1x8x8xf32>
    %202 = vector.shape_cast %201 : vector<1x8x8xf32> to vector<8x8xf32>
    %203 = vector.shape_cast %197 : vector<8x8xf32> to vector<1x8x8xf32>
    tpu.vector_store %arg9[%200, %c0_95, %c0_96], %203 {strides = array<i32>} : memref<8x8x8xf32, #tpu.memory_space<vmem>>, vector<1x8x8xf32>,
    %c5_i32 = arith.constant 5 : i32
    %204 = arith.index_cast %c5_i32 : i32 to index
    %c0_97 = arith.constant 0 : index
    %c0_98 = arith.constant 0 : index
    %205 = vector.load %arg8[%204, %c0_97, %c0_98] : memref<8x8x32xf32, #tpu.memory_space<vmem>>, vector<1x8x32xf32>
    %206 = vector.shape_cast %205 : vector<1x8x32xf32> to vector<8x32xf32>
    %c0_99 = arith.constant 0 : index
    %c0_100 = arith.constant 0 : index
    %207 = vector.load %arg10[%c0_99, %c0_100] : memref<8x8xf32, #tpu.memory_space<vmem>>, vector<8x8xf32>
    %cst_101 = arith.constant dense<0.000000e+00> : vector<8x32xf32>
    %208 = tpu.matmul %207, %13, %cst_101 {dimension_numbers = #tpu.dot_dimension_numbers<[1], [0], [0], [1], [0, 0, 1, 1], [], []>} : vector<8x8xf32>, vector<8x32xf32>, vector<8x32xf32> -> vector<8x32xf32>
    %209 = arith.addf %206, %208 : vector<8x32xf32>
    %210 = vector.extract_strided_slice %209 {offsets = [0, 0], sizes = [8, 8], strides = [1, 1]} : vector<8x32xf32> to vector<8x8xf32>
    %211 = arith.negf %210 : vector<8x8xf32>
    %212 = math.exp %211 : vector<8x8xf32>
    %cst_102 = arith.constant 1.000000e+00 : f32
    %213 = vector.broadcast %cst_102 : f32 to vector<8x8xf32>
    %214 = arith.addf %213, %212 : vector<8x8xf32>
    %215 = arith.divf %213, %214 : vector<8x8xf32>
    %216 = vector.extract_strided_slice %209 {offsets = [0, 8], sizes = [8, 8], strides = [1, 1]} : vector<8x32xf32> to vector<8x8xf32>
    %217 = arith.negf %216 : vector<8x8xf32>
    %218 = math.exp %217 : vector<8x8xf32>
    %cst_103 = arith.constant 1.000000e+00 : f32
    %219 = vector.broadcast %cst_103 : f32 to vector<8x8xf32>
    %220 = arith.addf %219, %218 : vector<8x8xf32>
    %221 = arith.divf %219, %220 : vector<8x8xf32>
    %222 = vector.extract_strided_slice %209 {offsets = [0, 16], sizes = [8, 8], strides = [1, 1]} : vector<8x32xf32> to vector<8x8xf32>
    %223 = math.tanh %222 : vector<8x8xf32>
    %224 = vector.extract_strided_slice %209 {offsets = [0, 24], sizes = [8, 8], strides = [1, 1]} : vector<8x32xf32> to vector<8x8xf32>
    %225 = arith.negf %224 : vector<8x8xf32>
    %226 = math.exp %225 : vector<8x8xf32>
    %cst_104 = arith.constant 1.000000e+00 : f32
    %227 = vector.broadcast %cst_104 : f32 to vector<8x8xf32>
    %228 = arith.addf %227, %226 : vector<8x8xf32>
    %229 = arith.divf %227, %228 : vector<8x8xf32>
    %c0_105 = arith.constant 0 : index
    %c0_106 = arith.constant 0 : index
    %230 = vector.load %arg11[%c0_105, %c0_106] : memref<8x8xf32, #tpu.memory_space<vmem>>, vector<8x8xf32>
    %231 = arith.mulf %221, %230 : vector<8x8xf32>
    %232 = arith.mulf %215, %223 : vector<8x8xf32>
    %233 = arith.addf %231, %232 : vector<8x8xf32>
    %234 = math.tanh %233 : vector<8x8xf32>
    %235 = arith.mulf %229, %234 : vector<8x8xf32>
    %c0_107 = arith.constant 0 : index
    %c0_108 = arith.constant 0 : index
    %236 = vector.load %arg11[%c0_107, %c0_108] : memref<8x8xf32, #tpu.memory_space<vmem>>, vector<8x8xf32>
    tpu.vector_store %arg11[%c0_107, %c0_108], %233 {strides = array<i32>} : memref<8x8xf32, #tpu.memory_space<vmem>>, vector<8x8xf32>,
    %c0_109 = arith.constant 0 : index
    %c0_110 = arith.constant 0 : index
    %237 = vector.load %arg10[%c0_109, %c0_110] : memref<8x8xf32, #tpu.memory_space<vmem>>, vector<8x8xf32>
    tpu.vector_store %arg10[%c0_109, %c0_110], %235 {strides = array<i32>} : memref<8x8xf32, #tpu.memory_space<vmem>>, vector<8x8xf32>,
    %238 = arith.index_cast %c5_i32 : i32 to index
    %c0_111 = arith.constant 0 : index
    %c0_112 = arith.constant 0 : index
    %239 = vector.load %arg9[%238, %c0_111, %c0_112] : memref<8x8x8xf32, #tpu.memory_space<vmem>>, vector<1x8x8xf32>
    %240 = vector.shape_cast %239 : vector<1x8x8xf32> to vector<8x8xf32>
    %241 = vector.shape_cast %235 : vector<8x8xf32> to vector<1x8x8xf32>
    tpu.vector_store %arg9[%238, %c0_111, %c0_112], %241 {strides = array<i32>} : memref<8x8x8xf32, #tpu.memory_space<vmem>>, vector<1x8x8xf32>,
    %c6_i32 = arith.constant 6 : i32
    %242 = arith.index_cast %c6_i32 : i32 to index
    %c0_113 = arith.constant 0 : index
    %c0_114 = arith.constant 0 : index
    %243 = vector.load %arg8[%242, %c0_113, %c0_114] : memref<8x8x32xf32, #tpu.memory_space<vmem>>, vector<1x8x32xf32>
    %244 = vector.shape_cast %243 : vector<1x8x32xf32> to vector<8x32xf32>
    %c0_115 = arith.constant 0 : index
    %c0_116 = arith.constant 0 : index
    %245 = vector.load %arg10[%c0_115, %c0_116] : memref<8x8xf32, #tpu.memory_space<vmem>>, vector<8x8xf32>
    %cst_117 = arith.constant dense<0.000000e+00> : vector<8x32xf32>
    %246 = tpu.matmul %245, %13, %cst_117 {dimension_numbers = #tpu.dot_dimension_numbers<[1], [0], [0], [1], [0, 0, 1, 1], [], []>} : vector<8x8xf32>, vector<8x32xf32>, vector<8x32xf32> -> vector<8x32xf32>
    %247 = arith.addf %244, %246 : vector<8x32xf32>
    %248 = vector.extract_strided_slice %247 {offsets = [0, 0], sizes = [8, 8], strides = [1, 1]} : vector<8x32xf32> to vector<8x8xf32>
    %249 = arith.negf %248 : vector<8x8xf32>
    %250 = math.exp %249 : vector<8x8xf32>
    %cst_118 = arith.constant 1.000000e+00 : f32
    %251 = vector.broadcast %cst_118 : f32 to vector<8x8xf32>
    %252 = arith.addf %251, %250 : vector<8x8xf32>
    %253 = arith.divf %251, %252 : vector<8x8xf32>
    %254 = vector.extract_strided_slice %247 {offsets = [0, 8], sizes = [8, 8], strides = [1, 1]} : vector<8x32xf32> to vector<8x8xf32>
    %255 = arith.negf %254 : vector<8x8xf32>
    %256 = math.exp %255 : vector<8x8xf32>
    %cst_119 = arith.constant 1.000000e+00 : f32
    %257 = vector.broadcast %cst_119 : f32 to vector<8x8xf32>
    %258 = arith.addf %257, %256 : vector<8x8xf32>
    %259 = arith.divf %257, %258 : vector<8x8xf32>
    %260 = vector.extract_strided_slice %247 {offsets = [0, 16], sizes = [8, 8], strides = [1, 1]} : vector<8x32xf32> to vector<8x8xf32>
    %261 = math.tanh %260 : vector<8x8xf32>
    %262 = vector.extract_strided_slice %247 {offsets = [0, 24], sizes = [8, 8], strides = [1, 1]} : vector<8x32xf32> to vector<8x8xf32>
    %263 = arith.negf %262 : vector<8x8xf32>
    %264 = math.exp %263 : vector<8x8xf32>
    %cst_120 = arith.constant 1.000000e+00 : f32
    %265 = vector.broadcast %cst_120 : f32 to vector<8x8xf32>
    %266 = arith.addf %265, %264 : vector<8x8xf32>
    %267 = arith.divf %265, %266 : vector<8x8xf32>
    %c0_121 = arith.constant 0 : index
    %c0_122 = arith.constant 0 : index
    %268 = vector.load %arg11[%c0_121, %c0_122] : memref<8x8xf32, #tpu.memory_space<vmem>>, vector<8x8xf32>
    %269 = arith.mulf %259, %268 : vector<8x8xf32>
    %270 = arith.mulf %253, %261 : vector<8x8xf32>
    %271 = arith.addf %269, %270 : vector<8x8xf32>
    %272 = math.tanh %271 : vector<8x8xf32>
    %273 = arith.mulf %267, %272 : vector<8x8xf32>
    %c0_123 = arith.constant 0 : index
    %c0_124 = arith.constant 0 : index
    %274 = vector.load %arg11[%c0_123, %c0_124] : memref<8x8xf32, #tpu.memory_space<vmem>>, vector<8x8xf32>
    tpu.vector_store %arg11[%c0_123, %c0_124], %271 {strides = array<i32>} : memref<8x8xf32, #tpu.memory_space<vmem>>, vector<8x8xf32>,
    %c0_125 = arith.constant 0 : index
    %c0_126 = arith.constant 0 : index
    %275 = vector.load %arg10[%c0_125, %c0_126] : memref<8x8xf32, #tpu.memory_space<vmem>>, vector<8x8xf32>
    tpu.vector_store %arg10[%c0_125, %c0_126], %273 {strides = array<i32>} : memref<8x8xf32, #tpu.memory_space<vmem>>, vector<8x8xf32>,
    %276 = arith.index_cast %c6_i32 : i32 to index
    %c0_127 = arith.constant 0 : index
    %c0_128 = arith.constant 0 : index
    %277 = vector.load %arg9[%276, %c0_127, %c0_128] : memref<8x8x8xf32, #tpu.memory_space<vmem>>, vector<1x8x8xf32>
    %278 = vector.shape_cast %277 : vector<1x8x8xf32> to vector<8x8xf32>
    %279 = vector.shape_cast %273 : vector<8x8xf32> to vector<1x8x8xf32>
    tpu.vector_store %arg9[%276, %c0_127, %c0_128], %279 {strides = array<i32>} : memref<8x8x8xf32, #tpu.memory_space<vmem>>, vector<1x8x8xf32>,
    %c7_i32 = arith.constant 7 : i32
    %280 = arith.index_cast %c7_i32 : i32 to index
    %c0_129 = arith.constant 0 : index
    %c0_130 = arith.constant 0 : index
    %281 = vector.load %arg8[%280, %c0_129, %c0_130] : memref<8x8x32xf32, #tpu.memory_space<vmem>>, vector<1x8x32xf32>
    %282 = vector.shape_cast %281 : vector<1x8x32xf32> to vector<8x32xf32>
    %c0_131 = arith.constant 0 : index
    %c0_132 = arith.constant 0 : index
    %283 = vector.load %arg10[%c0_131, %c0_132] : memref<8x8xf32, #tpu.memory_space<vmem>>, vector<8x8xf32>
    %cst_133 = arith.constant dense<0.000000e+00> : vector<8x32xf32>
    %284 = tpu.matmul %283, %13, %cst_133 {dimension_numbers = #tpu.dot_dimension_numbers<[1], [0], [0], [1], [0, 0, 1, 1], [], []>} : vector<8x8xf32>, vector<8x32xf32>, vector<8x32xf32> -> vector<8x32xf32>
    %285 = arith.addf %282, %284 : vector<8x32xf32>
    %286 = vector.extract_strided_slice %285 {offsets = [0, 0], sizes = [8, 8], strides = [1, 1]} : vector<8x32xf32> to vector<8x8xf32>
    %287 = arith.negf %286 : vector<8x8xf32>
    %288 = math.exp %287 : vector<8x8xf32>
    %cst_134 = arith.constant 1.000000e+00 : f32
    %289 = vector.broadcast %cst_134 : f32 to vector<8x8xf32>
    %290 = arith.addf %289, %288 : vector<8x8xf32>
    %291 = arith.divf %289, %290 : vector<8x8xf32>
    %292 = vector.extract_strided_slice %285 {offsets = [0, 8], sizes = [8, 8], strides = [1, 1]} : vector<8x32xf32> to vector<8x8xf32>
    %293 = arith.negf %292 : vector<8x8xf32>
    %294 = math.exp %293 : vector<8x8xf32>
    %cst_135 = arith.constant 1.000000e+00 : f32
    %295 = vector.broadcast %cst_135 : f32 to vector<8x8xf32>
    %296 = arith.addf %295, %294 : vector<8x8xf32>
    %297 = arith.divf %295, %296 : vector<8x8xf32>
    %298 = vector.extract_strided_slice %285 {offsets = [0, 16], sizes = [8, 8], strides = [1, 1]} : vector<8x32xf32> to vector<8x8xf32>
    %299 = math.tanh %298 : vector<8x8xf32>
    %300 = vector.extract_strided_slice %285 {offsets = [0, 24], sizes = [8, 8], strides = [1, 1]} : vector<8x32xf32> to vector<8x8xf32>
    %301 = arith.negf %300 : vector<8x8xf32>
    %302 = math.exp %301 : vector<8x8xf32>
    %cst_136 = arith.constant 1.000000e+00 : f32
    %303 = vector.broadcast %cst_136 : f32 to vector<8x8xf32>
    %304 = arith.addf %303, %302 : vector<8x8xf32>
    %305 = arith.divf %303, %304 : vector<8x8xf32>
    %c0_137 = arith.constant 0 : index
    %c0_138 = arith.constant 0 : index
    %306 = vector.load %arg11[%c0_137, %c0_138] : memref<8x8xf32, #tpu.memory_space<vmem>>, vector<8x8xf32>
    %307 = arith.mulf %297, %306 : vector<8x8xf32>
    %308 = arith.mulf %291, %299 : vector<8x8xf32>
    %309 = arith.addf %307, %308 : vector<8x8xf32>
    %310 = math.tanh %309 : vector<8x8xf32>
    %311 = arith.mulf %305, %310 : vector<8x8xf32>
    %c0_139 = arith.constant 0 : index
    %c0_140 = arith.constant 0 : index
    %312 = vector.load %arg11[%c0_139, %c0_140] : memref<8x8xf32, #tpu.memory_space<vmem>>, vector<8x8xf32>
    tpu.vector_store %arg11[%c0_139, %c0_140], %309 {strides = array<i32>} : memref<8x8xf32, #tpu.memory_space<vmem>>, vector<8x8xf32>,
    %c0_141 = arith.constant 0 : index
    %c0_142 = arith.constant 0 : index
    %313 = vector.load %arg10[%c0_141, %c0_142] : memref<8x8xf32, #tpu.memory_space<vmem>>, vector<8x8xf32>
    tpu.vector_store %arg10[%c0_141, %c0_142], %311 {strides = array<i32>} : memref<8x8xf32, #tpu.memory_space<vmem>>, vector<8x8xf32>,
    %314 = arith.index_cast %c7_i32 : i32 to index
    %c0_143 = arith.constant 0 : index
    %c0_144 = arith.constant 0 : index
    %315 = vector.load %arg9[%314, %c0_143, %c0_144] : memref<8x8x8xf32, #tpu.memory_space<vmem>>, vector<1x8x8xf32>
    %316 = vector.shape_cast %315 : vector<1x8x8xf32> to vector<8x8xf32>
    %317 = vector.shape_cast %311 : vector<8x8xf32> to vector<1x8x8xf32>
    tpu.vector_store %arg9[%314, %c0_143, %c0_144], %317 {strides = array<i32>} : memref<8x8x8xf32, #tpu.memory_space<vmem>>, vector<1x8x8xf32>,
    %c8_i32 = arith.constant 8 : i32
    %c0_145 = arith.constant 0 : index
    %c0_146 = arith.constant 0 : index
    %c0_147 = arith.constant 0 : index
    %318 = vector.load %arg9[%c0_145, %c0_146, %c0_147] : memref<8x8x8xf32, #tpu.memory_space<vmem>>, vector<8x8x8xf32>
    %319 = vector.shape_cast %318 : vector<8x8x8xf32> to vector<64x8xf32>
    %c0_148 = arith.constant 0 : index
    %c0_149 = arith.constant 0 : index
    %320 = vector.load %arg5[%c0_148, %c0_149] : memref<8x16xf32, #tpu.memory_space<vmem>>, vector<8x16xf32>
    %cst_150 = arith.constant dense<0.000000e+00> : vector<64x16xf32>
    %321 = tpu.matmul %319, %320, %cst_150 {dimension_numbers = #tpu.dot_dimension_numbers<[1], [0], [0], [1], [0, 0, 1, 1], [], []>} : vector<64x8xf32>, vector<8x16xf32>, vector<64x16xf32> -> vector<64x16xf32>
    %c0_151 = arith.constant 0 : index
    %c0_152 = arith.constant 0 : index
    %322 = vector.load %arg6[%c0_151, %c0_152] : memref<1x16xf32, #tpu.memory_space<vmem>>, vector<1x16xf32>
    %323 = vector.broadcast %322 : vector<1x16xf32> to vector<64x16xf32>
    %324 = arith.addf %321, %323 : vector<64x16xf32>
    %325 = vector.shape_cast %324 : vector<64x16xf32> to vector<8x8x16xf32>
    %c0_153 = arith.constant 0 : index
    %c0_154 = arith.constant 0 : index
    %c0_155 = arith.constant 0 : index
    %326 = vector.load %arg7[%c0_153, %c0_154, %c0_155] : memref<8x8x16xf32, #tpu.memory_space<vmem>>, vector<8x8x16xf32>
    tpu.vector_store %arg7[%c0_153, %c0_154, %c0_155], %325 {strides = array<i32>} : memref<8x8x16xf32, #tpu.memory_space<vmem>>, vector<8x8x16xf32>,
    return
  }
  func.func @transform_0(%arg0: i32) -> (i32, i32, i32) {
    %c0_i32 = arith.constant 0 : i32
    %c0_i32_0 = arith.constant 0 : i32
    %c0_i32_1 = arith.constant 0 : i32
    return %c0_i32, %arg0, %c0_i32_0 : i32, i32, i32
  }
  func.func @transform_1(%arg0: i32) -> (i32, i32) {
    %c0_i32 = arith.constant 0 : i32
    %c0_i32_0 = arith.constant 0 : i32
    %c0_i32_1 = arith.constant 0 : i32
    return %c0_i32, %c0_i32_0 : i32, i32
  }
  func.func @transform_2(%arg0: i32) -> (i32, i32) {
    %c0_i32 = arith.constant 0 : i32
    %c0_i32_0 = arith.constant 0 : i32
    %c0_i32_1 = arith.constant 0 : i32
    return %c0_i32, %c0_i32_0 : i32, i32
  }
  func.func @transform_3(%arg0: i32) -> (i32, i32) {
    %c0_i32 = arith.constant 0 : i32
    %c0_i32_0 = arith.constant 0 : i32
    %c0_i32_1 = arith.constant 0 : i32
    return %c0_i32, %c0_i32_0 : i32, i32
  }
  func.func @transform_4(%arg0: i32) -> (i32, i32) {
    %c0_i32 = arith.constant 0 : i32
    %c0_i32_0 = arith.constant 0 : i32
    %c0_i32_1 = arith.constant 0 : i32
    return %c0_i32, %c0_i32_0 : i32, i32
  }
  func.func @transform_5(%arg0: i32) -> (i32, i32) {
    %c0_i32 = arith.constant 0 : i32
    %c0_i32_0 = arith.constant 0 : i32
    %c0_i32_1 = arith.constant 0 : i32
    return %c0_i32, %c0_i32_0 : i32, i32
  }
  func.func @transform_6(%arg0: i32) -> (i32, i32, i32) {
    %c0_i32 = arith.constant 0 : i32
    %c0_i32_0 = arith.constant 0 : i32
    %c0_i32_1 = arith.constant 0 : i32
    return %c0_i32, %arg0, %c0_i32_0 : i32, i32, i32
  }
}

module attributes {stable_mosaic.version = 11 : i64} {
  func.func @lstm_kernel(%arg0: i32, %arg1: memref<4x16x16xf32, #tpu.memory_space<vmem>>, %arg2: memref<16x64xf32, #tpu.memory_space<vmem>>, %arg3: memref<16x64xf32, #tpu.memory_space<vmem>>, %arg4: memref<1x64xf32, #tpu.memory_space<vmem>>, %arg5: memref<16x16xf32, #tpu.memory_space<vmem>>, %arg6: memref<1x16xf32, #tpu.memory_space<vmem>>, %arg7: memref<4x16x16xf32, #tpu.memory_space<vmem>>, %arg8: memref<4x16x64xf32, #tpu.memory_space<vmem>>, %arg9: memref<4x16x16xf32, #tpu.memory_space<vmem>>, %arg10: memref<16x16xf32, #tpu.memory_space<vmem>>, %arg11: memref<16x16xf32, #tpu.memory_space<vmem>>) attributes {dimension_semantics = [#tpu.dimension_semantics<parallel>], iteration_bounds = array<i64: 1>, scalar_prefetch = 0 : i64, scratch_operands = 4 : i64, tpu.core_type = #tpu.core_type<tc>, window_params = [{transform_indices = @transform_0, window_bounds = array<i64: 4, 16, 16>}, {pipeline_mode = #tpu.pipeline_mode<synchronous>, transform_indices = @transform_1, window_bounds = array<i64: 16, 64>}, {pipeline_mode = #tpu.pipeline_mode<synchronous>, transform_indices = @transform_2, window_bounds = array<i64: 16, 64>}, {pipeline_mode = #tpu.pipeline_mode<synchronous>, transform_indices = @transform_3, window_bounds = array<i64: 1, 64>}, {pipeline_mode = #tpu.pipeline_mode<synchronous>, transform_indices = @transform_4, window_bounds = array<i64: 16, 16>}, {pipeline_mode = #tpu.pipeline_mode<synchronous>, transform_indices = @transform_5, window_bounds = array<i64: 1, 16>}, {transform_indices = @transform_6, window_bounds = array<i64: 4, 16, 16>}]} {
    %c0 = arith.constant 0 : index
    %c0_0 = arith.constant 0 : index
    %c0_1 = arith.constant 0 : index
    %0 = vector.load %arg1[%c0, %c0_0, %c0_1] : memref<4x16x16xf32, #tpu.memory_space<vmem>>, vector<4x16x16xf32>
    %1 = vector.shape_cast %0 : vector<4x16x16xf32> to vector<64x16xf32>
    %c0_2 = arith.constant 0 : index
    %c0_3 = arith.constant 0 : index
    %2 = vector.load %arg2[%c0_2, %c0_3] : memref<16x64xf32, #tpu.memory_space<vmem>>, vector<16x64xf32>
    %cst = arith.constant dense<0.000000e+00> : vector<64x64xf32>
    %3 = tpu.matmul %1, %2, %cst {dimension_numbers = #tpu.dot_dimension_numbers<[1], [0], [0], [1], [0, 0, 1, 1], [], []>} : vector<64x16xf32>, vector<16x64xf32>, vector<64x64xf32> -> vector<64x64xf32>
    %c0_4 = arith.constant 0 : index
    %c0_5 = arith.constant 0 : index
    %4 = vector.load %arg4[%c0_4, %c0_5] : memref<1x64xf32, #tpu.memory_space<vmem>>, vector<1x64xf32>
    %5 = vector.broadcast %4 : vector<1x64xf32> to vector<64x64xf32>
    %6 = arith.addf %3, %5 : vector<64x64xf32>
    %7 = vector.shape_cast %6 : vector<64x64xf32> to vector<4x16x64xf32>
    %c0_6 = arith.constant 0 : index
    %c0_7 = arith.constant 0 : index
    %c0_8 = arith.constant 0 : index
    %8 = vector.load %arg8[%c0_6, %c0_7, %c0_8] : memref<4x16x64xf32, #tpu.memory_space<vmem>>, vector<4x16x64xf32>
    tpu.vector_store %arg8[%c0_6, %c0_7, %c0_8], %7 {strides = array<i32>} : memref<4x16x64xf32, #tpu.memory_space<vmem>>, vector<4x16x64xf32>,
    %cst_9 = arith.constant 0.000000e+00 : f32
    %9 = vector.broadcast %cst_9 : f32 to vector<16x16xf32>
    %c0_10 = arith.constant 0 : index
    %c0_11 = arith.constant 0 : index
    %10 = vector.load %arg10[%c0_10, %c0_11] : memref<16x16xf32, #tpu.memory_space<vmem>>, vector<16x16xf32>
    tpu.vector_store %arg10[%c0_10, %c0_11], %9 {strides = array<i32>} : memref<16x16xf32, #tpu.memory_space<vmem>>, vector<16x16xf32>,
    %cst_12 = arith.constant 0.000000e+00 : f32
    %11 = vector.broadcast %cst_12 : f32 to vector<16x16xf32>
    %c0_13 = arith.constant 0 : index
    %c0_14 = arith.constant 0 : index
    %12 = vector.load %arg11[%c0_13, %c0_14] : memref<16x16xf32, #tpu.memory_space<vmem>>, vector<16x16xf32>
    tpu.vector_store %arg11[%c0_13, %c0_14], %11 {strides = array<i32>} : memref<16x16xf32, #tpu.memory_space<vmem>>, vector<16x16xf32>,
    %c0_15 = arith.constant 0 : index
    %c0_16 = arith.constant 0 : index
    %13 = vector.load %arg3[%c0_15, %c0_16] : memref<16x64xf32, #tpu.memory_space<vmem>>, vector<16x64xf32>
    %c0_i32 = arith.constant 0 : i32
    %14 = arith.index_cast %c0_i32 : i32 to index
    %c0_17 = arith.constant 0 : index
    %c0_18 = arith.constant 0 : index
    %15 = vector.load %arg8[%14, %c0_17, %c0_18] : memref<4x16x64xf32, #tpu.memory_space<vmem>>, vector<1x16x64xf32>
    %16 = vector.shape_cast %15 : vector<1x16x64xf32> to vector<16x64xf32>
    %c0_19 = arith.constant 0 : index
    %c0_20 = arith.constant 0 : index
    %17 = vector.load %arg10[%c0_19, %c0_20] : memref<16x16xf32, #tpu.memory_space<vmem>>, vector<16x16xf32>
    %cst_21 = arith.constant dense<0.000000e+00> : vector<16x64xf32>
    %18 = tpu.matmul %17, %13, %cst_21 {dimension_numbers = #tpu.dot_dimension_numbers<[1], [0], [0], [1], [0, 0, 1, 1], [], []>} : vector<16x16xf32>, vector<16x64xf32>, vector<16x64xf32> -> vector<16x64xf32>
    %19 = arith.addf %16, %18 : vector<16x64xf32>
    %20 = vector.extract_strided_slice %19 {offsets = [0, 0], sizes = [16, 16], strides = [1, 1]} : vector<16x64xf32> to vector<16x16xf32>
    %21 = arith.negf %20 : vector<16x16xf32>
    %22 = math.exp %21 : vector<16x16xf32>
    %cst_22 = arith.constant 1.000000e+00 : f32
    %23 = vector.broadcast %cst_22 : f32 to vector<16x16xf32>
    %24 = arith.addf %23, %22 : vector<16x16xf32>
    %25 = arith.divf %23, %24 : vector<16x16xf32>
    %26 = vector.extract_strided_slice %19 {offsets = [0, 16], sizes = [16, 16], strides = [1, 1]} : vector<16x64xf32> to vector<16x16xf32>
    %27 = arith.negf %26 : vector<16x16xf32>
    %28 = math.exp %27 : vector<16x16xf32>
    %cst_23 = arith.constant 1.000000e+00 : f32
    %29 = vector.broadcast %cst_23 : f32 to vector<16x16xf32>
    %30 = arith.addf %29, %28 : vector<16x16xf32>
    %31 = arith.divf %29, %30 : vector<16x16xf32>
    %32 = vector.extract_strided_slice %19 {offsets = [0, 32], sizes = [16, 16], strides = [1, 1]} : vector<16x64xf32> to vector<16x16xf32>
    %33 = math.tanh %32 : vector<16x16xf32>
    %34 = vector.extract_strided_slice %19 {offsets = [0, 48], sizes = [16, 16], strides = [1, 1]} : vector<16x64xf32> to vector<16x16xf32>
    %35 = arith.negf %34 : vector<16x16xf32>
    %36 = math.exp %35 : vector<16x16xf32>
    %cst_24 = arith.constant 1.000000e+00 : f32
    %37 = vector.broadcast %cst_24 : f32 to vector<16x16xf32>
    %38 = arith.addf %37, %36 : vector<16x16xf32>
    %39 = arith.divf %37, %38 : vector<16x16xf32>
    %c0_25 = arith.constant 0 : index
    %c0_26 = arith.constant 0 : index
    %40 = vector.load %arg11[%c0_25, %c0_26] : memref<16x16xf32, #tpu.memory_space<vmem>>, vector<16x16xf32>
    %41 = arith.mulf %31, %40 : vector<16x16xf32>
    %42 = arith.mulf %25, %33 : vector<16x16xf32>
    %43 = arith.addf %41, %42 : vector<16x16xf32>
    %44 = math.tanh %43 : vector<16x16xf32>
    %45 = arith.mulf %39, %44 : vector<16x16xf32>
    %c0_27 = arith.constant 0 : index
    %c0_28 = arith.constant 0 : index
    %46 = vector.load %arg11[%c0_27, %c0_28] : memref<16x16xf32, #tpu.memory_space<vmem>>, vector<16x16xf32>
    tpu.vector_store %arg11[%c0_27, %c0_28], %43 {strides = array<i32>} : memref<16x16xf32, #tpu.memory_space<vmem>>, vector<16x16xf32>,
    %c0_29 = arith.constant 0 : index
    %c0_30 = arith.constant 0 : index
    %47 = vector.load %arg10[%c0_29, %c0_30] : memref<16x16xf32, #tpu.memory_space<vmem>>, vector<16x16xf32>
    tpu.vector_store %arg10[%c0_29, %c0_30], %45 {strides = array<i32>} : memref<16x16xf32, #tpu.memory_space<vmem>>, vector<16x16xf32>,
    %48 = arith.index_cast %c0_i32 : i32 to index
    %c0_31 = arith.constant 0 : index
    %c0_32 = arith.constant 0 : index
    %49 = vector.load %arg9[%48, %c0_31, %c0_32] : memref<4x16x16xf32, #tpu.memory_space<vmem>>, vector<1x16x16xf32>
    %50 = vector.shape_cast %49 : vector<1x16x16xf32> to vector<16x16xf32>
    %51 = vector.shape_cast %45 : vector<16x16xf32> to vector<1x16x16xf32>
    tpu.vector_store %arg9[%48, %c0_31, %c0_32], %51 {strides = array<i32>} : memref<4x16x16xf32, #tpu.memory_space<vmem>>, vector<1x16x16xf32>,
    %c1_i32 = arith.constant 1 : i32
    %52 = arith.index_cast %c1_i32 : i32 to index
    %c0_33 = arith.constant 0 : index
    %c0_34 = arith.constant 0 : index
    %53 = vector.load %arg8[%52, %c0_33, %c0_34] : memref<4x16x64xf32, #tpu.memory_space<vmem>>, vector<1x16x64xf32>
    %54 = vector.shape_cast %53 : vector<1x16x64xf32> to vector<16x64xf32>
    %c0_35 = arith.constant 0 : index
    %c0_36 = arith.constant 0 : index
    %55 = vector.load %arg10[%c0_35, %c0_36] : memref<16x16xf32, #tpu.memory_space<vmem>>, vector<16x16xf32>
    %cst_37 = arith.constant dense<0.000000e+00> : vector<16x64xf32>
    %56 = tpu.matmul %55, %13, %cst_37 {dimension_numbers = #tpu.dot_dimension_numbers<[1], [0], [0], [1], [0, 0, 1, 1], [], []>} : vector<16x16xf32>, vector<16x64xf32>, vector<16x64xf32> -> vector<16x64xf32>
    %57 = arith.addf %54, %56 : vector<16x64xf32>
    %58 = vector.extract_strided_slice %57 {offsets = [0, 0], sizes = [16, 16], strides = [1, 1]} : vector<16x64xf32> to vector<16x16xf32>
    %59 = arith.negf %58 : vector<16x16xf32>
    %60 = math.exp %59 : vector<16x16xf32>
    %cst_38 = arith.constant 1.000000e+00 : f32
    %61 = vector.broadcast %cst_38 : f32 to vector<16x16xf32>
    %62 = arith.addf %61, %60 : vector<16x16xf32>
    %63 = arith.divf %61, %62 : vector<16x16xf32>
    %64 = vector.extract_strided_slice %57 {offsets = [0, 16], sizes = [16, 16], strides = [1, 1]} : vector<16x64xf32> to vector<16x16xf32>
    %65 = arith.negf %64 : vector<16x16xf32>
    %66 = math.exp %65 : vector<16x16xf32>
    %cst_39 = arith.constant 1.000000e+00 : f32
    %67 = vector.broadcast %cst_39 : f32 to vector<16x16xf32>
    %68 = arith.addf %67, %66 : vector<16x16xf32>
    %69 = arith.divf %67, %68 : vector<16x16xf32>
    %70 = vector.extract_strided_slice %57 {offsets = [0, 32], sizes = [16, 16], strides = [1, 1]} : vector<16x64xf32> to vector<16x16xf32>
    %71 = math.tanh %70 : vector<16x16xf32>
    %72 = vector.extract_strided_slice %57 {offsets = [0, 48], sizes = [16, 16], strides = [1, 1]} : vector<16x64xf32> to vector<16x16xf32>
    %73 = arith.negf %72 : vector<16x16xf32>
    %74 = math.exp %73 : vector<16x16xf32>
    %cst_40 = arith.constant 1.000000e+00 : f32
    %75 = vector.broadcast %cst_40 : f32 to vector<16x16xf32>
    %76 = arith.addf %75, %74 : vector<16x16xf32>
    %77 = arith.divf %75, %76 : vector<16x16xf32>
    %c0_41 = arith.constant 0 : index
    %c0_42 = arith.constant 0 : index
    %78 = vector.load %arg11[%c0_41, %c0_42] : memref<16x16xf32, #tpu.memory_space<vmem>>, vector<16x16xf32>
    %79 = arith.mulf %69, %78 : vector<16x16xf32>
    %80 = arith.mulf %63, %71 : vector<16x16xf32>
    %81 = arith.addf %79, %80 : vector<16x16xf32>
    %82 = math.tanh %81 : vector<16x16xf32>
    %83 = arith.mulf %77, %82 : vector<16x16xf32>
    %c0_43 = arith.constant 0 : index
    %c0_44 = arith.constant 0 : index
    %84 = vector.load %arg11[%c0_43, %c0_44] : memref<16x16xf32, #tpu.memory_space<vmem>>, vector<16x16xf32>
    tpu.vector_store %arg11[%c0_43, %c0_44], %81 {strides = array<i32>} : memref<16x16xf32, #tpu.memory_space<vmem>>, vector<16x16xf32>,
    %c0_45 = arith.constant 0 : index
    %c0_46 = arith.constant 0 : index
    %85 = vector.load %arg10[%c0_45, %c0_46] : memref<16x16xf32, #tpu.memory_space<vmem>>, vector<16x16xf32>
    tpu.vector_store %arg10[%c0_45, %c0_46], %83 {strides = array<i32>} : memref<16x16xf32, #tpu.memory_space<vmem>>, vector<16x16xf32>,
    %86 = arith.index_cast %c1_i32 : i32 to index
    %c0_47 = arith.constant 0 : index
    %c0_48 = arith.constant 0 : index
    %87 = vector.load %arg9[%86, %c0_47, %c0_48] : memref<4x16x16xf32, #tpu.memory_space<vmem>>, vector<1x16x16xf32>
    %88 = vector.shape_cast %87 : vector<1x16x16xf32> to vector<16x16xf32>
    %89 = vector.shape_cast %83 : vector<16x16xf32> to vector<1x16x16xf32>
    tpu.vector_store %arg9[%86, %c0_47, %c0_48], %89 {strides = array<i32>} : memref<4x16x16xf32, #tpu.memory_space<vmem>>, vector<1x16x16xf32>,
    %c2_i32 = arith.constant 2 : i32
    %90 = arith.index_cast %c2_i32 : i32 to index
    %c0_49 = arith.constant 0 : index
    %c0_50 = arith.constant 0 : index
    %91 = vector.load %arg8[%90, %c0_49, %c0_50] : memref<4x16x64xf32, #tpu.memory_space<vmem>>, vector<1x16x64xf32>
    %92 = vector.shape_cast %91 : vector<1x16x64xf32> to vector<16x64xf32>
    %c0_51 = arith.constant 0 : index
    %c0_52 = arith.constant 0 : index
    %93 = vector.load %arg10[%c0_51, %c0_52] : memref<16x16xf32, #tpu.memory_space<vmem>>, vector<16x16xf32>
    %cst_53 = arith.constant dense<0.000000e+00> : vector<16x64xf32>
    %94 = tpu.matmul %93, %13, %cst_53 {dimension_numbers = #tpu.dot_dimension_numbers<[1], [0], [0], [1], [0, 0, 1, 1], [], []>} : vector<16x16xf32>, vector<16x64xf32>, vector<16x64xf32> -> vector<16x64xf32>
    %95 = arith.addf %92, %94 : vector<16x64xf32>
    %96 = vector.extract_strided_slice %95 {offsets = [0, 0], sizes = [16, 16], strides = [1, 1]} : vector<16x64xf32> to vector<16x16xf32>
    %97 = arith.negf %96 : vector<16x16xf32>
    %98 = math.exp %97 : vector<16x16xf32>
    %cst_54 = arith.constant 1.000000e+00 : f32
    %99 = vector.broadcast %cst_54 : f32 to vector<16x16xf32>
    %100 = arith.addf %99, %98 : vector<16x16xf32>
    %101 = arith.divf %99, %100 : vector<16x16xf32>
    %102 = vector.extract_strided_slice %95 {offsets = [0, 16], sizes = [16, 16], strides = [1, 1]} : vector<16x64xf32> to vector<16x16xf32>
    %103 = arith.negf %102 : vector<16x16xf32>
    %104 = math.exp %103 : vector<16x16xf32>
    %cst_55 = arith.constant 1.000000e+00 : f32
    %105 = vector.broadcast %cst_55 : f32 to vector<16x16xf32>
    %106 = arith.addf %105, %104 : vector<16x16xf32>
    %107 = arith.divf %105, %106 : vector<16x16xf32>
    %108 = vector.extract_strided_slice %95 {offsets = [0, 32], sizes = [16, 16], strides = [1, 1]} : vector<16x64xf32> to vector<16x16xf32>
    %109 = math.tanh %108 : vector<16x16xf32>
    %110 = vector.extract_strided_slice %95 {offsets = [0, 48], sizes = [16, 16], strides = [1, 1]} : vector<16x64xf32> to vector<16x16xf32>
    %111 = arith.negf %110 : vector<16x16xf32>
    %112 = math.exp %111 : vector<16x16xf32>
    %cst_56 = arith.constant 1.000000e+00 : f32
    %113 = vector.broadcast %cst_56 : f32 to vector<16x16xf32>
    %114 = arith.addf %113, %112 : vector<16x16xf32>
    %115 = arith.divf %113, %114 : vector<16x16xf32>
    %c0_57 = arith.constant 0 : index
    %c0_58 = arith.constant 0 : index
    %116 = vector.load %arg11[%c0_57, %c0_58] : memref<16x16xf32, #tpu.memory_space<vmem>>, vector<16x16xf32>
    %117 = arith.mulf %107, %116 : vector<16x16xf32>
    %118 = arith.mulf %101, %109 : vector<16x16xf32>
    %119 = arith.addf %117, %118 : vector<16x16xf32>
    %120 = math.tanh %119 : vector<16x16xf32>
    %121 = arith.mulf %115, %120 : vector<16x16xf32>
    %c0_59 = arith.constant 0 : index
    %c0_60 = arith.constant 0 : index
    %122 = vector.load %arg11[%c0_59, %c0_60] : memref<16x16xf32, #tpu.memory_space<vmem>>, vector<16x16xf32>
    tpu.vector_store %arg11[%c0_59, %c0_60], %119 {strides = array<i32>} : memref<16x16xf32, #tpu.memory_space<vmem>>, vector<16x16xf32>,
    %c0_61 = arith.constant 0 : index
    %c0_62 = arith.constant 0 : index
    %123 = vector.load %arg10[%c0_61, %c0_62] : memref<16x16xf32, #tpu.memory_space<vmem>>, vector<16x16xf32>
    tpu.vector_store %arg10[%c0_61, %c0_62], %121 {strides = array<i32>} : memref<16x16xf32, #tpu.memory_space<vmem>>, vector<16x16xf32>,
    %124 = arith.index_cast %c2_i32 : i32 to index
    %c0_63 = arith.constant 0 : index
    %c0_64 = arith.constant 0 : index
    %125 = vector.load %arg9[%124, %c0_63, %c0_64] : memref<4x16x16xf32, #tpu.memory_space<vmem>>, vector<1x16x16xf32>
    %126 = vector.shape_cast %125 : vector<1x16x16xf32> to vector<16x16xf32>
    %127 = vector.shape_cast %121 : vector<16x16xf32> to vector<1x16x16xf32>
    tpu.vector_store %arg9[%124, %c0_63, %c0_64], %127 {strides = array<i32>} : memref<4x16x16xf32, #tpu.memory_space<vmem>>, vector<1x16x16xf32>,
    %c3_i32 = arith.constant 3 : i32
    %128 = arith.index_cast %c3_i32 : i32 to index
    %c0_65 = arith.constant 0 : index
    %c0_66 = arith.constant 0 : index
    %129 = vector.load %arg8[%128, %c0_65, %c0_66] : memref<4x16x64xf32, #tpu.memory_space<vmem>>, vector<1x16x64xf32>
    %130 = vector.shape_cast %129 : vector<1x16x64xf32> to vector<16x64xf32>
    %c0_67 = arith.constant 0 : index
    %c0_68 = arith.constant 0 : index
    %131 = vector.load %arg10[%c0_67, %c0_68] : memref<16x16xf32, #tpu.memory_space<vmem>>, vector<16x16xf32>
    %cst_69 = arith.constant dense<0.000000e+00> : vector<16x64xf32>
    %132 = tpu.matmul %131, %13, %cst_69 {dimension_numbers = #tpu.dot_dimension_numbers<[1], [0], [0], [1], [0, 0, 1, 1], [], []>} : vector<16x16xf32>, vector<16x64xf32>, vector<16x64xf32> -> vector<16x64xf32>
    %133 = arith.addf %130, %132 : vector<16x64xf32>
    %134 = vector.extract_strided_slice %133 {offsets = [0, 0], sizes = [16, 16], strides = [1, 1]} : vector<16x64xf32> to vector<16x16xf32>
    %135 = arith.negf %134 : vector<16x16xf32>
    %136 = math.exp %135 : vector<16x16xf32>
    %cst_70 = arith.constant 1.000000e+00 : f32
    %137 = vector.broadcast %cst_70 : f32 to vector<16x16xf32>
    %138 = arith.addf %137, %136 : vector<16x16xf32>
    %139 = arith.divf %137, %138 : vector<16x16xf32>
    %140 = vector.extract_strided_slice %133 {offsets = [0, 16], sizes = [16, 16], strides = [1, 1]} : vector<16x64xf32> to vector<16x16xf32>
    %141 = arith.negf %140 : vector<16x16xf32>
    %142 = math.exp %141 : vector<16x16xf32>
    %cst_71 = arith.constant 1.000000e+00 : f32
    %143 = vector.broadcast %cst_71 : f32 to vector<16x16xf32>
    %144 = arith.addf %143, %142 : vector<16x16xf32>
    %145 = arith.divf %143, %144 : vector<16x16xf32>
    %146 = vector.extract_strided_slice %133 {offsets = [0, 32], sizes = [16, 16], strides = [1, 1]} : vector<16x64xf32> to vector<16x16xf32>
    %147 = math.tanh %146 : vector<16x16xf32>
    %148 = vector.extract_strided_slice %133 {offsets = [0, 48], sizes = [16, 16], strides = [1, 1]} : vector<16x64xf32> to vector<16x16xf32>
    %149 = arith.negf %148 : vector<16x16xf32>
    %150 = math.exp %149 : vector<16x16xf32>
    %cst_72 = arith.constant 1.000000e+00 : f32
    %151 = vector.broadcast %cst_72 : f32 to vector<16x16xf32>
    %152 = arith.addf %151, %150 : vector<16x16xf32>
    %153 = arith.divf %151, %152 : vector<16x16xf32>
    %c0_73 = arith.constant 0 : index
    %c0_74 = arith.constant 0 : index
    %154 = vector.load %arg11[%c0_73, %c0_74] : memref<16x16xf32, #tpu.memory_space<vmem>>, vector<16x16xf32>
    %155 = arith.mulf %145, %154 : vector<16x16xf32>
    %156 = arith.mulf %139, %147 : vector<16x16xf32>
    %157 = arith.addf %155, %156 : vector<16x16xf32>
    %158 = math.tanh %157 : vector<16x16xf32>
    %159 = arith.mulf %153, %158 : vector<16x16xf32>
    %c0_75 = arith.constant 0 : index
    %c0_76 = arith.constant 0 : index
    %160 = vector.load %arg11[%c0_75, %c0_76] : memref<16x16xf32, #tpu.memory_space<vmem>>, vector<16x16xf32>
    tpu.vector_store %arg11[%c0_75, %c0_76], %157 {strides = array<i32>} : memref<16x16xf32, #tpu.memory_space<vmem>>, vector<16x16xf32>,
    %c0_77 = arith.constant 0 : index
    %c0_78 = arith.constant 0 : index
    %161 = vector.load %arg10[%c0_77, %c0_78] : memref<16x16xf32, #tpu.memory_space<vmem>>, vector<16x16xf32>
    tpu.vector_store %arg10[%c0_77, %c0_78], %159 {strides = array<i32>} : memref<16x16xf32, #tpu.memory_space<vmem>>, vector<16x16xf32>,
    %162 = arith.index_cast %c3_i32 : i32 to index
    %c0_79 = arith.constant 0 : index
    %c0_80 = arith.constant 0 : index
    %163 = vector.load %arg9[%162, %c0_79, %c0_80] : memref<4x16x16xf32, #tpu.memory_space<vmem>>, vector<1x16x16xf32>
    %164 = vector.shape_cast %163 : vector<1x16x16xf32> to vector<16x16xf32>
    %165 = vector.shape_cast %159 : vector<16x16xf32> to vector<1x16x16xf32>
    tpu.vector_store %arg9[%162, %c0_79, %c0_80], %165 {strides = array<i32>} : memref<4x16x16xf32, #tpu.memory_space<vmem>>, vector<1x16x16xf32>,
    %c4_i32 = arith.constant 4 : i32
    %c0_81 = arith.constant 0 : index
    %c0_82 = arith.constant 0 : index
    %c0_83 = arith.constant 0 : index
    %166 = vector.load %arg9[%c0_81, %c0_82, %c0_83] : memref<4x16x16xf32, #tpu.memory_space<vmem>>, vector<4x16x16xf32>
    %167 = vector.shape_cast %166 : vector<4x16x16xf32> to vector<64x16xf32>
    %c0_84 = arith.constant 0 : index
    %c0_85 = arith.constant 0 : index
    %168 = vector.load %arg5[%c0_84, %c0_85] : memref<16x16xf32, #tpu.memory_space<vmem>>, vector<16x16xf32>
    %cst_86 = arith.constant dense<0.000000e+00> : vector<64x16xf32>
    %169 = tpu.matmul %167, %168, %cst_86 {dimension_numbers = #tpu.dot_dimension_numbers<[1], [0], [0], [1], [0, 0, 1, 1], [], []>} : vector<64x16xf32>, vector<16x16xf32>, vector<64x16xf32> -> vector<64x16xf32>
    %c0_87 = arith.constant 0 : index
    %c0_88 = arith.constant 0 : index
    %170 = vector.load %arg6[%c0_87, %c0_88] : memref<1x16xf32, #tpu.memory_space<vmem>>, vector<1x16xf32>
    %171 = vector.broadcast %170 : vector<1x16xf32> to vector<64x16xf32>
    %172 = arith.addf %169, %171 : vector<64x16xf32>
    %173 = vector.shape_cast %172 : vector<64x16xf32> to vector<4x16x16xf32>
    %c0_89 = arith.constant 0 : index
    %c0_90 = arith.constant 0 : index
    %c0_91 = arith.constant 0 : index
    %174 = vector.load %arg7[%c0_89, %c0_90, %c0_91] : memref<4x16x16xf32, #tpu.memory_space<vmem>>, vector<4x16x16xf32>
    tpu.vector_store %arg7[%c0_89, %c0_90, %c0_91], %173 {strides = array<i32>} : memref<4x16x16xf32, #tpu.memory_space<vmem>>, vector<4x16x16xf32>,
    return
  }
  func.func @transform_0(%arg0: i32) -> (i32, i32, i32) {
    %c0_i32 = arith.constant 0 : i32
    %c0_i32_0 = arith.constant 0 : i32
    %c0_i32_1 = arith.constant 0 : i32
    return %c0_i32, %arg0, %c0_i32_0 : i32, i32, i32
  }
  func.func @transform_1(%arg0: i32) -> (i32, i32) {
    %c0_i32 = arith.constant 0 : i32
    %c0_i32_0 = arith.constant 0 : i32
    %c0_i32_1 = arith.constant 0 : i32
    return %c0_i32, %c0_i32_0 : i32, i32
  }
  func.func @transform_2(%arg0: i32) -> (i32, i32) {
    %c0_i32 = arith.constant 0 : i32
    %c0_i32_0 = arith.constant 0 : i32
    %c0_i32_1 = arith.constant 0 : i32
    return %c0_i32, %c0_i32_0 : i32, i32
  }
  func.func @transform_3(%arg0: i32) -> (i32, i32) {
    %c0_i32 = arith.constant 0 : i32
    %c0_i32_0 = arith.constant 0 : i32
    %c0_i32_1 = arith.constant 0 : i32
    return %c0_i32, %c0_i32_0 : i32, i32
  }
  func.func @transform_4(%arg0: i32) -> (i32, i32) {
    %c0_i32 = arith.constant 0 : i32
    %c0_i32_0 = arith.constant 0 : i32
    %c0_i32_1 = arith.constant 0 : i32
    return %c0_i32, %c0_i32_0 : i32, i32
  }
  func.func @transform_5(%arg0: i32) -> (i32, i32) {
    %c0_i32 = arith.constant 0 : i32
    %c0_i32_0 = arith.constant 0 : i32
    %c0_i32_1 = arith.constant 0 : i32
    return %c0_i32, %c0_i32_0 : i32, i32
  }
  func.func @transform_6(%arg0: i32) -> (i32, i32, i32) {
    %c0_i32 = arith.constant 0 : i32
    %c0_i32_0 = arith.constant 0 : i32
    %c0_i32_1 = arith.constant 0 : i32
    return %c0_i32, %arg0, %c0_i32_0 : i32, i32, i32
  }
}

module attributes {stable_mosaic.version = 11 : i64} {
  func.func @colnorm_add_kernel(%arg0: i32, %arg1: memref<32x32xf32, #tpu.memory_space<vmem>>, %arg2: memref<32x32xf32, #tpu.memory_space<vmem>>, %arg3: memref<1x32xf32, #tpu.memory_space<vmem>>, %arg4: memref<1x32xf32, #tpu.memory_space<vmem>>, %arg5: memref<32x32xf32, #tpu.memory_space<vmem>>) attributes {dimension_semantics = [#tpu.dimension_semantics<parallel>], iteration_bounds = array<i64: 1>, scalar_prefetch = 0 : i64, scratch_operands = 0 : i64, tpu.core_type = #tpu.core_type<tc>, window_params = [{transform_indices = @transform_0, window_bounds = array<i64: 32, 32>}, {transform_indices = @transform_1, window_bounds = array<i64: 32, 32>}, {transform_indices = @transform_2, window_bounds = array<i64: 1, 32>}, {transform_indices = @transform_3, window_bounds = array<i64: 1, 32>}, {transform_indices = @transform_4, window_bounds = array<i64: 32, 32>}]} {
    %c0 = arith.constant 0 : index
    %c0_0 = arith.constant 0 : index
    %0 = vector.load %arg1[%c0, %c0_0] : memref<32x32xf32, #tpu.memory_space<vmem>>, vector<32x32xf32>
    %cst = arith.constant dense<0.000000e+00> : vector<32xf32>
    %1 = vector.multi_reduction <add>, %0, %cst [0] : vector<32x32xf32> to vector<32xf32>
    %2 = vector.shape_cast %1 : vector<32xf32> to vector<1x32xf32>
    %cst_1 = arith.constant 3.200000e+01 : f32
    %3 = vector.broadcast %cst_1 : f32 to vector<1x32xf32>
    %4 = arith.divf %2, %3 : vector<1x32xf32>
    %5 = vector.broadcast %4 : vector<1x32xf32> to vector<32x32xf32>
    %6 = arith.subf %0, %5 : vector<32x32xf32>
    %7 = arith.mulf %6, %6 : vector<32x32xf32>
    %cst_2 = arith.constant dense<0.000000e+00> : vector<32xf32>
    %8 = vector.multi_reduction <add>, %7, %cst_2 [0] : vector<32x32xf32> to vector<32xf32>
    %9 = vector.shape_cast %8 : vector<32xf32> to vector<1x32xf32>
    %cst_3 = arith.constant 3.200000e+01 : f32
    %10 = vector.broadcast %cst_3 : f32 to vector<1x32xf32>
    %11 = arith.divf %9, %10 : vector<1x32xf32>
    %cst_4 = arith.constant 9.99999993E-9 : f32
    %12 = vector.broadcast %cst_4 : f32 to vector<1x32xf32>
    %13 = arith.addf %11, %12 : vector<1x32xf32>
    %14 = math.rsqrt %13 : vector<1x32xf32>
    %15 = vector.broadcast %14 : vector<1x32xf32> to vector<32x32xf32>
    %16 = arith.mulf %6, %15 : vector<32x32xf32>
    %c0_5 = arith.constant 0 : index
    %c0_6 = arith.constant 0 : index
    %17 = vector.load %arg2[%c0_5, %c0_6] : memref<32x32xf32, #tpu.memory_space<vmem>>, vector<32x32xf32>
    %c0_7 = arith.constant 0 : index
    %c0_8 = arith.constant 0 : index
    %18 = vector.load %arg3[%c0_7, %c0_8] : memref<1x32xf32, #tpu.memory_space<vmem>>, vector<1x32xf32>
    %19 = vector.broadcast %18 : vector<1x32xf32> to vector<32x32xf32>
    %20 = arith.mulf %16, %19 : vector<32x32xf32>
    %21 = arith.addf %17, %20 : vector<32x32xf32>
    %c0_9 = arith.constant 0 : index
    %c0_10 = arith.constant 0 : index
    %22 = vector.load %arg4[%c0_9, %c0_10] : memref<1x32xf32, #tpu.memory_space<vmem>>, vector<1x32xf32>
    %23 = vector.broadcast %22 : vector<1x32xf32> to vector<32x32xf32>
    %24 = arith.addf %21, %23 : vector<32x32xf32>
    %c0_11 = arith.constant 0 : index
    %c0_12 = arith.constant 0 : index
    %25 = vector.load %arg5[%c0_11, %c0_12] : memref<32x32xf32, #tpu.memory_space<vmem>>, vector<32x32xf32>
    tpu.vector_store %arg5[%c0_11, %c0_12], %24 {strides = array<i32>} : memref<32x32xf32, #tpu.memory_space<vmem>>, vector<32x32xf32>,
    return
  }
  func.func @transform_0(%arg0: i32) -> (i32, i32) {
    %c0_i32 = arith.constant 0 : i32
    %c0_i32_0 = arith.constant 0 : i32
    return %c0_i32, %arg0 : i32, i32
  }
  func.func @transform_1(%arg0: i32) -> (i32, i32) {
    %c0_i32 = arith.constant 0 : i32
    %c0_i32_0 = arith.constant 0 : i32
    return %c0_i32, %arg0 : i32, i32
  }
  func.func @transform_2(%arg0: i32) -> (i32, i32) {
    %c0_i32 = arith.constant 0 : i32
    %c0_i32_0 = arith.constant 0 : i32
    return %c0_i32, %arg0 : i32, i32
  }
  func.func @transform_3(%arg0: i32) -> (i32, i32) {
    %c0_i32 = arith.constant 0 : i32
    %c0_i32_0 = arith.constant 0 : i32
    return %c0_i32, %arg0 : i32, i32
  }
  func.func @transform_4(%arg0: i32) -> (i32, i32) {
    %c0_i32 = arith.constant 0 : i32
    %c0_i32_0 = arith.constant 0 : i32
    return %c0_i32, %arg0 : i32, i32
  }
}

</mosaic_0001>

<llo_original>
// kernel: dprnn_forward.7
$region0: #{dprnn_forward.7}
  #allocation0 [shape = 'u32[]', space=smem, size = 0x4, offset = 0x4, fixed_abs, tag = 'smem constant byte address 0x4 - core index']
  #allocation1 [shape = 'u32[144,128]{1,0:T(1,128)}', space=vmem, size = 0x12000, scoped, tag = 'internal scratch']
  %s0 = inlined_call_operand.vmem [shape: f32[16,4,16], index: 0, kind: input, shape index: {}]
  %s1 = inlined_call_operand.vmem [shape: f32[16,4,16], index: 1, kind: input, shape index: {}]
  %s2 = inlined_call_operand.vmem [shape: f32[16,4,16], index: 2, kind: input, shape index: {}]
  %s3 = inlined_call_operand.vmem [shape: f32[16,1,1], index: 3, kind: input, shape index: {}]
  %s4 = inlined_call_operand.vmem [shape: f32[16,1,1], index: 4, kind: input, shape index: {}]
  %s5 = inlined_call_operand.vmem [shape: f32[16,4,16], index: 5, kind: output, shape index: {}]
  %s6 = sld [smem:[#allocation0]]
  $region30: #{dprnn_forward.7} parent=0
    _
  %s8 = ssub.s32 1, %s6
  %s9 = scalar_select 0, %s8, %s6
  // Predicated region
  $region2: #{dprnn_forward.7} parent=0 // pred_check
    _
  $region3: #{dprnn_forward.7} parent=0 // pred_check_branch
    %11 = sbr.rel (0) target = $region5
  $region4: #{dprnn_forward.7} parent=0 // pred_region
    _
  $region5: #{dprnn_forward.7} parent=0 // pred_fallthru
    _
  // Predicated region
  $region6: #{dprnn_forward.7} parent=0 // pred_check
    _
  $region7: #{dprnn_forward.7} parent=0 // pred_check_branch
    %13 = sbr.rel (0) target = $region9
  $region8: #{dprnn_forward.7} parent=0 // pred_region
    _
  $region9: #{dprnn_forward.7} parent=0 // pred_fallthru
    _
  // Predicated region
  $region10: #{dprnn_forward.7} parent=0 // pred_check
    _
  $region11: #{dprnn_forward.7} parent=0 // pred_check_branch
    %15 = sbr.rel (0) target = $region13
  $region12: #{dprnn_forward.7} parent=0 // pred_region
    _
  $region13: #{dprnn_forward.7} parent=0 // pred_fallthru
    _
  // Predicated region
  $region14: #{dprnn_forward.7} parent=0 // pred_check
    _
  $region15: #{dprnn_forward.7} parent=0 // pred_check_branch
    %17 = sbr.rel (0) target = $region17
  $region16: #{dprnn_forward.7} parent=0 // pred_region
    _
  $region17: #{dprnn_forward.7} parent=0 // pred_fallthru
    _
  // Predicated region
  $region18: #{dprnn_forward.7} parent=0 // pred_check
    _
  $region19: #{dprnn_forward.7} parent=0 // pred_check_branch
    %19 = sbr.rel (0) target = $region21
  $region20: #{dprnn_forward.7} parent=0 // pred_region
    _
  $region21: #{dprnn_forward.7} parent=0 // pred_fallthru
    _
  %v20 = vld [vmem:[%s0] sm:$0xf]
  %v21 = vld [vmem:[%s0 + $0x4] sm:$0xf]
  %v22 = vld [vmem:[%s0 + $0x8] sm:$0xf]
  %v23 = vld [vmem:[%s0 + $0xc] sm:$0xf]
  %v24 = vld [vmem:[%s0 + $0x10] sm:$0xf]
  %v25 = vld [vmem:[%s0 + $0x14] sm:$0xf]
  %v26 = vld [vmem:[%s0 + $0x18] sm:$0xf]
  %v27 = vld [vmem:[%s0 + $0x1c] sm:$0xf]
  %v28 = vld [vmem:[%s0 + $0x20] sm:$0xf]
  %v29 = vld [vmem:[%s0 + $0x24] sm:$0xf]
  %v30 = vld [vmem:[%s0 + $0x28] sm:$0xf]
  %v31 = vld [vmem:[%s0 + $0x2c] sm:$0xf]
  %v32 = vld [vmem:[%s0 + $0x30] sm:$0xf]
  %v33 = vld [vmem:[%s0 + $0x34] sm:$0xf]
  %v34 = vld [vmem:[%s0 + $0x38] sm:$0xf]
  %v35 = vld [vmem:[%s0 + $0x3c] sm:$0xf]
  %v36 = vld [vmem:[%s1] sm:$0xf]
  %v37 = vld [vmem:[%s1 + $0x4] sm:$0xf]
  %v38 = vld [vmem:[%s1 + $0x8] sm:$0xf]
  %v39 = vld [vmem:[%s1 + $0xc] sm:$0xf]
  %v40 = vld [vmem:[%s1 + $0x10] sm:$0xf]
  %v41 = vld [vmem:[%s1 + $0x14] sm:$0xf]
  %v42 = vld [vmem:[%s1 + $0x18] sm:$0xf]
  %v43 = vld [vmem:[%s1 + $0x1c] sm:$0xf]
  %v44 = vld [vmem:[%s1 + $0x20] sm:$0xf]
  %v45 = vld [vmem:[%s1 + $0x24] sm:$0xf]
  %v46 = vld [vmem:[%s1 + $0x28] sm:$0xf]
  %v47 = vld [vmem:[%s1 + $0x2c] sm:$0xf]
  %v48 = vld [vmem:[%s1 + $0x30] sm:$0xf]
  %v49 = vld [vmem:[%s1 + $0x34] sm:$0xf]
  %v50 = vld [vmem:[%s1 + $0x38] sm:$0xf]
  %v51 = vld [vmem:[%s1 + $0x3c] sm:$0xf]
  %v52 = vadd.f32 %v20, %v36
  %v53 = vadd.f32 %v21, %v37
  %v54 = vadd.f32 %v22, %v38
  %v55 = vadd.f32 %v23, %v39
  %v56 = vadd.f32 %v24, %v40
  %v57 = vadd.f32 %v25, %v41
  %v58 = vadd.f32 %v26, %v42
  %v59 = vadd.f32 %v27, %v43
  %v60 = vadd.f32 %v28, %v44
  %v61 = vadd.f32 %v29, %v45
  %v62 = vadd.f32 %v30, %v46
  %v63 = vadd.f32 %v31, %v47
  %v64 = vadd.f32 %v32, %v48
  %v65 = vadd.f32 %v33, %v49
  %v66 = vadd.f32 %v34, %v50
  %v67 = vadd.f32 %v35, %v51
  %vm68 = vcmask 125952
  %v69 = vsel %vm68, %v52, 0.0
  %70 = vadd.xlane.f32.xlu0 %v69
  %v71 = vpop.xlane.xlu0 %70
  %v72 = vsel %vm68, %v53, 0.0
  %73 = vadd.xlane.f32.xlu0 %v72
  %v74 = vpop.xlane.xlu0 %73
  %v75 = vsel %vm68, %v54, 0.0
  %76 = vadd.xlane.f32.xlu0 %v75
  %v77 = vpop.xlane.xlu0 %76
  %v78 = vsel %vm68, %v55, 0.0
  %79 = vadd.xlane.f32.xlu0 %v78
  %v80 = vpop.xlane.xlu0 %79
  %v81 = vsel %vm68, %v56, 0.0
  %82 = vadd.xlane.f32.xlu0 %v81
  %v83 = vpop.xlane.xlu0 %82
  %v84 = vsel %vm68, %v57, 0.0
  %85 = vadd.xlane.f32.xlu0 %v84
  %v86 = vpop.xlane.xlu0 %85
  %v87 = vsel %vm68, %v58, 0.0
  %88 = vadd.xlane.f32.xlu0 %v87
  %v89 = vpop.xlane.xlu0 %88
  %v90 = vsel %vm68, %v59, 0.0
  %91 = vadd.xlane.f32.xlu0 %v90
  %v92 = vpop.xlane.xlu0 %91
  %v93 = vsel %vm68, %v60, 0.0
  %94 = vadd.xlane.f32.xlu0 %v93
  %v95 = vpop.xlane.xlu0 %94
  %v96 = vsel %vm68, %v61, 0.0
  %97 = vadd.xlane.f32.xlu0 %v96
  %v98 = vpop.xlane.xlu0 %97
  %v99 = vsel %vm68, %v62, 0.0
  %100 = vadd.xlane.f32.xlu0 %v99
  %v101 = vpop.xlane.xlu0 %100
  %v102 = vsel %vm68, %v63, 0.0
  %103 = vadd.xlane.f32.xlu0 %v102
  %v104 = vpop.xlane.xlu0 %103
  %v105 = vsel %vm68, %v64, 0.0
  %106 = vadd.xlane.f32.xlu0 %v105
  %v107 = vpop.xlane.xlu0 %106
  %v108 = vsel %vm68, %v65, 0.0
  %109 = vadd.xlane.f32.xlu0 %v108
  %v110 = vpop.xlane.xlu0 %109
  %v111 = vsel %vm68, %v66, 0.0
  %112 = vadd.xlane.f32.xlu0 %v111
  %v113 = vpop.xlane.xlu0 %112
  %v114 = vsel %vm68, %v67, 0.0
  %115 = vadd.xlane.f32.xlu0 %v114
  %v116 = vpop.xlane.xlu0 %115
  %vm117 = vcmask 1043456
  %v118 = vsel %vm117, %v71, 0.0
  %v119 = vrot.slane %v118, 4
  %v120 = vadd.f32 %v118, %v119
  %v121 = vrot.slane %v120, 2
  %v122 = vadd.f32 %v120, %v121
  %v123 = vrot.slane %v122, 1
  %v124 = vadd.f32 %v122, %v123
  %v125 = vsel %vm117, %v74, 0.0
  %v126 = vrot.slane %v125, 4
  %v127 = vadd.f32 %v125, %v126
  %v128 = vrot.slane %v127, 2
  %v129 = vadd.f32 %v127, %v128
  %v130 = vrot.slane %v129, 1
  %v131 = vadd.f32 %v129, %v130
  %v132 = vsel %vm117, %v77, 0.0
  %v133 = vrot.slane %v132, 4
  %v134 = vadd.f32 %v132, %v133
  %v135 = vrot.slane %v134, 2
  %v136 = vadd.f32 %v134, %v135
  %v137 = vrot.slane %v136, 1
  %v138 = vadd.f32 %v136, %v137
  %v139 = vsel %vm117, %v80, 0.0
  %v140 = vrot.slane %v139, 4
  %v141 = vadd.f32 %v139, %v140
  %v142 = vrot.slane %v141, 2
  %v143 = vadd.f32 %v141, %v142
  %v144 = vrot.slane %v143, 1
  %v145 = vadd.f32 %v143, %v144
  %v146 = vsel %vm117, %v83, 0.0
  %v147 = vrot.slane %v146, 4
  %v148 = vadd.f32 %v146, %v147
  %v149 = vrot.slane %v148, 2
  %v150 = vadd.f32 %v148, %v149
  %v151 = vrot.slane %v150, 1
  %v152 = vadd.f32 %v150, %v151
  %v153 = vsel %vm117, %v86, 0.0
  %v154 = vrot.slane %v153, 4
  %v155 = vadd.f32 %v153, %v154
  %v156 = vrot.slane %v155, 2
  %v157 = vadd.f32 %v155, %v156
  %v158 = vrot.slane %v157, 1
  %v159 = vadd.f32 %v157, %v158
  %v160 = vsel %vm117, %v89, 0.0
  %v161 = vrot.slane %v160, 4
  %v162 = vadd.f32 %v160, %v161
  %v163 = vrot.slane %v162, 2
  %v164 = vadd.f32 %v162, %v163
  %v165 = vrot.slane %v164, 1
  %v166 = vadd.f32 %v164, %v165
  %v167 = vsel %vm117, %v92, 0.0
  %v168 = vrot.slane %v167, 4
  %v169 = vadd.f32 %v167, %v168
  %v170 = vrot.slane %v169, 2
  %v171 = vadd.f32 %v169, %v170
  %v172 = vrot.slane %v171, 1
  %v173 = vadd.f32 %v171, %v172
  %v174 = vsel %vm117, %v95, 0.0
  %v175 = vrot.slane %v174, 4
  %v176 = vadd.f32 %v174, %v175
  %v177 = vrot.slane %v176, 2
  %v178 = vadd.f32 %v176, %v177
  %v179 = vrot.slane %v178, 1
  %v180 = vadd.f32 %v178, %v179
  %v181 = vsel %vm117, %v98, 0.0
  %v182 = vrot.slane %v181, 4
  %v183 = vadd.f32 %v181, %v182
  %v184 = vrot.slane %v183, 2
  %v185 = vadd.f32 %v183, %v184
  %v186 = vrot.slane %v185, 1
  %v187 = vadd.f32 %v185, %v186
  %v188 = vsel %vm117, %v101, 0.0
  %v189 = vrot.slane %v188, 4
  %v190 = vadd.f32 %v188, %v189
  %v191 = vrot.slane %v190, 2
  %v192 = vadd.f32 %v190, %v191
  %v193 = vrot.slane %v192, 1
  %v194 = vadd.f32 %v192, %v193
  %v195 = vsel %vm117, %v104, 0.0
  %v196 = vrot.slane %v195, 4
  %v197 = vadd.f32 %v195, %v196
  %v198 = vrot.slane %v197, 2
  %v199 = vadd.f32 %v197, %v198
  %v200 = vrot.slane %v199, 1
  %v201 = vadd.f32 %v199, %v200
  %v202 = vsel %vm117, %v107, 0.0
  %v203 = vrot.slane %v202, 4
  %v204 = vadd.f32 %v202, %v203
  %v205 = vrot.slane %v204, 2
  %v206 = vadd.f32 %v204, %v205
  %v207 = vrot.slane %v206, 1
  %v208 = vadd.f32 %v206, %v207
  %v209 = vsel %vm117, %v110, 0.0
  %v210 = vrot.slane %v209, 4
  %v211 = vadd.f32 %v209, %v210
  %v212 = vrot.slane %v211, 2
  %v213 = vadd.f32 %v211, %v212
  %v214 = vrot.slane %v213, 1
  %v215 = vadd.f32 %v213, %v214
  %v216 = vsel %vm117, %v113, 0.0
  %v217 = vrot.slane %v216, 4
  %v218 = vadd.f32 %v216, %v217
  %v219 = vrot.slane %v218, 2
  %v220 = vadd.f32 %v218, %v219
  %v221 = vrot.slane %v220, 1
  %v222 = vadd.f32 %v220, %v221
  %v223 = vsel %vm117, %v116, 0.0
  %v224 = vrot.slane %v223, 4
  %v225 = vadd.f32 %v223, %v224
  %v226 = vrot.slane %v225, 2
  %v227 = vadd.f32 %v225, %v226
  %v228 = vrot.slane %v227, 1
  %v229 = vadd.f32 %v227, %v228
  %v230 = vrcp.pop 64.0
  %v231 = vmul.f32 %v124, %v230
  %v232 = vmul.f32 %v131, %v230
  %v233 = vmul.f32 %v138, %v230
  %v234 = vmul.f32 %v145, %v230
  %v235 = vmul.f32 %v152, %v230
  %v236 = vmul.f32 %v159, %v230
  %v237 = vmul.f32 %v166, %v230
  %v238 = vmul.f32 %v173, %v230
  %v239 = vmul.f32 %v180, %v230
  %v240 = vmul.f32 %v187, %v230
  %v241 = vmul.f32 %v194, %v230
  %v242 = vmul.f32 %v201, %v230
  %v243 = vmul.f32 %v208, %v230
  %v244 = vmul.f32 %v215, %v230
  %v245 = vmul.f32 %v222, %v230
  %v246 = vmul.f32 %v229, %v230
  %v247 = vsub.f32 %v52, %v231
  %v248 = vsub.f32 %v53, %v232
  %v249 = vsub.f32 %v54, %v233
  %v250 = vsub.f32 %v55, %v234
  %v251 = vsub.f32 %v56, %v235
  %v252 = vsub.f32 %v57, %v236
  %v253 = vsub.f32 %v58, %v237
  %v254 = vsub.f32 %v59, %v238
  %v255 = vsub.f32 %v60, %v239
  %v256 = vsub.f32 %v61, %v240
  %v257 = vsub.f32 %v62, %v241
  %v258 = vsub.f32 %v63, %v242
  %v259 = vsub.f32 %v64, %v243
  %v260 = vsub.f32 %v65, %v244
  %v261 = vsub.f32 %v66, %v245
  %v262 = vsub.f32 %v67, %v246
  %v263 = vmul.f32 %v247, %v247
  %v264 = vmul.f32 %v248, %v248
  %v265 = vmul.f32 %v249, %v249
  %v266 = vmul.f32 %v250, %v250
  %v267 = vmul.f32 %v251, %v251
  %v268 = vmul.f32 %v252, %v252
  %v269 = vmul.f32 %v253, %v253
  %v270 = vmul.f32 %v254, %v254
  %v271 = vmul.f32 %v255, %v255
  %v272 = vmul.f32 %v256, %v256
  %v273 = vmul.f32 %v257, %v257
  %v274 = vmul.f32 %v258, %v258
  %v275 = vmul.f32 %v259, %v259
  %v276 = vmul.f32 %v260, %v260
  %v277 = vmul.f32 %v261, %v261
  %v278 = vmul.f32 %v262, %v262
  %v279 = vsel %vm68, %v263, 0.0
  %280 = vadd.xlane.f32.xlu0 %v279
  %v281 = vpop.xlane.xlu0 %280
  %v282 = vsel %vm68, %v264, 0.0
  %283 = vadd.xlane.f32.xlu0 %v282
  %v284 = vpop.xlane.xlu0 %283
  %v285 = vsel %vm68, %v265, 0.0
  %286 = vadd.xlane.f32.xlu0 %v285
  %v287 = vpop.xlane.xlu0 %286
  %v288 = vsel %vm68, %v266, 0.0
  %289 = vadd.xlane.f32.xlu0 %v288
  %v290 = vpop.xlane.xlu0 %289
  %v291 = vsel %vm68, %v267, 0.0
  %292 = vadd.xlane.f32.xlu0 %v291
  %v293 = vpop.xlane.xlu0 %292
  %v294 = vsel %vm68, %v268, 0.0
  %295 = vadd.xlane.f32.xlu0 %v294
  %v296 = vpop.xlane.xlu0 %295
  %v297 = vsel %vm68, %v269, 0.0
  %298 = vadd.xlane.f32.xlu0 %v297
  %v299 = vpop.xlane.xlu0 %298
  %v300 = vsel %vm68, %v270, 0.0
  %301 = vadd.xlane.f32.xlu0 %v300
  %v302 = vpop.xlane.xlu0 %301
  %v303 = vsel %vm68, %v271, 0.0
  %304 = vadd.xlane.f32.xlu0 %v303
  %v305 = vpop.xlane.xlu0 %304
  %v306 = vsel %vm68, %v272, 0.0
  %307 = vadd.xlane.f32.xlu0 %v306
  %v308 = vpop.xlane.xlu0 %307
  %v309 = vsel %vm68, %v273, 0.0
  %310 = vadd.xlane.f32.xlu0 %v309
  %v311 = vpop.xlane.xlu0 %310
  %v312 = vsel %vm68, %v274, 0.0
  %313 = vadd.xlane.f32.xlu0 %v312
  %v314 = vpop.xlane.xlu0 %313
  %v315 = vsel %vm68, %v275, 0.0
  %316 = vadd.xlane.f32.xlu0 %v315
  %v317 = vpop.xlane.xlu0 %316
  %v318 = vsel %vm68, %v276, 0.0
  %319 = vadd.xlane.f32.xlu0 %v318
  %v320 = vpop.xlane.xlu0 %319
  %v321 = vsel %vm68, %v277, 0.0
  %322 = vadd.xlane.f32.xlu0 %v321
  %v323 = vpop.xlane.xlu0 %322
  %v324 = vsel %vm68, %v278, 0.0
  %325 = vadd.xlane.f32.xlu0 %v324
  %v326 = vpop.xlane.xlu0 %325
  %v327 = vsel %vm117, %v281, 0.0
  %v328 = vrot.slane %v327, 4
  %v329 = vadd.f32 %v327, %v328
  %v330 = vrot.slane %v329, 2
  %v331 = vadd.f32 %v329, %v330
  %v332 = vrot.slane %v331, 1
  %v333 = vadd.f32 %v331, %v332
  %v334 = vsel %vm117, %v284, 0.0
  %v335 = vrot.slane %v334, 4
  %v336 = vadd.f32 %v334, %v335
  %v337 = vrot.slane %v336, 2
  %v338 = vadd.f32 %v336, %v337
  %v339 = vrot.slane %v338, 1
  %v340 = vadd.f32 %v338, %v339
  %v341 = vsel %vm117, %v287, 0.0
  %v342 = vrot.slane %v341, 4
  %v343 = vadd.f32 %v341, %v342
  %v344 = vrot.slane %v343, 2
  %v345 = vadd.f32 %v343, %v344
  %v346 = vrot.slane %v345, 1
  %v347 = vadd.f32 %v345, %v346
  %v348 = vsel %vm117, %v290, 0.0
  %v349 = vrot.slane %v348, 4
  %v350 = vadd.f32 %v348, %v349
  %v351 = vrot.slane %v350, 2
  %v352 = vadd.f32 %v350, %v351
  %v353 = vrot.slane %v352, 1
  %v354 = vadd.f32 %v352, %v353
  %v355 = vsel %vm117, %v293, 0.0
  %v356 = vrot.slane %v355, 4
  %v357 = vadd.f32 %v355, %v356
  %v358 = vrot.slane %v357, 2
  %v359 = vadd.f32 %v357, %v358
  %v360 = vrot.slane %v359, 1
  %v361 = vadd.f32 %v359, %v360
  %v362 = vsel %vm117, %v296, 0.0
  %v363 = vrot.slane %v362, 4
  %v364 = vadd.f32 %v362, %v363
  %v365 = vrot.slane %v364, 2
  %v366 = vadd.f32 %v364, %v365
  %v367 = vrot.slane %v366, 1
  %v368 = vadd.f32 %v366, %v367
  %v369 = vsel %vm117, %v299, 0.0
  %v370 = vrot.slane %v369, 4
  %v371 = vadd.f32 %v369, %v370
  %v372 = vrot.slane %v371, 2
  %v373 = vadd.f32 %v371, %v372
  %v374 = vrot.slane %v373, 1
  %v375 = vadd.f32 %v373, %v374
  %v376 = vsel %vm117, %v302, 0.0
  %v377 = vrot.slane %v376, 4
  %v378 = vadd.f32 %v376, %v377
  %v379 = vrot.slane %v378, 2
  %v380 = vadd.f32 %v378, %v379
  %v381 = vrot.slane %v380, 1
  %v382 = vadd.f32 %v380, %v381
  %v383 = vsel %vm117, %v305, 0.0
  %v384 = vrot.slane %v383, 4
  %v385 = vadd.f32 %v383, %v384
  %v386 = vrot.slane %v385, 2
  %v387 = vadd.f32 %v385, %v386
  %v388 = vrot.slane %v387, 1
  %v389 = vadd.f32 %v387, %v388
  %v390 = vsel %vm117, %v308, 0.0
  %v391 = vrot.slane %v390, 4
  %v392 = vadd.f32 %v390, %v391
  %v393 = vrot.slane %v392, 2
  %v394 = vadd.f32 %v392, %v393
  %v395 = vrot.slane %v394, 1
  %v396 = vadd.f32 %v394, %v395
  %v397 = vsel %vm117, %v311, 0.0
  %v398 = vrot.slane %v397, 4
  %v399 = vadd.f32 %v397, %v398
  %v400 = vrot.slane %v399, 2
  %v401 = vadd.f32 %v399, %v400
  %v402 = vrot.slane %v401, 1
  %v403 = vadd.f32 %v401, %v402
  %v404 = vsel %vm117, %v314, 0.0
  %v405 = vrot.slane %v404, 4
  %v406 = vadd.f32 %v404, %v405
  %v407 = vrot.slane %v406, 2
  %v408 = vadd.f32 %v406, %v407
  %v409 = vrot.slane %v408, 1
  %v410 = vadd.f32 %v408, %v409
  %v411 = vsel %vm117, %v317, 0.0
  %v412 = vrot.slane %v411, 4
  %v413 = vadd.f32 %v411, %v412
  %v414 = vrot.slane %v413, 2
  %v415 = vadd.f32 %v413, %v414
  %v416 = vrot.slane %v415, 1
  %v417 = vadd.f32 %v415, %v416
  %v418 = vsel %vm117, %v320, 0.0
  %v419 = vrot.slane %v418, 4
  %v420 = vadd.f32 %v418, %v419
  %v421 = vrot.slane %v420, 2
  %v422 = vadd.f32 %v420, %v421
  %v423 = vrot.slane %v422, 1
  %v424 = vadd.f32 %v422, %v423
  %v425 = vsel %vm117, %v323, 0.0
  %v426 = vrot.slane %v425, 4
  %v427 = vadd.f32 %v425, %v426
  %v428 = vrot.slane %v427, 2
  %v429 = vadd.f32 %v427, %v428
  %v430 = vrot.slane %v429, 1
  %v431 = vadd.f32 %v429, %v430
  %v432 = vsel %vm117, %v326, 0.0
  %v433 = vrot.slane %v432, 4
  %v434 = vadd.f32 %v432, %v433
  %v435 = vrot.slane %v434, 2
  %v436 = vadd.f32 %v434, %v435
  %v437 = vrot.slane %v436, 1
  %v438 = vadd.f32 %v436, %v437
  %v439 = vmul.f32 %v333, %v230
  %v440 = vmul.f32 %v340, %v230
  %v441 = vmul.f32 %v347, %v230
  %v442 = vmul.f32 %v354, %v230
  %v443 = vmul.f32 %v361, %v230
  %v444 = vmul.f32 %v368, %v230
  %v445 = vmul.f32 %v375, %v230
  %v446 = vmul.f32 %v382, %v230
  %v447 = vmul.f32 %v389, %v230
  %v448 = vmul.f32 %v396, %v230
  %v449 = vmul.f32 %v403, %v230
  %v450 = vmul.f32 %v410, %v230
  %v451 = vmul.f32 %v417, %v230
  %v452 = vmul.f32 %v424, %v230
  %v453 = vmul.f32 %v431, %v230
  %v454 = vmul.f32 %v438, %v230
  %v455 = vadd.f32 %v439, 1e-08
  %v456 = vadd.f32 %v440, 1e-08
  %v457 = vadd.f32 %v441, 1e-08
  %v458 = vadd.f32 %v442, 1e-08
  %v459 = vadd.f32 %v443, 1e-08
  %v460 = vadd.f32 %v444, 1e-08
  %v461 = vadd.f32 %v445, 1e-08
  %v462 = vadd.f32 %v446, 1e-08
  %v463 = vadd.f32 %v447, 1e-08
  %v464 = vadd.f32 %v448, 1e-08
  %v465 = vadd.f32 %v449, 1e-08
  %v466 = vadd.f32 %v450, 1e-08
  %v467 = vadd.f32 %v451, 1e-08
  %v468 = vadd.f32 %v452, 1e-08
  %v469 = vadd.f32 %v453, 1e-08
  %v470 = vadd.f32 %v454, 1e-08
  %v471 = vrsqrt.pop %v455
  %v472 = vrsqrt.pop %v456
  %v473 = vrsqrt.pop %v457
  %v474 = vrsqrt.pop %v458
  %v475 = vrsqrt.pop %v459
  %v476 = vrsqrt.pop %v460
  %v477 = vrsqrt.pop %v461
  %v478 = vrsqrt.pop %v462
  %v479 = vrsqrt.pop %v463
  %v480 = vrsqrt.pop %v464
  %v481 = vrsqrt.pop %v465
  %v482 = vrsqrt.pop %v466
  %v483 = vrsqrt.pop %v467
  %v484 = vrsqrt.pop %v468
  %v485 = vrsqrt.pop %v469
  %v486 = vrsqrt.pop %v470
  %v487 = vmul.f32 %v247, %v471
  %v488 = vmul.f32 %v248, %v472
  %v489 = vmul.f32 %v249, %v473
  %v490 = vmul.f32 %v250, %v474
  %v491 = vmul.f32 %v251, %v475
  %v492 = vmul.f32 %v252, %v476
  %v493 = vmul.f32 %v253, %v477
  %v494 = vmul.f32 %v254, %v478
  %v495 = vmul.f32 %v255, %v479
  %v496 = vmul.f32 %v256, %v480
  %v497 = vmul.f32 %v257, %v481
  %v498 = vmul.f32 %v258, %v482
  %v499 = vmul.f32 %v259, %v483
  %v500 = vmul.f32 %v260, %v484
  %v501 = vmul.f32 %v261, %v485
  %v502 = vmul.f32 %v262, %v486
  %v503 = vld [vmem:[%s2] sm:$0xf]
  %v504 = vld [vmem:[%s2 + $0x4] sm:$0xf]
  %v505 = vld [vmem:[%s2 + $0x8] sm:$0xf]
  %v506 = vld [vmem:[%s2 + $0xc] sm:$0xf]
  %v507 = vld [vmem:[%s2 + $0x10] sm:$0xf]
  %v508 = vld [vmem:[%s2 + $0x14] sm:$0xf]
  %v509 = vld [vmem:[%s2 + $0x18] sm:$0xf]
  %v510 = vld [vmem:[%s2 + $0x1c] sm:$0xf]
  %v511 = vld [vmem:[%s2 + $0x20] sm:$0xf]
  %v512 = vld [vmem:[%s2 + $0x24] sm:$0xf]
  %v513 = vld [vmem:[%s2 + $0x28] sm:$0xf]
  %v514 = vld [vmem:[%s2 + $0x2c] sm:$0xf]
  %v515 = vld [vmem:[%s2 + $0x30] sm:$0xf]
  %v516 = vld [vmem:[%s2 + $0x34] sm:$0xf]
  %v517 = vld [vmem:[%s2 + $0x38] sm:$0xf]
  %v518 = vld [vmem:[%s2 + $0x3c] sm:$0xf]
  %v519 = vld [vmem:[%s3] sm:$0x1]
  %v520 = vld [vmem:[%s3 + $0x1] sm:$0x1]
  %v521 = vld [vmem:[%s3 + $0x2] sm:$0x1]
  %v522 = vld [vmem:[%s3 + $0x3] sm:$0x1]
  %v523 = vld [vmem:[%s3 + $0x4] sm:$0x1]
  %v524 = vld [vmem:[%s3 + $0x5] sm:$0x1]
  %v525 = vld [vmem:[%s3 + $0x6] sm:$0x1]
  %v526 = vld [vmem:[%s3 + $0x7] sm:$0x1]
  %v527 = vld [vmem:[%s3 + $0x8] sm:$0x1]
  %v528 = vld [vmem:[%s3 + $0x9] sm:$0x1]
  %v529 = vld [vmem:[%s3 + $0xa] sm:$0x1]
  %v530 = vld [vmem:[%s3 + $0xb] sm:$0x1]
  %v531 = vld [vmem:[%s3 + $0xc] sm:$0x1]
  %v532 = vld [vmem:[%s3 + $0xd] sm:$0x1]
  %v533 = vld [vmem:[%s3 + $0xe] sm:$0x1]
  %v534 = vld [vmem:[%s3 + $0xf] sm:$0x1]
  %v551 = vlaneseq
  %v552 = vshrl.u32 %v551, 7
  %v553 = vsub.s32 0, %v552
  %v554 = vrot.slane %v519, %v553
  %v555 = vlaneseq
  %v556 = vshrl.u32 %v555, 7
  %v557 = vsub.s32 0, %v556
  %v558 = vrot.slane %v520, %v557
  %v559 = vlaneseq
  %v560 = vshrl.u32 %v559, 7
  %v561 = vsub.s32 0, %v560
  %v562 = vrot.slane %v521, %v561
  %v563 = vlaneseq
  %v564 = vshrl.u32 %v563, 7
  %v565 = vsub.s32 0, %v564
  %v566 = vrot.slane %v522, %v565
  %v567 = vlaneseq
  %v568 = vshrl.u32 %v567, 7
  %v569 = vsub.s32 0, %v568
  %v570 = vrot.slane %v523, %v569
  %v571 = vlaneseq
  %v572 = vshrl.u32 %v571, 7
  %v573 = vsub.s32 0, %v572
  %v574 = vrot.slane %v524, %v573
  %v575 = vlaneseq
  %v576 = vshrl.u32 %v575, 7
  %v577 = vsub.s32 0, %v576
  %v578 = vrot.slane %v525, %v577
  %v579 = vlaneseq
  %v580 = vshrl.u32 %v579, 7
  %v581 = vsub.s32 0, %v580
  %v582 = vrot.slane %v526, %v581
  %v583 = vlaneseq
  %v584 = vshrl.u32 %v583, 7
  %v585 = vsub.s32 0, %v584
  %v586 = vrot.slane %v527, %v585
  %v587 = vlaneseq
  %v588 = vshrl.u32 %v587, 7
  %v589 = vsub.s32 0, %v588
  %v590 = vrot.slane %v528, %v589
  %v591 = vlaneseq
  %v592 = vshrl.u32 %v591, 7
  %v593 = vsub.s32 0, %v592
  %v594 = vrot.slane %v529, %v593
  %v595 = vlaneseq
  %v596 = vshrl.u32 %v595, 7
  %v597 = vsub.s32 0, %v596
  %v598 = vrot.slane %v530, %v597
  %v599 = vlaneseq
  %v600 = vshrl.u32 %v599, 7
  %v601 = vsub.s32 0, %v600
  %v602 = vrot.slane %v531, %v601
  %v603 = vlaneseq
  %v604 = vshrl.u32 %v603, 7
  %v605 = vsub.s32 0, %v604
  %v606 = vrot.slane %v532, %v605
  %v607 = vlaneseq
  %v608 = vshrl.u32 %v607, 7
  %v609 = vsub.s32 0, %v608
  %v610 = vrot.slane %v533, %v609
  %v611 = vlaneseq
  %v612 = vshrl.u32 %v611, 7
  %v613 = vsub.s32 0, %v612
  %v614 = vrot.slane %v534, %v613
  %615 = vset.pattern.permute.xlu0 0
  %616 = vperm.xlu0 %615, %v554
  %v617 = vpop.permute.xlu0 %616
  %619 = vset.pattern.permute.xlu0 0
  %620 = vperm.xlu0 %619, %v558
  %v621 = vpop.permute.xlu0 %620
  %623 = vset.pattern.permute.xlu0 0
  %624 = vperm.xlu0 %623, %v562
  %v625 = vpop.permute.xlu0 %624
  %627 = vset.pattern.permute.xlu0 0
  %628 = vperm.xlu0 %627, %v566
  %v629 = vpop.permute.xlu0 %628
  %631 = vset.pattern.permute.xlu0 0
  %632 = vperm.xlu0 %631, %v570
  %v633 = vpop.permute.xlu0 %632
  %635 = vset.pattern.permute.xlu0 0
  %636 = vperm.xlu0 %635, %v574
  %v637 = vpop.permute.xlu0 %636
  %639 = vset.pattern.permute.xlu0 0
  %640 = vperm.xlu0 %639, %v578
  %v641 = vpop.permute.xlu0 %640
  %643 = vset.pattern.permute.xlu0 0
  %644 = vperm.xlu0 %643, %v582
  %v645 = vpop.permute.xlu0 %644
  %647 = vset.pattern.permute.xlu0 0
  %648 = vperm.xlu0 %647, %v586
  %v649 = vpop.permute.xlu0 %648
  %651 = vset.pattern.permute.xlu0 0
  %652 = vperm.xlu0 %651, %v590
  %v653 = vpop.permute.xlu0 %652
  %655 = vset.pattern.permute.xlu0 0
  %656 = vperm.xlu0 %655, %v594
  %v657 = vpop.permute.xlu0 %656
  %659 = vset.pattern.permute.xlu0 0
  %660 = vperm.xlu0 %659, %v598
  %v661 = vpop.permute.xlu0 %660
  %663 = vset.pattern.permute.xlu0 0
  %664 = vperm.xlu0 %663, %v602
  %v665 = vpop.permute.xlu0 %664
  %667 = vset.pattern.permute.xlu0 0
  %668 = vperm.xlu0 %667, %v606
  %v669 = vpop.permute.xlu0 %668
  %671 = vset.pattern.permute.xlu0 0
  %672 = vperm.xlu0 %671, %v610
  %v673 = vpop.permute.xlu0 %672
  %675 = vset.pattern.permute.xlu0 0
  %676 = vperm.xlu0 %675, %v614
  %v677 = vpop.permute.xlu0 %676
  %v679 = vmul.f32 %v487, %v617
  %v680 = vmul.f32 %v488, %v621
  %v681 = vmul.f32 %v489, %v625
  %v682 = vmul.f32 %v490, %v629
  %v683 = vmul.f32 %v491, %v633
  %v684 = vmul.f32 %v492, %v637
  %v685 = vmul.f32 %v493, %v641
  %v686 = vmul.f32 %v494, %v645
  %v687 = vmul.f32 %v495, %v649
  %v688 = vmul.f32 %v496, %v653
  %v689 = vmul.f32 %v497, %v657
  %v690 = vmul.f32 %v498, %v661
  %v691 = vmul.f32 %v499, %v665
  %v692 = vmul.f32 %v500, %v669
  %v693 = vmul.f32 %v501, %v673
  %v694 = vmul.f32 %v502, %v677
  %v695 = vadd.f32 %v503, %v679
  %v696 = vadd.f32 %v504, %v680
  %v697 = vadd.f32 %v505, %v681
  %v698 = vadd.f32 %v506, %v682
  %v699 = vadd.f32 %v507, %v683
  %v700 = vadd.f32 %v508, %v684
  %v701 = vadd.f32 %v509, %v685
  %v702 = vadd.f32 %v510, %v686
  %v703 = vadd.f32 %v511, %v687
  %v704 = vadd.f32 %v512, %v688
  %v705 = vadd.f32 %v513, %v689
  %v706 = vadd.f32 %v514, %v690
  %v707 = vadd.f32 %v515, %v691
  %v708 = vadd.f32 %v516, %v692
  %v709 = vadd.f32 %v517, %v693
  %v710 = vadd.f32 %v518, %v694
  %v711 = vld [vmem:[%s4] sm:$0x1]
  %v712 = vld [vmem:[%s4 + $0x1] sm:$0x1]
  %v713 = vld [vmem:[%s4 + $0x2] sm:$0x1]
  %v714 = vld [vmem:[%s4 + $0x3] sm:$0x1]
  %v715 = vld [vmem:[%s4 + $0x4] sm:$0x1]
  %v716 = vld [vmem:[%s4 + $0x5] sm:$0x1]
  %v717 = vld [vmem:[%s4 + $0x6] sm:$0x1]
  %v718 = vld [vmem:[%s4 + $0x7] sm:$0x1]
  %v719 = vld [vmem:[%s4 + $0x8] sm:$0x1]
  %v720 = vld [vmem:[%s4 + $0x9] sm:$0x1]
  %v721 = vld [vmem:[%s4 + $0xa] sm:$0x1]
  %v722 = vld [vmem:[%s4 + $0xb] sm:$0x1]
  %v723 = vld [vmem:[%s4 + $0xc] sm:$0x1]
  %v724 = vld [vmem:[%s4 + $0xd] sm:$0x1]
  %v725 = vld [vmem:[%s4 + $0xe] sm:$0x1]
  %v726 = vld [vmem:[%s4 + $0xf] sm:$0x1]
  %v743 = vlaneseq
  %v744 = vshrl.u32 %v743, 7
  %v745 = vsub.s32 0, %v744
  %v746 = vrot.slane %v711, %v745
  %v747 = vlaneseq
  %v748 = vshrl.u32 %v747, 7
  %v749 = vsub.s32 0, %v748
  %v750 = vrot.slane %v712, %v749
  %v751 = vlaneseq
  %v752 = vshrl.u32 %v751, 7
  %v753 = vsub.s32 0, %v752
  %v754 = vrot.slane %v713, %v753
  %v755 = vlaneseq
  %v756 = vshrl.u32 %v755, 7
  %v757 = vsub.s32 0, %v756
  %v758 = vrot.slane %v714, %v757
  %v759 = vlaneseq
  %v760 = vshrl.u32 %v759, 7
  %v761 = vsub.s32 0, %v760
  %v762 = vrot.slane %v715, %v761
  %v763 = vlaneseq
  %v764 = vshrl.u32 %v763, 7
  %v765 = vsub.s32 0, %v764
  %v766 = vrot.slane %v716, %v765
  %v767 = vlaneseq
  %v768 = vshrl.u32 %v767, 7
  %v769 = vsub.s32 0, %v768
  %v770 = vrot.slane %v717, %v769
  %v771 = vlaneseq
  %v772 = vshrl.u32 %v771, 7
  %v773 = vsub.s32 0, %v772
  %v774 = vrot.slane %v718, %v773
  %v775 = vlaneseq
  %v776 = vshrl.u32 %v775, 7
  %v777 = vsub.s32 0, %v776
  %v778 = vrot.slane %v719, %v777
  %v779 = vlaneseq
  %v780 = vshrl.u32 %v779, 7
  %v781 = vsub.s32 0, %v780
  %v782 = vrot.slane %v720, %v781
  %v783 = vlaneseq
  %v784 = vshrl.u32 %v783, 7
  %v785 = vsub.s32 0, %v784
  %v786 = vrot.slane %v721, %v785
  %v787 = vlaneseq
  %v788 = vshrl.u32 %v787, 7
  %v789 = vsub.s32 0, %v788
  %v790 = vrot.slane %v722, %v789
  %v791 = vlaneseq
  %v792 = vshrl.u32 %v791, 7
  %v793 = vsub.s32 0, %v792
  %v794 = vrot.slane %v723, %v793
  %v795 = vlaneseq
  %v796 = vshrl.u32 %v795, 7
  %v797 = vsub.s32 0, %v796
  %v798 = vrot.slane %v724, %v797
  %v799 = vlaneseq
  %v800 = vshrl.u32 %v799, 7
  %v801 = vsub.s32 0, %v800
  %v802 = vrot.slane %v725, %v801
  %v803 = vlaneseq
  %v804 = vshrl.u32 %v803, 7
  %v805 = vsub.s32 0, %v804
  %v806 = vrot.slane %v726, %v805
  %807 = vset.pattern.permute.xlu0 0
  %808 = vperm.xlu0 %807, %v746
  %v809 = vpop.permute.xlu0 %808
  %811 = vset.pattern.permute.xlu0 0
  %812 = vperm.xlu0 %811, %v750
  %v813 = vpop.permute.xlu0 %812
  %815 = vset.pattern.permute.xlu0 0
  %816 = vperm.xlu0 %815, %v754
  %v817 = vpop.permute.xlu0 %816
  %819 = vset.pattern.permute.xlu0 0
  %820 = vperm.xlu0 %819, %v758
  %v821 = vpop.permute.xlu0 %820
  %823 = vset.pattern.permute.xlu0 0
  %824 = vperm.xlu0 %823, %v762
  %v825 = vpop.permute.xlu0 %824
  %827 = vset.pattern.permute.xlu0 0
  %828 = vperm.xlu0 %827, %v766
  %v829 = vpop.permute.xlu0 %828
  %831 = vset.pattern.permute.xlu0 0
  %832 = vperm.xlu0 %831, %v770
  %v833 = vpop.permute.xlu0 %832
  %835 = vset.pattern.permute.xlu0 0
  %836 = vperm.xlu0 %835, %v774
  %v837 = vpop.permute.xlu0 %836
  %839 = vset.pattern.permute.xlu0 0
  %840 = vperm.xlu0 %839, %v778
  %v841 = vpop.permute.xlu0 %840
  %843 = vset.pattern.permute.xlu0 0
  %844 = vperm.xlu0 %843, %v782
  %v845 = vpop.permute.xlu0 %844
  %847 = vset.pattern.permute.xlu0 0
  %848 = vperm.xlu0 %847, %v786
  %v849 = vpop.permute.xlu0 %848
  %851 = vset.pattern.permute.xlu0 0
  %852 = vperm.xlu0 %851, %v790
  %v853 = vpop.permute.xlu0 %852
  %855 = vset.pattern.permute.xlu0 0
  %856 = vperm.xlu0 %855, %v794
  %v857 = vpop.permute.xlu0 %856
  %859 = vset.pattern.permute.xlu0 0
  %860 = vperm.xlu0 %859, %v798
  %v861 = vpop.permute.xlu0 %860
  %863 = vset.pattern.permute.xlu0 0
  %864 = vperm.xlu0 %863, %v802
  %v865 = vpop.permute.xlu0 %864
  %867 = vset.pattern.permute.xlu0 0
  %868 = vperm.xlu0 %867, %v806
  %v869 = vpop.permute.xlu0 %868
  %v871 = vadd.f32 %v695, %v809
  %v872 = vadd.f32 %v696, %v813
  %v873 = vadd.f32 %v697, %v817
  %v874 = vadd.f32 %v698, %v821
  %v875 = vadd.f32 %v699, %v825
  %v876 = vadd.f32 %v700, %v829
  %v877 = vadd.f32 %v701, %v833
  %v878 = vadd.f32 %v702, %v837
  %v879 = vadd.f32 %v703, %v841
  %v880 = vadd.f32 %v704, %v845
  %v881 = vadd.f32 %v705, %v849
  %v882 = vadd.f32 %v706, %v853
  %v883 = vadd.f32 %v707, %v857
  %v884 = vadd.f32 %v708, %v861
  %v885 = vadd.f32 %v709, %v865
  %v886 = vadd.f32 %v710, %v869
  %887 = vst.msk [vmem:[%s5] sm:$0xf] %vm68, %v871
  %888 = vst.msk [vmem:[%s5 + $0x4] sm:$0xf] %vm68, %v872
  %889 = vst.msk [vmem:[%s5 + $0x8] sm:$0xf] %vm68, %v873
  %890 = vst.msk [vmem:[%s5 + $0xc] sm:$0xf] %vm68, %v874
  %891 = vst.msk [vmem:[%s5 + $0x10] sm:$0xf] %vm68, %v875
  %892 = vst.msk [vmem:[%s5 + $0x14] sm:$0xf] %vm68, %v876
  %893 = vst.msk [vmem:[%s5 + $0x18] sm:$0xf] %vm68, %v877
  %894 = vst.msk [vmem:[%s5 + $0x1c] sm:$0xf] %vm68, %v878
  %895 = vst.msk [vmem:[%s5 + $0x20] sm:$0xf] %vm68, %v879
  %896 = vst.msk [vmem:[%s5 + $0x24] sm:$0xf] %vm68, %v880
  %897 = vst.msk [vmem:[%s5 + $0x28] sm:$0xf] %vm68, %v881
  %898 = vst.msk [vmem:[%s5 + $0x2c] sm:$0xf] %vm68, %v882
  %899 = vst.msk [vmem:[%s5 + $0x30] sm:$0xf] %vm68, %v883
  %900 = vst.msk [vmem:[%s5 + $0x34] sm:$0xf] %vm68, %v884
  %901 = vst.msk [vmem:[%s5 + $0x38] sm:$0xf] %vm68, %v885
  %902 = vst.msk [vmem:[%s5 + $0x3c] sm:$0xf] %vm68, %v886
  // Predicated region
  $region22: #{dprnn_forward.7} parent=0 // pred_check
    _
  $region23: #{dprnn_forward.7} parent=0 // pred_check_branch
    %904 = sbr.rel (0) target = $region25
  $region24: #{dprnn_forward.7} parent=0 // pred_region
    _
  $region25: #{dprnn_forward.7} parent=0 // pred_fallthru
    _
  // Predicated region
  $region26: #{dprnn_forward.7} parent=0 // pred_check
    _
  $region27: #{dprnn_forward.7} parent=0 // pred_check_branch
    %906 = sbr.rel (0) target = $region29
  $region28: #{dprnn_forward.7} parent=0 // pred_region
    _
  $region29: #{dprnn_forward.7} parent=0 // pred_fallthru
    _

// kernel: dprnn_forward.8
$region0: #{dprnn_forward.8}
  #allocation0 [shape = 'u32[]', space=smem, size = 0x4, offset = 0x4, fixed_abs, tag = 'smem constant byte address 0x4 - core index']
  #allocation1 [shape = 'u32[144,128]{1,0:T(1,128)}', space=vmem, size = 0x12000, scoped, tag = 'internal scratch']
  #allocation2 [shape = 'f32[4,16,64]{2,1,0:T(8,128)}', space=vmem, size = 0x8000, scoped, tag = 'scratch operand']
  #allocation3 [shape = 'f32[4,16,16]{2,1,0:T(8,128)}', space=vmem, size = 0x8000, scoped, tag = 'scratch operand']
  #allocation4 [shape = 'f32[16,16]{1,0:T(8,128)}', space=vmem, size = 0x2000, scoped, tag = 'scratch operand']
  #allocation5 [shape = 'f32[16,16]{1,0:T(8,128)}', space=vmem, size = 0x2000, scoped, tag = 'scratch operand']
  %s0 = inlined_call_operand.vmem [shape: f32[4,16,16], index: 0, kind: input, shape index: {}]
  %s1 = inlined_call_operand.vmem [shape: f32[16,64], index: 1, kind: input, shape index: {}]
  %s2 = inlined_call_operand.vmem [shape: f32[16,64], index: 2, kind: input, shape index: {}]
  %s3 = inlined_call_operand.vmem [shape: f32[1,64], index: 3, kind: input, shape index: {}]
  %s4 = inlined_call_operand.vmem [shape: f32[16,16], index: 4, kind: input, shape index: {}]
  %s5 = inlined_call_operand.vmem [shape: f32[1,16], index: 5, kind: input, shape index: {}]
  %s6 = inlined_call_operand.vmem [shape: f32[4,16,16], index: 6, kind: output, shape index: {}]
  %s7 = sld [smem:[#allocation0]]
  $region34: #{dprnn_forward.8} parent=0
    _
  %s9 = ssub.s32 1, %s7
  %s10 = scalar_select 0, %s9, %s7
  // Predicated region
  $region2: #{dprnn_forward.8} parent=0 // pred_check
    _
  $region3: #{dprnn_forward.8} parent=0 // pred_check_branch
    %12 = sbr.rel (0) target = $region5
  $region4: #{dprnn_forward.8} parent=0 // pred_region
    _
  $region5: #{dprnn_forward.8} parent=0 // pred_fallthru
    _
  // Predicated region
  $region6: #{dprnn_forward.8} parent=0 // pred_check
    _
  $region7: #{dprnn_forward.8} parent=0 // pred_check_branch
    %14 = sbr.rel (0) target = $region9
  $region8: #{dprnn_forward.8} parent=0 // pred_region
    _
  $region9: #{dprnn_forward.8} parent=0 // pred_fallthru
    _
  // Predicated region
  $region10: #{dprnn_forward.8} parent=0 // pred_check
    _
  $region11: #{dprnn_forward.8} parent=0 // pred_check_branch
    %16 = sbr.rel (0) target = $region13
  $region12: #{dprnn_forward.8} parent=0 // pred_region
    _
  $region13: #{dprnn_forward.8} parent=0 // pred_fallthru
    _
  // Predicated region
  $region14: #{dprnn_forward.8} parent=0 // pred_check
    _
  $region15: #{dprnn_forward.8} parent=0 // pred_check_branch
    %18 = sbr.rel (0) target = $region17
  $region16: #{dprnn_forward.8} parent=0 // pred_region
    _
  $region17: #{dprnn_forward.8} parent=0 // pred_fallthru
    _
  // Predicated region
  $region18: #{dprnn_forward.8} parent=0 // pred_check
    _
  $region19: #{dprnn_forward.8} parent=0 // pred_check_branch
    %20 = sbr.rel (0) target = $region21
  $region20: #{dprnn_forward.8} parent=0 // pred_region
    _
  $region21: #{dprnn_forward.8} parent=0 // pred_fallthru
    _
  // Predicated region
  $region22: #{dprnn_forward.8} parent=0 // pred_check
    _
  $region23: #{dprnn_forward.8} parent=0 // pred_check_branch
    %22 = sbr.rel (0) target = $region25
  $region24: #{dprnn_forward.8} parent=0 // pred_region
    _
  $region25: #{dprnn_forward.8} parent=0 // pred_fallthru
    _
  %v23 = vld [vmem:[%s0] sm:$0xff]
  %v24 = vld [vmem:[%s0 + $0x8] sm:$0xff]
  %v25 = vld [vmem:[%s0 + $0x10] sm:$0xff]
  %v26 = vld [vmem:[%s0 + $0x18] sm:$0xff]
  %v27 = vld [vmem:[%s0 + $0x20] sm:$0xff]
  %v28 = vld [vmem:[%s0 + $0x28] sm:$0xff]
  %v29 = vld [vmem:[%s0 + $0x30] sm:$0xff]
  %v30 = vld [vmem:[%s0 + $0x38] sm:$0xff]
  %v31 = vld [vmem:[%s1] sm:$0xff]
  %v32 = vld [vmem:[%s1 + $0x8] sm:$0xff]
  %v33 = vld [vmem:[%s3] sm:$0x1]
  %v35 = vlaneseq
  %v36 = vshrl.u32 %v35, 7
  %v37 = vsub.s32 0, %v36
  %v38 = vrot.slane %v33, %v37
  %vm40 = vcmask 130048
  %v42 = vsel %vm40, %v23, 0
  %v45 = vsel %vm40, %v24, 0
  %v48 = vsel %vm40, %v25, 0
  %v51 = vsel %vm40, %v26, 0
  %v54 = vsel %vm40, %v27, 0
  %v57 = vsel %vm40, %v28, 0
  %v60 = vsel %vm40, %v29, 0
  %v63 = vsel %vm40, %v30, 0
  %65 = vmatprep.subr.mxu0 0.0
  %66 = vmatpush1.msra.mxu0 %v31
  %67 = vmatprep.subr.mxu0 0.0
  %68 = vmatpush1.msra.mxu0 %v32
  %69 = vmatprep.subr.mxu0 0.0
  %70 = vmatpush1.msra.mxu0 0.0
  %71 = vmatprep.subr.mxu0 0.0
  %72 = vmatpush1.msra.mxu0 0.0
  %73 = vmatprep.subr.mxu0 0.0
  %74 = vmatpush1.msra.mxu0 0.0
  %75 = vmatprep.subr.mxu0 0.0
  %76 = vmatpush1.msra.mxu0 0.0
  %77 = vmatprep.subr.mxu0 0.0
  %78 = vmatpush1.msra.mxu0 0.0
  %79 = vmatprep.subr.mxu0 0.0
  %80 = vmatpush1.msra.mxu0 0.0
  %81 = vmatprep.subr.mxu0 0.0
  %82 = vmatpush1.msra.mxu0 0.0
  %83 = vmatprep.subr.mxu0 0.0
  %84 = vmatpush1.msra.mxu0 0.0
  %85 = vmatprep.subr.mxu0 0.0
  %86 = vmatpush1.msra.mxu0 0.0
  %87 = vmatprep.subr.mxu0 0.0
  %88 = vmatpush1.msra.mxu0 0.0
  %89 = vmatprep.subr.mxu0 0.0
  %90 = vmatpush1.msra.mxu0 0.0
  %91 = vmatprep.subr.mxu0 0.0
  %92 = vmatpush1.msra.mxu0 0.0
  %93 = vmatprep.subr.mxu0 0.0
  %94 = vmatpush1.msra.mxu0 0.0
  %95 = vmatprep.subr.mxu0 0.0
  %96 = vmatpush1.msra.mxu0 0.0
  %97 = vmatprep.subr.mxu0 0.0
  %98 = vmatpush1.msra.mxu0 0.0
  %99 = vmatprep.subr.mxu0 0.0
  %100 = vmatpush1.msra.mxu0 0.0
  %101 = vmatprep.subr.mxu0 0.0
  %102 = vmatpush1.msra.mxu0 0.0
  %103 = vmatprep.subr.mxu0 0.0
  %104 = vmatpush1.msra.mxu0 0.0
  %105 = vmatprep.subr.mxu0 0.0
  %106 = vmatpush1.msra.mxu0 0.0
  %107 = vmatprep.subr.mxu0 0.0
  %108 = vmatpush1.msra.mxu0 0.0
  %109 = vmatprep.subr.mxu0 0.0
  %110 = vmatpush1.msra.mxu0 0.0
  %111 = vmatprep.subr.mxu0 0.0
  %112 = vmatpush1.msra.mxu0 0.0
  %113 = vmatprep.subr.mxu0 0.0
  %114 = vmatpush1.msra.mxu0 0.0
  %115 = vmatprep.subr.mxu0 0.0
  %116 = vmatpush1.msra.mxu0 0.0
  %117 = vmatprep.subr.mxu0 0.0
  %118 = vmatpush1.msra.mxu0 0.0
  %119 = vmatprep.subr.mxu0 0.0
  %120 = vmatpush1.msra.mxu0 0.0
  %121 = vmatprep.subr.mxu0 0.0
  %122 = vmatpush1.msra.mxu0 0.0
  %123 = vmatprep.subr.mxu0 0.0
  %124 = vmatpush1.msra.mxu0 0.0
  %125 = vmatprep.subr.mxu0 0.0
  %126 = vmatpush1.msra.mxu0 0.0
  %127 = vmatprep.subr.mxu0 0.0
  %128 = vmatpush1.msra.mxu0 0.0
  %129 = vmatprep.mubr.f32.mxu0 0.0
  %130 = vmatmul.mubr.f32.gmra.mrb[0].mxu0 %v42
  %v131 = vpop.f32.mrb[0].mxu0
  %v132 = vadd.f32 %v38, %v131
  %v133 = vpop.f32.mrb[0].mxu0
  %134 = vmatprep.mubr.f32.mxu0 0.0
  %135 = vmatmul.mubr.f32.gmra.mrb[0].mxu0 %v45
  %v136 = vpop.f32.mrb[0].mxu0
  %v137 = vadd.f32 %v38, %v136
  %v138 = vpop.f32.mrb[0].mxu0
  %139 = vmatprep.mubr.f32.mxu0 0.0
  %140 = vmatmul.mubr.f32.gmra.mrb[0].mxu0 %v48
  %v141 = vpop.f32.mrb[0].mxu0
  %v142 = vadd.f32 %v38, %v141
  %v143 = vpop.f32.mrb[0].mxu0
  %144 = vmatprep.mubr.f32.mxu0 0.0
  %145 = vmatmul.mubr.f32.gmra.mrb[0].mxu0 %v51
  %v146 = vpop.f32.mrb[0].mxu0
  %v147 = vadd.f32 %v38, %v146
  %v148 = vpop.f32.mrb[0].mxu0
  %149 = vmatprep.mubr.f32.mxu0 0.0
  %150 = vmatmul.mubr.f32.gmra.mrb[0].mxu0 %v54
  %v151 = vpop.f32.mrb[0].mxu0
  %v152 = vadd.f32 %v38, %v151
  %v153 = vpop.f32.mrb[0].mxu0
  %154 = vmatprep.mubr.f32.mxu0 0.0
  %155 = vmatmul.mubr.f32.gmra.mrb[0].mxu0 %v57
  %v156 = vpop.f32.mrb[0].mxu0
  %v157 = vadd.f32 %v38, %v156
  %v158 = vpop.f32.mrb[0].mxu0
  %159 = vmatprep.mubr.f32.mxu0 0.0
  %160 = vmatmul.mubr.f32.gmra.mrb[0].mxu0 %v60
  %v161 = vpop.f32.mrb[0].mxu0
  %v162 = vadd.f32 %v38, %v161
  %v163 = vpop.f32.mrb[0].mxu0
  %164 = vmatprep.mubr.f32.mxu0 0.0
  %165 = vmatmul.mubr.f32.gmra.mrb[0].mxu0 %v63
  %v166 = vpop.f32.mrb[0].mxu0
  %v167 = vadd.f32 %v38, %v166
  %v168 = vpop.f32.mrb[0].mxu0
  %169 = vdwg.mxu0
  %vm170 = vcmask 523264
  %171 = vst.msk [vmem:[#allocation2] sm:$0xff] %vm170, %v132
  %172 = vst.msk [vmem:[#allocation2 + $0x8] sm:$0xff] %vm170, %v137
  %173 = vst.msk [vmem:[#allocation2 + $0x10] sm:$0xff] %vm170, %v142
  %174 = vst.msk [vmem:[#allocation2 + $0x18] sm:$0xff] %vm170, %v147
  %175 = vst.msk [vmem:[#allocation2 + $0x20] sm:$0xff] %vm170, %v152
  %176 = vst.msk [vmem:[#allocation2 + $0x28] sm:$0xff] %vm170, %v157
  %177 = vst.msk [vmem:[#allocation2 + $0x30] sm:$0xff] %vm170, %v162
  %178 = vst.msk [vmem:[#allocation2 + $0x38] sm:$0xff] %vm170, %v167
  %179 = vst.msk [vmem:[#allocation4] sm:$0xff] %vm40, 0.0
  %180 = vst.msk [vmem:[#allocation4 + $0x8] sm:$0xff] %vm40, 0.0
  %181 = vst.msk [vmem:[#allocation5] sm:$0xff] %vm40, 0.0
  %182 = vst.msk [vmem:[#allocation5 + $0x8] sm:$0xff] %vm40, 0.0
  %v183 = vld [vmem:[%s2] sm:$0xff]
  %v184 = vld [vmem:[%s2 + $0x8] sm:$0xff]
  %v185 = vld [vmem:[#allocation2] sm:$0xff]
  %v186 = vld [vmem:[#allocation2 + $0x8] sm:$0xff]
  %v187 = vld [vmem:[#allocation4] sm:$0xff]
  %v188 = vld [vmem:[#allocation4 + $0x8] sm:$0xff]
  %v190 = vsel %vm40, %v187, 0
  %v193 = vsel %vm40, %v188, 0
  %195 = vmatprep.subr.mxu0 0.0
  %196 = vmatpush1.msra.mxu0 %v183
  %197 = vmatprep.subr.mxu0 0.0
  %198 = vmatpush1.msra.mxu0 %v184
  %199 = vmatprep.subr.mxu0 0.0
  %200 = vmatpush1.msra.mxu0 0.0
  %201 = vmatprep.subr.mxu0 0.0
  %202 = vmatpush1.msra.mxu0 0.0
  %203 = vmatprep.subr.mxu0 0.0
  %204 = vmatpush1.msra.mxu0 0.0
  %205 = vmatprep.subr.mxu0 0.0
  %206 = vmatpush1.msra.mxu0 0.0
  %207 = vmatprep.subr.mxu0 0.0
  %208 = vmatpush1.msra.mxu0 0.0
  %209 = vmatprep.subr.mxu0 0.0
  %210 = vmatpush1.msra.mxu0 0.0
  %211 = vmatprep.subr.mxu0 0.0
  %212 = vmatpush1.msra.mxu0 0.0
  %213 = vmatprep.subr.mxu0 0.0
  %214 = vmatpush1.msra.mxu0 0.0
  %215 = vmatprep.subr.mxu0 0.0
  %216 = vmatpush1.msra.mxu0 0.0
  %217 = vmatprep.subr.mxu0 0.0
  %218 = vmatpush1.msra.mxu0 0.0
  %219 = vmatprep.subr.mxu0 0.0
  %220 = vmatpush1.msra.mxu0 0.0
  %221 = vmatprep.subr.mxu0 0.0
  %222 = vmatpush1.msra.mxu0 0.0
  %223 = vmatprep.subr.mxu0 0.0
  %224 = vmatpush1.msra.mxu0 0.0
  %225 = vmatprep.subr.mxu0 0.0
  %226 = vmatpush1.msra.mxu0 0.0
  %227 = vmatprep.subr.mxu0 0.0
  %228 = vmatpush1.msra.mxu0 0.0
  %229 = vmatprep.subr.mxu0 0.0
  %230 = vmatpush1.msra.mxu0 0.0
  %231 = vmatprep.subr.mxu0 0.0
  %232 = vmatpush1.msra.mxu0 0.0
  %233 = vmatprep.subr.mxu0 0.0
  %234 = vmatpush1.msra.mxu0 0.0
  %235 = vmatprep.subr.mxu0 0.0
  %236 = vmatpush1.msra.mxu0 0.0
  %237 = vmatprep.subr.mxu0 0.0
  %238 = vmatpush1.msra.mxu0 0.0
  %239 = vmatprep.subr.mxu0 0.0
  %240 = vmatpush1.msra.mxu0 0.0
  %241 = vmatprep.subr.mxu0 0.0
  %242 = vmatpush1.msra.mxu0 0.0
  %243 = vmatprep.subr.mxu0 0.0
  %244 = vmatpush1.msra.mxu0 0.0
  %245 = vmatprep.subr.mxu0 0.0
  %246 = vmatpush1.msra.mxu0 0.0
  %247 = vmatprep.subr.mxu0 0.0
  %248 = vmatpush1.msra.mxu0 0.0
  %249 = vmatprep.subr.mxu0 0.0
  %250 = vmatpush1.msra.mxu0 0.0
  %251 = vmatprep.subr.mxu0 0.0
  %252 = vmatpush1.msra.mxu0 0.0
  %253 = vmatprep.subr.mxu0 0.0
  %254 = vmatpush1.msra.mxu0 0.0
  %255 = vmatprep.subr.mxu0 0.0
  %256 = vmatpush1.msra.mxu0 0.0
  %257 = vmatprep.subr.mxu0 0.0
  %258 = vmatpush1.msra.mxu0 0.0
  %259 = vmatprep.mubr.f32.mxu0 0.0
  %260 = vmatmul.mubr.f32.gmra.mrb[0].mxu0 %v190
  %v261 = vpop.f32.mrb[0].mxu0
  %v262 = vadd.f32 0.0, %v261
  %v263 = vpop.f32.mrb[0].mxu0
  %264 = vmatprep.mubr.f32.mxu0 0.0
  %265 = vmatmul.mubr.f32.gmra.mrb[0].mxu0 %v193
  %v266 = vpop.f32.mrb[0].mxu0
  %v267 = vadd.f32 0.0, %v266
  %v268 = vpop.f32.mrb[0].mxu0
  %269 = vdwg.mxu0
  %v270 = vadd.f32 %v185, %v262
  %v271 = vadd.f32 %v186, %v267
  %v272 = vxor.u32 %v270, 2147483648
  %v273 = vxor.u32 %v271, 2147483648
  %v274 = vmul.f32 %v272, 1.442695
  %v275 = vpow.pop %v274
  %v276 = vmul.f32 %v273, 1.442695
  %v277 = vpow.pop %v276
  %v278 = vadd.f32 %v275, 1.0
  %v279 = vadd.f32 %v277, 1.0
  %v280 = vrcp.pop %v278
  %v281 = vmul.f32 1.0, %v280
  %v282 = vrcp.pop %v279
  %v283 = vmul.f32 1.0, %v282
  %v284 = vtanh.pop %v270
  %v285 = vtanh.pop %v271
  %v286 = vld [vmem:[#allocation5] sm:$0xff]
  %v287 = vld [vmem:[#allocation5 + $0x8] sm:$0xff]
  %290 = vrot.lane.b32.xlu0 %v286, 16
  %v291 = vpop.permute.xlu0 %290
  %292 = vrot.lane.b32.xlu0 %v287, 16
  %v293 = vpop.permute.xlu0 %292
  %v296 = vmul.f32 %v281, %v291
  %v297 = vmul.f32 %v283, %v293
  %300 = vrot.lane.b32.xlu0 %v284, 96
  %v301 = vpop.permute.xlu0 %300
  %302 = vrot.lane.b32.xlu0 %v285, 96
  %v303 = vpop.permute.xlu0 %302
  %v306 = vmul.f32 %v281, %v301
  %v307 = vmul.f32 %v283, %v303
  %310 = vrot.lane.b32.xlu0 %v306, 16
  %v311 = vpop.permute.xlu0 %310
  %312 = vrot.lane.b32.xlu0 %v307, 16
  %v313 = vpop.permute.xlu0 %312
  %v316 = vadd.f32 %v296, %v311
  %v317 = vadd.f32 %v297, %v313
  %v318 = vtanh.pop %v316
  %v319 = vtanh.pop %v317
  %322 = vrot.lane.b32.xlu0 %v318, 32
  %v323 = vpop.permute.xlu0 %322
  %324 = vrot.lane.b32.xlu0 %v319, 32
  %v325 = vpop.permute.xlu0 %324
  %v328 = vmul.f32 %v281, %v323
  %v329 = vmul.f32 %v283, %v325
  %332 = vrot.lane.b32.xlu0 %v316, 112
  %v333 = vpop.permute.xlu0 %332
  %334 = vrot.lane.b32.xlu0 %v317, 112
  %v335 = vpop.permute.xlu0 %334
  %338 = vst.msk [vmem:[#allocation5] sm:$0xff] %vm40, %v333
  %339 = vst.msk [vmem:[#allocation5 + $0x8] sm:$0xff] %vm40, %v335
  %342 = vrot.lane.b32.xlu0 %v328, 80
  %v343 = vpop.permute.xlu0 %342
  %344 = vrot.lane.b32.xlu0 %v329, 80
  %v345 = vpop.permute.xlu0 %344
  %348 = vst.msk [vmem:[#allocation4] sm:$0xff] %vm40, %v343
  %349 = vst.msk [vmem:[#allocation4 + $0x8] sm:$0xff] %vm40, %v345
  %350 = vst.msk [vmem:[#allocation3] sm:$0xff] %vm40, %v343
  %351 = vst.msk [vmem:[#allocation3 + $0x8] sm:$0xff] %vm40, %v345
  %s352 = scalar_lea.vmem [#allocation2], 16
  %v353 = vld [vmem:[%s352] sm:$0xff]
  %v354 = vld [vmem:[%s352 + $0x8] sm:$0xff]
  %v355 = vld [vmem:[#allocation4] sm:$0xff]
  %v356 = vld [vmem:[#allocation4 + $0x8] sm:$0xff]
  %v358 = vsel %vm40, %v355, 0
  %v361 = vsel %vm40, %v356, 0
  %363 = vmatprep.subr.mxu0 0.0
  %364 = vmatpush1.msra.mxu0 %v183
  %365 = vmatprep.subr.mxu0 0.0
  %366 = vmatpush1.msra.mxu0 %v184
  %367 = vmatprep.subr.mxu0 0.0
  %368 = vmatpush1.msra.mxu0 0.0
  %369 = vmatprep.subr.mxu0 0.0
  %370 = vmatpush1.msra.mxu0 0.0
  %371 = vmatprep.subr.mxu0 0.0
  %372 = vmatpush1.msra.mxu0 0.0
  %373 = vmatprep.subr.mxu0 0.0
  %374 = vmatpush1.msra.mxu0 0.0
  %375 = vmatprep.subr.mxu0 0.0
  %376 = vmatpush1.msra.mxu0 0.0
  %377 = vmatprep.subr.mxu0 0.0
  %378 = vmatpush1.msra.mxu0 0.0
  %379 = vmatprep.subr.mxu0 0.0
  %380 = vmatpush1.msra.mxu0 0.0
  %381 = vmatprep.subr.mxu0 0.0
  %382 = vmatpush1.msra.mxu0 0.0
  %383 = vmatprep.subr.mxu0 0.0
  %384 = vmatpush1.msra.mxu0 0.0
  %385 = vmatprep.subr.mxu0 0.0
  %386 = vmatpush1.msra.mxu0 0.0
  %387 = vmatprep.subr.mxu0 0.0
  %388 = vmatpush1.msra.mxu0 0.0
  %389 = vmatprep.subr.mxu0 0.0
  %390 = vmatpush1.msra.mxu0 0.0
  %391 = vmatprep.subr.mxu0 0.0
  %392 = vmatpush1.msra.mxu0 0.0
  %393 = vmatprep.subr.mxu0 0.0
  %394 = vmatpush1.msra.mxu0 0.0
  %395 = vmatprep.subr.mxu0 0.0
  %396 = vmatpush1.msra.mxu0 0.0
  %397 = vmatprep.subr.mxu0 0.0
  %398 = vmatpush1.msra.mxu0 0.0
  %399 = vmatprep.subr.mxu0 0.0
  %400 = vmatpush1.msra.mxu0 0.0
  %401 = vmatprep.subr.mxu0 0.0
  %402 = vmatpush1.msra.mxu0 0.0
  %403 = vmatprep.subr.mxu0 0.0
  %404 = vmatpush1.msra.mxu0 0.0
  %405 = vmatprep.subr.mxu0 0.0
  %406 = vmatpush1.msra.mxu0 0.0
  %407 = vmatprep.subr.mxu0 0.0
  %408 = vmatpush1.msra.mxu0 0.0
  %409 = vmatprep.subr.mxu0 0.0
  %410 = vmatpush1.msra.mxu0 0.0
  %411 = vmatprep.subr.mxu0 0.0
  %412 = vmatpush1.msra.mxu0 0.0
  %413 = vmatprep.subr.mxu0 0.0
  %414 = vmatpush1.msra.mxu0 0.0
  %415 = vmatprep.subr.mxu0 0.0
  %416 = vmatpush1.msra.mxu0 0.0
  %417 = vmatprep.subr.mxu0 0.0
  %418 = vmatpush1.msra.mxu0 0.0
  %419 = vmatprep.subr.mxu0 0.0
  %420 = vmatpush1.msra.mxu0 0.0
  %421 = vmatprep.subr.mxu0 0.0
  %422 = vmatpush1.msra.mxu0 0.0
  %423 = vmatprep.subr.mxu0 0.0
  %424 = vmatpush1.msra.mxu0 0.0
  %425 = vmatprep.subr.mxu0 0.0
  %426 = vmatpush1.msra.mxu0 0.0
  %427 = vmatprep.mubr.f32.mxu0 0.0
  %428 = vmatmul.mubr.f32.gmra.mrb[0].mxu0 %v358
  %v429 = vpop.f32.mrb[0].mxu0
  %v430 = vadd.f32 0.0, %v429
  %v431 = vpop.f32.mrb[0].mxu0
  %432 = vmatprep.mubr.f32.mxu0 0.0
  %433 = vmatmul.mubr.f32.gmra.mrb[0].mxu0 %v361
  %v434 = vpop.f32.mrb[0].mxu0
  %v435 = vadd.f32 0.0, %v434
  %v436 = vpop.f32.mrb[0].mxu0
  %437 = vdwg.mxu0
  %v438 = vadd.f32 %v353, %v430
  %v439 = vadd.f32 %v354, %v435
  %v440 = vxor.u32 %v438, 2147483648
  %v441 = vxor.u32 %v439, 2147483648
  %v442 = vmul.f32 %v440, 1.442695
  %v443 = vpow.pop %v442
  %v444 = vmul.f32 %v441, 1.442695
  %v445 = vpow.pop %v444
  %v446 = vadd.f32 %v443, 1.0
  %v447 = vadd.f32 %v445, 1.0
  %v448 = vrcp.pop %v446
  %v449 = vmul.f32 1.0, %v448
  %v450 = vrcp.pop %v447
  %v451 = vmul.f32 1.0, %v450
  %v452 = vtanh.pop %v438
  %v453 = vtanh.pop %v439
  %v454 = vld [vmem:[#allocation5] sm:$0xff]
  %v455 = vld [vmem:[#allocation5 + $0x8] sm:$0xff]
  %458 = vrot.lane.b32.xlu0 %v454, 16
  %v459 = vpop.permute.xlu0 %458
  %460 = vrot.lane.b32.xlu0 %v455, 16
  %v461 = vpop.permute.xlu0 %460
  %v464 = vmul.f32 %v449, %v459
  %v465 = vmul.f32 %v451, %v461
  %468 = vrot.lane.b32.xlu0 %v452, 96
  %v469 = vpop.permute.xlu0 %468
  %470 = vrot.lane.b32.xlu0 %v453, 96
  %v471 = vpop.permute.xlu0 %470
  %v474 = vmul.f32 %v449, %v469
  %v475 = vmul.f32 %v451, %v471
  %478 = vrot.lane.b32.xlu0 %v474, 16
  %v479 = vpop.permute.xlu0 %478
  %480 = vrot.lane.b32.xlu0 %v475, 16
  %v481 = vpop.permute.xlu0 %480
  %v484 = vadd.f32 %v464, %v479
  %v485 = vadd.f32 %v465, %v481
  %v486 = vtanh.pop %v484
  %v487 = vtanh.pop %v485
  %490 = vrot.lane.b32.xlu0 %v486, 32
  %v491 = vpop.permute.xlu0 %490
  %492 = vrot.lane.b32.xlu0 %v487, 32
  %v493 = vpop.permute.xlu0 %492
  %v496 = vmul.f32 %v449, %v491
  %v497 = vmul.f32 %v451, %v493
  %500 = vrot.lane.b32.xlu0 %v484, 112
  %v501 = vpop.permute.xlu0 %500
  %502 = vrot.lane.b32.xlu0 %v485, 112
  %v503 = vpop.permute.xlu0 %502
  %506 = vst.msk [vmem:[#allocation5] sm:$0xff] %vm40, %v501
  %507 = vst.msk [vmem:[#allocation5 + $0x8] sm:$0xff] %vm40, %v503
  %510 = vrot.lane.b32.xlu0 %v496, 80
  %v511 = vpop.permute.xlu0 %510
  %512 = vrot.lane.b32.xlu0 %v497, 80
  %v513 = vpop.permute.xlu0 %512
  %516 = vst.msk [vmem:[#allocation4] sm:$0xff] %vm40, %v511
  %517 = vst.msk [vmem:[#allocation4 + $0x8] sm:$0xff] %vm40, %v513
  %s518 = scalar_lea.vmem [#allocation3], 16
  %519 = vst.msk [vmem:[%s518] sm:$0xff] %vm40, %v511
  %520 = vst.msk [vmem:[%s518 + $0x8] sm:$0xff] %vm40, %v513
  %s521 = scalar_lea.vmem [#allocation2], 32
  %v522 = vld [vmem:[%s521] sm:$0xff]
  %v523 = vld [vmem:[%s521 + $0x8] sm:$0xff]
  %v524 = vld [vmem:[#allocation4] sm:$0xff]
  %v525 = vld [vmem:[#allocation4 + $0x8] sm:$0xff]
  %v527 = vsel %vm40, %v524, 0
  %v530 = vsel %vm40, %v525, 0
  %532 = vmatprep.subr.mxu0 0.0
  %533 = vmatpush1.msra.mxu0 %v183
  %534 = vmatprep.subr.mxu0 0.0
  %535 = vmatpush1.msra.mxu0 %v184
  %536 = vmatprep.subr.mxu0 0.0
  %537 = vmatpush1.msra.mxu0 0.0
  %538 = vmatprep.subr.mxu0 0.0
  %539 = vmatpush1.msra.mxu0 0.0
  %540 = vmatprep.subr.mxu0 0.0
  %541 = vmatpush1.msra.mxu0 0.0
  %542 = vmatprep.subr.mxu0 0.0
  %543 = vmatpush1.msra.mxu0 0.0
  %544 = vmatprep.subr.mxu0 0.0
  %545 = vmatpush1.msra.mxu0 0.0
  %546 = vmatprep.subr.mxu0 0.0
  %547 = vmatpush1.msra.mxu0 0.0
  %548 = vmatprep.subr.mxu0 0.0
  %549 = vmatpush1.msra.mxu0 0.0
  %550 = vmatprep.subr.mxu0 0.0
  %551 = vmatpush1.msra.mxu0 0.0
  %552 = vmatprep.subr.mxu0 0.0
  %553 = vmatpush1.msra.mxu0 0.0
  %554 = vmatprep.subr.mxu0 0.0
  %555 = vmatpush1.msra.mxu0 0.0
  %556 = vmatprep.subr.mxu0 0.0
  %557 = vmatpush1.msra.mxu0 0.0
  %558 = vmatprep.subr.mxu0 0.0
  %559 = vmatpush1.msra.mxu0 0.0
  %560 = vmatprep.subr.mxu0 0.0
  %561 = vmatpush1.msra.mxu0 0.0
  %562 = vmatprep.subr.mxu0 0.0
  %563 = vmatpush1.msra.mxu0 0.0
  %564 = vmatprep.subr.mxu0 0.0
  %565 = vmatpush1.msra.mxu0 0.0
  %566 = vmatprep.subr.mxu0 0.0
  %567 = vmatpush1.msra.mxu0 0.0
  %568 = vmatprep.subr.mxu0 0.0
  %569 = vmatpush1.msra.mxu0 0.0
  %570 = vmatprep.subr.mxu0 0.0
  %571 = vmatpush1.msra.mxu0 0.0
  %572 = vmatprep.subr.mxu0 0.0
  %573 = vmatpush1.msra.mxu0 0.0
  %574 = vmatprep.subr.mxu0 0.0
  %575 = vmatpush1.msra.mxu0 0.0
  %576 = vmatprep.subr.mxu0 0.0
  %577 = vmatpush1.msra.mxu0 0.0
  %578 = vmatprep.subr.mxu0 0.0
  %579 = vmatpush1.msra.mxu0 0.0
  %580 = vmatprep.subr.mxu0 0.0
  %581 = vmatpush1.msra.mxu0 0.0
  %582 = vmatprep.subr.mxu0 0.0
  %583 = vmatpush1.msra.mxu0 0.0
  %584 = vmatprep.subr.mxu0 0.0
  %585 = vmatpush1.msra.mxu0 0.0
  %586 = vmatprep.subr.mxu0 0.0
  %587 = vmatpush1.msra.mxu0 0.0
  %588 = vmatprep.subr.mxu0 0.0
  %589 = vmatpush1.msra.mxu0 0.0
  %590 = vmatprep.subr.mxu0 0.0
  %591 = vmatpush1.msra.mxu0 0.0
  %592 = vmatprep.subr.mxu0 0.0
  %593 = vmatpush1.msra.mxu0 0.0
  %594 = vmatprep.subr.mxu0 0.0
  %595 = vmatpush1.msra.mxu0 0.0
  %596 = vmatprep.mubr.f32.mxu0 0.0
  %597 = vmatmul.mubr.f32.gmra.mrb[0].mxu0 %v527
  %v598 = vpop.f32.mrb[0].mxu0
  %v599 = vadd.f32 0.0, %v598
  %v600 = vpop.f32.mrb[0].mxu0
  %601 = vmatprep.mubr.f32.mxu0 0.0
  %602 = vmatmul.mubr.f32.gmra.mrb[0].mxu0 %v530
  %v603 = vpop.f32.mrb[0].mxu0
  %v604 = vadd.f32 0.0, %v603
  %v605 = vpop.f32.mrb[0].mxu0
  %606 = vdwg.mxu0
  %v607 = vadd.f32 %v522, %v599
  %v608 = vadd.f32 %v523, %v604
  %v609 = vxor.u32 %v607, 2147483648
  %v610 = vxor.u32 %v608, 2147483648
  %v611 = vmul.f32 %v609, 1.442695
  %v612 = vpow.pop %v611
  %v613 = vmul.f32 %v610, 1.442695
  %v614 = vpow.pop %v613
  %v615 = vadd.f32 %v612, 1.0
  %v616 = vadd.f32 %v614, 1.0
  %v617 = vrcp.pop %v615
  %v618 = vmul.f32 1.0, %v617
  %v619 = vrcp.pop %v616
  %v620 = vmul.f32 1.0, %v619
  %v621 = vtanh.pop %v607
  %v622 = vtanh.pop %v608
  %v623 = vld [vmem:[#allocation5] sm:$0xff]
  %v624 = vld [vmem:[#allocation5 + $0x8] sm:$0xff]
  %627 = vrot.lane.b32.xlu0 %v623, 16
  %v628 = vpop.permute.xlu0 %627
  %629 = vrot.lane.b32.xlu0 %v624, 16
  %v630 = vpop.permute.xlu0 %629
  %v633 = vmul.f32 %v618, %v628
  %v634 = vmul.f32 %v620, %v630
  %637 = vrot.lane.b32.xlu0 %v621, 96
  %v638 = vpop.permute.xlu0 %637
  %639 = vrot.lane.b32.xlu0 %v622, 96
  %v640 = vpop.permute.xlu0 %639
  %v643 = vmul.f32 %v618, %v638
  %v644 = vmul.f32 %v620, %v640
  %647 = vrot.lane.b32.xlu0 %v643, 16
  %v648 = vpop.permute.xlu0 %647
  %649 = vrot.lane.b32.xlu0 %v644, 16
  %v650 = vpop.permute.xlu0 %649
  %v653 = vadd.f32 %v633, %v648
  %v654 = vadd.f32 %v634, %v650
  %v655 = vtanh.pop %v653
  %v656 = vtanh.pop %v654
  %659 = vrot.lane.b32.xlu0 %v655, 32
  %v660 = vpop.permute.xlu0 %659
  %661 = vrot.lane.b32.xlu0 %v656, 32
  %v662 = vpop.permute.xlu0 %661
  %v665 = vmul.f32 %v618, %v660
  %v666 = vmul.f32 %v620, %v662
  %669 = vrot.lane.b32.xlu0 %v653, 112
  %v670 = vpop.permute.xlu0 %669
  %671 = vrot.lane.b32.xlu0 %v654, 112
  %v672 = vpop.permute.xlu0 %671
  %675 = vst.msk [vmem:[#allocation5] sm:$0xff] %vm40, %v670
  %676 = vst.msk [vmem:[#allocation5 + $0x8] sm:$0xff] %vm40, %v672
  %679 = vrot.lane.b32.xlu0 %v665, 80
  %v680 = vpop.permute.xlu0 %679
  %681 = vrot.lane.b32.xlu0 %v666, 80
  %v682 = vpop.permute.xlu0 %681
  %685 = vst.msk [vmem:[#allocation4] sm:$0xff] %vm40, %v680
  %686 = vst.msk [vmem:[#allocation4 + $0x8] sm:$0xff] %vm40, %v682
  %s687 = scalar_lea.vmem [#allocation3], 32
  %688 = vst.msk [vmem:[%s687] sm:$0xff] %vm40, %v680
  %689 = vst.msk [vmem:[%s687 + $0x8] sm:$0xff] %vm40, %v682
  %s690 = scalar_lea.vmem [#allocation2], 48
  %v691 = vld [vmem:[%s690] sm:$0xff]
  %v692 = vld [vmem:[%s690 + $0x8] sm:$0xff]
  %v693 = vld [vmem:[#allocation4] sm:$0xff]
  %v694 = vld [vmem:[#allocation4 + $0x8] sm:$0xff]
  %v696 = vsel %vm40, %v693, 0
  %v699 = vsel %vm40, %v694, 0
  %701 = vmatprep.subr.mxu0 0.0
  %702 = vmatpush1.msra.mxu0 %v183
  %703 = vmatprep.subr.mxu0 0.0
  %704 = vmatpush1.msra.mxu0 %v184
  %705 = vmatprep.subr.mxu0 0.0
  %706 = vmatpush1.msra.mxu0 0.0
  %707 = vmatprep.subr.mxu0 0.0
  %708 = vmatpush1.msra.mxu0 0.0
  %709 = vmatprep.subr.mxu0 0.0
  %710 = vmatpush1.msra.mxu0 0.0
  %711 = vmatprep.subr.mxu0 0.0
  %712 = vmatpush1.msra.mxu0 0.0
  %713 = vmatprep.subr.mxu0 0.0
  %714 = vmatpush1.msra.mxu0 0.0
  %715 = vmatprep.subr.mxu0 0.0
  %716 = vmatpush1.msra.mxu0 0.0
  %717 = vmatprep.subr.mxu0 0.0
  %718 = vmatpush1.msra.mxu0 0.0
  %719 = vmatprep.subr.mxu0 0.0
  %720 = vmatpush1.msra.mxu0 0.0
  %721 = vmatprep.subr.mxu0 0.0
  %722 = vmatpush1.msra.mxu0 0.0
  %723 = vmatprep.subr.mxu0 0.0
  %724 = vmatpush1.msra.mxu0 0.0
  %725 = vmatprep.subr.mxu0 0.0
  %726 = vmatpush1.msra.mxu0 0.0
  %727 = vmatprep.subr.mxu0 0.0
  %728 = vmatpush1.msra.mxu0 0.0
  %729 = vmatprep.subr.mxu0 0.0
  %730 = vmatpush1.msra.mxu0 0.0
  %731 = vmatprep.subr.mxu0 0.0
  %732 = vmatpush1.msra.mxu0 0.0
  %733 = vmatprep.subr.mxu0 0.0
  %734 = vmatpush1.msra.mxu0 0.0
  %735 = vmatprep.subr.mxu0 0.0
  %736 = vmatpush1.msra.mxu0 0.0
  %737 = vmatprep.subr.mxu0 0.0
  %738 = vmatpush1.msra.mxu0 0.0
  %739 = vmatprep.subr.mxu0 0.0
  %740 = vmatpush1.msra.mxu0 0.0
  %741 = vmatprep.subr.mxu0 0.0
  %742 = vmatpush1.msra.mxu0 0.0
  %743 = vmatprep.subr.mxu0 0.0
  %744 = vmatpush1.msra.mxu0 0.0
  %745 = vmatprep.subr.mxu0 0.0
  %746 = vmatpush1.msra.mxu0 0.0
  %747 = vmatprep.subr.mxu0 0.0
  %748 = vmatpush1.msra.mxu0 0.0
  %749 = vmatprep.subr.mxu0 0.0
  %750 = vmatpush1.msra.mxu0 0.0
  %751 = vmatprep.subr.mxu0 0.0
  %752 = vmatpush1.msra.mxu0 0.0
  %753 = vmatprep.subr.mxu0 0.0
  %754 = vmatpush1.msra.mxu0 0.0
  %755 = vmatprep.subr.mxu0 0.0
  %756 = vmatpush1.msra.mxu0 0.0
  %757 = vmatprep.subr.mxu0 0.0
  %758 = vmatpush1.msra.mxu0 0.0
  %759 = vmatprep.subr.mxu0 0.0
  %760 = vmatpush1.msra.mxu0 0.0
  %761 = vmatprep.subr.mxu0 0.0
  %762 = vmatpush1.msra.mxu0 0.0
  %763 = vmatprep.subr.mxu0 0.0
  %764 = vmatpush1.msra.mxu0 0.0
  %765 = vmatprep.mubr.f32.mxu0 0.0
  %766 = vmatmul.mubr.f32.gmra.mrb[0].mxu0 %v696
  %v767 = vpop.f32.mrb[0].mxu0
  %v768 = vadd.f32 0.0, %v767
  %v769 = vpop.f32.mrb[0].mxu0
  %770 = vmatprep.mubr.f32.mxu0 0.0
  %771 = vmatmul.mubr.f32.gmra.mrb[0].mxu0 %v699
  %v772 = vpop.f32.mrb[0].mxu0
  %v773 = vadd.f32 0.0, %v772
  %v774 = vpop.f32.mrb[0].mxu0
  %775 = vdwg.mxu0
  %v776 = vadd.f32 %v691, %v768
  %v777 = vadd.f32 %v692, %v773
  %v778 = vxor.u32 %v776, 2147483648
  %v779 = vxor.u32 %v777, 2147483648
  %v780 = vmul.f32 %v778, 1.442695
  %v781 = vpow.pop %v780
  %v782 = vmul.f32 %v779, 1.442695
  %v783 = vpow.pop %v782
  %v784 = vadd.f32 %v781, 1.0
  %v785 = vadd.f32 %v783, 1.0
  %v786 = vrcp.pop %v784
  %v787 = vmul.f32 1.0, %v786
  %v788 = vrcp.pop %v785
  %v789 = vmul.f32 1.0, %v788
  %v790 = vtanh.pop %v776
  %v791 = vtanh.pop %v777
  %v792 = vld [vmem:[#allocation5] sm:$0xff]
  %v793 = vld [vmem:[#allocation5 + $0x8] sm:$0xff]
  %796 = vrot.lane.b32.xlu0 %v792, 16
  %v797 = vpop.permute.xlu0 %796
  %798 = vrot.lane.b32.xlu0 %v793, 16
  %v799 = vpop.permute.xlu0 %798
  %v802 = vmul.f32 %v787, %v797
  %v803 = vmul.f32 %v789, %v799
  %806 = vrot.lane.b32.xlu0 %v790, 96
  %v807 = vpop.permute.xlu0 %806
  %808 = vrot.lane.b32.xlu0 %v791, 96
  %v809 = vpop.permute.xlu0 %808
  %v812 = vmul.f32 %v787, %v807
  %v813 = vmul.f32 %v789, %v809
  %816 = vrot.lane.b32.xlu0 %v812, 16
  %v817 = vpop.permute.xlu0 %816
  %818 = vrot.lane.b32.xlu0 %v813, 16
  %v819 = vpop.permute.xlu0 %818
  %v822 = vadd.f32 %v802, %v817
  %v823 = vadd.f32 %v803, %v819
  %v824 = vtanh.pop %v822
  %v825 = vtanh.pop %v823
  %828 = vrot.lane.b32.xlu0 %v824, 32
  %v829 = vpop.permute.xlu0 %828
  %830 = vrot.lane.b32.xlu0 %v825, 32
  %v831 = vpop.permute.xlu0 %830
  %v834 = vmul.f32 %v787, %v829
  %v835 = vmul.f32 %v789, %v831
  %838 = vrot.lane.b32.xlu0 %v822, 112
  %v839 = vpop.permute.xlu0 %838
  %840 = vrot.lane.b32.xlu0 %v823, 112
  %v841 = vpop.permute.xlu0 %840
  %844 = vst.msk [vmem:[#allocation5] sm:$0xff] %vm40, %v839
  %845 = vst.msk [vmem:[#allocation5 + $0x8] sm:$0xff] %vm40, %v841
  %848 = vrot.lane.b32.xlu0 %v834, 80
  %v849 = vpop.permute.xlu0 %848
  %850 = vrot.lane.b32.xlu0 %v835, 80
  %v851 = vpop.permute.xlu0 %850
  %854 = vst.msk [vmem:[#allocation4] sm:$0xff] %vm40, %v849
  %855 = vst.msk [vmem:[#allocation4 + $0x8] sm:$0xff] %vm40, %v851
  %s856 = scalar_lea.vmem [#allocation3], 48
  %857 = vst.msk [vmem:[%s856] sm:$0xff] %vm40, %v849
  %858 = vst.msk [vmem:[%s856 + $0x8] sm:$0xff] %vm40, %v851
  %v859 = vld [vmem:[#allocation3] sm:$0xff]
  %v860 = vld [vmem:[#allocation3 + $0x8] sm:$0xff]
  %v861 = vld [vmem:[#allocation3 + $0x10] sm:$0xff]
  %v862 = vld [vmem:[#allocation3 + $0x18] sm:$0xff]
  %v863 = vld [vmem:[#allocation3 + $0x20] sm:$0xff]
  %v864 = vld [vmem:[#allocation3 + $0x28] sm:$0xff]
  %v865 = vld [vmem:[#allocation3 + $0x30] sm:$0xff]
  %v866 = vld [vmem:[#allocation3 + $0x38] sm:$0xff]
  %v867 = vld [vmem:[%s4] sm:$0xff]
  %v868 = vld [vmem:[%s4 + $0x8] sm:$0xff]
  %v869 = vld [vmem:[%s5] sm:$0x1]
  %v871 = vlaneseq
  %v872 = vshrl.u32 %v871, 7
  %v873 = vsub.s32 0, %v872
  %v874 = vrot.slane %v869, %v873
  %v877 = vsel %vm40, %v859, 0
  %v880 = vsel %vm40, %v860, 0
  %v883 = vsel %vm40, %v861, 0
  %v886 = vsel %vm40, %v862, 0
  %v889 = vsel %vm40, %v863, 0
  %v892 = vsel %vm40, %v864, 0
  %v895 = vsel %vm40, %v865, 0
  %v898 = vsel %vm40, %v866, 0
  %900 = vmatprep.subr.mxu0 0.0
  %901 = vmatpush1.msra.mxu0 %v867
  %902 = vmatprep.subr.mxu0 0.0
  %903 = vmatpush1.msra.mxu0 %v868
  %904 = vmatprep.subr.mxu0 0.0
  %905 = vmatpush1.msra.mxu0 0.0
  %906 = vmatprep.subr.mxu0 0.0
  %907 = vmatpush1.msra.mxu0 0.0
  %908 = vmatprep.subr.mxu0 0.0
  %909 = vmatpush1.msra.mxu0 0.0
  %910 = vmatprep.subr.mxu0 0.0
  %911 = vmatpush1.msra.mxu0 0.0
  %912 = vmatprep.subr.mxu0 0.0
  %913 = vmatpush1.msra.mxu0 0.0
  %914 = vmatprep.subr.mxu0 0.0
  %915 = vmatpush1.msra.mxu0 0.0
  %916 = vmatprep.subr.mxu0 0.0
  %917 = vmatpush1.msra.mxu0 0.0
  %918 = vmatprep.subr.mxu0 0.0
  %919 = vmatpush1.msra.mxu0 0.0
  %920 = vmatprep.subr.mxu0 0.0
  %921 = vmatpush1.msra.mxu0 0.0
  %922 = vmatprep.subr.mxu0 0.0
  %923 = vmatpush1.msra.mxu0 0.0
  %924 = vmatprep.subr.mxu0 0.0
  %925 = vmatpush1.msra.mxu0 0.0
  %926 = vmatprep.subr.mxu0 0.0
  %927 = vmatpush1.msra.mxu0 0.0
  %928 = vmatprep.subr.mxu0 0.0
  %929 = vmatpush1.msra.mxu0 0.0
  %930 = vmatprep.subr.mxu0 0.0
  %931 = vmatpush1.msra.mxu0 0.0
  %932 = vmatprep.subr.mxu0 0.0
  %933 = vmatpush1.msra.mxu0 0.0
  %934 = vmatprep.subr.mxu0 0.0
  %935 = vmatpush1.msra.mxu0 0.0
  %936 = vmatprep.subr.mxu0 0.0
  %937 = vmatpush1.msra.mxu0 0.0
  %938 = vmatprep.subr.mxu0 0.0
  %939 = vmatpush1.msra.mxu0 0.0
  %940 = vmatprep.subr.mxu0 0.0
  %941 = vmatpush1.msra.mxu0 0.0
  %942 = vmatprep.subr.mxu0 0.0
  %943 = vmatpush1.msra.mxu0 0.0
  %944 = vmatprep.subr.mxu0 0.0
  %945 = vmatpush1.msra.mxu0 0.0
  %946 = vmatprep.subr.mxu0 0.0
  %947 = vmatpush1.msra.mxu0 0.0
  %948 = vmatprep.subr.mxu0 0.0
  %949 = vmatpush1.msra.mxu0 0.0
  %950 = vmatprep.subr.mxu0 0.0
  %951 = vmatpush1.msra.mxu0 0.0
  %952 = vmatprep.subr.mxu0 0.0
  %953 = vmatpush1.msra.mxu0 0.0
  %954 = vmatprep.subr.mxu0 0.0
  %955 = vmatpush1.msra.mxu0 0.0
  %956 = vmatprep.subr.mxu0 0.0
  %957 = vmatpush1.msra.mxu0 0.0
  %958 = vmatprep.subr.mxu0 0.0
  %959 = vmatpush1.msra.mxu0 0.0
  %960 = vmatprep.subr.mxu0 0.0
  %961 = vmatpush1.msra.mxu0 0.0
  %962 = vmatprep.subr.mxu0 0.0
  %963 = vmatpush1.msra.mxu0 0.0
  %964 = vmatprep.mubr.f32.mxu0 0.0
  %965 = vmatmul.mubr.f32.gmra.mrb[0].mxu0 %v877
  %v966 = vpop.f32.mrb[0].mxu0
  %v967 = vadd.f32 %v874, %v966
  %v968 = vpop.f32.mrb[0].mxu0
  %969 = vmatprep.mubr.f32.mxu0 0.0
  %970 = vmatmul.mubr.f32.gmra.mrb[0].mxu0 %v880
  %v971 = vpop.f32.mrb[0].mxu0
  %v972 = vadd.f32 %v874, %v971
  %v973 = vpop.f32.mrb[0].mxu0
  %974 = vmatprep.mubr.f32.mxu0 0.0
  %975 = vmatmul.mubr.f32.gmra.mrb[0].mxu0 %v883
  %v976 = vpop.f32.mrb[0].mxu0
  %v977 = vadd.f32 %v874, %v976
  %v978 = vpop.f32.mrb[0].mxu0
  %979 = vmatprep.mubr.f32.mxu0 0.0
  %980 = vmatmul.mubr.f32.gmra.mrb[0].mxu0 %v886
  %v981 = vpop.f32.mrb[0].mxu0
  %v982 = vadd.f32 %v874, %v981
  %v983 = vpop.f32.mrb[0].mxu0
  %984 = vmatprep.mubr.f32.mxu0 0.0
  %985 = vmatmul.mubr.f32.gmra.mrb[0].mxu0 %v889
  %v986 = vpop.f32.mrb[0].mxu0
  %v987 = vadd.f32 %v874, %v986
  %v988 = vpop.f32.mrb[0].mxu0
  %989 = vmatprep.mubr.f32.mxu0 0.0
  %990 = vmatmul.mubr.f32.gmra.mrb[0].mxu0 %v892
  %v991 = vpop.f32.mrb[0].mxu0
  %v992 = vadd.f32 %v874, %v991
  %v993 = vpop.f32.mrb[0].mxu0
  %994 = vmatprep.mubr.f32.mxu0 0.0
  %995 = vmatmul.mubr.f32.gmra.mrb[0].mxu0 %v895
  %v996 = vpop.f32.mrb[0].mxu0
  %v997 = vadd.f32 %v874, %v996
  %v998 = vpop.f32.mrb[0].mxu0
  %999 = vmatprep.mubr.f32.mxu0 0.0
  %1000 = vmatmul.mubr.f32.gmra.mrb[0].mxu0 %v898
  %v1001 = vpop.f32.mrb[0].mxu0
  %v1002 = vadd.f32 %v874, %v1001
  %v1003 = vpop.f32.mrb[0].mxu0
  %1004 = vdwg.mxu0
  %1005 = vst.msk [vmem:[%s6] sm:$0xff] %vm40, %v967
  %1006 = vst.msk [vmem:[%s6 + $0x8] sm:$0xff] %vm40, %v972
  %1007 = vst.msk [vmem:[%s6 + $0x10] sm:$0xff] %vm40, %v977
  %1008 = vst.msk [vmem:[%s6 + $0x18] sm:$0xff] %vm40, %v982
  %1009 = vst.msk [vmem:[%s6 + $0x20] sm:$0xff] %vm40, %v987
  %1010 = vst.msk [vmem:[%s6 + $0x28] sm:$0xff] %vm40, %v992
  %1011 = vst.msk [vmem:[%s6 + $0x30] sm:$0xff] %vm40, %v997
  %1012 = vst.msk [vmem:[%s6 + $0x38] sm:$0xff] %vm40, %v1002
  // Predicated region
  $region26: #{dprnn_forward.8} parent=0 // pred_check
    _
  $region27: #{dprnn_forward.8} parent=0 // pred_check_branch
    %1014 = sbr.rel (0) target = $region29
  $region28: #{dprnn_forward.8} parent=0 // pred_region
    _
  $region29: #{dprnn_forward.8} parent=0 // pred_fallthru
    _
  // Predicated region
  $region30: #{dprnn_forward.8} parent=0 // pred_check
    _
  $region31: #{dprnn_forward.8} parent=0 // pred_check_branch
    %1016 = sbr.rel (0) target = $region33
  $region32: #{dprnn_forward.8} parent=0 // pred_region
    _
  $region33: #{dprnn_forward.8} parent=0 // pred_fallthru
    _

// kernel: dprnn_forward.6
$region0: #{dprnn_forward.6}
  #allocation0 [shape = 'u32[]', space=smem, size = 0x4, offset = 0x4, fixed_abs, tag = 'smem constant byte address 0x4 - core index']
  #allocation1 [shape = 'u32[144,128]{1,0:T(1,128)}', space=vmem, size = 0x12000, scoped, tag = 'internal scratch']
  #allocation2 [shape = 'f32[8,8,32]{2,1,0:T(8,128)}', space=vmem, size = 0x8000, scoped, tag = 'scratch operand']
  #allocation3 [shape = 'f32[8,8,8]{2,1,0:T(8,128)}', space=vmem, size = 0x8000, scoped, tag = 'scratch operand']
  #allocation4 [shape = 'f32[8,8]{1,0:T(8,128)}', space=vmem, size = 0x1000, scoped, tag = 'scratch operand']
  #allocation5 [shape = 'f32[8,8]{1,0:T(8,128)}', space=vmem, size = 0x1000, scoped, tag = 'scratch operand']
  %s0 = inlined_call_operand.vmem [shape: f32[8,8,16], index: 0, kind: input, shape index: {}]
  %s1 = inlined_call_operand.vmem [shape: f32[16,32], index: 1, kind: input, shape index: {}]
  %s2 = inlined_call_operand.vmem [shape: f32[8,32], index: 2, kind: input, shape index: {}]
  %s3 = inlined_call_operand.vmem [shape: f32[1,32], index: 3, kind: input, shape index: {}]
  %s4 = inlined_call_operand.vmem [shape: f32[8,16], index: 4, kind: input, shape index: {}]
  %s5 = inlined_call_operand.vmem [shape: f32[1,16], index: 5, kind: input, shape index: {}]
  %s6 = inlined_call_operand.vmem [shape: f32[8,8,16], index: 6, kind: output, shape index: {}]
  %s7 = sld [smem:[#allocation0]]
  $region34: #{dprnn_forward.6} parent=0
    _
  %s9 = ssub.s32 1, %s7
  %s10 = scalar_select 0, %s9, %s7
  // Predicated region
  $region2: #{dprnn_forward.6} parent=0 // pred_check
    _
  $region3: #{dprnn_forward.6} parent=0 // pred_check_branch
    %12 = sbr.rel (0) target = $region5
  $region4: #{dprnn_forward.6} parent=0 // pred_region
    _
  $region5: #{dprnn_forward.6} parent=0 // pred_fallthru
    _
  // Predicated region
  $region6: #{dprnn_forward.6} parent=0 // pred_check
    _
  $region7: #{dprnn_forward.6} parent=0 // pred_check_branch
    %14 = sbr.rel (0) target = $region9
  $region8: #{dprnn_forward.6} parent=0 // pred_region
    _
  $region9: #{dprnn_forward.6} parent=0 // pred_fallthru
    _
  // Predicated region
  $region10: #{dprnn_forward.6} parent=0 // pred_check
    _
  $region11: #{dprnn_forward.6} parent=0 // pred_check_branch
    %16 = sbr.rel (0) target = $region13
  $region12: #{dprnn_forward.6} parent=0 // pred_region
    _
  $region13: #{dprnn_forward.6} parent=0 // pred_fallthru
    _
  // Predicated region
  $region14: #{dprnn_forward.6} parent=0 // pred_check
    _
  $region15: #{dprnn_forward.6} parent=0 // pred_check_branch
    %18 = sbr.rel (0) target = $region17
  $region16: #{dprnn_forward.6} parent=0 // pred_region
    _
  $region17: #{dprnn_forward.6} parent=0 // pred_fallthru
    _
  // Predicated region
  $region18: #{dprnn_forward.6} parent=0 // pred_check
    _
  $region19: #{dprnn_forward.6} parent=0 // pred_check_branch
    %20 = sbr.rel (0) target = $region21
  $region20: #{dprnn_forward.6} parent=0 // pred_region
    _
  $region21: #{dprnn_forward.6} parent=0 // pred_fallthru
    _
  // Predicated region
  $region22: #{dprnn_forward.6} parent=0 // pred_check
    _
  $region23: #{dprnn_forward.6} parent=0 // pred_check_branch
    %22 = sbr.rel (0) target = $region25
  $region24: #{dprnn_forward.6} parent=0 // pred_region
    _
  $region25: #{dprnn_forward.6} parent=0 // pred_fallthru
    _
  %v23 = vld [vmem:[%s0] sm:$0xff]
  %v24 = vld [vmem:[%s0 + $0x8] sm:$0xff]
  %v25 = vld [vmem:[%s0 + $0x10] sm:$0xff]
  %v26 = vld [vmem:[%s0 + $0x18] sm:$0xff]
  %v27 = vld [vmem:[%s0 + $0x20] sm:$0xff]
  %v28 = vld [vmem:[%s0 + $0x28] sm:$0xff]
  %v29 = vld [vmem:[%s0 + $0x30] sm:$0xff]
  %v30 = vld [vmem:[%s0 + $0x38] sm:$0xff]
  %v31 = vld [vmem:[%s1] sm:$0xff]
  %v32 = vld [vmem:[%s1 + $0x8] sm:$0xff]
  %v33 = vld [vmem:[%s3] sm:$0x1]
  %v35 = vlaneseq
  %v36 = vshrl.u32 %v35, 7
  %v37 = vsub.s32 0, %v36
  %v38 = vrot.slane %v33, %v37
  %vm40 = vcmask 130048
  %v42 = vsel %vm40, %v23, 0
  %v45 = vsel %vm40, %v24, 0
  %v48 = vsel %vm40, %v25, 0
  %v51 = vsel %vm40, %v26, 0
  %v54 = vsel %vm40, %v27, 0
  %v57 = vsel %vm40, %v28, 0
  %v60 = vsel %vm40, %v29, 0
  %v63 = vsel %vm40, %v30, 0
  %65 = vmatprep.subr.mxu0 0.0
  %66 = vmatpush1.msra.mxu0 %v31
  %67 = vmatprep.subr.mxu0 0.0
  %68 = vmatpush1.msra.mxu0 %v32
  %69 = vmatprep.subr.mxu0 0.0
  %70 = vmatpush1.msra.mxu0 0.0
  %71 = vmatprep.subr.mxu0 0.0
  %72 = vmatpush1.msra.mxu0 0.0
  %73 = vmatprep.subr.mxu0 0.0
  %74 = vmatpush1.msra.mxu0 0.0
  %75 = vmatprep.subr.mxu0 0.0
  %76 = vmatpush1.msra.mxu0 0.0
  %77 = vmatprep.subr.mxu0 0.0
  %78 = vmatpush1.msra.mxu0 0.0
  %79 = vmatprep.subr.mxu0 0.0
  %80 = vmatpush1.msra.mxu0 0.0
  %81 = vmatprep.subr.mxu0 0.0
  %82 = vmatpush1.msra.mxu0 0.0
  %83 = vmatprep.subr.mxu0 0.0
  %84 = vmatpush1.msra.mxu0 0.0
  %85 = vmatprep.subr.mxu0 0.0
  %86 = vmatpush1.msra.mxu0 0.0
  %87 = vmatprep.subr.mxu0 0.0
  %88 = vmatpush1.msra.mxu0 0.0
  %89 = vmatprep.subr.mxu0 0.0
  %90 = vmatpush1.msra.mxu0 0.0
  %91 = vmatprep.subr.mxu0 0.0
  %92 = vmatpush1.msra.mxu0 0.0
  %93 = vmatprep.subr.mxu0 0.0
  %94 = vmatpush1.msra.mxu0 0.0
  %95 = vmatprep.subr.mxu0 0.0
  %96 = vmatpush1.msra.mxu0 0.0
  %97 = vmatprep.subr.mxu0 0.0
  %98 = vmatpush1.msra.mxu0 0.0
  %99 = vmatprep.subr.mxu0 0.0
  %100 = vmatpush1.msra.mxu0 0.0
  %101 = vmatprep.subr.mxu0 0.0
  %102 = vmatpush1.msra.mxu0 0.0
  %103 = vmatprep.subr.mxu0 0.0
  %104 = vmatpush1.msra.mxu0 0.0
  %105 = vmatprep.subr.mxu0 0.0
  %106 = vmatpush1.msra.mxu0 0.0
  %107 = vmatprep.subr.mxu0 0.0
  %108 = vmatpush1.msra.mxu0 0.0
  %109 = vmatprep.subr.mxu0 0.0
  %110 = vmatpush1.msra.mxu0 0.0
  %111 = vmatprep.subr.mxu0 0.0
  %112 = vmatpush1.msra.mxu0 0.0
  %113 = vmatprep.subr.mxu0 0.0
  %114 = vmatpush1.msra.mxu0 0.0
  %115 = vmatprep.subr.mxu0 0.0
  %116 = vmatpush1.msra.mxu0 0.0
  %117 = vmatprep.subr.mxu0 0.0
  %118 = vmatpush1.msra.mxu0 0.0
  %119 = vmatprep.subr.mxu0 0.0
  %120 = vmatpush1.msra.mxu0 0.0
  %121 = vmatprep.subr.mxu0 0.0
  %122 = vmatpush1.msra.mxu0 0.0
  %123 = vmatprep.subr.mxu0 0.0
  %124 = vmatpush1.msra.mxu0 0.0
  %125 = vmatprep.subr.mxu0 0.0
  %126 = vmatpush1.msra.mxu0 0.0
  %127 = vmatprep.subr.mxu0 0.0
  %128 = vmatpush1.msra.mxu0 0.0
  %129 = vmatprep.mubr.f32.mxu0 0.0
  %130 = vmatmul.mubr.f32.gmra.mrb[0].mxu0 %v42
  %v131 = vpop.f32.mrb[0].mxu0
  %v132 = vadd.f32 %v38, %v131
  %v133 = vpop.f32.mrb[0].mxu0
  %134 = vmatprep.mubr.f32.mxu0 0.0
  %135 = vmatmul.mubr.f32.gmra.mrb[0].mxu0 %v45
  %v136 = vpop.f32.mrb[0].mxu0
  %v137 = vadd.f32 %v38, %v136
  %v138 = vpop.f32.mrb[0].mxu0
  %139 = vmatprep.mubr.f32.mxu0 0.0
  %140 = vmatmul.mubr.f32.gmra.mrb[0].mxu0 %v48
  %v141 = vpop.f32.mrb[0].mxu0
  %v142 = vadd.f32 %v38, %v141
  %v143 = vpop.f32.mrb[0].mxu0
  %144 = vmatprep.mubr.f32.mxu0 0.0
  %145 = vmatmul.mubr.f32.gmra.mrb[0].mxu0 %v51
  %v146 = vpop.f32.mrb[0].mxu0
  %v147 = vadd.f32 %v38, %v146
  %v148 = vpop.f32.mrb[0].mxu0
  %149 = vmatprep.mubr.f32.mxu0 0.0
  %150 = vmatmul.mubr.f32.gmra.mrb[0].mxu0 %v54
  %v151 = vpop.f32.mrb[0].mxu0
  %v152 = vadd.f32 %v38, %v151
  %v153 = vpop.f32.mrb[0].mxu0
  %154 = vmatprep.mubr.f32.mxu0 0.0
  %155 = vmatmul.mubr.f32.gmra.mrb[0].mxu0 %v57
  %v156 = vpop.f32.mrb[0].mxu0
  %v157 = vadd.f32 %v38, %v156
  %v158 = vpop.f32.mrb[0].mxu0
  %159 = vmatprep.mubr.f32.mxu0 0.0
  %160 = vmatmul.mubr.f32.gmra.mrb[0].mxu0 %v60
  %v161 = vpop.f32.mrb[0].mxu0
  %v162 = vadd.f32 %v38, %v161
  %v163 = vpop.f32.mrb[0].mxu0
  %164 = vmatprep.mubr.f32.mxu0 0.0
  %165 = vmatmul.mubr.f32.gmra.mrb[0].mxu0 %v63
  %v166 = vpop.f32.mrb[0].mxu0
  %v167 = vadd.f32 %v38, %v166
  %v168 = vpop.f32.mrb[0].mxu0
  %169 = vdwg.mxu0
  %vm170 = vcmask 261120
  %171 = vst.msk [vmem:[#allocation2] sm:$0xff] %vm170, %v132
  %172 = vst.msk [vmem:[#allocation2 + $0x8] sm:$0xff] %vm170, %v137
  %173 = vst.msk [vmem:[#allocation2 + $0x10] sm:$0xff] %vm170, %v142
  %174 = vst.msk [vmem:[#allocation2 + $0x18] sm:$0xff] %vm170, %v147
  %175 = vst.msk [vmem:[#allocation2 + $0x20] sm:$0xff] %vm170, %v152
  %176 = vst.msk [vmem:[#allocation2 + $0x28] sm:$0xff] %vm170, %v157
  %177 = vst.msk [vmem:[#allocation2 + $0x30] sm:$0xff] %vm170, %v162
  %178 = vst.msk [vmem:[#allocation2 + $0x38] sm:$0xff] %vm170, %v167
  %vm179 = vcmask 64512
  %180 = vst.msk [vmem:[#allocation4] sm:$0xff] %vm179, 0.0
  %181 = vst.msk [vmem:[#allocation5] sm:$0xff] %vm179, 0.0
  %v182 = vld [vmem:[%s2] sm:$0xff]
  %s183 = scalar_lea.vmem [#allocation2], 56
  %v184 = vld [vmem:[%s183] sm:$0xff]
  %v185 = vld [vmem:[#allocation4] sm:$0xff]
  %v187 = vsel %vm179, %v185, 0
  %189 = vmatprep.subr.mxu0 0.0
  %190 = vmatpush1.msra.mxu0 %v182
  %191 = vmatprep.subr.mxu0 0.0
  %192 = vmatpush1.msra.mxu0 0.0
  %193 = vmatprep.subr.mxu0 0.0
  %194 = vmatpush1.msra.mxu0 0.0
  %195 = vmatprep.subr.mxu0 0.0
  %196 = vmatpush1.msra.mxu0 0.0
  %197 = vmatprep.subr.mxu0 0.0
  %198 = vmatpush1.msra.mxu0 0.0
  %199 = vmatprep.subr.mxu0 0.0
  %200 = vmatpush1.msra.mxu0 0.0
  %201 = vmatprep.subr.mxu0 0.0
  %202 = vmatpush1.msra.mxu0 0.0
  %203 = vmatprep.subr.mxu0 0.0
  %204 = vmatpush1.msra.mxu0 0.0
  %205 = vmatprep.subr.mxu0 0.0
  %206 = vmatpush1.msra.mxu0 0.0
  %207 = vmatprep.subr.mxu0 0.0
  %208 = vmatpush1.msra.mxu0 0.0
  %209 = vmatprep.subr.mxu0 0.0
  %210 = vmatpush1.msra.mxu0 0.0
  %211 = vmatprep.subr.mxu0 0.0
  %212 = vmatpush1.msra.mxu0 0.0
  %213 = vmatprep.subr.mxu0 0.0
  %214 = vmatpush1.msra.mxu0 0.0
  %215 = vmatprep.subr.mxu0 0.0
  %216 = vmatpush1.msra.mxu0 0.0
  %217 = vmatprep.subr.mxu0 0.0
  %218 = vmatpush1.msra.mxu0 0.0
  %219 = vmatprep.subr.mxu0 0.0
  %220 = vmatpush1.msra.mxu0 0.0
  %221 = vmatprep.subr.mxu0 0.0
  %222 = vmatpush1.msra.mxu0 0.0
  %223 = vmatprep.subr.mxu0 0.0
  %224 = vmatpush1.msra.mxu0 0.0
  %225 = vmatprep.subr.mxu0 0.0
  %226 = vmatpush1.msra.mxu0 0.0
  %227 = vmatprep.subr.mxu0 0.0
  %228 = vmatpush1.msra.mxu0 0.0
  %229 = vmatprep.subr.mxu0 0.0
  %230 = vmatpush1.msra.mxu0 0.0
  %231 = vmatprep.subr.mxu0 0.0
  %232 = vmatpush1.msra.mxu0 0.0
  %233 = vmatprep.subr.mxu0 0.0
  %234 = vmatpush1.msra.mxu0 0.0
  %235 = vmatprep.subr.mxu0 0.0
  %236 = vmatpush1.msra.mxu0 0.0
  %237 = vmatprep.subr.mxu0 0.0
  %238 = vmatpush1.msra.mxu0 0.0
  %239 = vmatprep.subr.mxu0 0.0
  %240 = vmatpush1.msra.mxu0 0.0
  %241 = vmatprep.subr.mxu0 0.0
  %242 = vmatpush1.msra.mxu0 0.0
  %243 = vmatprep.subr.mxu0 0.0
  %244 = vmatpush1.msra.mxu0 0.0
  %245 = vmatprep.subr.mxu0 0.0
  %246 = vmatpush1.msra.mxu0 0.0
  %247 = vmatprep.subr.mxu0 0.0
  %248 = vmatpush1.msra.mxu0 0.0
  %249 = vmatprep.subr.mxu0 0.0
  %250 = vmatpush1.msra.mxu0 0.0
  %251 = vmatprep.subr.mxu0 0.0
  %252 = vmatpush1.msra.mxu0 0.0
  %253 = vmatprep.mubr.f32.mxu0 0.0
  %254 = vmatmul.mubr.f32.gmra.mrb[0].mxu0 %v187
  %v255 = vpop.f32.mrb[0].mxu0
  %v256 = vadd.f32 0.0, %v255
  %v257 = vpop.f32.mrb[0].mxu0
  %258 = vdwg.mxu0
  %v259 = vadd.f32 %v184, %v256
  %v260 = vxor.u32 %v259, 2147483648
  %v261 = vmul.f32 %v260, 1.442695
  %v262 = vpow.pop %v261
  %v263 = vadd.f32 %v262, 1.0
  %v264 = vrcp.pop %v263
  %v265 = vmul.f32 1.0, %v264
  %v266 = vtanh.pop %v259
  %v267 = vld [vmem:[#allocation5] sm:$0xff]
  %269 = vrot.lane.b32.xlu0 %v267, 8
  %v270 = vpop.permute.xlu0 %269
  %v272 = vmul.f32 %v265, %v270
  %274 = vrot.lane.b32.xlu0 %v266, 112
  %v275 = vpop.permute.xlu0 %274
  %v277 = vmul.f32 %v265, %v275
  %279 = vrot.lane.b32.xlu0 %v277, 8
  %v280 = vpop.permute.xlu0 %279
  %v282 = vadd.f32 %v272, %v280
  %v283 = vtanh.pop %v282
  %285 = vrot.lane.b32.xlu0 %v283, 16
  %v286 = vpop.permute.xlu0 %285
  %v288 = vmul.f32 %v265, %v286
  %290 = vrot.lane.b32.xlu0 %v282, 120
  %v291 = vpop.permute.xlu0 %290
  %293 = vst.msk [vmem:[#allocation5] sm:$0xff] %vm179, %v291
  %295 = vrot.lane.b32.xlu0 %v288, 104
  %v296 = vpop.permute.xlu0 %295
  %298 = vst.msk [vmem:[#allocation4] sm:$0xff] %vm179, %v296
  %s299 = scalar_lea.vmem [#allocation3], 56
  %300 = vst.msk [vmem:[%s299] sm:$0xff] %vm179, %v296
  %s301 = scalar_lea.vmem [#allocation2], 48
  %v302 = vld [vmem:[%s301] sm:$0xff]
  %v303 = vld [vmem:[#allocation4] sm:$0xff]
  %v305 = vsel %vm179, %v303, 0
  %307 = vmatprep.subr.mxu0 0.0
  %308 = vmatpush1.msra.mxu0 %v182
  %309 = vmatprep.subr.mxu0 0.0
  %310 = vmatpush1.msra.mxu0 0.0
  %311 = vmatprep.subr.mxu0 0.0
  %312 = vmatpush1.msra.mxu0 0.0
  %313 = vmatprep.subr.mxu0 0.0
  %314 = vmatpush1.msra.mxu0 0.0
  %315 = vmatprep.subr.mxu0 0.0
  %316 = vmatpush1.msra.mxu0 0.0
  %317 = vmatprep.subr.mxu0 0.0
  %318 = vmatpush1.msra.mxu0 0.0
  %319 = vmatprep.subr.mxu0 0.0
  %320 = vmatpush1.msra.mxu0 0.0
  %321 = vmatprep.subr.mxu0 0.0
  %322 = vmatpush1.msra.mxu0 0.0
  %323 = vmatprep.subr.mxu0 0.0
  %324 = vmatpush1.msra.mxu0 0.0
  %325 = vmatprep.subr.mxu0 0.0
  %326 = vmatpush1.msra.mxu0 0.0
  %327 = vmatprep.subr.mxu0 0.0
  %328 = vmatpush1.msra.mxu0 0.0
  %329 = vmatprep.subr.mxu0 0.0
  %330 = vmatpush1.msra.mxu0 0.0
  %331 = vmatprep.subr.mxu0 0.0
  %332 = vmatpush1.msra.mxu0 0.0
  %333 = vmatprep.subr.mxu0 0.0
  %334 = vmatpush1.msra.mxu0 0.0
  %335 = vmatprep.subr.mxu0 0.0
  %336 = vmatpush1.msra.mxu0 0.0
  %337 = vmatprep.subr.mxu0 0.0
  %338 = vmatpush1.msra.mxu0 0.0
  %339 = vmatprep.subr.mxu0 0.0
  %340 = vmatpush1.msra.mxu0 0.0
  %341 = vmatprep.subr.mxu0 0.0
  %342 = vmatpush1.msra.mxu0 0.0
  %343 = vmatprep.subr.mxu0 0.0
  %344 = vmatpush1.msra.mxu0 0.0
  %345 = vmatprep.subr.mxu0 0.0
  %346 = vmatpush1.msra.mxu0 0.0
  %347 = vmatprep.subr.mxu0 0.0
  %348 = vmatpush1.msra.mxu0 0.0
  %349 = vmatprep.subr.mxu0 0.0
  %350 = vmatpush1.msra.mxu0 0.0
  %351 = vmatprep.subr.mxu0 0.0
  %352 = vmatpush1.msra.mxu0 0.0
  %353 = vmatprep.subr.mxu0 0.0
  %354 = vmatpush1.msra.mxu0 0.0
  %355 = vmatprep.subr.mxu0 0.0
  %356 = vmatpush1.msra.mxu0 0.0
  %357 = vmatprep.subr.mxu0 0.0
  %358 = vmatpush1.msra.mxu0 0.0
  %359 = vmatprep.subr.mxu0 0.0
  %360 = vmatpush1.msra.mxu0 0.0
  %361 = vmatprep.subr.mxu0 0.0
  %362 = vmatpush1.msra.mxu0 0.0
  %363 = vmatprep.subr.mxu0 0.0
  %364 = vmatpush1.msra.mxu0 0.0
  %365 = vmatprep.subr.mxu0 0.0
  %366 = vmatpush1.msra.mxu0 0.0
  %367 = vmatprep.subr.mxu0 0.0
  %368 = vmatpush1.msra.mxu0 0.0
  %369 = vmatprep.subr.mxu0 0.0
  %370 = vmatpush1.msra.mxu0 0.0
  %371 = vmatprep.mubr.f32.mxu0 0.0
  %372 = vmatmul.mubr.f32.gmra.mrb[0].mxu0 %v305
  %v373 = vpop.f32.mrb[0].mxu0
  %v374 = vadd.f32 0.0, %v373
  %v375 = vpop.f32.mrb[0].mxu0
  %376 = vdwg.mxu0
  %v377 = vadd.f32 %v302, %v374
  %v378 = vxor.u32 %v377, 2147483648
  %v379 = vmul.f32 %v378, 1.442695
  %v380 = vpow.pop %v379
  %v381 = vadd.f32 %v380, 1.0
  %v382 = vrcp.pop %v381
  %v383 = vmul.f32 1.0, %v382
  %v384 = vtanh.pop %v377
  %v385 = vld [vmem:[#allocation5] sm:$0xff]
  %387 = vrot.lane.b32.xlu0 %v385, 8
  %v388 = vpop.permute.xlu0 %387
  %v390 = vmul.f32 %v383, %v388
  %392 = vrot.lane.b32.xlu0 %v384, 112
  %v393 = vpop.permute.xlu0 %392
  %v395 = vmul.f32 %v383, %v393
  %397 = vrot.lane.b32.xlu0 %v395, 8
  %v398 = vpop.permute.xlu0 %397
  %v400 = vadd.f32 %v390, %v398
  %v401 = vtanh.pop %v400
  %403 = vrot.lane.b32.xlu0 %v401, 16
  %v404 = vpop.permute.xlu0 %403
  %v406 = vmul.f32 %v383, %v404
  %408 = vrot.lane.b32.xlu0 %v400, 120
  %v409 = vpop.permute.xlu0 %408
  %411 = vst.msk [vmem:[#allocation5] sm:$0xff] %vm179, %v409
  %413 = vrot.lane.b32.xlu0 %v406, 104
  %v414 = vpop.permute.xlu0 %413
  %416 = vst.msk [vmem:[#allocation4] sm:$0xff] %vm179, %v414
  %s417 = scalar_lea.vmem [#allocation3], 48
  %418 = vst.msk [vmem:[%s417] sm:$0xff] %vm179, %v414
  %s419 = scalar_lea.vmem [#allocation2], 40
  %v420 = vld [vmem:[%s419] sm:$0xff]
  %v421 = vld [vmem:[#allocation4] sm:$0xff]
  %v423 = vsel %vm179, %v421, 0
  %425 = vmatprep.subr.mxu0 0.0
  %426 = vmatpush1.msra.mxu0 %v182
  %427 = vmatprep.subr.mxu0 0.0
  %428 = vmatpush1.msra.mxu0 0.0
  %429 = vmatprep.subr.mxu0 0.0
  %430 = vmatpush1.msra.mxu0 0.0
  %431 = vmatprep.subr.mxu0 0.0
  %432 = vmatpush1.msra.mxu0 0.0
  %433 = vmatprep.subr.mxu0 0.0
  %434 = vmatpush1.msra.mxu0 0.0
  %435 = vmatprep.subr.mxu0 0.0
  %436 = vmatpush1.msra.mxu0 0.0
  %437 = vmatprep.subr.mxu0 0.0
  %438 = vmatpush1.msra.mxu0 0.0
  %439 = vmatprep.subr.mxu0 0.0
  %440 = vmatpush1.msra.mxu0 0.0
  %441 = vmatprep.subr.mxu0 0.0
  %442 = vmatpush1.msra.mxu0 0.0
  %443 = vmatprep.subr.mxu0 0.0
  %444 = vmatpush1.msra.mxu0 0.0
  %445 = vmatprep.subr.mxu0 0.0
  %446 = vmatpush1.msra.mxu0 0.0
  %447 = vmatprep.subr.mxu0 0.0
  %448 = vmatpush1.msra.mxu0 0.0
  %449 = vmatprep.subr.mxu0 0.0
  %450 = vmatpush1.msra.mxu0 0.0
  %451 = vmatprep.subr.mxu0 0.0
  %452 = vmatpush1.msra.mxu0 0.0
  %453 = vmatprep.subr.mxu0 0.0
  %454 = vmatpush1.msra.mxu0 0.0
  %455 = vmatprep.subr.mxu0 0.0
  %456 = vmatpush1.msra.mxu0 0.0
  %457 = vmatprep.subr.mxu0 0.0
  %458 = vmatpush1.msra.mxu0 0.0
  %459 = vmatprep.subr.mxu0 0.0
  %460 = vmatpush1.msra.mxu0 0.0
  %461 = vmatprep.subr.mxu0 0.0
  %462 = vmatpush1.msra.mxu0 0.0
  %463 = vmatprep.subr.mxu0 0.0
  %464 = vmatpush1.msra.mxu0 0.0
  %465 = vmatprep.subr.mxu0 0.0
  %466 = vmatpush1.msra.mxu0 0.0
  %467 = vmatprep.subr.mxu0 0.0
  %468 = vmatpush1.msra.mxu0 0.0
  %469 = vmatprep.subr.mxu0 0.0
  %470 = vmatpush1.msra.mxu0 0.0
  %471 = vmatprep.subr.mxu0 0.0
  %472 = vmatpush1.msra.mxu0 0.0
  %473 = vmatprep.subr.mxu0 0.0
  %474 = vmatpush1.msra.mxu0 0.0
  %475 = vmatprep.subr.mxu0 0.0
  %476 = vmatpush1.msra.mxu0 0.0
  %477 = vmatprep.subr.mxu0 0.0
  %478 = vmatpush1.msra.mxu0 0.0
  %479 = vmatprep.subr.mxu0 0.0
  %480 = vmatpush1.msra.mxu0 0.0
  %481 = vmatprep.subr.mxu0 0.0
  %482 = vmatpush1.msra.mxu0 0.0
  %483 = vmatprep.subr.mxu0 0.0
  %484 = vmatpush1.msra.mxu0 0.0
  %485 = vmatprep.subr.mxu0 0.0
  %486 = vmatpush1.msra.mxu0 0.0
  %487 = vmatprep.subr.mxu0 0.0
  %488 = vmatpush1.msra.mxu0 0.0
  %489 = vmatprep.mubr.f32.mxu0 0.0
  %490 = vmatmul.mubr.f32.gmra.mrb[0].mxu0 %v423
  %v491 = vpop.f32.mrb[0].mxu0
  %v492 = vadd.f32 0.0, %v491
  %v493 = vpop.f32.mrb[0].mxu0
  %494 = vdwg.mxu0
  %v495 = vadd.f32 %v420, %v492
  %v496 = vxor.u32 %v495, 2147483648
  %v497 = vmul.f32 %v496, 1.442695
  %v498 = vpow.pop %v497
  %v499 = vadd.f32 %v498, 1.0
  %v500 = vrcp.pop %v499
  %v501 = vmul.f32 1.0, %v500
  %v502 = vtanh.pop %v495
  %v503 = vld [vmem:[#allocation5] sm:$0xff]
  %505 = vrot.lane.b32.xlu0 %v503, 8
  %v506 = vpop.permute.xlu0 %505
  %v508 = vmul.f32 %v501, %v506
  %510 = vrot.lane.b32.xlu0 %v502, 112
  %v511 = vpop.permute.xlu0 %510
  %v513 = vmul.f32 %v501, %v511
  %515 = vrot.lane.b32.xlu0 %v513, 8
  %v516 = vpop.permute.xlu0 %515
  %v518 = vadd.f32 %v508, %v516
  %v519 = vtanh.pop %v518
  %521 = vrot.lane.b32.xlu0 %v519, 16
  %v522 = vpop.permute.xlu0 %521
  %v524 = vmul.f32 %v501, %v522
  %526 = vrot.lane.b32.xlu0 %v518, 120
  %v527 = vpop.permute.xlu0 %526
  %529 = vst.msk [vmem:[#allocation5] sm:$0xff] %vm179, %v527
  %531 = vrot.lane.b32.xlu0 %v524, 104
  %v532 = vpop.permute.xlu0 %531
  %534 = vst.msk [vmem:[#allocation4] sm:$0xff] %vm179, %v532
  %s535 = scalar_lea.vmem [#allocation3], 40
  %536 = vst.msk [vmem:[%s535] sm:$0xff] %vm179, %v532
  %s537 = scalar_lea.vmem [#allocation2], 32
  %v538 = vld [vmem:[%s537] sm:$0xff]
  %v539 = vld [vmem:[#allocation4] sm:$0xff]
  %v541 = vsel %vm179, %v539, 0
  %543 = vmatprep.subr.mxu0 0.0
  %544 = vmatpush1.msra.mxu0 %v182
  %545 = vmatprep.subr.mxu0 0.0
  %546 = vmatpush1.msra.mxu0 0.0
  %547 = vmatprep.subr.mxu0 0.0
  %548 = vmatpush1.msra.mxu0 0.0
  %549 = vmatprep.subr.mxu0 0.0
  %550 = vmatpush1.msra.mxu0 0.0
  %551 = vmatprep.subr.mxu0 0.0
  %552 = vmatpush1.msra.mxu0 0.0
  %553 = vmatprep.subr.mxu0 0.0
  %554 = vmatpush1.msra.mxu0 0.0
  %555 = vmatprep.subr.mxu0 0.0
  %556 = vmatpush1.msra.mxu0 0.0
  %557 = vmatprep.subr.mxu0 0.0
  %558 = vmatpush1.msra.mxu0 0.0
  %559 = vmatprep.subr.mxu0 0.0
  %560 = vmatpush1.msra.mxu0 0.0
  %561 = vmatprep.subr.mxu0 0.0
  %562 = vmatpush1.msra.mxu0 0.0
  %563 = vmatprep.subr.mxu0 0.0
  %564 = vmatpush1.msra.mxu0 0.0
  %565 = vmatprep.subr.mxu0 0.0
  %566 = vmatpush1.msra.mxu0 0.0
  %567 = vmatprep.subr.mxu0 0.0
  %568 = vmatpush1.msra.mxu0 0.0
  %569 = vmatprep.subr.mxu0 0.0
  %570 = vmatpush1.msra.mxu0 0.0
  %571 = vmatprep.subr.mxu0 0.0
  %572 = vmatpush1.msra.mxu0 0.0
  %573 = vmatprep.subr.mxu0 0.0
  %574 = vmatpush1.msra.mxu0 0.0
  %575 = vmatprep.subr.mxu0 0.0
  %576 = vmatpush1.msra.mxu0 0.0
  %577 = vmatprep.subr.mxu0 0.0
  %578 = vmatpush1.msra.mxu0 0.0
  %579 = vmatprep.subr.mxu0 0.0
  %580 = vmatpush1.msra.mxu0 0.0
  %581 = vmatprep.subr.mxu0 0.0
  %582 = vmatpush1.msra.mxu0 0.0
  %583 = vmatprep.subr.mxu0 0.0
  %584 = vmatpush1.msra.mxu0 0.0
  %585 = vmatprep.subr.mxu0 0.0
  %586 = vmatpush1.msra.mxu0 0.0
  %587 = vmatprep.subr.mxu0 0.0
  %588 = vmatpush1.msra.mxu0 0.0
  %589 = vmatprep.subr.mxu0 0.0
  %590 = vmatpush1.msra.mxu0 0.0
  %591 = vmatprep.subr.mxu0 0.0
  %592 = vmatpush1.msra.mxu0 0.0
  %593 = vmatprep.subr.mxu0 0.0
  %594 = vmatpush1.msra.mxu0 0.0
  %595 = vmatprep.subr.mxu0 0.0
  %596 = vmatpush1.msra.mxu0 0.0
  %597 = vmatprep.subr.mxu0 0.0
  %598 = vmatpush1.msra.mxu0 0.0
  %599 = vmatprep.subr.mxu0 0.0
  %600 = vmatpush1.msra.mxu0 0.0
  %601 = vmatprep.subr.mxu0 0.0
  %602 = vmatpush1.msra.mxu0 0.0
  %603 = vmatprep.subr.mxu0 0.0
  %604 = vmatpush1.msra.mxu0 0.0
  %605 = vmatprep.subr.mxu0 0.0
  %606 = vmatpush1.msra.mxu0 0.0
  %607 = vmatprep.mubr.f32.mxu0 0.0
  %608 = vmatmul.mubr.f32.gmra.mrb[0].mxu0 %v541
  %v609 = vpop.f32.mrb[0].mxu0
  %v610 = vadd.f32 0.0, %v609
  %v611 = vpop.f32.mrb[0].mxu0
  %612 = vdwg.mxu0
  %v613 = vadd.f32 %v538, %v610
  %v614 = vxor.u32 %v613, 2147483648
  %v615 = vmul.f32 %v614, 1.442695
  %v616 = vpow.pop %v615
  %v617 = vadd.f32 %v616, 1.0
  %v618 = vrcp.pop %v617
  %v619 = vmul.f32 1.0, %v618
  %v620 = vtanh.pop %v613
  %v621 = vld [vmem:[#allocation5] sm:$0xff]
  %623 = vrot.lane.b32.xlu0 %v621, 8
  %v624 = vpop.permute.xlu0 %623
  %v626 = vmul.f32 %v619, %v624
  %628 = vrot.lane.b32.xlu0 %v620, 112
  %v629 = vpop.permute.xlu0 %628
  %v631 = vmul.f32 %v619, %v629
  %633 = vrot.lane.b32.xlu0 %v631, 8
  %v634 = vpop.permute.xlu0 %633
  %v636 = vadd.f32 %v626, %v634
  %v637 = vtanh.pop %v636
  %639 = vrot.lane.b32.xlu0 %v637, 16
  %v640 = vpop.permute.xlu0 %639
  %v642 = vmul.f32 %v619, %v640
  %644 = vrot.lane.b32.xlu0 %v636, 120
  %v645 = vpop.permute.xlu0 %644
  %647 = vst.msk [vmem:[#allocation5] sm:$0xff] %vm179, %v645
  %649 = vrot.lane.b32.xlu0 %v642, 104
  %v650 = vpop.permute.xlu0 %649
  %652 = vst.msk [vmem:[#allocation4] sm:$0xff] %vm179, %v650
  %s653 = scalar_lea.vmem [#allocation3], 32
  %654 = vst.msk [vmem:[%s653] sm:$0xff] %vm179, %v650
  %s655 = scalar_lea.vmem [#allocation2], 24
  %v656 = vld [vmem:[%s655] sm:$0xff]
  %v657 = vld [vmem:[#allocation4] sm:$0xff]
  %v659 = vsel %vm179, %v657, 0
  %661 = vmatprep.subr.mxu0 0.0
  %662 = vmatpush1.msra.mxu0 %v182
  %663 = vmatprep.subr.mxu0 0.0
  %664 = vmatpush1.msra.mxu0 0.0
  %665 = vmatprep.subr.mxu0 0.0
  %666 = vmatpush1.msra.mxu0 0.0
  %667 = vmatprep.subr.mxu0 0.0
  %668 = vmatpush1.msra.mxu0 0.0
  %669 = vmatprep.subr.mxu0 0.0
  %670 = vmatpush1.msra.mxu0 0.0
  %671 = vmatprep.subr.mxu0 0.0
  %672 = vmatpush1.msra.mxu0 0.0
  %673 = vmatprep.subr.mxu0 0.0
  %674 = vmatpush1.msra.mxu0 0.0
  %675 = vmatprep.subr.mxu0 0.0
  %676 = vmatpush1.msra.mxu0 0.0
  %677 = vmatprep.subr.mxu0 0.0
  %678 = vmatpush1.msra.mxu0 0.0
  %679 = vmatprep.subr.mxu0 0.0
  %680 = vmatpush1.msra.mxu0 0.0
  %681 = vmatprep.subr.mxu0 0.0
  %682 = vmatpush1.msra.mxu0 0.0
  %683 = vmatprep.subr.mxu0 0.0
  %684 = vmatpush1.msra.mxu0 0.0
  %685 = vmatprep.subr.mxu0 0.0
  %686 = vmatpush1.msra.mxu0 0.0
  %687 = vmatprep.subr.mxu0 0.0
  %688 = vmatpush1.msra.mxu0 0.0
  %689 = vmatprep.subr.mxu0 0.0
  %690 = vmatpush1.msra.mxu0 0.0
  %691 = vmatprep.subr.mxu0 0.0
  %692 = vmatpush1.msra.mxu0 0.0
  %693 = vmatprep.subr.mxu0 0.0
  %694 = vmatpush1.msra.mxu0 0.0
  %695 = vmatprep.subr.mxu0 0.0
  %696 = vmatpush1.msra.mxu0 0.0
  %697 = vmatprep.subr.mxu0 0.0
  %698 = vmatpush1.msra.mxu0 0.0
  %699 = vmatprep.subr.mxu0 0.0
  %700 = vmatpush1.msra.mxu0 0.0
  %701 = vmatprep.subr.mxu0 0.0
  %702 = vmatpush1.msra.mxu0 0.0
  %703 = vmatprep.subr.mxu0 0.0
  %704 = vmatpush1.msra.mxu0 0.0
  %705 = vmatprep.subr.mxu0 0.0
  %706 = vmatpush1.msra.mxu0 0.0
  %707 = vmatprep.subr.mxu0 0.0
  %708 = vmatpush1.msra.mxu0 0.0
  %709 = vmatprep.subr.mxu0 0.0
  %710 = vmatpush1.msra.mxu0 0.0
  %711 = vmatprep.subr.mxu0 0.0
  %712 = vmatpush1.msra.mxu0 0.0
  %713 = vmatprep.subr.mxu0 0.0
  %714 = vmatpush1.msra.mxu0 0.0
  %715 = vmatprep.subr.mxu0 0.0
  %716 = vmatpush1.msra.mxu0 0.0
  %717 = vmatprep.subr.mxu0 0.0
  %718 = vmatpush1.msra.mxu0 0.0
  %719 = vmatprep.subr.mxu0 0.0
  %720 = vmatpush1.msra.mxu0 0.0
  %721 = vmatprep.subr.mxu0 0.0
  %722 = vmatpush1.msra.mxu0 0.0
  %723 = vmatprep.subr.mxu0 0.0
  %724 = vmatpush1.msra.mxu0 0.0
  %725 = vmatprep.mubr.f32.mxu0 0.0
  %726 = vmatmul.mubr.f32.gmra.mrb[0].mxu0 %v659
  %v727 = vpop.f32.mrb[0].mxu0
  %v728 = vadd.f32 0.0, %v727
  %v729 = vpop.f32.mrb[0].mxu0
  %730 = vdwg.mxu0
  %v731 = vadd.f32 %v656, %v728
  %v732 = vxor.u32 %v731, 2147483648
  %v733 = vmul.f32 %v732, 1.442695
  %v734 = vpow.pop %v733
  %v735 = vadd.f32 %v734, 1.0
  %v736 = vrcp.pop %v735
  %v737 = vmul.f32 1.0, %v736
  %v738 = vtanh.pop %v731
  %v739 = vld [vmem:[#allocation5] sm:$0xff]
  %741 = vrot.lane.b32.xlu0 %v739, 8
  %v742 = vpop.permute.xlu0 %741
  %v744 = vmul.f32 %v737, %v742
  %746 = vrot.lane.b32.xlu0 %v738, 112
  %v747 = vpop.permute.xlu0 %746
  %v749 = vmul.f32 %v737, %v747
  %751 = vrot.lane.b32.xlu0 %v749, 8
  %v752 = vpop.permute.xlu0 %751
  %v754 = vadd.f32 %v744, %v752
  %v755 = vtanh.pop %v754
  %757 = vrot.lane.b32.xlu0 %v755, 16
  %v758 = vpop.permute.xlu0 %757
  %v760 = vmul.f32 %v737, %v758
  %762 = vrot.lane.b32.xlu0 %v754, 120
  %v763 = vpop.permute.xlu0 %762
  %765 = vst.msk [vmem:[#allocation5] sm:$0xff] %vm179, %v763
  %767 = vrot.lane.b32.xlu0 %v760, 104
  %v768 = vpop.permute.xlu0 %767
  %770 = vst.msk [vmem:[#allocation4] sm:$0xff] %vm179, %v768
  %s771 = scalar_lea.vmem [#allocation3], 24
  %772 = vst.msk [vmem:[%s771] sm:$0xff] %vm179, %v768
  %s773 = scalar_lea.vmem [#allocation2], 16
  %v774 = vld [vmem:[%s773] sm:$0xff]
  %v775 = vld [vmem:[#allocation4] sm:$0xff]
  %v777 = vsel %vm179, %v775, 0
  %779 = vmatprep.subr.mxu0 0.0
  %780 = vmatpush1.msra.mxu0 %v182
  %781 = vmatprep.subr.mxu0 0.0
  %782 = vmatpush1.msra.mxu0 0.0
  %783 = vmatprep.subr.mxu0 0.0
  %784 = vmatpush1.msra.mxu0 0.0
  %785 = vmatprep.subr.mxu0 0.0
  %786 = vmatpush1.msra.mxu0 0.0
  %787 = vmatprep.subr.mxu0 0.0
  %788 = vmatpush1.msra.mxu0 0.0
  %789 = vmatprep.subr.mxu0 0.0
  %790 = vmatpush1.msra.mxu0 0.0
  %791 = vmatprep.subr.mxu0 0.0
  %792 = vmatpush1.msra.mxu0 0.0
  %793 = vmatprep.subr.mxu0 0.0
  %794 = vmatpush1.msra.mxu0 0.0
  %795 = vmatprep.subr.mxu0 0.0
  %796 = vmatpush1.msra.mxu0 0.0
  %797 = vmatprep.subr.mxu0 0.0
  %798 = vmatpush1.msra.mxu0 0.0
  %799 = vmatprep.subr.mxu0 0.0
  %800 = vmatpush1.msra.mxu0 0.0
  %801 = vmatprep.subr.mxu0 0.0
  %802 = vmatpush1.msra.mxu0 0.0
  %803 = vmatprep.subr.mxu0 0.0
  %804 = vmatpush1.msra.mxu0 0.0
  %805 = vmatprep.subr.mxu0 0.0
  %806 = vmatpush1.msra.mxu0 0.0
  %807 = vmatprep.subr.mxu0 0.0
  %808 = vmatpush1.msra.mxu0 0.0
  %809 = vmatprep.subr.mxu0 0.0
  %810 = vmatpush1.msra.mxu0 0.0
  %811 = vmatprep.subr.mxu0 0.0
  %812 = vmatpush1.msra.mxu0 0.0
  %813 = vmatprep.subr.mxu0 0.0
  %814 = vmatpush1.msra.mxu0 0.0
  %815 = vmatprep.subr.mxu0 0.0
  %816 = vmatpush1.msra.mxu0 0.0
  %817 = vmatprep.subr.mxu0 0.0
  %818 = vmatpush1.msra.mxu0 0.0
  %819 = vmatprep.subr.mxu0 0.0
  %820 = vmatpush1.msra.mxu0 0.0
  %821 = vmatprep.subr.mxu0 0.0
  %822 = vmatpush1.msra.mxu0 0.0
  %823 = vmatprep.subr.mxu0 0.0
  %824 = vmatpush1.msra.mxu0 0.0
  %825 = vmatprep.subr.mxu0 0.0
  %826 = vmatpush1.msra.mxu0 0.0
  %827 = vmatprep.subr.mxu0 0.0
  %828 = vmatpush1.msra.mxu0 0.0
  %829 = vmatprep.subr.mxu0 0.0
  %830 = vmatpush1.msra.mxu0 0.0
  %831 = vmatprep.subr.mxu0 0.0
  %832 = vmatpush1.msra.mxu0 0.0
  %833 = vmatprep.subr.mxu0 0.0
  %834 = vmatpush1.msra.mxu0 0.0
  %835 = vmatprep.subr.mxu0 0.0
  %836 = vmatpush1.msra.mxu0 0.0
  %837 = vmatprep.subr.mxu0 0.0
  %838 = vmatpush1.msra.mxu0 0.0
  %839 = vmatprep.subr.mxu0 0.0
  %840 = vmatpush1.msra.mxu0 0.0
  %841 = vmatprep.subr.mxu0 0.0
  %842 = vmatpush1.msra.mxu0 0.0
  %843 = vmatprep.mubr.f32.mxu0 0.0
  %844 = vmatmul.mubr.f32.gmra.mrb[0].mxu0 %v777
  %v845 = vpop.f32.mrb[0].mxu0
  %v846 = vadd.f32 0.0, %v845
  %v847 = vpop.f32.mrb[0].mxu0
  %848 = vdwg.mxu0
  %v849 = vadd.f32 %v774, %v846
  %v850 = vxor.u32 %v849, 2147483648
  %v851 = vmul.f32 %v850, 1.442695
  %v852 = vpow.pop %v851
  %v853 = vadd.f32 %v852, 1.0
  %v854 = vrcp.pop %v853
  %v855 = vmul.f32 1.0, %v854
  %v856 = vtanh.pop %v849
  %v857 = vld [vmem:[#allocation5] sm:$0xff]
  %859 = vrot.lane.b32.xlu0 %v857, 8
  %v860 = vpop.permute.xlu0 %859
  %v862 = vmul.f32 %v855, %v860
  %864 = vrot.lane.b32.xlu0 %v856, 112
  %v865 = vpop.permute.xlu0 %864
  %v867 = vmul.f32 %v855, %v865
  %869 = vrot.lane.b32.xlu0 %v867, 8
  %v870 = vpop.permute.xlu0 %869
  %v872 = vadd.f32 %v862, %v870
  %v873 = vtanh.pop %v872
  %875 = vrot.lane.b32.xlu0 %v873, 16
  %v876 = vpop.permute.xlu0 %875
  %v878 = vmul.f32 %v855, %v876
  %880 = vrot.lane.b32.xlu0 %v872, 120
  %v881 = vpop.permute.xlu0 %880
  %883 = vst.msk [vmem:[#allocation5] sm:$0xff] %vm179, %v881
  %885 = vrot.lane.b32.xlu0 %v878, 104
  %v886 = vpop.permute.xlu0 %885
  %888 = vst.msk [vmem:[#allocation4] sm:$0xff] %vm179, %v886
  %s889 = scalar_lea.vmem [#allocation3], 16
  %890 = vst.msk [vmem:[%s889] sm:$0xff] %vm179, %v886
  %s891 = scalar_lea.vmem [#allocation2], 8
  %v892 = vld [vmem:[%s891] sm:$0xff]
  %v893 = vld [vmem:[#allocation4] sm:$0xff]
  %v895 = vsel %vm179, %v893, 0
  %897 = vmatprep.subr.mxu0 0.0
  %898 = vmatpush1.msra.mxu0 %v182
  %899 = vmatprep.subr.mxu0 0.0
  %900 = vmatpush1.msra.mxu0 0.0
  %901 = vmatprep.subr.mxu0 0.0
  %902 = vmatpush1.msra.mxu0 0.0
  %903 = vmatprep.subr.mxu0 0.0
  %904 = vmatpush1.msra.mxu0 0.0
  %905 = vmatprep.subr.mxu0 0.0
  %906 = vmatpush1.msra.mxu0 0.0
  %907 = vmatprep.subr.mxu0 0.0
  %908 = vmatpush1.msra.mxu0 0.0
  %909 = vmatprep.subr.mxu0 0.0
  %910 = vmatpush1.msra.mxu0 0.0
  %911 = vmatprep.subr.mxu0 0.0
  %912 = vmatpush1.msra.mxu0 0.0
  %913 = vmatprep.subr.mxu0 0.0
  %914 = vmatpush1.msra.mxu0 0.0
  %915 = vmatprep.subr.mxu0 0.0
  %916 = vmatpush1.msra.mxu0 0.0
  %917 = vmatprep.subr.mxu0 0.0
  %918 = vmatpush1.msra.mxu0 0.0
  %919 = vmatprep.subr.mxu0 0.0
  %920 = vmatpush1.msra.mxu0 0.0
  %921 = vmatprep.subr.mxu0 0.0
  %922 = vmatpush1.msra.mxu0 0.0
  %923 = vmatprep.subr.mxu0 0.0
  %924 = vmatpush1.msra.mxu0 0.0
  %925 = vmatprep.subr.mxu0 0.0
  %926 = vmatpush1.msra.mxu0 0.0
  %927 = vmatprep.subr.mxu0 0.0
  %928 = vmatpush1.msra.mxu0 0.0
  %929 = vmatprep.subr.mxu0 0.0
  %930 = vmatpush1.msra.mxu0 0.0
  %931 = vmatprep.subr.mxu0 0.0
  %932 = vmatpush1.msra.mxu0 0.0
  %933 = vmatprep.subr.mxu0 0.0
  %934 = vmatpush1.msra.mxu0 0.0
  %935 = vmatprep.subr.mxu0 0.0
  %936 = vmatpush1.msra.mxu0 0.0
  %937 = vmatprep.subr.mxu0 0.0
  %938 = vmatpush1.msra.mxu0 0.0
  %939 = vmatprep.subr.mxu0 0.0
  %940 = vmatpush1.msra.mxu0 0.0
  %941 = vmatprep.subr.mxu0 0.0
  %942 = vmatpush1.msra.mxu0 0.0
  %943 = vmatprep.subr.mxu0 0.0
  %944 = vmatpush1.msra.mxu0 0.0
  %945 = vmatprep.subr.mxu0 0.0
  %946 = vmatpush1.msra.mxu0 0.0
  %947 = vmatprep.subr.mxu0 0.0
  %948 = vmatpush1.msra.mxu0 0.0
  %949 = vmatprep.subr.mxu0 0.0
  %950 = vmatpush1.msra.mxu0 0.0
  %951 = vmatprep.subr.mxu0 0.0
  %952 = vmatpush1.msra.mxu0 0.0
  %953 = vmatprep.subr.mxu0 0.0
  %954 = vmatpush1.msra.mxu0 0.0
  %955 = vmatprep.subr.mxu0 0.0
  %956 = vmatpush1.msra.mxu0 0.0
  %957 = vmatprep.subr.mxu0 0.0
  %958 = vmatpush1.msra.mxu0 0.0
  %959 = vmatprep.subr.mxu0 0.0
  %960 = vmatpush1.msra.mxu0 0.0
  %961 = vmatprep.mubr.f32.mxu0 0.0
  %962 = vmatmul.mubr.f32.gmra.mrb[0].mxu0 %v895
  %v963 = vpop.f32.mrb[0].mxu0
  %v964 = vadd.f32 0.0, %v963
  %v965 = vpop.f32.mrb[0].mxu0
  %966 = vdwg.mxu0
  %v967 = vadd.f32 %v892, %v964
  %v968 = vxor.u32 %v967, 2147483648
  %v969 = vmul.f32 %v968, 1.442695
  %v970 = vpow.pop %v969
  %v971 = vadd.f32 %v970, 1.0
  %v972 = vrcp.pop %v971
  %v973 = vmul.f32 1.0, %v972
  %v974 = vtanh.pop %v967
  %v975 = vld [vmem:[#allocation5] sm:$0xff]
  %977 = vrot.lane.b32.xlu0 %v975, 8
  %v978 = vpop.permute.xlu0 %977
  %v980 = vmul.f32 %v973, %v978
  %982 = vrot.lane.b32.xlu0 %v974, 112
  %v983 = vpop.permute.xlu0 %982
  %v985 = vmul.f32 %v973, %v983
  %987 = vrot.lane.b32.xlu0 %v985, 8
  %v988 = vpop.permute.xlu0 %987
  %v990 = vadd.f32 %v980, %v988
  %v991 = vtanh.pop %v990
  %993 = vrot.lane.b32.xlu0 %v991, 16
  %v994 = vpop.permute.xlu0 %993
  %v996 = vmul.f32 %v973, %v994
  %998 = vrot.lane.b32.xlu0 %v990, 120
  %v999 = vpop.permute.xlu0 %998
  %1001 = vst.msk [vmem:[#allocation5] sm:$0xff] %vm179, %v999
  %1003 = vrot.lane.b32.xlu0 %v996, 104
  %v1004 = vpop.permute.xlu0 %1003
  %1006 = vst.msk [vmem:[#allocation4] sm:$0xff] %vm179, %v1004
  %s1007 = scalar_lea.vmem [#allocation3], 8
  %1008 = vst.msk [vmem:[%s1007] sm:$0xff] %vm179, %v1004
  %v1009 = vld [vmem:[#allocation2] sm:$0xff]
  %v1010 = vld [vmem:[#allocation4] sm:$0xff]
  %v1012 = vsel %vm179, %v1010, 0
  %1014 = vmatprep.subr.mxu0 0.0
  %1015 = vmatpush1.msra.mxu0 %v182
  %1016 = vmatprep.subr.mxu0 0.0
  %1017 = vmatpush1.msra.mxu0 0.0
  %1018 = vmatprep.subr.mxu0 0.0
  %1019 = vmatpush1.msra.mxu0 0.0
  %1020 = vmatprep.subr.mxu0 0.0
  %1021 = vmatpush1.msra.mxu0 0.0
  %1022 = vmatprep.subr.mxu0 0.0
  %1023 = vmatpush1.msra.mxu0 0.0
  %1024 = vmatprep.subr.mxu0 0.0
  %1025 = vmatpush1.msra.mxu0 0.0
  %1026 = vmatprep.subr.mxu0 0.0
  %1027 = vmatpush1.msra.mxu0 0.0
  %1028 = vmatprep.subr.mxu0 0.0
  %1029 = vmatpush1.msra.mxu0 0.0
  %1030 = vmatprep.subr.mxu0 0.0
  %1031 = vmatpush1.msra.mxu0 0.0
  %1032 = vmatprep.subr.mxu0 0.0
  %1033 = vmatpush1.msra.mxu0 0.0
  %1034 = vmatprep.subr.mxu0 0.0
  %1035 = vmatpush1.msra.mxu0 0.0
  %1036 = vmatprep.subr.mxu0 0.0
  %1037 = vmatpush1.msra.mxu0 0.0
  %1038 = vmatprep.subr.mxu0 0.0
  %1039 = vmatpush1.msra.mxu0 0.0
  %1040 = vmatprep.subr.mxu0 0.0
  %1041 = vmatpush1.msra.mxu0 0.0
  %1042 = vmatprep.subr.mxu0 0.0
  %1043 = vmatpush1.msra.mxu0 0.0
  %1044 = vmatprep.subr.mxu0 0.0
  %1045 = vmatpush1.msra.mxu0 0.0
  %1046 = vmatprep.subr.mxu0 0.0
  %1047 = vmatpush1.msra.mxu0 0.0
  %1048 = vmatprep.subr.mxu0 0.0
  %1049 = vmatpush1.msra.mxu0 0.0
  %1050 = vmatprep.subr.mxu0 0.0
  %1051 = vmatpush1.msra.mxu0 0.0
  %1052 = vmatprep.subr.mxu0 0.0
  %1053 = vmatpush1.msra.mxu0 0.0
  %1054 = vmatprep.subr.mxu0 0.0
  %1055 = vmatpush1.msra.mxu0 0.0
  %1056 = vmatprep.subr.mxu0 0.0
  %1057 = vmatpush1.msra.mxu0 0.0
  %1058 = vmatprep.subr.mxu0 0.0
  %1059 = vmatpush1.msra.mxu0 0.0
  %1060 = vmatprep.subr.mxu0 0.0
  %1061 = vmatpush1.msra.mxu0 0.0
  %1062 = vmatprep.subr.mxu0 0.0
  %1063 = vmatpush1.msra.mxu0 0.0
  %1064 = vmatprep.subr.mxu0 0.0
  %1065 = vmatpush1.msra.mxu0 0.0
  %1066 = vmatprep.subr.mxu0 0.0
  %1067 = vmatpush1.msra.mxu0 0.0
  %1068 = vmatprep.subr.mxu0 0.0
  %1069 = vmatpush1.msra.mxu0 0.0
  %1070 = vmatprep.subr.mxu0 0.0
  %1071 = vmatpush1.msra.mxu0 0.0
  %1072 = vmatprep.subr.mxu0 0.0
  %1073 = vmatpush1.msra.mxu0 0.0
  %1074 = vmatprep.subr.mxu0 0.0
  %1075 = vmatpush1.msra.mxu0 0.0
  %1076 = vmatprep.subr.mxu0 0.0
  %1077 = vmatpush1.msra.mxu0 0.0
  %1078 = vmatprep.mubr.f32.mxu0 0.0
  %1079 = vmatmul.mubr.f32.gmra.mrb[0].mxu0 %v1012
  %v1080 = vpop.f32.mrb[0].mxu0
  %v1081 = vadd.f32 0.0, %v1080
  %v1082 = vpop.f32.mrb[0].mxu0
  %1083 = vdwg.mxu0
  %v1084 = vadd.f32 %v1009, %v1081
  %v1085 = vxor.u32 %v1084, 2147483648
  %v1086 = vmul.f32 %v1085, 1.442695
  %v1087 = vpow.pop %v1086
  %v1088 = vadd.f32 %v1087, 1.0
  %v1089 = vrcp.pop %v1088
  %v1090 = vmul.f32 1.0, %v1089
  %v1091 = vtanh.pop %v1084
  %v1092 = vld [vmem:[#allocation5] sm:$0xff]
  %1094 = vrot.lane.b32.xlu0 %v1092, 8
  %v1095 = vpop.permute.xlu0 %1094
  %v1097 = vmul.f32 %v1090, %v1095
  %1099 = vrot.lane.b32.xlu0 %v1091, 112
  %v1100 = vpop.permute.xlu0 %1099
  %v1102 = vmul.f32 %v1090, %v1100
  %1104 = vrot.lane.b32.xlu0 %v1102, 8
  %v1105 = vpop.permute.xlu0 %1104
  %v1107 = vadd.f32 %v1097, %v1105
  %v1108 = vtanh.pop %v1107
  %1110 = vrot.lane.b32.xlu0 %v1108, 16
  %v1111 = vpop.permute.xlu0 %1110
  %v1113 = vmul.f32 %v1090, %v1111
  %1115 = vrot.lane.b32.xlu0 %v1107, 120
  %v1116 = vpop.permute.xlu0 %1115
  %1118 = vst.msk [vmem:[#allocation5] sm:$0xff] %vm179, %v1116
  %1120 = vrot.lane.b32.xlu0 %v1113, 104
  %v1121 = vpop.permute.xlu0 %1120
  %1123 = vst.msk [vmem:[#allocation4] sm:$0xff] %vm179, %v1121
  %1124 = vst.msk [vmem:[#allocation3] sm:$0xff] %vm179, %v1121
  %v1125 = vld [vmem:[#allocation3] sm:$0xff]
  %v1126 = vld [vmem:[#allocation3 + $0x8] sm:$0xff]
  %v1127 = vld [vmem:[#allocation3 + $0x10] sm:$0xff]
  %v1128 = vld [vmem:[#allocation3 + $0x18] sm:$0xff]
  %v1129 = vld [vmem:[#allocation3 + $0x20] sm:$0xff]
  %v1130 = vld [vmem:[#allocation3 + $0x28] sm:$0xff]
  %v1131 = vld [vmem:[#allocation3 + $0x30] sm:$0xff]
  %v1132 = vld [vmem:[#allocation3 + $0x38] sm:$0xff]
  %v1133 = vld [vmem:[%s4] sm:$0xff]
  %v1134 = vld [vmem:[%s5] sm:$0x1]
  %v1136 = vlaneseq
  %v1137 = vshrl.u32 %v1136, 7
  %v1138 = vsub.s32 0, %v1137
  %v1139 = vrot.slane %v1134, %v1138
  %v1142 = vsel %vm179, %v1125, 0
  %v1145 = vsel %vm179, %v1126, 0
  %v1148 = vsel %vm179, %v1127, 0
  %v1151 = vsel %vm179, %v1128, 0
  %v1154 = vsel %vm179, %v1129, 0
  %v1157 = vsel %vm179, %v1130, 0
  %v1160 = vsel %vm179, %v1131, 0
  %v1163 = vsel %vm179, %v1132, 0
  %1165 = vmatprep.subr.mxu0 0.0
  %1166 = vmatpush1.msra.mxu0 %v1133
  %1167 = vmatprep.subr.mxu0 0.0
  %1168 = vmatpush1.msra.mxu0 0.0
  %1169 = vmatprep.subr.mxu0 0.0
  %1170 = vmatpush1.msra.mxu0 0.0
  %1171 = vmatprep.subr.mxu0 0.0
  %1172 = vmatpush1.msra.mxu0 0.0
  %1173 = vmatprep.subr.mxu0 0.0
  %1174 = vmatpush1.msra.mxu0 0.0
  %1175 = vmatprep.subr.mxu0 0.0
  %1176 = vmatpush1.msra.mxu0 0.0
  %1177 = vmatprep.subr.mxu0 0.0
  %1178 = vmatpush1.msra.mxu0 0.0
  %1179 = vmatprep.subr.mxu0 0.0
  %1180 = vmatpush1.msra.mxu0 0.0
  %1181 = vmatprep.subr.mxu0 0.0
  %1182 = vmatpush1.msra.mxu0 0.0
  %1183 = vmatprep.subr.mxu0 0.0
  %1184 = vmatpush1.msra.mxu0 0.0
  %1185 = vmatprep.subr.mxu0 0.0
  %1186 = vmatpush1.msra.mxu0 0.0
  %1187 = vmatprep.subr.mxu0 0.0
  %1188 = vmatpush1.msra.mxu0 0.0
  %1189 = vmatprep.subr.mxu0 0.0
  %1190 = vmatpush1.msra.mxu0 0.0
  %1191 = vmatprep.subr.mxu0 0.0
  %1192 = vmatpush1.msra.mxu0 0.0
  %1193 = vmatprep.subr.mxu0 0.0
  %1194 = vmatpush1.msra.mxu0 0.0
  %1195 = vmatprep.subr.mxu0 0.0
  %1196 = vmatpush1.msra.mxu0 0.0
  %1197 = vmatprep.subr.mxu0 0.0
  %1198 = vmatpush1.msra.mxu0 0.0
  %1199 = vmatprep.subr.mxu0 0.0
  %1200 = vmatpush1.msra.mxu0 0.0
  %1201 = vmatprep.subr.mxu0 0.0
  %1202 = vmatpush1.msra.mxu0 0.0
  %1203 = vmatprep.subr.mxu0 0.0
  %1204 = vmatpush1.msra.mxu0 0.0
  %1205 = vmatprep.subr.mxu0 0.0
  %1206 = vmatpush1.msra.mxu0 0.0
  %1207 = vmatprep.subr.mxu0 0.0
  %1208 = vmatpush1.msra.mxu0 0.0
  %1209 = vmatprep.subr.mxu0 0.0
  %1210 = vmatpush1.msra.mxu0 0.0
  %1211 = vmatprep.subr.mxu0 0.0
  %1212 = vmatpush1.msra.mxu0 0.0
  %1213 = vmatprep.subr.mxu0 0.0
  %1214 = vmatpush1.msra.mxu0 0.0
  %1215 = vmatprep.subr.mxu0 0.0
  %1216 = vmatpush1.msra.mxu0 0.0
  %1217 = vmatprep.subr.mxu0 0.0
  %1218 = vmatpush1.msra.mxu0 0.0
  %1219 = vmatprep.subr.mxu0 0.0
  %1220 = vmatpush1.msra.mxu0 0.0
  %1221 = vmatprep.subr.mxu0 0.0
  %1222 = vmatpush1.msra.mxu0 0.0
  %1223 = vmatprep.subr.mxu0 0.0
  %1224 = vmatpush1.msra.mxu0 0.0
  %1225 = vmatprep.subr.mxu0 0.0
  %1226 = vmatpush1.msra.mxu0 0.0
  %1227 = vmatprep.subr.mxu0 0.0
  %1228 = vmatpush1.msra.mxu0 0.0
  %1229 = vmatprep.mubr.f32.mxu0 0.0
  %1230 = vmatmul.mubr.f32.gmra.mrb[0].mxu0 %v1142
  %v1231 = vpop.f32.mrb[0].mxu0
  %v1232 = vadd.f32 %v1139, %v1231
  %v1233 = vpop.f32.mrb[0].mxu0
  %1234 = vmatprep.mubr.f32.mxu0 0.0
  %1235 = vmatmul.mubr.f32.gmra.mrb[0].mxu0 %v1145
  %v1236 = vpop.f32.mrb[0].mxu0
  %v1237 = vadd.f32 %v1139, %v1236
  %v1238 = vpop.f32.mrb[0].mxu0
  %1239 = vmatprep.mubr.f32.mxu0 0.0
  %1240 = vmatmul.mubr.f32.gmra.mrb[0].mxu0 %v1148
  %v1241 = vpop.f32.mrb[0].mxu0
  %v1242 = vadd.f32 %v1139, %v1241
  %v1243 = vpop.f32.mrb[0].mxu0
  %1244 = vmatprep.mubr.f32.mxu0 0.0
  %1245 = vmatmul.mubr.f32.gmra.mrb[0].mxu0 %v1151
  %v1246 = vpop.f32.mrb[0].mxu0
  %v1247 = vadd.f32 %v1139, %v1246
  %v1248 = vpop.f32.mrb[0].mxu0
  %1249 = vmatprep.mubr.f32.mxu0 0.0
  %1250 = vmatmul.mubr.f32.gmra.mrb[0].mxu0 %v1154
  %v1251 = vpop.f32.mrb[0].mxu0
  %v1252 = vadd.f32 %v1139, %v1251
  %v1253 = vpop.f32.mrb[0].mxu0
  %1254 = vmatprep.mubr.f32.mxu0 0.0
  %1255 = vmatmul.mubr.f32.gmra.mrb[0].mxu0 %v1157
  %v1256 = vpop.f32.mrb[0].mxu0
  %v1257 = vadd.f32 %v1139, %v1256
  %v1258 = vpop.f32.mrb[0].mxu0
  %1259 = vmatprep.mubr.f32.mxu0 0.0
  %1260 = vmatmul.mubr.f32.gmra.mrb[0].mxu0 %v1160
  %v1261 = vpop.f32.mrb[0].mxu0
  %v1262 = vadd.f32 %v1139, %v1261
  %v1263 = vpop.f32.mrb[0].mxu0
  %1264 = vmatprep.mubr.f32.mxu0 0.0
  %1265 = vmatmul.mubr.f32.gmra.mrb[0].mxu0 %v1163
  %v1266 = vpop.f32.mrb[0].mxu0
  %v1267 = vadd.f32 %v1139, %v1266
  %v1268 = vpop.f32.mrb[0].mxu0
  %1269 = vdwg.mxu0
  %1270 = vst.msk [vmem:[%s6] sm:$0xff] %vm40, %v1232
  %1271 = vst.msk [vmem:[%s6 + $0x8] sm:$0xff] %vm40, %v1237
  %1272 = vst.msk [vmem:[%s6 + $0x10] sm:$0xff] %vm40, %v1242
  %1273 = vst.msk [vmem:[%s6 + $0x18] sm:$0xff] %vm40, %v1247
  %1274 = vst.msk [vmem:[%s6 + $0x20] sm:$0xff] %vm40, %v1252
  %1275 = vst.msk [vmem:[%s6 + $0x28] sm:$0xff] %vm40, %v1257
  %1276 = vst.msk [vmem:[%s6 + $0x30] sm:$0xff] %vm40, %v1262
  %1277 = vst.msk [vmem:[%s6 + $0x38] sm:$0xff] %vm40, %v1267
  // Predicated region
  $region26: #{dprnn_forward.6} parent=0 // pred_check
    _
  $region27: #{dprnn_forward.6} parent=0 // pred_check_branch
    %1279 = sbr.rel (0) target = $region29
  $region28: #{dprnn_forward.6} parent=0 // pred_region
    _
  $region29: #{dprnn_forward.6} parent=0 // pred_fallthru
    _
  // Predicated region
  $region30: #{dprnn_forward.6} parent=0 // pred_check
    _
  $region31: #{dprnn_forward.6} parent=0 // pred_check_branch
    %1281 = sbr.rel (0) target = $region33
  $region32: #{dprnn_forward.6} parent=0 // pred_region
    _
  $region33: #{dprnn_forward.6} parent=0 // pred_fallthru
    _

// kernel: dprnn_forward.5
$region0: #{dprnn_forward.5}
  #allocation0 [shape = 'u32[]', space=smem, size = 0x4, offset = 0x4, fixed_abs, tag = 'smem constant byte address 0x4 - core index']
  #allocation1 [shape = 'u32[144,128]{1,0:T(1,128)}', space=vmem, size = 0x12000, scoped, tag = 'internal scratch']
  #allocation2 [shape = 'f32[8,8,32]{2,1,0:T(8,128)}', space=vmem, size = 0x8000, scoped, tag = 'scratch operand']
  #allocation3 [shape = 'f32[8,8,8]{2,1,0:T(8,128)}', space=vmem, size = 0x8000, scoped, tag = 'scratch operand']
  #allocation4 [shape = 'f32[8,8]{1,0:T(8,128)}', space=vmem, size = 0x1000, scoped, tag = 'scratch operand']
  #allocation5 [shape = 'f32[8,8]{1,0:T(8,128)}', space=vmem, size = 0x1000, scoped, tag = 'scratch operand']
  %s0 = inlined_call_operand.vmem [shape: f32[8,8,16], index: 0, kind: input, shape index: {}]
  %s1 = inlined_call_operand.vmem [shape: f32[16,32], index: 1, kind: input, shape index: {}]
  %s2 = inlined_call_operand.vmem [shape: f32[8,32], index: 2, kind: input, shape index: {}]
  %s3 = inlined_call_operand.vmem [shape: f32[1,32], index: 3, kind: input, shape index: {}]
  %s4 = inlined_call_operand.vmem [shape: f32[8,16], index: 4, kind: input, shape index: {}]
  %s5 = inlined_call_operand.vmem [shape: f32[1,16], index: 5, kind: input, shape index: {}]
  %s6 = inlined_call_operand.vmem [shape: f32[8,8,16], index: 6, kind: output, shape index: {}]
  %s7 = sld [smem:[#allocation0]]
  $region34: #{dprnn_forward.5} parent=0
    _
  %s9 = ssub.s32 1, %s7
  %s10 = scalar_select 0, %s9, %s7
  // Predicated region
  $region2: #{dprnn_forward.5} parent=0 // pred_check
    _
  $region3: #{dprnn_forward.5} parent=0 // pred_check_branch
    %12 = sbr.rel (0) target = $region5
  $region4: #{dprnn_forward.5} parent=0 // pred_region
    _
  $region5: #{dprnn_forward.5} parent=0 // pred_fallthru
    _
  // Predicated region
  $region6: #{dprnn_forward.5} parent=0 // pred_check
    _
  $region7: #{dprnn_forward.5} parent=0 // pred_check_branch
    %14 = sbr.rel (0) target = $region9
  $region8: #{dprnn_forward.5} parent=0 // pred_region
    _
  $region9: #{dprnn_forward.5} parent=0 // pred_fallthru
    _
  // Predicated region
  $region10: #{dprnn_forward.5} parent=0 // pred_check
    _
  $region11: #{dprnn_forward.5} parent=0 // pred_check_branch
    %16 = sbr.rel (0) target = $region13
  $region12: #{dprnn_forward.5} parent=0 // pred_region
    _
  $region13: #{dprnn_forward.5} parent=0 // pred_fallthru
    _
  // Predicated region
  $region14: #{dprnn_forward.5} parent=0 // pred_check
    _
  $region15: #{dprnn_forward.5} parent=0 // pred_check_branch
    %18 = sbr.rel (0) target = $region17
  $region16: #{dprnn_forward.5} parent=0 // pred_region
    _
  $region17: #{dprnn_forward.5} parent=0 // pred_fallthru
    _
  // Predicated region
  $region18: #{dprnn_forward.5} parent=0 // pred_check
    _
  $region19: #{dprnn_forward.5} parent=0 // pred_check_branch
    %20 = sbr.rel (0) target = $region21
  $region20: #{dprnn_forward.5} parent=0 // pred_region
    _
  $region21: #{dprnn_forward.5} parent=0 // pred_fallthru
    _
  // Predicated region
  $region22: #{dprnn_forward.5} parent=0 // pred_check
    _
  $region23: #{dprnn_forward.5} parent=0 // pred_check_branch
    %22 = sbr.rel (0) target = $region25
  $region24: #{dprnn_forward.5} parent=0 // pred_region
    _
  $region25: #{dprnn_forward.5} parent=0 // pred_fallthru
    _
  %v23 = vld [vmem:[%s0] sm:$0xff]
  %v24 = vld [vmem:[%s0 + $0x8] sm:$0xff]
  %v25 = vld [vmem:[%s0 + $0x10] sm:$0xff]
  %v26 = vld [vmem:[%s0 + $0x18] sm:$0xff]
  %v27 = vld [vmem:[%s0 + $0x20] sm:$0xff]
  %v28 = vld [vmem:[%s0 + $0x28] sm:$0xff]
  %v29 = vld [vmem:[%s0 + $0x30] sm:$0xff]
  %v30 = vld [vmem:[%s0 + $0x38] sm:$0xff]
  %v31 = vld [vmem:[%s1] sm:$0xff]
  %v32 = vld [vmem:[%s1 + $0x8] sm:$0xff]
  %v33 = vld [vmem:[%s3] sm:$0x1]
  %v35 = vlaneseq
  %v36 = vshrl.u32 %v35, 7
  %v37 = vsub.s32 0, %v36
  %v38 = vrot.slane %v33, %v37
  %vm40 = vcmask 130048
  %v42 = vsel %vm40, %v23, 0
  %v45 = vsel %vm40, %v24, 0
  %v48 = vsel %vm40, %v25, 0
  %v51 = vsel %vm40, %v26, 0
  %v54 = vsel %vm40, %v27, 0
  %v57 = vsel %vm40, %v28, 0
  %v60 = vsel %vm40, %v29, 0
  %v63 = vsel %vm40, %v30, 0
  %65 = vmatprep.subr.mxu0 0.0
  %66 = vmatpush1.msra.mxu0 %v31
  %67 = vmatprep.subr.mxu0 0.0
  %68 = vmatpush1.msra.mxu0 %v32
  %69 = vmatprep.subr.mxu0 0.0
  %70 = vmatpush1.msra.mxu0 0.0
  %71 = vmatprep.subr.mxu0 0.0
  %72 = vmatpush1.msra.mxu0 0.0
  %73 = vmatprep.subr.mxu0 0.0
  %74 = vmatpush1.msra.mxu0 0.0
  %75 = vmatprep.subr.mxu0 0.0
  %76 = vmatpush1.msra.mxu0 0.0
  %77 = vmatprep.subr.mxu0 0.0
  %78 = vmatpush1.msra.mxu0 0.0
  %79 = vmatprep.subr.mxu0 0.0
  %80 = vmatpush1.msra.mxu0 0.0
  %81 = vmatprep.subr.mxu0 0.0
  %82 = vmatpush1.msra.mxu0 0.0
  %83 = vmatprep.subr.mxu0 0.0
  %84 = vmatpush1.msra.mxu0 0.0
  %85 = vmatprep.subr.mxu0 0.0
  %86 = vmatpush1.msra.mxu0 0.0
  %87 = vmatprep.subr.mxu0 0.0
  %88 = vmatpush1.msra.mxu0 0.0
  %89 = vmatprep.subr.mxu0 0.0
  %90 = vmatpush1.msra.mxu0 0.0
  %91 = vmatprep.subr.mxu0 0.0
  %92 = vmatpush1.msra.mxu0 0.0
  %93 = vmatprep.subr.mxu0 0.0
  %94 = vmatpush1.msra.mxu0 0.0
  %95 = vmatprep.subr.mxu0 0.0
  %96 = vmatpush1.msra.mxu0 0.0
  %97 = vmatprep.subr.mxu0 0.0
  %98 = vmatpush1.msra.mxu0 0.0
  %99 = vmatprep.subr.mxu0 0.0
  %100 = vmatpush1.msra.mxu0 0.0
  %101 = vmatprep.subr.mxu0 0.0
  %102 = vmatpush1.msra.mxu0 0.0
  %103 = vmatprep.subr.mxu0 0.0
  %104 = vmatpush1.msra.mxu0 0.0
  %105 = vmatprep.subr.mxu0 0.0
  %106 = vmatpush1.msra.mxu0 0.0
  %107 = vmatprep.subr.mxu0 0.0
  %108 = vmatpush1.msra.mxu0 0.0
  %109 = vmatprep.subr.mxu0 0.0
  %110 = vmatpush1.msra.mxu0 0.0
  %111 = vmatprep.subr.mxu0 0.0
  %112 = vmatpush1.msra.mxu0 0.0
  %113 = vmatprep.subr.mxu0 0.0
  %114 = vmatpush1.msra.mxu0 0.0
  %115 = vmatprep.subr.mxu0 0.0
  %116 = vmatpush1.msra.mxu0 0.0
  %117 = vmatprep.subr.mxu0 0.0
  %118 = vmatpush1.msra.mxu0 0.0
  %119 = vmatprep.subr.mxu0 0.0
  %120 = vmatpush1.msra.mxu0 0.0
  %121 = vmatprep.subr.mxu0 0.0
  %122 = vmatpush1.msra.mxu0 0.0
  %123 = vmatprep.subr.mxu0 0.0
  %124 = vmatpush1.msra.mxu0 0.0
  %125 = vmatprep.subr.mxu0 0.0
  %126 = vmatpush1.msra.mxu0 0.0
  %127 = vmatprep.subr.mxu0 0.0
  %128 = vmatpush1.msra.mxu0 0.0
  %129 = vmatprep.mubr.f32.mxu0 0.0
  %130 = vmatmul.mubr.f32.gmra.mrb[0].mxu0 %v42
  %v131 = vpop.f32.mrb[0].mxu0
  %v132 = vadd.f32 %v38, %v131
  %v133 = vpop.f32.mrb[0].mxu0
  %134 = vmatprep.mubr.f32.mxu0 0.0
  %135 = vmatmul.mubr.f32.gmra.mrb[0].mxu0 %v45
  %v136 = vpop.f32.mrb[0].mxu0
  %v137 = vadd.f32 %v38, %v136
  %v138 = vpop.f32.mrb[0].mxu0
  %139 = vmatprep.mubr.f32.mxu0 0.0
  %140 = vmatmul.mubr.f32.gmra.mrb[0].mxu0 %v48
  %v141 = vpop.f32.mrb[0].mxu0
  %v142 = vadd.f32 %v38, %v141
  %v143 = vpop.f32.mrb[0].mxu0
  %144 = vmatprep.mubr.f32.mxu0 0.0
  %145 = vmatmul.mubr.f32.gmra.mrb[0].mxu0 %v51
  %v146 = vpop.f32.mrb[0].mxu0
  %v147 = vadd.f32 %v38, %v146
  %v148 = vpop.f32.mrb[0].mxu0
  %149 = vmatprep.mubr.f32.mxu0 0.0
  %150 = vmatmul.mubr.f32.gmra.mrb[0].mxu0 %v54
  %v151 = vpop.f32.mrb[0].mxu0
  %v152 = vadd.f32 %v38, %v151
  %v153 = vpop.f32.mrb[0].mxu0
  %154 = vmatprep.mubr.f32.mxu0 0.0
  %155 = vmatmul.mubr.f32.gmra.mrb[0].mxu0 %v57
  %v156 = vpop.f32.mrb[0].mxu0
  %v157 = vadd.f32 %v38, %v156
  %v158 = vpop.f32.mrb[0].mxu0
  %159 = vmatprep.mubr.f32.mxu0 0.0
  %160 = vmatmul.mubr.f32.gmra.mrb[0].mxu0 %v60
  %v161 = vpop.f32.mrb[0].mxu0
  %v162 = vadd.f32 %v38, %v161
  %v163 = vpop.f32.mrb[0].mxu0
  %164 = vmatprep.mubr.f32.mxu0 0.0
  %165 = vmatmul.mubr.f32.gmra.mrb[0].mxu0 %v63
  %v166 = vpop.f32.mrb[0].mxu0
  %v167 = vadd.f32 %v38, %v166
  %v168 = vpop.f32.mrb[0].mxu0
  %169 = vdwg.mxu0
  %vm170 = vcmask 261120
  %171 = vst.msk [vmem:[#allocation2] sm:$0xff] %vm170, %v132
  %172 = vst.msk [vmem:[#allocation2 + $0x8] sm:$0xff] %vm170, %v137
  %173 = vst.msk [vmem:[#allocation2 + $0x10] sm:$0xff] %vm170, %v142
  %174 = vst.msk [vmem:[#allocation2 + $0x18] sm:$0xff] %vm170, %v147
  %175 = vst.msk [vmem:[#allocation2 + $0x20] sm:$0xff] %vm170, %v152
  %176 = vst.msk [vmem:[#allocation2 + $0x28] sm:$0xff] %vm170, %v157
  %177 = vst.msk [vmem:[#allocation2 + $0x30] sm:$0xff] %vm170, %v162
  %178 = vst.msk [vmem:[#allocation2 + $0x38] sm:$0xff] %vm170, %v167
  %vm179 = vcmask 64512
  %180 = vst.msk [vmem:[#allocation4] sm:$0xff] %vm179, 0.0
  %181 = vst.msk [vmem:[#allocation5] sm:$0xff] %vm179, 0.0
  %v182 = vld [vmem:[%s2] sm:$0xff]
  %v183 = vld [vmem:[#allocation2] sm:$0xff]
  %v184 = vld [vmem:[#allocation4] sm:$0xff]
  %v186 = vsel %vm179, %v184, 0
  %188 = vmatprep.subr.mxu0 0.0
  %189 = vmatpush1.msra.mxu0 %v182
  %190 = vmatprep.subr.mxu0 0.0
  %191 = vmatpush1.msra.mxu0 0.0
  %192 = vmatprep.subr.mxu0 0.0
  %193 = vmatpush1.msra.mxu0 0.0
  %194 = vmatprep.subr.mxu0 0.0
  %195 = vmatpush1.msra.mxu0 0.0
  %196 = vmatprep.subr.mxu0 0.0
  %197 = vmatpush1.msra.mxu0 0.0
  %198 = vmatprep.subr.mxu0 0.0
  %199 = vmatpush1.msra.mxu0 0.0
  %200 = vmatprep.subr.mxu0 0.0
  %201 = vmatpush1.msra.mxu0 0.0
  %202 = vmatprep.subr.mxu0 0.0
  %203 = vmatpush1.msra.mxu0 0.0
  %204 = vmatprep.subr.mxu0 0.0
  %205 = vmatpush1.msra.mxu0 0.0
  %206 = vmatprep.subr.mxu0 0.0
  %207 = vmatpush1.msra.mxu0 0.0
  %208 = vmatprep.subr.mxu0 0.0
  %209 = vmatpush1.msra.mxu0 0.0
  %210 = vmatprep.subr.mxu0 0.0
  %211 = vmatpush1.msra.mxu0 0.0
  %212 = vmatprep.subr.mxu0 0.0
  %213 = vmatpush1.msra.mxu0 0.0
  %214 = vmatprep.subr.mxu0 0.0
  %215 = vmatpush1.msra.mxu0 0.0
  %216 = vmatprep.subr.mxu0 0.0
  %217 = vmatpush1.msra.mxu0 0.0
  %218 = vmatprep.subr.mxu0 0.0
  %219 = vmatpush1.msra.mxu0 0.0
  %220 = vmatprep.subr.mxu0 0.0
  %221 = vmatpush1.msra.mxu0 0.0
  %222 = vmatprep.subr.mxu0 0.0
  %223 = vmatpush1.msra.mxu0 0.0
  %224 = vmatprep.subr.mxu0 0.0
  %225 = vmatpush1.msra.mxu0 0.0
  %226 = vmatprep.subr.mxu0 0.0
  %227 = vmatpush1.msra.mxu0 0.0
  %228 = vmatprep.subr.mxu0 0.0
  %229 = vmatpush1.msra.mxu0 0.0
  %230 = vmatprep.subr.mxu0 0.0
  %231 = vmatpush1.msra.mxu0 0.0
  %232 = vmatprep.subr.mxu0 0.0
  %233 = vmatpush1.msra.mxu0 0.0
  %234 = vmatprep.subr.mxu0 0.0
  %235 = vmatpush1.msra.mxu0 0.0
  %236 = vmatprep.subr.mxu0 0.0
  %237 = vmatpush1.msra.mxu0 0.0
  %238 = vmatprep.subr.mxu0 0.0
  %239 = vmatpush1.msra.mxu0 0.0
  %240 = vmatprep.subr.mxu0 0.0
  %241 = vmatpush1.msra.mxu0 0.0
  %242 = vmatprep.subr.mxu0 0.0
  %243 = vmatpush1.msra.mxu0 0.0
  %244 = vmatprep.subr.mxu0 0.0
  %245 = vmatpush1.msra.mxu0 0.0
  %246 = vmatprep.subr.mxu0 0.0
  %247 = vmatpush1.msra.mxu0 0.0
  %248 = vmatprep.subr.mxu0 0.0
  %249 = vmatpush1.msra.mxu0 0.0
  %250 = vmatprep.subr.mxu0 0.0
  %251 = vmatpush1.msra.mxu0 0.0
  %252 = vmatprep.mubr.f32.mxu0 0.0
  %253 = vmatmul.mubr.f32.gmra.mrb[0].mxu0 %v186
  %v254 = vpop.f32.mrb[0].mxu0
  %v255 = vadd.f32 0.0, %v254
  %v256 = vpop.f32.mrb[0].mxu0
  %257 = vdwg.mxu0
  %v258 = vadd.f32 %v183, %v255
  %v259 = vxor.u32 %v258, 2147483648
  %v260 = vmul.f32 %v259, 1.442695
  %v261 = vpow.pop %v260
  %v262 = vadd.f32 %v261, 1.0
  %v263 = vrcp.pop %v262
  %v264 = vmul.f32 1.0, %v263
  %v265 = vtanh.pop %v258
  %v266 = vld [vmem:[#allocation5] sm:$0xff]
  %268 = vrot.lane.b32.xlu0 %v266, 8
  %v269 = vpop.permute.xlu0 %268
  %v271 = vmul.f32 %v264, %v269
  %273 = vrot.lane.b32.xlu0 %v265, 112
  %v274 = vpop.permute.xlu0 %273
  %v276 = vmul.f32 %v264, %v274
  %278 = vrot.lane.b32.xlu0 %v276, 8
  %v279 = vpop.permute.xlu0 %278
  %v281 = vadd.f32 %v271, %v279
  %v282 = vtanh.pop %v281
  %284 = vrot.lane.b32.xlu0 %v282, 16
  %v285 = vpop.permute.xlu0 %284
  %v287 = vmul.f32 %v264, %v285
  %289 = vrot.lane.b32.xlu0 %v281, 120
  %v290 = vpop.permute.xlu0 %289
  %292 = vst.msk [vmem:[#allocation5] sm:$0xff] %vm179, %v290
  %294 = vrot.lane.b32.xlu0 %v287, 104
  %v295 = vpop.permute.xlu0 %294
  %297 = vst.msk [vmem:[#allocation4] sm:$0xff] %vm179, %v295
  %298 = vst.msk [vmem:[#allocation3] sm:$0xff] %vm179, %v295
  %s299 = scalar_lea.vmem [#allocation2], 8
  %v300 = vld [vmem:[%s299] sm:$0xff]
  %v301 = vld [vmem:[#allocation4] sm:$0xff]
  %v303 = vsel %vm179, %v301, 0
  %305 = vmatprep.subr.mxu0 0.0
  %306 = vmatpush1.msra.mxu0 %v182
  %307 = vmatprep.subr.mxu0 0.0
  %308 = vmatpush1.msra.mxu0 0.0
  %309 = vmatprep.subr.mxu0 0.0
  %310 = vmatpush1.msra.mxu0 0.0
  %311 = vmatprep.subr.mxu0 0.0
  %312 = vmatpush1.msra.mxu0 0.0
  %313 = vmatprep.subr.mxu0 0.0
  %314 = vmatpush1.msra.mxu0 0.0
  %315 = vmatprep.subr.mxu0 0.0
  %316 = vmatpush1.msra.mxu0 0.0
  %317 = vmatprep.subr.mxu0 0.0
  %318 = vmatpush1.msra.mxu0 0.0
  %319 = vmatprep.subr.mxu0 0.0
  %320 = vmatpush1.msra.mxu0 0.0
  %321 = vmatprep.subr.mxu0 0.0
  %322 = vmatpush1.msra.mxu0 0.0
  %323 = vmatprep.subr.mxu0 0.0
  %324 = vmatpush1.msra.mxu0 0.0
  %325 = vmatprep.subr.mxu0 0.0
  %326 = vmatpush1.msra.mxu0 0.0
  %327 = vmatprep.subr.mxu0 0.0
  %328 = vmatpush1.msra.mxu0 0.0
  %329 = vmatprep.subr.mxu0 0.0
  %330 = vmatpush1.msra.mxu0 0.0
  %331 = vmatprep.subr.mxu0 0.0
  %332 = vmatpush1.msra.mxu0 0.0
  %333 = vmatprep.subr.mxu0 0.0
  %334 = vmatpush1.msra.mxu0 0.0
  %335 = vmatprep.subr.mxu0 0.0
  %336 = vmatpush1.msra.mxu0 0.0
  %337 = vmatprep.subr.mxu0 0.0
  %338 = vmatpush1.msra.mxu0 0.0
  %339 = vmatprep.subr.mxu0 0.0
  %340 = vmatpush1.msra.mxu0 0.0
  %341 = vmatprep.subr.mxu0 0.0
  %342 = vmatpush1.msra.mxu0 0.0
  %343 = vmatprep.subr.mxu0 0.0
  %344 = vmatpush1.msra.mxu0 0.0
  %345 = vmatprep.subr.mxu0 0.0
  %346 = vmatpush1.msra.mxu0 0.0
  %347 = vmatprep.subr.mxu0 0.0
  %348 = vmatpush1.msra.mxu0 0.0
  %349 = vmatprep.subr.mxu0 0.0
  %350 = vmatpush1.msra.mxu0 0.0
  %351 = vmatprep.subr.mxu0 0.0
  %352 = vmatpush1.msra.mxu0 0.0
  %353 = vmatprep.subr.mxu0 0.0
  %354 = vmatpush1.msra.mxu0 0.0
  %355 = vmatprep.subr.mxu0 0.0
  %356 = vmatpush1.msra.mxu0 0.0
  %357 = vmatprep.subr.mxu0 0.0
  %358 = vmatpush1.msra.mxu0 0.0
  %359 = vmatprep.subr.mxu0 0.0
  %360 = vmatpush1.msra.mxu0 0.0
  %361 = vmatprep.subr.mxu0 0.0
  %362 = vmatpush1.msra.mxu0 0.0
  %363 = vmatprep.subr.mxu0 0.0
  %364 = vmatpush1.msra.mxu0 0.0
  %365 = vmatprep.subr.mxu0 0.0
  %366 = vmatpush1.msra.mxu0 0.0
  %367 = vmatprep.subr.mxu0 0.0
  %368 = vmatpush1.msra.mxu0 0.0
  %369 = vmatprep.mubr.f32.mxu0 0.0
  %370 = vmatmul.mubr.f32.gmra.mrb[0].mxu0 %v303
  %v371 = vpop.f32.mrb[0].mxu0
  %v372 = vadd.f32 0.0, %v371
  %v373 = vpop.f32.mrb[0].mxu0
  %374 = vdwg.mxu0
  %v375 = vadd.f32 %v300, %v372
  %v376 = vxor.u32 %v375, 2147483648
  %v377 = vmul.f32 %v376, 1.442695
  %v378 = vpow.pop %v377
  %v379 = vadd.f32 %v378, 1.0
  %v380 = vrcp.pop %v379
  %v381 = vmul.f32 1.0, %v380
  %v382 = vtanh.pop %v375
  %v383 = vld [vmem:[#allocation5] sm:$0xff]
  %385 = vrot.lane.b32.xlu0 %v383, 8
  %v386 = vpop.permute.xlu0 %385
  %v388 = vmul.f32 %v381, %v386
  %390 = vrot.lane.b32.xlu0 %v382, 112
  %v391 = vpop.permute.xlu0 %390
  %v393 = vmul.f32 %v381, %v391
  %395 = vrot.lane.b32.xlu0 %v393, 8
  %v396 = vpop.permute.xlu0 %395
  %v398 = vadd.f32 %v388, %v396
  %v399 = vtanh.pop %v398
  %401 = vrot.lane.b32.xlu0 %v399, 16
  %v402 = vpop.permute.xlu0 %401
  %v404 = vmul.f32 %v381, %v402
  %406 = vrot.lane.b32.xlu0 %v398, 120
  %v407 = vpop.permute.xlu0 %406
  %409 = vst.msk [vmem:[#allocation5] sm:$0xff] %vm179, %v407
  %411 = vrot.lane.b32.xlu0 %v404, 104
  %v412 = vpop.permute.xlu0 %411
  %414 = vst.msk [vmem:[#allocation4] sm:$0xff] %vm179, %v412
  %s415 = scalar_lea.vmem [#allocation3], 8
  %416 = vst.msk [vmem:[%s415] sm:$0xff] %vm179, %v412
  %s417 = scalar_lea.vmem [#allocation2], 16
  %v418 = vld [vmem:[%s417] sm:$0xff]
  %v419 = vld [vmem:[#allocation4] sm:$0xff]
  %v421 = vsel %vm179, %v419, 0
  %423 = vmatprep.subr.mxu0 0.0
  %424 = vmatpush1.msra.mxu0 %v182
  %425 = vmatprep.subr.mxu0 0.0
  %426 = vmatpush1.msra.mxu0 0.0
  %427 = vmatprep.subr.mxu0 0.0
  %428 = vmatpush1.msra.mxu0 0.0
  %429 = vmatprep.subr.mxu0 0.0
  %430 = vmatpush1.msra.mxu0 0.0
  %431 = vmatprep.subr.mxu0 0.0
  %432 = vmatpush1.msra.mxu0 0.0
  %433 = vmatprep.subr.mxu0 0.0
  %434 = vmatpush1.msra.mxu0 0.0
  %435 = vmatprep.subr.mxu0 0.0
  %436 = vmatpush1.msra.mxu0 0.0
  %437 = vmatprep.subr.mxu0 0.0
  %438 = vmatpush1.msra.mxu0 0.0
  %439 = vmatprep.subr.mxu0 0.0
  %440 = vmatpush1.msra.mxu0 0.0
  %441 = vmatprep.subr.mxu0 0.0
  %442 = vmatpush1.msra.mxu0 0.0
  %443 = vmatprep.subr.mxu0 0.0
  %444 = vmatpush1.msra.mxu0 0.0
  %445 = vmatprep.subr.mxu0 0.0
  %446 = vmatpush1.msra.mxu0 0.0
  %447 = vmatprep.subr.mxu0 0.0
  %448 = vmatpush1.msra.mxu0 0.0
  %449 = vmatprep.subr.mxu0 0.0
  %450 = vmatpush1.msra.mxu0 0.0
  %451 = vmatprep.subr.mxu0 0.0
  %452 = vmatpush1.msra.mxu0 0.0
  %453 = vmatprep.subr.mxu0 0.0
  %454 = vmatpush1.msra.mxu0 0.0
  %455 = vmatprep.subr.mxu0 0.0
  %456 = vmatpush1.msra.mxu0 0.0
  %457 = vmatprep.subr.mxu0 0.0
  %458 = vmatpush1.msra.mxu0 0.0
  %459 = vmatprep.subr.mxu0 0.0
  %460 = vmatpush1.msra.mxu0 0.0
  %461 = vmatprep.subr.mxu0 0.0
  %462 = vmatpush1.msra.mxu0 0.0
  %463 = vmatprep.subr.mxu0 0.0
  %464 = vmatpush1.msra.mxu0 0.0
  %465 = vmatprep.subr.mxu0 0.0
  %466 = vmatpush1.msra.mxu0 0.0
  %467 = vmatprep.subr.mxu0 0.0
  %468 = vmatpush1.msra.mxu0 0.0
  %469 = vmatprep.subr.mxu0 0.0
  %470 = vmatpush1.msra.mxu0 0.0
  %471 = vmatprep.subr.mxu0 0.0
  %472 = vmatpush1.msra.mxu0 0.0
  %473 = vmatprep.subr.mxu0 0.0
  %474 = vmatpush1.msra.mxu0 0.0
  %475 = vmatprep.subr.mxu0 0.0
  %476 = vmatpush1.msra.mxu0 0.0
  %477 = vmatprep.subr.mxu0 0.0
  %478 = vmatpush1.msra.mxu0 0.0
  %479 = vmatprep.subr.mxu0 0.0
  %480 = vmatpush1.msra.mxu0 0.0
  %481 = vmatprep.subr.mxu0 0.0
  %482 = vmatpush1.msra.mxu0 0.0
  %483 = vmatprep.subr.mxu0 0.0
  %484 = vmatpush1.msra.mxu0 0.0
  %485 = vmatprep.subr.mxu0 0.0
  %486 = vmatpush1.msra.mxu0 0.0
  %487 = vmatprep.mubr.f32.mxu0 0.0
  %488 = vmatmul.mubr.f32.gmra.mrb[0].mxu0 %v421
  %v489 = vpop.f32.mrb[0].mxu0
  %v490 = vadd.f32 0.0, %v489
  %v491 = vpop.f32.mrb[0].mxu0
  %492 = vdwg.mxu0
  %v493 = vadd.f32 %v418, %v490
  %v494 = vxor.u32 %v493, 2147483648
  %v495 = vmul.f32 %v494, 1.442695
  %v496 = vpow.pop %v495
  %v497 = vadd.f32 %v496, 1.0
  %v498 = vrcp.pop %v497
  %v499 = vmul.f32 1.0, %v498
  %v500 = vtanh.pop %v493
  %v501 = vld [vmem:[#allocation5] sm:$0xff]
  %503 = vrot.lane.b32.xlu0 %v501, 8
  %v504 = vpop.permute.xlu0 %503
  %v506 = vmul.f32 %v499, %v504
  %508 = vrot.lane.b32.xlu0 %v500, 112
  %v509 = vpop.permute.xlu0 %508
  %v511 = vmul.f32 %v499, %v509
  %513 = vrot.lane.b32.xlu0 %v511, 8
  %v514 = vpop.permute.xlu0 %513
  %v516 = vadd.f32 %v506, %v514
  %v517 = vtanh.pop %v516
  %519 = vrot.lane.b32.xlu0 %v517, 16
  %v520 = vpop.permute.xlu0 %519
  %v522 = vmul.f32 %v499, %v520
  %524 = vrot.lane.b32.xlu0 %v516, 120
  %v525 = vpop.permute.xlu0 %524
  %527 = vst.msk [vmem:[#allocation5] sm:$0xff] %vm179, %v525
  %529 = vrot.lane.b32.xlu0 %v522, 104
  %v530 = vpop.permute.xlu0 %529
  %532 = vst.msk [vmem:[#allocation4] sm:$0xff] %vm179, %v530
  %s533 = scalar_lea.vmem [#allocation3], 16
  %534 = vst.msk [vmem:[%s533] sm:$0xff] %vm179, %v530
  %s535 = scalar_lea.vmem [#allocation2], 24
  %v536 = vld [vmem:[%s535] sm:$0xff]
  %v537 = vld [vmem:[#allocation4] sm:$0xff]
  %v539 = vsel %vm179, %v537, 0
  %541 = vmatprep.subr.mxu0 0.0
  %542 = vmatpush1.msra.mxu0 %v182
  %543 = vmatprep.subr.mxu0 0.0
  %544 = vmatpush1.msra.mxu0 0.0
  %545 = vmatprep.subr.mxu0 0.0
  %546 = vmatpush1.msra.mxu0 0.0
  %547 = vmatprep.subr.mxu0 0.0
  %548 = vmatpush1.msra.mxu0 0.0
  %549 = vmatprep.subr.mxu0 0.0
  %550 = vmatpush1.msra.mxu0 0.0
  %551 = vmatprep.subr.mxu0 0.0
  %552 = vmatpush1.msra.mxu0 0.0
  %553 = vmatprep.subr.mxu0 0.0
  %554 = vmatpush1.msra.mxu0 0.0
  %555 = vmatprep.subr.mxu0 0.0
  %556 = vmatpush1.msra.mxu0 0.0
  %557 = vmatprep.subr.mxu0 0.0
  %558 = vmatpush1.msra.mxu0 0.0
  %559 = vmatprep.subr.mxu0 0.0
  %560 = vmatpush1.msra.mxu0 0.0
  %561 = vmatprep.subr.mxu0 0.0
  %562 = vmatpush1.msra.mxu0 0.0
  %563 = vmatprep.subr.mxu0 0.0
  %564 = vmatpush1.msra.mxu0 0.0
  %565 = vmatprep.subr.mxu0 0.0
  %566 = vmatpush1.msra.mxu0 0.0
  %567 = vmatprep.subr.mxu0 0.0
  %568 = vmatpush1.msra.mxu0 0.0
  %569 = vmatprep.subr.mxu0 0.0
  %570 = vmatpush1.msra.mxu0 0.0
  %571 = vmatprep.subr.mxu0 0.0
  %572 = vmatpush1.msra.mxu0 0.0
  %573 = vmatprep.subr.mxu0 0.0
  %574 = vmatpush1.msra.mxu0 0.0
  %575 = vmatprep.subr.mxu0 0.0
  %576 = vmatpush1.msra.mxu0 0.0
  %577 = vmatprep.subr.mxu0 0.0
  %578 = vmatpush1.msra.mxu0 0.0
  %579 = vmatprep.subr.mxu0 0.0
  %580 = vmatpush1.msra.mxu0 0.0
  %581 = vmatprep.subr.mxu0 0.0
  %582 = vmatpush1.msra.mxu0 0.0
  %583 = vmatprep.subr.mxu0 0.0
  %584 = vmatpush1.msra.mxu0 0.0
  %585 = vmatprep.subr.mxu0 0.0
  %586 = vmatpush1.msra.mxu0 0.0
  %587 = vmatprep.subr.mxu0 0.0
  %588 = vmatpush1.msra.mxu0 0.0
  %589 = vmatprep.subr.mxu0 0.0
  %590 = vmatpush1.msra.mxu0 0.0
  %591 = vmatprep.subr.mxu0 0.0
  %592 = vmatpush1.msra.mxu0 0.0
  %593 = vmatprep.subr.mxu0 0.0
  %594 = vmatpush1.msra.mxu0 0.0
  %595 = vmatprep.subr.mxu0 0.0
  %596 = vmatpush1.msra.mxu0 0.0
  %597 = vmatprep.subr.mxu0 0.0
  %598 = vmatpush1.msra.mxu0 0.0
  %599 = vmatprep.subr.mxu0 0.0
  %600 = vmatpush1.msra.mxu0 0.0
  %601 = vmatprep.subr.mxu0 0.0
  %602 = vmatpush1.msra.mxu0 0.0
  %603 = vmatprep.subr.mxu0 0.0
  %604 = vmatpush1.msra.mxu0 0.0
  %605 = vmatprep.mubr.f32.mxu0 0.0
  %606 = vmatmul.mubr.f32.gmra.mrb[0].mxu0 %v539
  %v607 = vpop.f32.mrb[0].mxu0
  %v608 = vadd.f32 0.0, %v607
  %v609 = vpop.f32.mrb[0].mxu0
  %610 = vdwg.mxu0
  %v611 = vadd.f32 %v536, %v608
  %v612 = vxor.u32 %v611, 2147483648
  %v613 = vmul.f32 %v612, 1.442695
  %v614 = vpow.pop %v613
  %v615 = vadd.f32 %v614, 1.0
  %v616 = vrcp.pop %v615
  %v617 = vmul.f32 1.0, %v616
  %v618 = vtanh.pop %v611
  %v619 = vld [vmem:[#allocation5] sm:$0xff]
  %621 = vrot.lane.b32.xlu0 %v619, 8
  %v622 = vpop.permute.xlu0 %621
  %v624 = vmul.f32 %v617, %v622
  %626 = vrot.lane.b32.xlu0 %v618, 112
  %v627 = vpop.permute.xlu0 %626
  %v629 = vmul.f32 %v617, %v627
  %631 = vrot.lane.b32.xlu0 %v629, 8
  %v632 = vpop.permute.xlu0 %631
  %v634 = vadd.f32 %v624, %v632
  %v635 = vtanh.pop %v634
  %637 = vrot.lane.b32.xlu0 %v635, 16
  %v638 = vpop.permute.xlu0 %637
  %v640 = vmul.f32 %v617, %v638
  %642 = vrot.lane.b32.xlu0 %v634, 120
  %v643 = vpop.permute.xlu0 %642
  %645 = vst.msk [vmem:[#allocation5] sm:$0xff] %vm179, %v643
  %647 = vrot.lane.b32.xlu0 %v640, 104
  %v648 = vpop.permute.xlu0 %647
  %650 = vst.msk [vmem:[#allocation4] sm:$0xff] %vm179, %v648
  %s651 = scalar_lea.vmem [#allocation3], 24
  %652 = vst.msk [vmem:[%s651] sm:$0xff] %vm179, %v648
  %s653 = scalar_lea.vmem [#allocation2], 32
  %v654 = vld [vmem:[%s653] sm:$0xff]
  %v655 = vld [vmem:[#allocation4] sm:$0xff]
  %v657 = vsel %vm179, %v655, 0
  %659 = vmatprep.subr.mxu0 0.0
  %660 = vmatpush1.msra.mxu0 %v182
  %661 = vmatprep.subr.mxu0 0.0
  %662 = vmatpush1.msra.mxu0 0.0
  %663 = vmatprep.subr.mxu0 0.0
  %664 = vmatpush1.msra.mxu0 0.0
  %665 = vmatprep.subr.mxu0 0.0
  %666 = vmatpush1.msra.mxu0 0.0
  %667 = vmatprep.subr.mxu0 0.0
  %668 = vmatpush1.msra.mxu0 0.0
  %669 = vmatprep.subr.mxu0 0.0
  %670 = vmatpush1.msra.mxu0 0.0
  %671 = vmatprep.subr.mxu0 0.0
  %672 = vmatpush1.msra.mxu0 0.0
  %673 = vmatprep.subr.mxu0 0.0
  %674 = vmatpush1.msra.mxu0 0.0
  %675 = vmatprep.subr.mxu0 0.0
  %676 = vmatpush1.msra.mxu0 0.0
  %677 = vmatprep.subr.mxu0 0.0
  %678 = vmatpush1.msra.mxu0 0.0
  %679 = vmatprep.subr.mxu0 0.0
  %680 = vmatpush1.msra.mxu0 0.0
  %681 = vmatprep.subr.mxu0 0.0
  %682 = vmatpush1.msra.mxu0 0.0
  %683 = vmatprep.subr.mxu0 0.0
  %684 = vmatpush1.msra.mxu0 0.0
  %685 = vmatprep.subr.mxu0 0.0
  %686 = vmatpush1.msra.mxu0 0.0
  %687 = vmatprep.subr.mxu0 0.0
  %688 = vmatpush1.msra.mxu0 0.0
  %689 = vmatprep.subr.mxu0 0.0
  %690 = vmatpush1.msra.mxu0 0.0
  %691 = vmatprep.subr.mxu0 0.0
  %692 = vmatpush1.msra.mxu0 0.0
  %693 = vmatprep.subr.mxu0 0.0
  %694 = vmatpush1.msra.mxu0 0.0
  %695 = vmatprep.subr.mxu0 0.0
  %696 = vmatpush1.msra.mxu0 0.0
  %697 = vmatprep.subr.mxu0 0.0
  %698 = vmatpush1.msra.mxu0 0.0
  %699 = vmatprep.subr.mxu0 0.0
  %700 = vmatpush1.msra.mxu0 0.0
  %701 = vmatprep.subr.mxu0 0.0
  %702 = vmatpush1.msra.mxu0 0.0
  %703 = vmatprep.subr.mxu0 0.0
  %704 = vmatpush1.msra.mxu0 0.0
  %705 = vmatprep.subr.mxu0 0.0
  %706 = vmatpush1.msra.mxu0 0.0
  %707 = vmatprep.subr.mxu0 0.0
  %708 = vmatpush1.msra.mxu0 0.0
  %709 = vmatprep.subr.mxu0 0.0
  %710 = vmatpush1.msra.mxu0 0.0
  %711 = vmatprep.subr.mxu0 0.0
  %712 = vmatpush1.msra.mxu0 0.0
  %713 = vmatprep.subr.mxu0 0.0
  %714 = vmatpush1.msra.mxu0 0.0
  %715 = vmatprep.subr.mxu0 0.0
  %716 = vmatpush1.msra.mxu0 0.0
  %717 = vmatprep.subr.mxu0 0.0
  %718 = vmatpush1.msra.mxu0 0.0
  %719 = vmatprep.subr.mxu0 0.0
  %720 = vmatpush1.msra.mxu0 0.0
  %721 = vmatprep.subr.mxu0 0.0
  %722 = vmatpush1.msra.mxu0 0.0
  %723 = vmatprep.mubr.f32.mxu0 0.0
  %724 = vmatmul.mubr.f32.gmra.mrb[0].mxu0 %v657
  %v725 = vpop.f32.mrb[0].mxu0
  %v726 = vadd.f32 0.0, %v725
  %v727 = vpop.f32.mrb[0].mxu0
  %728 = vdwg.mxu0
  %v729 = vadd.f32 %v654, %v726
  %v730 = vxor.u32 %v729, 2147483648
  %v731 = vmul.f32 %v730, 1.442695
  %v732 = vpow.pop %v731
  %v733 = vadd.f32 %v732, 1.0
  %v734 = vrcp.pop %v733
  %v735 = vmul.f32 1.0, %v734
  %v736 = vtanh.pop %v729
  %v737 = vld [vmem:[#allocation5] sm:$0xff]
  %739 = vrot.lane.b32.xlu0 %v737, 8
  %v740 = vpop.permute.xlu0 %739
  %v742 = vmul.f32 %v735, %v740
  %744 = vrot.lane.b32.xlu0 %v736, 112
  %v745 = vpop.permute.xlu0 %744
  %v747 = vmul.f32 %v735, %v745
  %749 = vrot.lane.b32.xlu0 %v747, 8
  %v750 = vpop.permute.xlu0 %749
  %v752 = vadd.f32 %v742, %v750
  %v753 = vtanh.pop %v752
  %755 = vrot.lane.b32.xlu0 %v753, 16
  %v756 = vpop.permute.xlu0 %755
  %v758 = vmul.f32 %v735, %v756
  %760 = vrot.lane.b32.xlu0 %v752, 120
  %v761 = vpop.permute.xlu0 %760
  %763 = vst.msk [vmem:[#allocation5] sm:$0xff] %vm179, %v761
  %765 = vrot.lane.b32.xlu0 %v758, 104
  %v766 = vpop.permute.xlu0 %765
  %768 = vst.msk [vmem:[#allocation4] sm:$0xff] %vm179, %v766
  %s769 = scalar_lea.vmem [#allocation3], 32
  %770 = vst.msk [vmem:[%s769] sm:$0xff] %vm179, %v766
  %s771 = scalar_lea.vmem [#allocation2], 40
  %v772 = vld [vmem:[%s771] sm:$0xff]
  %v773 = vld [vmem:[#allocation4] sm:$0xff]
  %v775 = vsel %vm179, %v773, 0
  %777 = vmatprep.subr.mxu0 0.0
  %778 = vmatpush1.msra.mxu0 %v182
  %779 = vmatprep.subr.mxu0 0.0
  %780 = vmatpush1.msra.mxu0 0.0
  %781 = vmatprep.subr.mxu0 0.0
  %782 = vmatpush1.msra.mxu0 0.0
  %783 = vmatprep.subr.mxu0 0.0
  %784 = vmatpush1.msra.mxu0 0.0
  %785 = vmatprep.subr.mxu0 0.0
  %786 = vmatpush1.msra.mxu0 0.0
  %787 = vmatprep.subr.mxu0 0.0
  %788 = vmatpush1.msra.mxu0 0.0
  %789 = vmatprep.subr.mxu0 0.0
  %790 = vmatpush1.msra.mxu0 0.0
  %791 = vmatprep.subr.mxu0 0.0
  %792 = vmatpush1.msra.mxu0 0.0
  %793 = vmatprep.subr.mxu0 0.0
  %794 = vmatpush1.msra.mxu0 0.0
  %795 = vmatprep.subr.mxu0 0.0
  %796 = vmatpush1.msra.mxu0 0.0
  %797 = vmatprep.subr.mxu0 0.0
  %798 = vmatpush1.msra.mxu0 0.0
  %799 = vmatprep.subr.mxu0 0.0
  %800 = vmatpush1.msra.mxu0 0.0
  %801 = vmatprep.subr.mxu0 0.0
  %802 = vmatpush1.msra.mxu0 0.0
  %803 = vmatprep.subr.mxu0 0.0
  %804 = vmatpush1.msra.mxu0 0.0
  %805 = vmatprep.subr.mxu0 0.0
  %806 = vmatpush1.msra.mxu0 0.0
  %807 = vmatprep.subr.mxu0 0.0
  %808 = vmatpush1.msra.mxu0 0.0
  %809 = vmatprep.subr.mxu0 0.0
  %810 = vmatpush1.msra.mxu0 0.0
  %811 = vmatprep.subr.mxu0 0.0
  %812 = vmatpush1.msra.mxu0 0.0
  %813 = vmatprep.subr.mxu0 0.0
  %814 = vmatpush1.msra.mxu0 0.0
  %815 = vmatprep.subr.mxu0 0.0
  %816 = vmatpush1.msra.mxu0 0.0
  %817 = vmatprep.subr.mxu0 0.0
  %818 = vmatpush1.msra.mxu0 0.0
  %819 = vmatprep.subr.mxu0 0.0
  %820 = vmatpush1.msra.mxu0 0.0
  %821 = vmatprep.subr.mxu0 0.0
  %822 = vmatpush1.msra.mxu0 0.0
  %823 = vmatprep.subr.mxu0 0.0
  %824 = vmatpush1.msra.mxu0 0.0
  %825 = vmatprep.subr.mxu0 0.0
  %826 = vmatpush1.msra.mxu0 0.0
  %827 = vmatprep.subr.mxu0 0.0
  %828 = vmatpush1.msra.mxu0 0.0
  %829 = vmatprep.subr.mxu0 0.0
  %830 = vmatpush1.msra.mxu0 0.0
  %831 = vmatprep.subr.mxu0 0.0
  %832 = vmatpush1.msra.mxu0 0.0
  %833 = vmatprep.subr.mxu0 0.0
  %834 = vmatpush1.msra.mxu0 0.0
  %835 = vmatprep.subr.mxu0 0.0
  %836 = vmatpush1.msra.mxu0 0.0
  %837 = vmatprep.subr.mxu0 0.0
  %838 = vmatpush1.msra.mxu0 0.0
  %839 = vmatprep.subr.mxu0 0.0
  %840 = vmatpush1.msra.mxu0 0.0
  %841 = vmatprep.mubr.f32.mxu0 0.0
  %842 = vmatmul.mubr.f32.gmra.mrb[0].mxu0 %v775
  %v843 = vpop.f32.mrb[0].mxu0
  %v844 = vadd.f32 0.0, %v843
  %v845 = vpop.f32.mrb[0].mxu0
  %846 = vdwg.mxu0
  %v847 = vadd.f32 %v772, %v844
  %v848 = vxor.u32 %v847, 2147483648
  %v849 = vmul.f32 %v848, 1.442695
  %v850 = vpow.pop %v849
  %v851 = vadd.f32 %v850, 1.0
  %v852 = vrcp.pop %v851
  %v853 = vmul.f32 1.0, %v852
  %v854 = vtanh.pop %v847
  %v855 = vld [vmem:[#allocation5] sm:$0xff]
  %857 = vrot.lane.b32.xlu0 %v855, 8
  %v858 = vpop.permute.xlu0 %857
  %v860 = vmul.f32 %v853, %v858
  %862 = vrot.lane.b32.xlu0 %v854, 112
  %v863 = vpop.permute.xlu0 %862
  %v865 = vmul.f32 %v853, %v863
  %867 = vrot.lane.b32.xlu0 %v865, 8
  %v868 = vpop.permute.xlu0 %867
  %v870 = vadd.f32 %v860, %v868
  %v871 = vtanh.pop %v870
  %873 = vrot.lane.b32.xlu0 %v871, 16
  %v874 = vpop.permute.xlu0 %873
  %v876 = vmul.f32 %v853, %v874
  %878 = vrot.lane.b32.xlu0 %v870, 120
  %v879 = vpop.permute.xlu0 %878
  %881 = vst.msk [vmem:[#allocation5] sm:$0xff] %vm179, %v879
  %883 = vrot.lane.b32.xlu0 %v876, 104
  %v884 = vpop.permute.xlu0 %883
  %886 = vst.msk [vmem:[#allocation4] sm:$0xff] %vm179, %v884
  %s887 = scalar_lea.vmem [#allocation3], 40
  %888 = vst.msk [vmem:[%s887] sm:$0xff] %vm179, %v884
  %s889 = scalar_lea.vmem [#allocation2], 48
  %v890 = vld [vmem:[%s889] sm:$0xff]
  %v891 = vld [vmem:[#allocation4] sm:$0xff]
  %v893 = vsel %vm179, %v891, 0
  %895 = vmatprep.subr.mxu0 0.0
  %896 = vmatpush1.msra.mxu0 %v182
  %897 = vmatprep.subr.mxu0 0.0
  %898 = vmatpush1.msra.mxu0 0.0
  %899 = vmatprep.subr.mxu0 0.0
  %900 = vmatpush1.msra.mxu0 0.0
  %901 = vmatprep.subr.mxu0 0.0
  %902 = vmatpush1.msra.mxu0 0.0
  %903 = vmatprep.subr.mxu0 0.0
  %904 = vmatpush1.msra.mxu0 0.0
  %905 = vmatprep.subr.mxu0 0.0
  %906 = vmatpush1.msra.mxu0 0.0
  %907 = vmatprep.subr.mxu0 0.0
  %908 = vmatpush1.msra.mxu0 0.0
  %909 = vmatprep.subr.mxu0 0.0
  %910 = vmatpush1.msra.mxu0 0.0
  %911 = vmatprep.subr.mxu0 0.0
  %912 = vmatpush1.msra.mxu0 0.0
  %913 = vmatprep.subr.mxu0 0.0
  %914 = vmatpush1.msra.mxu0 0.0
  %915 = vmatprep.subr.mxu0 0.0
  %916 = vmatpush1.msra.mxu0 0.0
  %917 = vmatprep.subr.mxu0 0.0
  %918 = vmatpush1.msra.mxu0 0.0
  %919 = vmatprep.subr.mxu0 0.0
  %920 = vmatpush1.msra.mxu0 0.0
  %921 = vmatprep.subr.mxu0 0.0
  %922 = vmatpush1.msra.mxu0 0.0
  %923 = vmatprep.subr.mxu0 0.0
  %924 = vmatpush1.msra.mxu0 0.0
  %925 = vmatprep.subr.mxu0 0.0
  %926 = vmatpush1.msra.mxu0 0.0
  %927 = vmatprep.subr.mxu0 0.0
  %928 = vmatpush1.msra.mxu0 0.0
  %929 = vmatprep.subr.mxu0 0.0
  %930 = vmatpush1.msra.mxu0 0.0
  %931 = vmatprep.subr.mxu0 0.0
  %932 = vmatpush1.msra.mxu0 0.0
  %933 = vmatprep.subr.mxu0 0.0
  %934 = vmatpush1.msra.mxu0 0.0
  %935 = vmatprep.subr.mxu0 0.0
  %936 = vmatpush1.msra.mxu0 0.0
  %937 = vmatprep.subr.mxu0 0.0
  %938 = vmatpush1.msra.mxu0 0.0
  %939 = vmatprep.subr.mxu0 0.0
  %940 = vmatpush1.msra.mxu0 0.0
  %941 = vmatprep.subr.mxu0 0.0
  %942 = vmatpush1.msra.mxu0 0.0
  %943 = vmatprep.subr.mxu0 0.0
  %944 = vmatpush1.msra.mxu0 0.0
  %945 = vmatprep.subr.mxu0 0.0
  %946 = vmatpush1.msra.mxu0 0.0
  %947 = vmatprep.subr.mxu0 0.0
  %948 = vmatpush1.msra.mxu0 0.0
  %949 = vmatprep.subr.mxu0 0.0
  %950 = vmatpush1.msra.mxu0 0.0
  %951 = vmatprep.subr.mxu0 0.0
  %952 = vmatpush1.msra.mxu0 0.0
  %953 = vmatprep.subr.mxu0 0.0
  %954 = vmatpush1.msra.mxu0 0.0
  %955 = vmatprep.subr.mxu0 0.0
  %956 = vmatpush1.msra.mxu0 0.0
  %957 = vmatprep.subr.mxu0 0.0
  %958 = vmatpush1.msra.mxu0 0.0
  %959 = vmatprep.mubr.f32.mxu0 0.0
  %960 = vmatmul.mubr.f32.gmra.mrb[0].mxu0 %v893
  %v961 = vpop.f32.mrb[0].mxu0
  %v962 = vadd.f32 0.0, %v961
  %v963 = vpop.f32.mrb[0].mxu0
  %964 = vdwg.mxu0
  %v965 = vadd.f32 %v890, %v962
  %v966 = vxor.u32 %v965, 2147483648
  %v967 = vmul.f32 %v966, 1.442695
  %v968 = vpow.pop %v967
  %v969 = vadd.f32 %v968, 1.0
  %v970 = vrcp.pop %v969
  %v971 = vmul.f32 1.0, %v970
  %v972 = vtanh.pop %v965
  %v973 = vld [vmem:[#allocation5] sm:$0xff]
  %975 = vrot.lane.b32.xlu0 %v973, 8
  %v976 = vpop.permute.xlu0 %975
  %v978 = vmul.f32 %v971, %v976
  %980 = vrot.lane.b32.xlu0 %v972, 112
  %v981 = vpop.permute.xlu0 %980
  %v983 = vmul.f32 %v971, %v981
  %985 = vrot.lane.b32.xlu0 %v983, 8
  %v986 = vpop.permute.xlu0 %985
  %v988 = vadd.f32 %v978, %v986
  %v989 = vtanh.pop %v988
  %991 = vrot.lane.b32.xlu0 %v989, 16
  %v992 = vpop.permute.xlu0 %991
  %v994 = vmul.f32 %v971, %v992
  %996 = vrot.lane.b32.xlu0 %v988, 120
  %v997 = vpop.permute.xlu0 %996
  %999 = vst.msk [vmem:[#allocation5] sm:$0xff] %vm179, %v997
  %1001 = vrot.lane.b32.xlu0 %v994, 104
  %v1002 = vpop.permute.xlu0 %1001
  %1004 = vst.msk [vmem:[#allocation4] sm:$0xff] %vm179, %v1002
  %s1005 = scalar_lea.vmem [#allocation3], 48
  %1006 = vst.msk [vmem:[%s1005] sm:$0xff] %vm179, %v1002
  %s1007 = scalar_lea.vmem [#allocation2], 56
  %v1008 = vld [vmem:[%s1007] sm:$0xff]
  %v1009 = vld [vmem:[#allocation4] sm:$0xff]
  %v1011 = vsel %vm179, %v1009, 0
  %1013 = vmatprep.subr.mxu0 0.0
  %1014 = vmatpush1.msra.mxu0 %v182
  %1015 = vmatprep.subr.mxu0 0.0
  %1016 = vmatpush1.msra.mxu0 0.0
  %1017 = vmatprep.subr.mxu0 0.0
  %1018 = vmatpush1.msra.mxu0 0.0
  %1019 = vmatprep.subr.mxu0 0.0
  %1020 = vmatpush1.msra.mxu0 0.0
  %1021 = vmatprep.subr.mxu0 0.0
  %1022 = vmatpush1.msra.mxu0 0.0
  %1023 = vmatprep.subr.mxu0 0.0
  %1024 = vmatpush1.msra.mxu0 0.0
  %1025 = vmatprep.subr.mxu0 0.0
  %1026 = vmatpush1.msra.mxu0 0.0
  %1027 = vmatprep.subr.mxu0 0.0
  %1028 = vmatpush1.msra.mxu0 0.0
  %1029 = vmatprep.subr.mxu0 0.0
  %1030 = vmatpush1.msra.mxu0 0.0
  %1031 = vmatprep.subr.mxu0 0.0
  %1032 = vmatpush1.msra.mxu0 0.0
  %1033 = vmatprep.subr.mxu0 0.0
  %1034 = vmatpush1.msra.mxu0 0.0
  %1035 = vmatprep.subr.mxu0 0.0
  %1036 = vmatpush1.msra.mxu0 0.0
  %1037 = vmatprep.subr.mxu0 0.0
  %1038 = vmatpush1.msra.mxu0 0.0
  %1039 = vmatprep.subr.mxu0 0.0
  %1040 = vmatpush1.msra.mxu0 0.0
  %1041 = vmatprep.subr.mxu0 0.0
  %1042 = vmatpush1.msra.mxu0 0.0
  %1043 = vmatprep.subr.mxu0 0.0
  %1044 = vmatpush1.msra.mxu0 0.0
  %1045 = vmatprep.subr.mxu0 0.0
  %1046 = vmatpush1.msra.mxu0 0.0
  %1047 = vmatprep.subr.mxu0 0.0
  %1048 = vmatpush1.msra.mxu0 0.0
  %1049 = vmatprep.subr.mxu0 0.0
  %1050 = vmatpush1.msra.mxu0 0.0
  %1051 = vmatprep.subr.mxu0 0.0
  %1052 = vmatpush1.msra.mxu0 0.0
  %1053 = vmatprep.subr.mxu0 0.0
  %1054 = vmatpush1.msra.mxu0 0.0
  %1055 = vmatprep.subr.mxu0 0.0
  %1056 = vmatpush1.msra.mxu0 0.0
  %1057 = vmatprep.subr.mxu0 0.0
  %1058 = vmatpush1.msra.mxu0 0.0
  %1059 = vmatprep.subr.mxu0 0.0
  %1060 = vmatpush1.msra.mxu0 0.0
  %1061 = vmatprep.subr.mxu0 0.0
  %1062 = vmatpush1.msra.mxu0 0.0
  %1063 = vmatprep.subr.mxu0 0.0
  %1064 = vmatpush1.msra.mxu0 0.0
  %1065 = vmatprep.subr.mxu0 0.0
  %1066 = vmatpush1.msra.mxu0 0.0
  %1067 = vmatprep.subr.mxu0 0.0
  %1068 = vmatpush1.msra.mxu0 0.0
  %1069 = vmatprep.subr.mxu0 0.0
  %1070 = vmatpush1.msra.mxu0 0.0
  %1071 = vmatprep.subr.mxu0 0.0
  %1072 = vmatpush1.msra.mxu0 0.0
  %1073 = vmatprep.subr.mxu0 0.0
  %1074 = vmatpush1.msra.mxu0 0.0
  %1075 = vmatprep.subr.mxu0 0.0
  %1076 = vmatpush1.msra.mxu0 0.0
  %1077 = vmatprep.mubr.f32.mxu0 0.0
  %1078 = vmatmul.mubr.f32.gmra.mrb[0].mxu0 %v1011
  %v1079 = vpop.f32.mrb[0].mxu0
  %v1080 = vadd.f32 0.0, %v1079
  %v1081 = vpop.f32.mrb[0].mxu0
  %1082 = vdwg.mxu0
  %v1083 = vadd.f32 %v1008, %v1080
  %v1084 = vxor.u32 %v1083, 2147483648
  %v1085 = vmul.f32 %v1084, 1.442695
  %v1086 = vpow.pop %v1085
  %v1087 = vadd.f32 %v1086, 1.0
  %v1088 = vrcp.pop %v1087
  %v1089 = vmul.f32 1.0, %v1088
  %v1090 = vtanh.pop %v1083
  %v1091 = vld [vmem:[#allocation5] sm:$0xff]
  %1093 = vrot.lane.b32.xlu0 %v1091, 8
  %v1094 = vpop.permute.xlu0 %1093
  %v1096 = vmul.f32 %v1089, %v1094
  %1098 = vrot.lane.b32.xlu0 %v1090, 112
  %v1099 = vpop.permute.xlu0 %1098
  %v1101 = vmul.f32 %v1089, %v1099
  %1103 = vrot.lane.b32.xlu0 %v1101, 8
  %v1104 = vpop.permute.xlu0 %1103
  %v1106 = vadd.f32 %v1096, %v1104
  %v1107 = vtanh.pop %v1106
  %1109 = vrot.lane.b32.xlu0 %v1107, 16
  %v1110 = vpop.permute.xlu0 %1109
  %v1112 = vmul.f32 %v1089, %v1110
  %1114 = vrot.lane.b32.xlu0 %v1106, 120
  %v1115 = vpop.permute.xlu0 %1114
  %1117 = vst.msk [vmem:[#allocation5] sm:$0xff] %vm179, %v1115
  %1119 = vrot.lane.b32.xlu0 %v1112, 104
  %v1120 = vpop.permute.xlu0 %1119
  %1122 = vst.msk [vmem:[#allocation4] sm:$0xff] %vm179, %v1120
  %s1123 = scalar_lea.vmem [#allocation3], 56
  %1124 = vst.msk [vmem:[%s1123] sm:$0xff] %vm179, %v1120
  %v1125 = vld [vmem:[#allocation3] sm:$0xff]
  %v1126 = vld [vmem:[#allocation3 + $0x8] sm:$0xff]
  %v1127 = vld [vmem:[#allocation3 + $0x10] sm:$0xff]
  %v1128 = vld [vmem:[#allocation3 + $0x18] sm:$0xff]
  %v1129 = vld [vmem:[#allocation3 + $0x20] sm:$0xff]
  %v1130 = vld [vmem:[#allocation3 + $0x28] sm:$0xff]
  %v1131 = vld [vmem:[#allocation3 + $0x30] sm:$0xff]
  %v1132 = vld [vmem:[#allocation3 + $0x38] sm:$0xff]
  %v1133 = vld [vmem:[%s4] sm:$0xff]
  %v1134 = vld [vmem:[%s5] sm:$0x1]
  %v1136 = vlaneseq
  %v1137 = vshrl.u32 %v1136, 7
  %v1138 = vsub.s32 0, %v1137
  %v1139 = vrot.slane %v1134, %v1138
  %v1142 = vsel %vm179, %v1125, 0
  %v1145 = vsel %vm179, %v1126, 0
  %v1148 = vsel %vm179, %v1127, 0
  %v1151 = vsel %vm179, %v1128, 0
  %v1154 = vsel %vm179, %v1129, 0
  %v1157 = vsel %vm179, %v1130, 0
  %v1160 = vsel %vm179, %v1131, 0
  %v1163 = vsel %vm179, %v1132, 0
  %1165 = vmatprep.subr.mxu0 0.0
  %1166 = vmatpush1.msra.mxu0 %v1133
  %1167 = vmatprep.subr.mxu0 0.0
  %1168 = vmatpush1.msra.mxu0 0.0
  %1169 = vmatprep.subr.mxu0 0.0
  %1170 = vmatpush1.msra.mxu0 0.0
  %1171 = vmatprep.subr.mxu0 0.0
  %1172 = vmatpush1.msra.mxu0 0.0
  %1173 = vmatprep.subr.mxu0 0.0
  %1174 = vmatpush1.msra.mxu0 0.0
  %1175 = vmatprep.subr.mxu0 0.0
  %1176 = vmatpush1.msra.mxu0 0.0
  %1177 = vmatprep.subr.mxu0 0.0
  %1178 = vmatpush1.msra.mxu0 0.0
  %1179 = vmatprep.subr.mxu0 0.0
  %1180 = vmatpush1.msra.mxu0 0.0
  %1181 = vmatprep.subr.mxu0 0.0
  %1182 = vmatpush1.msra.mxu0 0.0
  %1183 = vmatprep.subr.mxu0 0.0
  %1184 = vmatpush1.msra.mxu0 0.0
  %1185 = vmatprep.subr.mxu0 0.0
  %1186 = vmatpush1.msra.mxu0 0.0
  %1187 = vmatprep.subr.mxu0 0.0
  %1188 = vmatpush1.msra.mxu0 0.0
  %1189 = vmatprep.subr.mxu0 0.0
  %1190 = vmatpush1.msra.mxu0 0.0
  %1191 = vmatprep.subr.mxu0 0.0
  %1192 = vmatpush1.msra.mxu0 0.0
  %1193 = vmatprep.subr.mxu0 0.0
  %1194 = vmatpush1.msra.mxu0 0.0
  %1195 = vmatprep.subr.mxu0 0.0
  %1196 = vmatpush1.msra.mxu0 0.0
  %1197 = vmatprep.subr.mxu0 0.0
  %1198 = vmatpush1.msra.mxu0 0.0
  %1199 = vmatprep.subr.mxu0 0.0
  %1200 = vmatpush1.msra.mxu0 0.0
  %1201 = vmatprep.subr.mxu0 0.0
  %1202 = vmatpush1.msra.mxu0 0.0
  %1203 = vmatprep.subr.mxu0 0.0
  %1204 = vmatpush1.msra.mxu0 0.0
  %1205 = vmatprep.subr.mxu0 0.0
  %1206 = vmatpush1.msra.mxu0 0.0
  %1207 = vmatprep.subr.mxu0 0.0
  %1208 = vmatpush1.msra.mxu0 0.0
  %1209 = vmatprep.subr.mxu0 0.0
  %1210 = vmatpush1.msra.mxu0 0.0
  %1211 = vmatprep.subr.mxu0 0.0
  %1212 = vmatpush1.msra.mxu0 0.0
  %1213 = vmatprep.subr.mxu0 0.0
  %1214 = vmatpush1.msra.mxu0 0.0
  %1215 = vmatprep.subr.mxu0 0.0
  %1216 = vmatpush1.msra.mxu0 0.0
  %1217 = vmatprep.subr.mxu0 0.0
  %1218 = vmatpush1.msra.mxu0 0.0
  %1219 = vmatprep.subr.mxu0 0.0
  %1220 = vmatpush1.msra.mxu0 0.0
  %1221 = vmatprep.subr.mxu0 0.0
  %1222 = vmatpush1.msra.mxu0 0.0
  %1223 = vmatprep.subr.mxu0 0.0
  %1224 = vmatpush1.msra.mxu0 0.0
  %1225 = vmatprep.subr.mxu0 0.0
  %1226 = vmatpush1.msra.mxu0 0.0
  %1227 = vmatprep.subr.mxu0 0.0
  %1228 = vmatpush1.msra.mxu0 0.0
  %1229 = vmatprep.mubr.f32.mxu0 0.0
  %1230 = vmatmul.mubr.f32.gmra.mrb[0].mxu0 %v1142
  %v1231 = vpop.f32.mrb[0].mxu0
  %v1232 = vadd.f32 %v1139, %v1231
  %v1233 = vpop.f32.mrb[0].mxu0
  %1234 = vmatprep.mubr.f32.mxu0 0.0
  %1235 = vmatmul.mubr.f32.gmra.mrb[0].mxu0 %v1145
  %v1236 = vpop.f32.mrb[0].mxu0
  %v1237 = vadd.f32 %v1139, %v1236
  %v1238 = vpop.f32.mrb[0].mxu0
  %1239 = vmatprep.mubr.f32.mxu0 0.0
  %1240 = vmatmul.mubr.f32.gmra.mrb[0].mxu0 %v1148
  %v1241 = vpop.f32.mrb[0].mxu0
  %v1242 = vadd.f32 %v1139, %v1241
  %v1243 = vpop.f32.mrb[0].mxu0
  %1244 = vmatprep.mubr.f32.mxu0 0.0
  %1245 = vmatmul.mubr.f32.gmra.mrb[0].mxu0 %v1151
  %v1246 = vpop.f32.mrb[0].mxu0
  %v1247 = vadd.f32 %v1139, %v1246
  %v1248 = vpop.f32.mrb[0].mxu0
  %1249 = vmatprep.mubr.f32.mxu0 0.0
  %1250 = vmatmul.mubr.f32.gmra.mrb[0].mxu0 %v1154
  %v1251 = vpop.f32.mrb[0].mxu0
  %v1252 = vadd.f32 %v1139, %v1251
  %v1253 = vpop.f32.mrb[0].mxu0
  %1254 = vmatprep.mubr.f32.mxu0 0.0
  %1255 = vmatmul.mubr.f32.gmra.mrb[0].mxu0 %v1157
  %v1256 = vpop.f32.mrb[0].mxu0
  %v1257 = vadd.f32 %v1139, %v1256
  %v1258 = vpop.f32.mrb[0].mxu0
  %1259 = vmatprep.mubr.f32.mxu0 0.0
  %1260 = vmatmul.mubr.f32.gmra.mrb[0].mxu0 %v1160
  %v1261 = vpop.f32.mrb[0].mxu0
  %v1262 = vadd.f32 %v1139, %v1261
  %v1263 = vpop.f32.mrb[0].mxu0
  %1264 = vmatprep.mubr.f32.mxu0 0.0
  %1265 = vmatmul.mubr.f32.gmra.mrb[0].mxu0 %v1163
  %v1266 = vpop.f32.mrb[0].mxu0
  %v1267 = vadd.f32 %v1139, %v1266
  %v1268 = vpop.f32.mrb[0].mxu0
  %1269 = vdwg.mxu0
  %1270 = vst.msk [vmem:[%s6] sm:$0xff] %vm40, %v1232
  %1271 = vst.msk [vmem:[%s6 + $0x8] sm:$0xff] %vm40, %v1237
  %1272 = vst.msk [vmem:[%s6 + $0x10] sm:$0xff] %vm40, %v1242
  %1273 = vst.msk [vmem:[%s6 + $0x18] sm:$0xff] %vm40, %v1247
  %1274 = vst.msk [vmem:[%s6 + $0x20] sm:$0xff] %vm40, %v1252
  %1275 = vst.msk [vmem:[%s6 + $0x28] sm:$0xff] %vm40, %v1257
  %1276 = vst.msk [vmem:[%s6 + $0x30] sm:$0xff] %vm40, %v1262
  %1277 = vst.msk [vmem:[%s6 + $0x38] sm:$0xff] %vm40, %v1267
  // Predicated region
  $region26: #{dprnn_forward.5} parent=0 // pred_check
    _
  $region27: #{dprnn_forward.5} parent=0 // pred_check_branch
    %1279 = sbr.rel (0) target = $region29
  $region28: #{dprnn_forward.5} parent=0 // pred_region
    _
  $region29: #{dprnn_forward.5} parent=0 // pred_fallthru
    _
  // Predicated region
  $region30: #{dprnn_forward.5} parent=0 // pred_check
    _
  $region31: #{dprnn_forward.5} parent=0 // pred_check_branch
    %1281 = sbr.rel (0) target = $region33
  $region32: #{dprnn_forward.5} parent=0 // pred_region
    _
  $region33: #{dprnn_forward.5} parent=0 // pred_fallthru
    _

// kernel: tile.13
$region0: #{tile.13}
  #allocation0 [shape = 's32[1]{0}', space=sflag, size = 0x4, scoped, tag = 'scoped memory for tile.13']
  %s0 = inlined_call_operand.vmem [shape: f32[16], index: 0, kind: input, shape index: {}]
  %s1 = inlined_call_operand.vmem [shape: f32[2,16], index: 1, kind: output, shape index: {}]
  // Predicated region
  $region2: #{tile.13} parent=0 // pred_check
    _
  $region3: #{tile.13} parent=0 // pred_check_branch
    %3 = sbr.rel (0) target = $region5
  $region4: #{tile.13} parent=0 // pred_region
    _
  $region5: #{tile.13} parent=0 // pred_fallthru
    _
  %v4 = vld [vmem:[%s0] ss:$0 sm:$0xff]
  %5 = vst [vmem:[%s1] sm:$0x3] %v4

// kernel: tile.18
$region0: #{tile.18}
  %s0 = inlined_call_operand.vmem [shape: f32[2,16], index: 0, kind: input, shape index: {}]
  %s1 = inlined_call_operand.vmem [shape: f32[1,32], index: 1, kind: output, shape index: {}]
  $region1: #{tile.18} parent=0
    #allocation0 [shape = 'u8[4096]{0}', space=vmem, size = 0x1000, scoped, tag = 'scoped mem for output reshape']
    #allocation1 [shape = 'u8[4096]{0}', space=vmem, size = 0x1000, scoped, tag = 'scoped mem for input reshape']
    %s3 = sshllo.u32 0, 2
    %v4 = vld [vmem:[%s0] sm:%s3]
    %5 = vst [vmem:[#allocation1] sm:%s3] %v4
    %v6 = vld [vmem:[#allocation1] sm:$0x1]
    %vm7 = vcmask 130048
    %8 = vst.msk [vmem:[#allocation0] sm:$0x1] %vm7, %v6
    %s9 = scalar_lea.vmem [#allocation1], 1
    %v10 = vld [vmem:[%s9] sm:$0x1]
    %11 = vrot.lane.b32.xlu0 %v10, 16
    %v12 = vpop.permute.xlu0 %11
    %vm13 = vcmask 261248
    %14 = vst.msk [vmem:[#allocation0] sm:$0x1] %vm13, %v12
    %s16 = sshllo.u32 0, 1
    %v18 = vld [vmem:[#allocation0] sm:%s16]
    %s19 = sshllo.u32 0, 1
    %20 = vst [vmem:[%s1] sm:%s19] %v18

// kernel: dprnn_forward.9
$region0: #{dprnn_forward.9}
  #allocation0 [shape = 'u32[]', space=smem, size = 0x4, offset = 0x4, fixed_abs, tag = 'smem constant byte address 0x4 - core index']
  #allocation1 [shape = 'u32[144,128]{1,0:T(1,128)}', space=vmem, size = 0x12000, scoped, tag = 'internal scratch']
  %s0 = inlined_call_operand.vmem [shape: f32[32,32], index: 0, kind: input, shape index: {}]
  %s1 = inlined_call_operand.vmem [shape: f32[32,32], index: 1, kind: input, shape index: {}]
  %s2 = inlined_call_operand.vmem [shape: f32[1,32], index: 2, kind: input, shape index: {}]
  %s3 = inlined_call_operand.vmem [shape: f32[1,32], index: 3, kind: input, shape index: {}]
  %s4 = inlined_call_operand.vmem [shape: f32[32,32], index: 4, kind: output, shape index: {}]
  %s5 = sld [smem:[#allocation0]]
  $region26: #{dprnn_forward.9} parent=0
    _
  %s7 = ssub.s32 1, %s5
  %s8 = scalar_select 0, %s7, %s5
  // Predicated region
  $region2: #{dprnn_forward.9} parent=0 // pred_check
    _
  $region3: #{dprnn_forward.9} parent=0 // pred_check_branch
    %10 = sbr.rel (0) target = $region5
  $region4: #{dprnn_forward.9} parent=0 // pred_region
    _
  $region5: #{dprnn_forward.9} parent=0 // pred_fallthru
    _
  // Predicated region
  $region6: #{dprnn_forward.9} parent=0 // pred_check
    _
  $region7: #{dprnn_forward.9} parent=0 // pred_check_branch
    %12 = sbr.rel (0) target = $region9
  $region8: #{dprnn_forward.9} parent=0 // pred_region
    _
  $region9: #{dprnn_forward.9} parent=0 // pred_fallthru
    _
  // Predicated region
  $region10: #{dprnn_forward.9} parent=0 // pred_check
    _
  $region11: #{dprnn_forward.9} parent=0 // pred_check_branch
    %14 = sbr.rel (0) target = $region13
  $region12: #{dprnn_forward.9} parent=0 // pred_region
    _
  $region13: #{dprnn_forward.9} parent=0 // pred_fallthru
    _
  // Predicated region
  $region14: #{dprnn_forward.9} parent=0 // pred_check
    _
  $region15: #{dprnn_forward.9} parent=0 // pred_check_branch
    %16 = sbr.rel (0) target = $region17
  $region16: #{dprnn_forward.9} parent=0 // pred_region
    _
  $region17: #{dprnn_forward.9} parent=0 // pred_fallthru
    _
  %v17 = vld [vmem:[%s0] sm:$0xff]
  %v18 = vld [vmem:[%s0 + $0x8] sm:$0xff]
  %v19 = vld [vmem:[%s0 + $0x10] sm:$0xff]
  %v20 = vld [vmem:[%s0 + $0x18] sm:$0xff]
  %vm21 = vcmask 261120
  %v22 = vsel %vm21, %v17, 0.0
  %v23 = vsel %vm21, %v18, 0.0
  %v24 = vadd.f32 %v22, %v23
  %v25 = vsel %vm21, %v19, 0.0
  %v26 = vadd.f32 %v24, %v25
  %v27 = vsel %vm21, %v20, 0.0
  %v28 = vadd.f32 %v26, %v27
  %v29 = vrot.slane %v28, 4
  %v30 = vadd.f32 %v28, %v29
  %v31 = vrot.slane %v30, 2
  %v32 = vadd.f32 %v30, %v31
  %v33 = vrot.slane %v32, 1
  %v34 = vadd.f32 %v32, %v33
  %v35 = vrcp.pop 32.0
  %v36 = vmul.f32 %v34, %v35
  %v37 = vsub.f32 %v17, %v36
  %v38 = vsub.f32 %v18, %v36
  %v39 = vsub.f32 %v19, %v36
  %v40 = vsub.f32 %v20, %v36
  %v41 = vmul.f32 %v37, %v37
  %v42 = vmul.f32 %v38, %v38
  %v43 = vmul.f32 %v39, %v39
  %v44 = vmul.f32 %v40, %v40
  %v45 = vsel %vm21, %v41, 0.0
  %v46 = vsel %vm21, %v42, 0.0
  %v47 = vadd.f32 %v45, %v46
  %v48 = vsel %vm21, %v43, 0.0
  %v49 = vadd.f32 %v47, %v48
  %v50 = vsel %vm21, %v44, 0.0
  %v51 = vadd.f32 %v49, %v50
  %v52 = vrot.slane %v51, 4
  %v53 = vadd.f32 %v51, %v52
  %v54 = vrot.slane %v53, 2
  %v55 = vadd.f32 %v53, %v54
  %v56 = vrot.slane %v55, 1
  %v57 = vadd.f32 %v55, %v56
  %v58 = vmul.f32 %v57, %v35
  %v59 = vadd.f32 %v58, 1e-08
  %v60 = vrsqrt.pop %v59
  %v61 = vmul.f32 %v37, %v60
  %v62 = vmul.f32 %v38, %v60
  %v63 = vmul.f32 %v39, %v60
  %v64 = vmul.f32 %v40, %v60
  %v65 = vld [vmem:[%s1] sm:$0xff]
  %v66 = vld [vmem:[%s1 + $0x8] sm:$0xff]
  %v67 = vld [vmem:[%s1 + $0x10] sm:$0xff]
  %v68 = vld [vmem:[%s1 + $0x18] sm:$0xff]
  %v69 = vld [vmem:[%s2] sm:$0x1]
  %v71 = vlaneseq
  %v72 = vshrl.u32 %v71, 7
  %v73 = vsub.s32 0, %v72
  %v74 = vrot.slane %v69, %v73
  %v76 = vmul.f32 %v61, %v74
  %v77 = vmul.f32 %v62, %v74
  %v78 = vmul.f32 %v63, %v74
  %v79 = vmul.f32 %v64, %v74
  %v80 = vadd.f32 %v65, %v76
  %v81 = vadd.f32 %v66, %v77
  %v82 = vadd.f32 %v67, %v78
  %v83 = vadd.f32 %v68, %v79
  %v84 = vld [vmem:[%s3] sm:$0x1]
  %v86 = vlaneseq
  %v87 = vshrl.u32 %v86, 7
  %v88 = vsub.s32 0, %v87
  %v89 = vrot.slane %v84, %v88
  %v91 = vadd.f32 %v80, %v89
  %v92 = vadd.f32 %v81, %v89
  %v93 = vadd.f32 %v82, %v89
  %v94 = vadd.f32 %v83, %v89
  %95 = vst.msk [vmem:[%s4] sm:$0xff] %vm21, %v91
  %96 = vst.msk [vmem:[%s4 + $0x8] sm:$0xff] %vm21, %v92
  %97 = vst.msk [vmem:[%s4 + $0x10] sm:$0xff] %vm21, %v93
  %98 = vst.msk [vmem:[%s4 + $0x18] sm:$0xff] %vm21, %v94
  // Predicated region
  $region18: #{dprnn_forward.9} parent=0 // pred_check
    _
  $region19: #{dprnn_forward.9} parent=0 // pred_check_branch
    %100 = sbr.rel (0) target = $region21
  $region20: #{dprnn_forward.9} parent=0 // pred_region
    _
  $region21: #{dprnn_forward.9} parent=0 // pred_fallthru
    _
  // Predicated region
  $region22: #{dprnn_forward.9} parent=0 // pred_check
    _
  $region23: #{dprnn_forward.9} parent=0 // pred_check_branch
    %102 = sbr.rel (0) target = $region25
  $region24: #{dprnn_forward.9} parent=0 // pred_region
    _
  $region25: #{dprnn_forward.9} parent=0 // pred_fallthru
    _

</llo_original>
